<compile_context>
chip_gen: v5e
topology: v5e:2x2
jax: 0.10.0
libtpu: 0.0.40
codegen_flags: <defaults>
</compile_context>

<pallas_src>
import jax
import jax.numpy as jnp
from jax import lax
from jax.experimental import pallas as pl
from jax.experimental.pallas import tpu as pltpu


# ----------------------------- Pallas kernels ------------------------------

def convpool_stage_kernel(p_ref, w_ref, b_ref, o_ref):
    """conv(as im2col matmul) + bias + ReLU + 2x2/2 max-pool for one batch tile.

    p_ref : (1, 4, TM, K)  im2col rows (batch-tile x pooled-pixels), one slab
                           per pool quadrant
    w_ref : (K, C)         flattened conv weights
    b_ref : (1, C)         bias
    o_ref : (TM, C)        pooled activations
    """
    w = w_ref[...]
    y = jnp.dot(p_ref[0, 0], w, preferred_element_type=jnp.float32)
    for q in range(1, 4):                              # pool max over quadrants
        y = jnp.maximum(y, jnp.dot(p_ref[0, q], w,
                                   preferred_element_type=jnp.float32))
    # bias-add and ReLU commute with the quadrant max (both monotone).
    o_ref[...] = jnp.maximum(y + b_ref[...], 0.0)


def conv2_mlp_kernel(p_ref, w_ref, b_ref, w1_ref, b1_ref, w2_ref, b2_ref,
                     w3_ref, b3_ref, o_ref, feat_ref):
    """Fused conv2 + ReLU + maxpool + flatten + fc1 + fc2 + fc3 for one tile.

    p_ref   : (1, 4, P2*TB, K2)  conv2 im2col rows (pixel-major, batch-minor),
                                 one slab per pool quadrant
    w_ref   : (K2, C2)           conv2 weights;  b_ref: (1, C2)
    w1_ref  : (P2, C2, H1)       fc1 weights stacked per pooled pixel
                                 (PyTorch flatten order absorbed at trace time)
    b1..b3  : MLP biases / weights
    o_ref   : (TB, 10)           logits for this batch tile
    feat_ref: (P2*TB, C2)        VMEM scratch holding pooled conv2 features
    """
    w = w_ref[...]
    y = jnp.dot(p_ref[0, 0], w, preferred_element_type=jnp.float32)
    for q in range(1, 4):
        y = jnp.maximum(y, jnp.dot(p_ref[0, q], w,
                                   preferred_element_type=jnp.float32))
    feat_ref[...] = jnp.maximum(y + b_ref[...], 0.0)   # (P2*TB, C2)

    n_pix = w1_ref.shape[0]
    tb = o_ref.shape[0]
    # fc1: per-pixel accumulating matmuls; rows p*tb:(p+1)*tb hold the (TB, C2)
    # features of pooled pixel p (contiguous, sublane-aligned since TB % 8 == 0).
    acc = jnp.dot(feat_ref[0:tb, :], w1_ref[0],
                  preferred_element_type=jnp.float32)
    for p in range(1, n_pix):
        acc = acc + jnp.dot(feat_ref[p * tb:(p + 1) * tb, :], w1_ref[p],
                            preferred_element_type=jnp.float32)
    h = jnp.maximum(acc + b1_ref[...], 0.0)
    h = jnp.maximum(jnp.dot(h, w2_ref[...],
                            preferred_element_type=jnp.float32) + b2_ref[...], 0.0)
    o_ref[...] = (jnp.dot(h, w3_ref[...],
                          preferred_element_type=jnp.float32) + b3_ref[...])


# ------------------------------ call wrappers -------------------------------

def convpool_stage(patches, wflat, bias):
    """patches: (nt, 4, tile_rows, K) quadrant im2col rows -> (nt*tile_rows, C)."""
    nt, _, tile_rows, K = patches.shape
    C = wflat.shape[1]
    M = nt * tile_rows
    return pl.pallas_call(
        convpool_stage_kernel,
        out_shape=jax.ShapeDtypeStruct((M, C), jnp.float32),
        grid=(nt,),
        in_specs=[
            pl.BlockSpec((1, 4, tile_rows, K), lambda t: (t, 0, 0, 0)),
            pl.BlockSpec((K, C), lambda t: (0, 0)),
            pl.BlockSpec((1, C), lambda t: (0, 0)),
        ],
        out_specs=pl.BlockSpec((tile_rows, C), lambda t: (t, 0)),
        compiler_params=pltpu.CompilerParams(
            dimension_semantics=("parallel",),
            vmem_limit_bytes=32 * 1024 * 1024),
    )(patches, wflat, bias)


def conv2_mlp(patches, w2f, b2c, w1s, b1, w2, b2, w3, b3, tb):
    """patches: (nt, 4, P2*tb, K2) -> logits (nt*tb, 10)."""
    nt, _, R, K = patches.shape
    C2 = w2f.shape[1]
    N = nt * tb
    return pl.pallas_call(
        conv2_mlp_kernel,
        out_shape=jax.ShapeDtypeStruct((N, 10), jnp.float32),
        grid=(nt,),
        in_specs=[
            pl.BlockSpec((1, 4, R, K), lambda t: (t, 0, 0, 0)),
            pl.BlockSpec(w2f.shape, lambda t: (0, 0)),
            pl.BlockSpec(b2c.shape, lambda t: (0, 0)),
            pl.BlockSpec(w1s.shape, lambda t: (0, 0, 0)),
            pl.BlockSpec(b1.shape, lambda t: (0, 0)),
            pl.BlockSpec(w2.shape, lambda t: (0, 0)),
            pl.BlockSpec(b2.shape, lambda t: (0, 0)),
            pl.BlockSpec(w3.shape, lambda t: (0, 0)),
            pl.BlockSpec(b3.shape, lambda t: (0, 0)),
        ],
        out_specs=pl.BlockSpec((tb, 10), lambda t: (t, 0)),
        scratch_shapes=[pltpu.VMEM((R, C2), jnp.float32)],
        compiler_params=pltpu.CompilerParams(
            dimension_semantics=("parallel",),
            vmem_limit_bytes=32 * 1024 * 1024),
    )(patches, w2f, b2c, w1s, b1, w2, b2, w3, b3)


# ------------------------------- JAX glue -----------------------------------

def quadrant_im2col(x_nhwc, kh, kw, pad):
    """im2col patches grouped by 2x2 pool quadrant.

    Returns (4, N, Hp*Wp, kh*kw*C) plus pooled dims (Hp, Wp).  Quadrant d=(dy,dx)
    row hp*Wp+wp holds the patch for conv-output pixel (2*hp+dy, 2*wp+dx), so an
    elementwise max over d implements 2x2/2 max-pool (PyTorch floor mode).
    """
    N, H, W, C = x_nhwc.shape
    xp = jnp.pad(x_nhwc, ((0, 0), (pad, pad), (pad, pad), (0, 0)))
    Hout = H + 2 * pad - kh + 1
    Wout = W + 2 * pad - kw + 1
    cols = []
    for i in range(kh):
        for j in range(kw):
            cols.append(xp[:, i:i + Hout, j:j + Wout, :])       # (N, Hout, Wout, C)
    pat = jnp.stack(cols, axis=3).reshape(N, Hout, Wout, kh * kw * C)
    Hp, Wp = Hout // 2, Wout // 2
    quads = []
    for dy in range(2):
        for dx in range(2):
            quads.append(pat[:, dy:2 * Hp:2, dx:2 * Wp:2, :]
                         .reshape(N, Hp * Wp, kh * kw * C))
    return jnp.stack(quads, axis=0), Hp, Wp                      # (4, N, Hp*Wp, K)


@jax.jit
def cifar_convo_forward(x_nchw, params):
    N = x_nchw.shape[0]
    TB = 8                                   # batch tile (multiple of 8: sublane-aligned)
    assert N % TB == 0, "demo tiling requires batch % 8 == 0"
    nt = N // TB

    x = jnp.transpose(x_nchw, (0, 2, 3, 1))                      # NCHW -> NHWC

    # ---- stage 1: conv1(3->6,k5,p1) + ReLU + maxpool2 : 32x32 -> 15x15 ----
    p1, Hp1, Wp1 = quadrant_im2col(x, 5, 5, 1)                   # (4, N, 225, 75)
    P1 = Hp1 * Wp1
    K1 = p1.shape[-1]
    # (tile, quadrant, batch-in-tile x pooled-pixel, K) layout for the kernel.
    p1 = (p1.reshape(4, nt, TB, P1, K1)
            .transpose(1, 0, 2, 3, 4)
            .reshape(nt, 4, TB * P1, K1))
    w1f = params['conv1_w'].transpose(2, 3, 1, 0).reshape(K1, 6)
    y1 = convpool_stage(p1, w1f, params['conv1_b'].reshape(1, -1))   # (N*225, 6)
    x2 = y1.reshape(N, Hp1, Wp1, 6)

    # ---- stage 2 (fused): conv2(6->16) + ReLU + maxpool2 + flatten + MLP ----
    p2, Hp2, Wp2 = quadrant_im2col(x2, 5, 5, 1)                  # (4, N, 36, 150)
    P2 = Hp2 * Wp2
    K2 = p2.shape[-1]
    # reorder rows to (pixel-major, batch-minor) inside each batch tile so the
    # fused MLP can slice contiguous (TB, 16) blocks per pooled pixel.
    p2 = (p2.reshape(4, nt, TB, P2, K2)
            .transpose(1, 0, 3, 2, 4)
            .reshape(nt, 4, P2 * TB, K2))
    w2f = params['conv2_w'].transpose(2, 3, 1, 0).reshape(K2, 16)
    # fc1: PyTorch flatten order is (c, hp, wp); stack one (16, 128) slab per
    # pooled pixel p = hp*Wp2+wp so the kernel never transposes features.
    w1s = params['fc1_w'].reshape(128, 16, P2).transpose(2, 1, 0)  # (P2, 16, 128)

    return conv2_mlp(p2, w2f, params['conv2_b'].reshape(1, -1),
                     w1s, params['fc1_b'].reshape(1, -1),
                     params['fc2_w'].T, params['fc2_b'].reshape(1, -1),
                     params['fc3_w'].T, params['fc3_b'].reshape(1, -1),
                     TB)


# -------------------------- reference (plain JAX) ---------------------------

def reference_forward(x_nchw, params):
    dn = ('NCHW', 'OIHW', 'NCHW')
    prec = lax.Precision.HIGHEST
    h = lax.conv_general_dilated(x_nchw, params['conv1_w'], (1, 1), ((1, 1), (1, 1)),
                                 dimension_numbers=dn, precision=prec)
    h = jax.nn.relu(h + params['conv1_b'][None, :, None, None])
    h = lax.reduce_window(h, -jnp.inf, lax.max, (1, 1, 2, 2), (1, 1, 2, 2), 'VALID')
    h = lax.conv_general_dilated(h, params['conv2_w'], (1, 1), ((1, 1), (1, 1)),
                                 dimension_numbers=dn, precision=prec)
    h = jax.nn.relu(h + params['conv2_b'][None, :, None, None])
    h = lax.reduce_window(h, -jnp.inf, lax.max, (1, 1, 2, 2), (1, 1, 2, 2), 'VALID')
    h = h.reshape(h.shape[0], -1)
    h = jax.nn.relu(jnp.dot(h, params['fc1_w'].T, precision=prec) + params['fc1_b'])
    h = jax.nn.relu(jnp.dot(h, params['fc2_w'].T, precision=prec) + params['fc2_b'])
    return jnp.dot(h, params['fc3_w'].T, precision=prec) + params['fc3_b']


# ------------------------------ params / main -------------------------------

def init_params(key):
    ks = jax.random.split(key, 10)

    def u(k, shape, fan_in):
        bound = 1.0 / float(fan_in) ** 0.5
        return jax.random.uniform(k, shape, jnp.float32, -bound, bound)

    return {
        'conv1_w': u(ks[0], (6, 3, 5, 5), 3 * 5 * 5),
        'conv1_b': u(ks[1], (6,), 3 * 5 * 5),
        'conv2_w': u(ks[2], (16, 6, 5, 5), 6 * 5 * 5),
        'conv2_b': u(ks[3], (16,), 6 * 5 * 5),
        'fc1_w': u(ks[4], (128, 576), 576),
        'fc1_b': u(ks[5], (128,), 576),
        'fc2_w': u(ks[6], (64, 128), 128),
        'fc2_b': u(ks[7], (64,), 128),
        'fc3_w': u(ks[8], (10, 64), 64),
        'fc3_b': u(ks[9], (10,), 64),
    }


if __name__ == "__main__":
    key = jax.random.PRNGKey(0)
    k_x, k_p = jax.random.split(key)
    # batch = 16 -> 2 parallel batch tiles of 8 (keeps both v7x TensorCores busy).
    x = jax.random.normal(k_x, (16, 3, 32, 32), dtype=jnp.float32)
    params = init_params(k_p)

    out = jax.block_until_ready(cifar_convo_forward(x, params))
    assert out.shape == (16, 10), out.shape

    ref = reference_forward(x, params)
    # Kernels use default (single bf16-pass) MXU precision with f32 accumulation,
    # so the tolerance vs the exact-f32 reference is relaxed accordingly.
    err = float(jnp.max(jnp.abs(out - ref)))
    assert jnp.allclose(out, ref, rtol=2e-2, atol=2e-2), f"max abs err {err}"

    print("KERNEL_OK")
</pallas_src>

<mosaic_0001>
module attributes {stable_mosaic.version = 11 : i64} {
  func.func @convpool_stage_kernel(%arg0: i32, %arg1: memref<1x4x1800x75xf32, #tpu.memory_space<vmem>>, %arg2: memref<75x6xf32, #tpu.memory_space<vmem>>, %arg3: memref<1x6xf32, #tpu.memory_space<vmem>>, %arg4: memref<1800x6xf32, #tpu.memory_space<vmem>>) attributes {dimension_semantics = [#tpu.dimension_semantics<parallel>], iteration_bounds = array<i64: 2>, scalar_prefetch = 0 : i64, scratch_operands = 0 : i64, tpu.core_type = #tpu.core_type<tc>, window_params = [{transform_indices = @transform_0, window_bounds = array<i64: 1, 4, 1800, 75>}, {pipeline_mode = #tpu.pipeline_mode<synchronous>, transform_indices = @transform_1, window_bounds = array<i64: 75, 6>}, {pipeline_mode = #tpu.pipeline_mode<synchronous>, transform_indices = @transform_2, window_bounds = array<i64: 1, 6>}, {transform_indices = @transform_3, window_bounds = array<i64: 1800, 6>}]} {
    %c0 = arith.constant 0 : index
    %c0_0 = arith.constant 0 : index
    %0 = vector.load %arg2[%c0, %c0_0] : memref<75x6xf32, #tpu.memory_space<vmem>>, vector<75x6xf32>
    %c0_1 = arith.constant 0 : index
    %c0_2 = arith.constant 0 : index
    %c0_3 = arith.constant 0 : index
    %c0_4 = arith.constant 0 : index
    %1 = vector.load %arg1[%c0_1, %c0_2, %c0_3, %c0_4] : memref<1x4x1800x75xf32, #tpu.memory_space<vmem>>, vector<1x1x1800x75xf32>
    %2 = vector.shape_cast %1 : vector<1x1x1800x75xf32> to vector<1800x75xf32>
    %cst = arith.constant dense<0.000000e+00> : vector<1800x6xf32>
    %3 = tpu.matmul %2, %0, %cst {dimension_numbers = #tpu.dot_dimension_numbers<[1], [0], [0], [1], [0, 0, 1, 1], [], []>} : vector<1800x75xf32>, vector<75x6xf32>, vector<1800x6xf32> -> vector<1800x6xf32>
    %c0_5 = arith.constant 0 : index
    %c1 = arith.constant 1 : index
    %c0_6 = arith.constant 0 : index
    %c0_7 = arith.constant 0 : index
    %4 = vector.load %arg1[%c0_5, %c1, %c0_6, %c0_7] : memref<1x4x1800x75xf32, #tpu.memory_space<vmem>>, vector<1x1x1800x75xf32>
    %5 = vector.shape_cast %4 : vector<1x1x1800x75xf32> to vector<1800x75xf32>
    %cst_8 = arith.constant dense<0.000000e+00> : vector<1800x6xf32>
    %6 = tpu.matmul %5, %0, %cst_8 {dimension_numbers = #tpu.dot_dimension_numbers<[1], [0], [0], [1], [0, 0, 1, 1], [], []>} : vector<1800x75xf32>, vector<75x6xf32>, vector<1800x6xf32> -> vector<1800x6xf32>
    %7 = arith.maximumf %3, %6 : vector<1800x6xf32>
    %c0_9 = arith.constant 0 : index
    %c2 = arith.constant 2 : index
    %c0_10 = arith.constant 0 : index
    %c0_11 = arith.constant 0 : index
    %8 = vector.load %arg1[%c0_9, %c2, %c0_10, %c0_11] : memref<1x4x1800x75xf32, #tpu.memory_space<vmem>>, vector<1x1x1800x75xf32>
    %9 = vector.shape_cast %8 : vector<1x1x1800x75xf32> to vector<1800x75xf32>
    %cst_12 = arith.constant dense<0.000000e+00> : vector<1800x6xf32>
    %10 = tpu.matmul %9, %0, %cst_12 {dimension_numbers = #tpu.dot_dimension_numbers<[1], [0], [0], [1], [0, 0, 1, 1], [], []>} : vector<1800x75xf32>, vector<75x6xf32>, vector<1800x6xf32> -> vector<1800x6xf32>
    %11 = arith.maximumf %7, %10 : vector<1800x6xf32>
    %c0_13 = arith.constant 0 : index
    %c3 = arith.constant 3 : index
    %c0_14 = arith.constant 0 : index
    %c0_15 = arith.constant 0 : index
    %12 = vector.load %arg1[%c0_13, %c3, %c0_14, %c0_15] : memref<1x4x1800x75xf32, #tpu.memory_space<vmem>>, vector<1x1x1800x75xf32>
    %13 = vector.shape_cast %12 : vector<1x1x1800x75xf32> to vector<1800x75xf32>
    %cst_16 = arith.constant dense<0.000000e+00> : vector<1800x6xf32>
    %14 = tpu.matmul %13, %0, %cst_16 {dimension_numbers = #tpu.dot_dimension_numbers<[1], [0], [0], [1], [0, 0, 1, 1], [], []>} : vector<1800x75xf32>, vector<75x6xf32>, vector<1800x6xf32> -> vector<1800x6xf32>
    %15 = arith.maximumf %11, %14 : vector<1800x6xf32>
    %c0_17 = arith.constant 0 : index
    %c0_18 = arith.constant 0 : index
    %16 = vector.load %arg3[%c0_17, %c0_18] : memref<1x6xf32, #tpu.memory_space<vmem>>, vector<1x6xf32>
    %17 = vector.broadcast %16 : vector<1x6xf32> to vector<1800x6xf32>
    %18 = arith.addf %15, %17 : vector<1800x6xf32>
    %cst_19 = arith.constant 0.000000e+00 : f32
    %19 = vector.broadcast %cst_19 : f32 to vector<1800x6xf32>
    %20 = arith.maximumf %18, %19 : vector<1800x6xf32>
    %c0_20 = arith.constant 0 : index
    %c0_21 = arith.constant 0 : index
    %21 = vector.load %arg4[%c0_20, %c0_21] : memref<1800x6xf32, #tpu.memory_space<vmem>>, vector<1800x6xf32>
    tpu.vector_store %arg4[%c0_20, %c0_21], %20 {strides = array<i32>} : memref<1800x6xf32, #tpu.memory_space<vmem>>, vector<1800x6xf32>,
    return
  }
  func.func @transform_0(%arg0: i32) -> (i32, i32, i32, i32) {
    %c0_i32 = arith.constant 0 : i32
    %c0_i32_0 = arith.constant 0 : i32
    %c0_i32_1 = arith.constant 0 : i32
    %c0_i32_2 = arith.constant 0 : i32
    return %arg0, %c0_i32, %c0_i32_0, %c0_i32_1 : i32, i32, i32, i32
  }
  func.func @transform_1(%arg0: i32) -> (i32, i32) {
    %c0_i32 = arith.constant 0 : i32
    %c0_i32_0 = arith.constant 0 : i32
    %c0_i32_1 = arith.constant 0 : i32
    return %c0_i32, %c0_i32_0 : i32, i32
  }
  func.func @transform_2(%arg0: i32) -> (i32, i32) {
    %c0_i32 = arith.constant 0 : i32
    %c0_i32_0 = arith.constant 0 : i32
    %c0_i32_1 = arith.constant 0 : i32
    return %c0_i32, %c0_i32_0 : i32, i32
  }
  func.func @transform_3(%arg0: i32) -> (i32, i32) {
    %c0_i32 = arith.constant 0 : i32
    %c0_i32_0 = arith.constant 0 : i32
    return %arg0, %c0_i32 : i32, i32
  }
}

module attributes {stable_mosaic.version = 11 : i64} {
  func.func @conv2_mlp_kernel(%arg0: i32, %arg1: memref<1x4x288x150xf32, #tpu.memory_space<vmem>>, %arg2: memref<150x16xf32, #tpu.memory_space<vmem>>, %arg3: memref<1x16xf32, #tpu.memory_space<vmem>>, %arg4: memref<36x16x128xf32, #tpu.memory_space<vmem>>, %arg5: memref<1x128xf32, #tpu.memory_space<vmem>>, %arg6: memref<128x64xf32, #tpu.memory_space<vmem>>, %arg7: memref<1x64xf32, #tpu.memory_space<vmem>>, %arg8: memref<64x10xf32, #tpu.memory_space<vmem>>, %arg9: memref<1x10xf32, #tpu.memory_space<vmem>>, %arg10: memref<8x10xf32, #tpu.memory_space<vmem>>, %arg11: memref<288x16xf32, #tpu.memory_space<vmem>>) attributes {dimension_semantics = [#tpu.dimension_semantics<parallel>], iteration_bounds = array<i64: 2>, scalar_prefetch = 0 : i64, scratch_operands = 1 : i64, tpu.core_type = #tpu.core_type<tc>, window_params = [{transform_indices = @transform_0, window_bounds = array<i64: 1, 4, 288, 150>}, {pipeline_mode = #tpu.pipeline_mode<synchronous>, transform_indices = @transform_1, window_bounds = array<i64: 150, 16>}, {pipeline_mode = #tpu.pipeline_mode<synchronous>, transform_indices = @transform_2, window_bounds = array<i64: 1, 16>}, {pipeline_mode = #tpu.pipeline_mode<synchronous>, transform_indices = @transform_3, window_bounds = array<i64: 36, 16, 128>}, {pipeline_mode = #tpu.pipeline_mode<synchronous>, transform_indices = @transform_4, window_bounds = array<i64: 1, 128>}, {pipeline_mode = #tpu.pipeline_mode<synchronous>, transform_indices = @transform_5, window_bounds = array<i64: 128, 64>}, {pipeline_mode = #tpu.pipeline_mode<synchronous>, transform_indices = @transform_6, window_bounds = array<i64: 1, 64>}, {pipeline_mode = #tpu.pipeline_mode<synchronous>, transform_indices = @transform_7, window_bounds = array<i64: 64, 10>}, {pipeline_mode = #tpu.pipeline_mode<synchronous>, transform_indices = @transform_8, window_bounds = array<i64: 1, 10>}, {transform_indices = @transform_9, window_bounds = array<i64: 8, 10>}]} {
    %c0 = arith.constant 0 : index
    %c0_0 = arith.constant 0 : index
    %0 = vector.load %arg2[%c0, %c0_0] : memref<150x16xf32, #tpu.memory_space<vmem>>, vector<150x16xf32>
    %c0_1 = arith.constant 0 : index
    %c0_2 = arith.constant 0 : index
    %c0_3 = arith.constant 0 : index
    %c0_4 = arith.constant 0 : index
    %1 = vector.load %arg1[%c0_1, %c0_2, %c0_3, %c0_4] : memref<1x4x288x150xf32, #tpu.memory_space<vmem>>, vector<1x1x288x150xf32>
    %2 = vector.shape_cast %1 : vector<1x1x288x150xf32> to vector<288x150xf32>
    %cst = arith.constant dense<0.000000e+00> : vector<288x16xf32>
    %3 = tpu.matmul %2, %0, %cst {dimension_numbers = #tpu.dot_dimension_numbers<[1], [0], [0], [1], [0, 0, 1, 1], [], []>} : vector<288x150xf32>, vector<150x16xf32>, vector<288x16xf32> -> vector<288x16xf32>
    %c0_5 = arith.constant 0 : index
    %c1 = arith.constant 1 : index
    %c0_6 = arith.constant 0 : index
    %c0_7 = arith.constant 0 : index
    %4 = vector.load %arg1[%c0_5, %c1, %c0_6, %c0_7] : memref<1x4x288x150xf32, #tpu.memory_space<vmem>>, vector<1x1x288x150xf32>
    %5 = vector.shape_cast %4 : vector<1x1x288x150xf32> to vector<288x150xf32>
    %cst_8 = arith.constant dense<0.000000e+00> : vector<288x16xf32>
    %6 = tpu.matmul %5, %0, %cst_8 {dimension_numbers = #tpu.dot_dimension_numbers<[1], [0], [0], [1], [0, 0, 1, 1], [], []>} : vector<288x150xf32>, vector<150x16xf32>, vector<288x16xf32> -> vector<288x16xf32>
    %7 = arith.maximumf %3, %6 : vector<288x16xf32>
    %c0_9 = arith.constant 0 : index
    %c2 = arith.constant 2 : index
    %c0_10 = arith.constant 0 : index
    %c0_11 = arith.constant 0 : index
    %8 = vector.load %arg1[%c0_9, %c2, %c0_10, %c0_11] : memref<1x4x288x150xf32, #tpu.memory_space<vmem>>, vector<1x1x288x150xf32>
    %9 = vector.shape_cast %8 : vector<1x1x288x150xf32> to vector<288x150xf32>
    %cst_12 = arith.constant dense<0.000000e+00> : vector<288x16xf32>
    %10 = tpu.matmul %9, %0, %cst_12 {dimension_numbers = #tpu.dot_dimension_numbers<[1], [0], [0], [1], [0, 0, 1, 1], [], []>} : vector<288x150xf32>, vector<150x16xf32>, vector<288x16xf32> -> vector<288x16xf32>
    %11 = arith.maximumf %7, %10 : vector<288x16xf32>
    %c0_13 = arith.constant 0 : index
    %c3 = arith.constant 3 : index
    %c0_14 = arith.constant 0 : index
    %c0_15 = arith.constant 0 : index
    %12 = vector.load %arg1[%c0_13, %c3, %c0_14, %c0_15] : memref<1x4x288x150xf32, #tpu.memory_space<vmem>>, vector<1x1x288x150xf32>
    %13 = vector.shape_cast %12 : vector<1x1x288x150xf32> to vector<288x150xf32>
    %cst_16 = arith.constant dense<0.000000e+00> : vector<288x16xf32>
    %14 = tpu.matmul %13, %0, %cst_16 {dimension_numbers = #tpu.dot_dimension_numbers<[1], [0], [0], [1], [0, 0, 1, 1], [], []>} : vector<288x150xf32>, vector<150x16xf32>, vector<288x16xf32> -> vector<288x16xf32>
    %15 = arith.maximumf %11, %14 : vector<288x16xf32>
    %c0_17 = arith.constant 0 : index
    %c0_18 = arith.constant 0 : index
    %16 = vector.load %arg3[%c0_17, %c0_18] : memref<1x16xf32, #tpu.memory_space<vmem>>, vector<1x16xf32>
    %17 = vector.broadcast %16 : vector<1x16xf32> to vector<288x16xf32>
    %18 = arith.addf %15, %17 : vector<288x16xf32>
    %cst_19 = arith.constant 0.000000e+00 : f32
    %19 = vector.broadcast %cst_19 : f32 to vector<288x16xf32>
    %20 = arith.maximumf %18, %19 : vector<288x16xf32>
    %c0_20 = arith.constant 0 : index
    %c0_21 = arith.constant 0 : index
    %21 = vector.load %arg11[%c0_20, %c0_21] : memref<288x16xf32, #tpu.memory_space<vmem>>, vector<288x16xf32>
    tpu.vector_store %arg11[%c0_20, %c0_21], %20 {strides = array<i32>} : memref<288x16xf32, #tpu.memory_space<vmem>>, vector<288x16xf32>,
    %c0_22 = arith.constant 0 : index
    %c0_23 = arith.constant 0 : index
    %22 = vector.load %arg11[%c0_22, %c0_23] : memref<288x16xf32, #tpu.memory_space<vmem>>, vector<8x16xf32>
    %c0_24 = arith.constant 0 : index
    %c0_25 = arith.constant 0 : index
    %c0_26 = arith.constant 0 : index
    %23 = vector.load %arg4[%c0_24, %c0_25, %c0_26] : memref<36x16x128xf32, #tpu.memory_space<vmem>>, vector<1x16x128xf32>
    %24 = vector.shape_cast %23 : vector<1x16x128xf32> to vector<16x128xf32>
    %cst_27 = arith.constant dense<0.000000e+00> : vector<8x128xf32>
    %25 = tpu.matmul %22, %24, %cst_27 {dimension_numbers = #tpu.dot_dimension_numbers<[1], [0], [0], [1], [0, 0, 1, 1], [], []>} : vector<8x16xf32>, vector<16x128xf32>, vector<8x128xf32> -> vector<8x128xf32>
    %c8 = arith.constant 8 : index
    %c0_28 = arith.constant 0 : index
    %26 = vector.load %arg11[%c8, %c0_28] : memref<288x16xf32, #tpu.memory_space<vmem>>, vector<8x16xf32>
    %c1_29 = arith.constant 1 : index
    %c0_30 = arith.constant 0 : index
    %c0_31 = arith.constant 0 : index
    %27 = vector.load %arg4[%c1_29, %c0_30, %c0_31] : memref<36x16x128xf32, #tpu.memory_space<vmem>>, vector<1x16x128xf32>
    %28 = vector.shape_cast %27 : vector<1x16x128xf32> to vector<16x128xf32>
    %cst_32 = arith.constant dense<0.000000e+00> : vector<8x128xf32>
    %29 = tpu.matmul %26, %28, %cst_32 {dimension_numbers = #tpu.dot_dimension_numbers<[1], [0], [0], [1], [0, 0, 1, 1], [], []>} : vector<8x16xf32>, vector<16x128xf32>, vector<8x128xf32> -> vector<8x128xf32>
    %30 = arith.addf %25, %29 : vector<8x128xf32>
    %c16 = arith.constant 16 : index
    %c0_33 = arith.constant 0 : index
    %31 = vector.load %arg11[%c16, %c0_33] : memref<288x16xf32, #tpu.memory_space<vmem>>, vector<8x16xf32>
    %c2_34 = arith.constant 2 : index
    %c0_35 = arith.constant 0 : index
    %c0_36 = arith.constant 0 : index
    %32 = vector.load %arg4[%c2_34, %c0_35, %c0_36] : memref<36x16x128xf32, #tpu.memory_space<vmem>>, vector<1x16x128xf32>
    %33 = vector.shape_cast %32 : vector<1x16x128xf32> to vector<16x128xf32>
    %cst_37 = arith.constant dense<0.000000e+00> : vector<8x128xf32>
    %34 = tpu.matmul %31, %33, %cst_37 {dimension_numbers = #tpu.dot_dimension_numbers<[1], [0], [0], [1], [0, 0, 1, 1], [], []>} : vector<8x16xf32>, vector<16x128xf32>, vector<8x128xf32> -> vector<8x128xf32>
    %35 = arith.addf %30, %34 : vector<8x128xf32>
    %c24 = arith.constant 24 : index
    %c0_38 = arith.constant 0 : index
    %36 = vector.load %arg11[%c24, %c0_38] : memref<288x16xf32, #tpu.memory_space<vmem>>, vector<8x16xf32>
    %c3_39 = arith.constant 3 : index
    %c0_40 = arith.constant 0 : index
    %c0_41 = arith.constant 0 : index
    %37 = vector.load %arg4[%c3_39, %c0_40, %c0_41] : memref<36x16x128xf32, #tpu.memory_space<vmem>>, vector<1x16x128xf32>
    %38 = vector.shape_cast %37 : vector<1x16x128xf32> to vector<16x128xf32>
    %cst_42 = arith.constant dense<0.000000e+00> : vector<8x128xf32>
    %39 = tpu.matmul %36, %38, %cst_42 {dimension_numbers = #tpu.dot_dimension_numbers<[1], [0], [0], [1], [0, 0, 1, 1], [], []>} : vector<8x16xf32>, vector<16x128xf32>, vector<8x128xf32> -> vector<8x128xf32>
    %40 = arith.addf %35, %39 : vector<8x128xf32>
    %c32 = arith.constant 32 : index
    %c0_43 = arith.constant 0 : index
    %41 = vector.load %arg11[%c32, %c0_43] : memref<288x16xf32, #tpu.memory_space<vmem>>, vector<8x16xf32>
    %c4 = arith.constant 4 : index
    %c0_44 = arith.constant 0 : index
    %c0_45 = arith.constant 0 : index
    %42 = vector.load %arg4[%c4, %c0_44, %c0_45] : memref<36x16x128xf32, #tpu.memory_space<vmem>>, vector<1x16x128xf32>
    %43 = vector.shape_cast %42 : vector<1x16x128xf32> to vector<16x128xf32>
    %cst_46 = arith.constant dense<0.000000e+00> : vector<8x128xf32>
    %44 = tpu.matmul %41, %43, %cst_46 {dimension_numbers = #tpu.dot_dimension_numbers<[1], [0], [0], [1], [0, 0, 1, 1], [], []>} : vector<8x16xf32>, vector<16x128xf32>, vector<8x128xf32> -> vector<8x128xf32>
    %45 = arith.addf %40, %44 : vector<8x128xf32>
    %c40 = arith.constant 40 : index
    %c0_47 = arith.constant 0 : index
    %46 = vector.load %arg11[%c40, %c0_47] : memref<288x16xf32, #tpu.memory_space<vmem>>, vector<8x16xf32>
    %c5 = arith.constant 5 : index
    %c0_48 = arith.constant 0 : index
    %c0_49 = arith.constant 0 : index
    %47 = vector.load %arg4[%c5, %c0_48, %c0_49] : memref<36x16x128xf32, #tpu.memory_space<vmem>>, vector<1x16x128xf32>
    %48 = vector.shape_cast %47 : vector<1x16x128xf32> to vector<16x128xf32>
    %cst_50 = arith.constant dense<0.000000e+00> : vector<8x128xf32>
    %49 = tpu.matmul %46, %48, %cst_50 {dimension_numbers = #tpu.dot_dimension_numbers<[1], [0], [0], [1], [0, 0, 1, 1], [], []>} : vector<8x16xf32>, vector<16x128xf32>, vector<8x128xf32> -> vector<8x128xf32>
    %50 = arith.addf %45, %49 : vector<8x128xf32>
    %c48 = arith.constant 48 : index
    %c0_51 = arith.constant 0 : index
    %51 = vector.load %arg11[%c48, %c0_51] : memref<288x16xf32, #tpu.memory_space<vmem>>, vector<8x16xf32>
    %c6 = arith.constant 6 : index
    %c0_52 = arith.constant 0 : index
    %c0_53 = arith.constant 0 : index
    %52 = vector.load %arg4[%c6, %c0_52, %c0_53] : memref<36x16x128xf32, #tpu.memory_space<vmem>>, vector<1x16x128xf32>
    %53 = vector.shape_cast %52 : vector<1x16x128xf32> to vector<16x128xf32>
    %cst_54 = arith.constant dense<0.000000e+00> : vector<8x128xf32>
    %54 = tpu.matmul %51, %53, %cst_54 {dimension_numbers = #tpu.dot_dimension_numbers<[1], [0], [0], [1], [0, 0, 1, 1], [], []>} : vector<8x16xf32>, vector<16x128xf32>, vector<8x128xf32> -> vector<8x128xf32>
    %55 = arith.addf %50, %54 : vector<8x128xf32>
    %c56 = arith.constant 56 : index
    %c0_55 = arith.constant 0 : index
    %56 = vector.load %arg11[%c56, %c0_55] : memref<288x16xf32, #tpu.memory_space<vmem>>, vector<8x16xf32>
    %c7 = arith.constant 7 : index
    %c0_56 = arith.constant 0 : index
    %c0_57 = arith.constant 0 : index
    %57 = vector.load %arg4[%c7, %c0_56, %c0_57] : memref<36x16x128xf32, #tpu.memory_space<vmem>>, vector<1x16x128xf32>
    %58 = vector.shape_cast %57 : vector<1x16x128xf32> to vector<16x128xf32>
    %cst_58 = arith.constant dense<0.000000e+00> : vector<8x128xf32>
    %59 = tpu.matmul %56, %58, %cst_58 {dimension_numbers = #tpu.dot_dimension_numbers<[1], [0], [0], [1], [0, 0, 1, 1], [], []>} : vector<8x16xf32>, vector<16x128xf32>, vector<8x128xf32> -> vector<8x128xf32>
    %60 = arith.addf %55, %59 : vector<8x128xf32>
    %c64 = arith.constant 64 : index
    %c0_59 = arith.constant 0 : index
    %61 = vector.load %arg11[%c64, %c0_59] : memref<288x16xf32, #tpu.memory_space<vmem>>, vector<8x16xf32>
    %c8_60 = arith.constant 8 : index
    %c0_61 = arith.constant 0 : index
    %c0_62 = arith.constant 0 : index
    %62 = vector.load %arg4[%c8_60, %c0_61, %c0_62] : memref<36x16x128xf32, #tpu.memory_space<vmem>>, vector<1x16x128xf32>
    %63 = vector.shape_cast %62 : vector<1x16x128xf32> to vector<16x128xf32>
    %cst_63 = arith.constant dense<0.000000e+00> : vector<8x128xf32>
    %64 = tpu.matmul %61, %63, %cst_63 {dimension_numbers = #tpu.dot_dimension_numbers<[1], [0], [0], [1], [0, 0, 1, 1], [], []>} : vector<8x16xf32>, vector<16x128xf32>, vector<8x128xf32> -> vector<8x128xf32>
    %65 = arith.addf %60, %64 : vector<8x128xf32>
    %c72 = arith.constant 72 : index
    %c0_64 = arith.constant 0 : index
    %66 = vector.load %arg11[%c72, %c0_64] : memref<288x16xf32, #tpu.memory_space<vmem>>, vector<8x16xf32>
    %c9 = arith.constant 9 : index
    %c0_65 = arith.constant 0 : index
    %c0_66 = arith.constant 0 : index
    %67 = vector.load %arg4[%c9, %c0_65, %c0_66] : memref<36x16x128xf32, #tpu.memory_space<vmem>>, vector<1x16x128xf32>
    %68 = vector.shape_cast %67 : vector<1x16x128xf32> to vector<16x128xf32>
    %cst_67 = arith.constant dense<0.000000e+00> : vector<8x128xf32>
    %69 = tpu.matmul %66, %68, %cst_67 {dimension_numbers = #tpu.dot_dimension_numbers<[1], [0], [0], [1], [0, 0, 1, 1], [], []>} : vector<8x16xf32>, vector<16x128xf32>, vector<8x128xf32> -> vector<8x128xf32>
    %70 = arith.addf %65, %69 : vector<8x128xf32>
    %c80 = arith.constant 80 : index
    %c0_68 = arith.constant 0 : index
    %71 = vector.load %arg11[%c80, %c0_68] : memref<288x16xf32, #tpu.memory_space<vmem>>, vector<8x16xf32>
    %c10 = arith.constant 10 : index
    %c0_69 = arith.constant 0 : index
    %c0_70 = arith.constant 0 : index
    %72 = vector.load %arg4[%c10, %c0_69, %c0_70] : memref<36x16x128xf32, #tpu.memory_space<vmem>>, vector<1x16x128xf32>
    %73 = vector.shape_cast %72 : vector<1x16x128xf32> to vector<16x128xf32>
    %cst_71 = arith.constant dense<0.000000e+00> : vector<8x128xf32>
    %74 = tpu.matmul %71, %73, %cst_71 {dimension_numbers = #tpu.dot_dimension_numbers<[1], [0], [0], [1], [0, 0, 1, 1], [], []>} : vector<8x16xf32>, vector<16x128xf32>, vector<8x128xf32> -> vector<8x128xf32>
    %75 = arith.addf %70, %74 : vector<8x128xf32>
    %c88 = arith.constant 88 : index
    %c0_72 = arith.constant 0 : index
    %76 = vector.load %arg11[%c88, %c0_72] : memref<288x16xf32, #tpu.memory_space<vmem>>, vector<8x16xf32>
    %c11 = arith.constant 11 : index
    %c0_73 = arith.constant 0 : index
    %c0_74 = arith.constant 0 : index
    %77 = vector.load %arg4[%c11, %c0_73, %c0_74] : memref<36x16x128xf32, #tpu.memory_space<vmem>>, vector<1x16x128xf32>
    %78 = vector.shape_cast %77 : vector<1x16x128xf32> to vector<16x128xf32>
    %cst_75 = arith.constant dense<0.000000e+00> : vector<8x128xf32>
    %79 = tpu.matmul %76, %78, %cst_75 {dimension_numbers = #tpu.dot_dimension_numbers<[1], [0], [0], [1], [0, 0, 1, 1], [], []>} : vector<8x16xf32>, vector<16x128xf32>, vector<8x128xf32> -> vector<8x128xf32>
    %80 = arith.addf %75, %79 : vector<8x128xf32>
    %c96 = arith.constant 96 : index
    %c0_76 = arith.constant 0 : index
    %81 = vector.load %arg11[%c96, %c0_76] : memref<288x16xf32, #tpu.memory_space<vmem>>, vector<8x16xf32>
    %c12 = arith.constant 12 : index
    %c0_77 = arith.constant 0 : index
    %c0_78 = arith.constant 0 : index
    %82 = vector.load %arg4[%c12, %c0_77, %c0_78] : memref<36x16x128xf32, #tpu.memory_space<vmem>>, vector<1x16x128xf32>
    %83 = vector.shape_cast %82 : vector<1x16x128xf32> to vector<16x128xf32>
    %cst_79 = arith.constant dense<0.000000e+00> : vector<8x128xf32>
    %84 = tpu.matmul %81, %83, %cst_79 {dimension_numbers = #tpu.dot_dimension_numbers<[1], [0], [0], [1], [0, 0, 1, 1], [], []>} : vector<8x16xf32>, vector<16x128xf32>, vector<8x128xf32> -> vector<8x128xf32>
    %85 = arith.addf %80, %84 : vector<8x128xf32>
    %c104 = arith.constant 104 : index
    %c0_80 = arith.constant 0 : index
    %86 = vector.load %arg11[%c104, %c0_80] : memref<288x16xf32, #tpu.memory_space<vmem>>, vector<8x16xf32>
    %c13 = arith.constant 13 : index
    %c0_81 = arith.constant 0 : index
    %c0_82 = arith.constant 0 : index
    %87 = vector.load %arg4[%c13, %c0_81, %c0_82] : memref<36x16x128xf32, #tpu.memory_space<vmem>>, vector<1x16x128xf32>
    %88 = vector.shape_cast %87 : vector<1x16x128xf32> to vector<16x128xf32>
    %cst_83 = arith.constant dense<0.000000e+00> : vector<8x128xf32>
    %89 = tpu.matmul %86, %88, %cst_83 {dimension_numbers = #tpu.dot_dimension_numbers<[1], [0], [0], [1], [0, 0, 1, 1], [], []>} : vector<8x16xf32>, vector<16x128xf32>, vector<8x128xf32> -> vector<8x128xf32>
    %90 = arith.addf %85, %89 : vector<8x128xf32>
    %c112 = arith.constant 112 : index
    %c0_84 = arith.constant 0 : index
    %91 = vector.load %arg11[%c112, %c0_84] : memref<288x16xf32, #tpu.memory_space<vmem>>, vector<8x16xf32>
    %c14 = arith.constant 14 : index
    %c0_85 = arith.constant 0 : index
    %c0_86 = arith.constant 0 : index
    %92 = vector.load %arg4[%c14, %c0_85, %c0_86] : memref<36x16x128xf32, #tpu.memory_space<vmem>>, vector<1x16x128xf32>
    %93 = vector.shape_cast %92 : vector<1x16x128xf32> to vector<16x128xf32>
    %cst_87 = arith.constant dense<0.000000e+00> : vector<8x128xf32>
    %94 = tpu.matmul %91, %93, %cst_87 {dimension_numbers = #tpu.dot_dimension_numbers<[1], [0], [0], [1], [0, 0, 1, 1], [], []>} : vector<8x16xf32>, vector<16x128xf32>, vector<8x128xf32> -> vector<8x128xf32>
    %95 = arith.addf %90, %94 : vector<8x128xf32>
    %c120 = arith.constant 120 : index
    %c0_88 = arith.constant 0 : index
    %96 = vector.load %arg11[%c120, %c0_88] : memref<288x16xf32, #tpu.memory_space<vmem>>, vector<8x16xf32>
    %c15 = arith.constant 15 : index
    %c0_89 = arith.constant 0 : index
    %c0_90 = arith.constant 0 : index
    %97 = vector.load %arg4[%c15, %c0_89, %c0_90] : memref<36x16x128xf32, #tpu.memory_space<vmem>>, vector<1x16x128xf32>
    %98 = vector.shape_cast %97 : vector<1x16x128xf32> to vector<16x128xf32>
    %cst_91 = arith.constant dense<0.000000e+00> : vector<8x128xf32>
    %99 = tpu.matmul %96, %98, %cst_91 {dimension_numbers = #tpu.dot_dimension_numbers<[1], [0], [0], [1], [0, 0, 1, 1], [], []>} : vector<8x16xf32>, vector<16x128xf32>, vector<8x128xf32> -> vector<8x128xf32>
    %100 = arith.addf %95, %99 : vector<8x128xf32>
    %c128 = arith.constant 128 : index
    %c0_92 = arith.constant 0 : index
    %101 = vector.load %arg11[%c128, %c0_92] : memref<288x16xf32, #tpu.memory_space<vmem>>, vector<8x16xf32>
    %c16_93 = arith.constant 16 : index
    %c0_94 = arith.constant 0 : index
    %c0_95 = arith.constant 0 : index
    %102 = vector.load %arg4[%c16_93, %c0_94, %c0_95] : memref<36x16x128xf32, #tpu.memory_space<vmem>>, vector<1x16x128xf32>
    %103 = vector.shape_cast %102 : vector<1x16x128xf32> to vector<16x128xf32>
    %cst_96 = arith.constant dense<0.000000e+00> : vector<8x128xf32>
    %104 = tpu.matmul %101, %103, %cst_96 {dimension_numbers = #tpu.dot_dimension_numbers<[1], [0], [0], [1], [0, 0, 1, 1], [], []>} : vector<8x16xf32>, vector<16x128xf32>, vector<8x128xf32> -> vector<8x128xf32>
    %105 = arith.addf %100, %104 : vector<8x128xf32>
    %c136 = arith.constant 136 : index
    %c0_97 = arith.constant 0 : index
    %106 = vector.load %arg11[%c136, %c0_97] : memref<288x16xf32, #tpu.memory_space<vmem>>, vector<8x16xf32>
    %c17 = arith.constant 17 : index
    %c0_98 = arith.constant 0 : index
    %c0_99 = arith.constant 0 : index
    %107 = vector.load %arg4[%c17, %c0_98, %c0_99] : memref<36x16x128xf32, #tpu.memory_space<vmem>>, vector<1x16x128xf32>
    %108 = vector.shape_cast %107 : vector<1x16x128xf32> to vector<16x128xf32>
    %cst_100 = arith.constant dense<0.000000e+00> : vector<8x128xf32>
    %109 = tpu.matmul %106, %108, %cst_100 {dimension_numbers = #tpu.dot_dimension_numbers<[1], [0], [0], [1], [0, 0, 1, 1], [], []>} : vector<8x16xf32>, vector<16x128xf32>, vector<8x128xf32> -> vector<8x128xf32>
    %110 = arith.addf %105, %109 : vector<8x128xf32>
    %c144 = arith.constant 144 : index
    %c0_101 = arith.constant 0 : index
    %111 = vector.load %arg11[%c144, %c0_101] : memref<288x16xf32, #tpu.memory_space<vmem>>, vector<8x16xf32>
    %c18 = arith.constant 18 : index
    %c0_102 = arith.constant 0 : index
    %c0_103 = arith.constant 0 : index
    %112 = vector.load %arg4[%c18, %c0_102, %c0_103] : memref<36x16x128xf32, #tpu.memory_space<vmem>>, vector<1x16x128xf32>
    %113 = vector.shape_cast %112 : vector<1x16x128xf32> to vector<16x128xf32>
    %cst_104 = arith.constant dense<0.000000e+00> : vector<8x128xf32>
    %114 = tpu.matmul %111, %113, %cst_104 {dimension_numbers = #tpu.dot_dimension_numbers<[1], [0], [0], [1], [0, 0, 1, 1], [], []>} : vector<8x16xf32>, vector<16x128xf32>, vector<8x128xf32> -> vector<8x128xf32>
    %115 = arith.addf %110, %114 : vector<8x128xf32>
    %c152 = arith.constant 152 : index
    %c0_105 = arith.constant 0 : index
    %116 = vector.load %arg11[%c152, %c0_105] : memref<288x16xf32, #tpu.memory_space<vmem>>, vector<8x16xf32>
    %c19 = arith.constant 19 : index
    %c0_106 = arith.constant 0 : index
    %c0_107 = arith.constant 0 : index
    %117 = vector.load %arg4[%c19, %c0_106, %c0_107] : memref<36x16x128xf32, #tpu.memory_space<vmem>>, vector<1x16x128xf32>
    %118 = vector.shape_cast %117 : vector<1x16x128xf32> to vector<16x128xf32>
    %cst_108 = arith.constant dense<0.000000e+00> : vector<8x128xf32>
    %119 = tpu.matmul %116, %118, %cst_108 {dimension_numbers = #tpu.dot_dimension_numbers<[1], [0], [0], [1], [0, 0, 1, 1], [], []>} : vector<8x16xf32>, vector<16x128xf32>, vector<8x128xf32> -> vector<8x128xf32>
    %120 = arith.addf %115, %119 : vector<8x128xf32>
    %c160 = arith.constant 160 : index
    %c0_109 = arith.constant 0 : index
    %121 = vector.load %arg11[%c160, %c0_109] : memref<288x16xf32, #tpu.memory_space<vmem>>, vector<8x16xf32>
    %c20 = arith.constant 20 : index
    %c0_110 = arith.constant 0 : index
    %c0_111 = arith.constant 0 : index
    %122 = vector.load %arg4[%c20, %c0_110, %c0_111] : memref<36x16x128xf32, #tpu.memory_space<vmem>>, vector<1x16x128xf32>
    %123 = vector.shape_cast %122 : vector<1x16x128xf32> to vector<16x128xf32>
    %cst_112 = arith.constant dense<0.000000e+00> : vector<8x128xf32>
    %124 = tpu.matmul %121, %123, %cst_112 {dimension_numbers = #tpu.dot_dimension_numbers<[1], [0], [0], [1], [0, 0, 1, 1], [], []>} : vector<8x16xf32>, vector<16x128xf32>, vector<8x128xf32> -> vector<8x128xf32>
    %125 = arith.addf %120, %124 : vector<8x128xf32>
    %c168 = arith.constant 168 : index
    %c0_113 = arith.constant 0 : index
    %126 = vector.load %arg11[%c168, %c0_113] : memref<288x16xf32, #tpu.memory_space<vmem>>, vector<8x16xf32>
    %c21 = arith.constant 21 : index
    %c0_114 = arith.constant 0 : index
    %c0_115 = arith.constant 0 : index
    %127 = vector.load %arg4[%c21, %c0_114, %c0_115] : memref<36x16x128xf32, #tpu.memory_space<vmem>>, vector<1x16x128xf32>
    %128 = vector.shape_cast %127 : vector<1x16x128xf32> to vector<16x128xf32>
    %cst_116 = arith.constant dense<0.000000e+00> : vector<8x128xf32>
    %129 = tpu.matmul %126, %128, %cst_116 {dimension_numbers = #tpu.dot_dimension_numbers<[1], [0], [0], [1], [0, 0, 1, 1], [], []>} : vector<8x16xf32>, vector<16x128xf32>, vector<8x128xf32> -> vector<8x128xf32>
    %130 = arith.addf %125, %129 : vector<8x128xf32>
    %c176 = arith.constant 176 : index
    %c0_117 = arith.constant 0 : index
    %131 = vector.load %arg11[%c176, %c0_117] : memref<288x16xf32, #tpu.memory_space<vmem>>, vector<8x16xf32>
    %c22 = arith.constant 22 : index
    %c0_118 = arith.constant 0 : index
    %c0_119 = arith.constant 0 : index
    %132 = vector.load %arg4[%c22, %c0_118, %c0_119] : memref<36x16x128xf32, #tpu.memory_space<vmem>>, vector<1x16x128xf32>
    %133 = vector.shape_cast %132 : vector<1x16x128xf32> to vector<16x128xf32>
    %cst_120 = arith.constant dense<0.000000e+00> : vector<8x128xf32>
    %134 = tpu.matmul %131, %133, %cst_120 {dimension_numbers = #tpu.dot_dimension_numbers<[1], [0], [0], [1], [0, 0, 1, 1], [], []>} : vector<8x16xf32>, vector<16x128xf32>, vector<8x128xf32> -> vector<8x128xf32>
    %135 = arith.addf %130, %134 : vector<8x128xf32>
    %c184 = arith.constant 184 : index
    %c0_121 = arith.constant 0 : index
    %136 = vector.load %arg11[%c184, %c0_121] : memref<288x16xf32, #tpu.memory_space<vmem>>, vector<8x16xf32>
    %c23 = arith.constant 23 : index
    %c0_122 = arith.constant 0 : index
    %c0_123 = arith.constant 0 : index
    %137 = vector.load %arg4[%c23, %c0_122, %c0_123] : memref<36x16x128xf32, #tpu.memory_space<vmem>>, vector<1x16x128xf32>
    %138 = vector.shape_cast %137 : vector<1x16x128xf32> to vector<16x128xf32>
    %cst_124 = arith.constant dense<0.000000e+00> : vector<8x128xf32>
    %139 = tpu.matmul %136, %138, %cst_124 {dimension_numbers = #tpu.dot_dimension_numbers<[1], [0], [0], [1], [0, 0, 1, 1], [], []>} : vector<8x16xf32>, vector<16x128xf32>, vector<8x128xf32> -> vector<8x128xf32>
    %140 = arith.addf %135, %139 : vector<8x128xf32>
    %c192 = arith.constant 192 : index
    %c0_125 = arith.constant 0 : index
    %141 = vector.load %arg11[%c192, %c0_125] : memref<288x16xf32, #tpu.memory_space<vmem>>, vector<8x16xf32>
    %c24_126 = arith.constant 24 : index
    %c0_127 = arith.constant 0 : index
    %c0_128 = arith.constant 0 : index
    %142 = vector.load %arg4[%c24_126, %c0_127, %c0_128] : memref<36x16x128xf32, #tpu.memory_space<vmem>>, vector<1x16x128xf32>
    %143 = vector.shape_cast %142 : vector<1x16x128xf32> to vector<16x128xf32>
    %cst_129 = arith.constant dense<0.000000e+00> : vector<8x128xf32>
    %144 = tpu.matmul %141, %143, %cst_129 {dimension_numbers = #tpu.dot_dimension_numbers<[1], [0], [0], [1], [0, 0, 1, 1], [], []>} : vector<8x16xf32>, vector<16x128xf32>, vector<8x128xf32> -> vector<8x128xf32>
    %145 = arith.addf %140, %144 : vector<8x128xf32>
    %c200 = arith.constant 200 : index
    %c0_130 = arith.constant 0 : index
    %146 = vector.load %arg11[%c200, %c0_130] : memref<288x16xf32, #tpu.memory_space<vmem>>, vector<8x16xf32>
    %c25 = arith.constant 25 : index
    %c0_131 = arith.constant 0 : index
    %c0_132 = arith.constant 0 : index
    %147 = vector.load %arg4[%c25, %c0_131, %c0_132] : memref<36x16x128xf32, #tpu.memory_space<vmem>>, vector<1x16x128xf32>
    %148 = vector.shape_cast %147 : vector<1x16x128xf32> to vector<16x128xf32>
    %cst_133 = arith.constant dense<0.000000e+00> : vector<8x128xf32>
    %149 = tpu.matmul %146, %148, %cst_133 {dimension_numbers = #tpu.dot_dimension_numbers<[1], [0], [0], [1], [0, 0, 1, 1], [], []>} : vector<8x16xf32>, vector<16x128xf32>, vector<8x128xf32> -> vector<8x128xf32>
    %150 = arith.addf %145, %149 : vector<8x128xf32>
    %c208 = arith.constant 208 : index
    %c0_134 = arith.constant 0 : index
    %151 = vector.load %arg11[%c208, %c0_134] : memref<288x16xf32, #tpu.memory_space<vmem>>, vector<8x16xf32>
    %c26 = arith.constant 26 : index
    %c0_135 = arith.constant 0 : index
    %c0_136 = arith.constant 0 : index
    %152 = vector.load %arg4[%c26, %c0_135, %c0_136] : memref<36x16x128xf32, #tpu.memory_space<vmem>>, vector<1x16x128xf32>
    %153 = vector.shape_cast %152 : vector<1x16x128xf32> to vector<16x128xf32>
    %cst_137 = arith.constant dense<0.000000e+00> : vector<8x128xf32>
    %154 = tpu.matmul %151, %153, %cst_137 {dimension_numbers = #tpu.dot_dimension_numbers<[1], [0], [0], [1], [0, 0, 1, 1], [], []>} : vector<8x16xf32>, vector<16x128xf32>, vector<8x128xf32> -> vector<8x128xf32>
    %155 = arith.addf %150, %154 : vector<8x128xf32>
    %c216 = arith.constant 216 : index
    %c0_138 = arith.constant 0 : index
    %156 = vector.load %arg11[%c216, %c0_138] : memref<288x16xf32, #tpu.memory_space<vmem>>, vector<8x16xf32>
    %c27 = arith.constant 27 : index
    %c0_139 = arith.constant 0 : index
    %c0_140 = arith.constant 0 : index
    %157 = vector.load %arg4[%c27, %c0_139, %c0_140] : memref<36x16x128xf32, #tpu.memory_space<vmem>>, vector<1x16x128xf32>
    %158 = vector.shape_cast %157 : vector<1x16x128xf32> to vector<16x128xf32>
    %cst_141 = arith.constant dense<0.000000e+00> : vector<8x128xf32>
    %159 = tpu.matmul %156, %158, %cst_141 {dimension_numbers = #tpu.dot_dimension_numbers<[1], [0], [0], [1], [0, 0, 1, 1], [], []>} : vector<8x16xf32>, vector<16x128xf32>, vector<8x128xf32> -> vector<8x128xf32>
    %160 = arith.addf %155, %159 : vector<8x128xf32>
    %c224 = arith.constant 224 : index
    %c0_142 = arith.constant 0 : index
    %161 = vector.load %arg11[%c224, %c0_142] : memref<288x16xf32, #tpu.memory_space<vmem>>, vector<8x16xf32>
    %c28 = arith.constant 28 : index
    %c0_143 = arith.constant 0 : index
    %c0_144 = arith.constant 0 : index
    %162 = vector.load %arg4[%c28, %c0_143, %c0_144] : memref<36x16x128xf32, #tpu.memory_space<vmem>>, vector<1x16x128xf32>
    %163 = vector.shape_cast %162 : vector<1x16x128xf32> to vector<16x128xf32>
    %cst_145 = arith.constant dense<0.000000e+00> : vector<8x128xf32>
    %164 = tpu.matmul %161, %163, %cst_145 {dimension_numbers = #tpu.dot_dimension_numbers<[1], [0], [0], [1], [0, 0, 1, 1], [], []>} : vector<8x16xf32>, vector<16x128xf32>, vector<8x128xf32> -> vector<8x128xf32>
    %165 = arith.addf %160, %164 : vector<8x128xf32>
    %c232 = arith.constant 232 : index
    %c0_146 = arith.constant 0 : index
    %166 = vector.load %arg11[%c232, %c0_146] : memref<288x16xf32, #tpu.memory_space<vmem>>, vector<8x16xf32>
    %c29 = arith.constant 29 : index
    %c0_147 = arith.constant 0 : index
    %c0_148 = arith.constant 0 : index
    %167 = vector.load %arg4[%c29, %c0_147, %c0_148] : memref<36x16x128xf32, #tpu.memory_space<vmem>>, vector<1x16x128xf32>
    %168 = vector.shape_cast %167 : vector<1x16x128xf32> to vector<16x128xf32>
    %cst_149 = arith.constant dense<0.000000e+00> : vector<8x128xf32>
    %169 = tpu.matmul %166, %168, %cst_149 {dimension_numbers = #tpu.dot_dimension_numbers<[1], [0], [0], [1], [0, 0, 1, 1], [], []>} : vector<8x16xf32>, vector<16x128xf32>, vector<8x128xf32> -> vector<8x128xf32>
    %170 = arith.addf %165, %169 : vector<8x128xf32>
    %c240 = arith.constant 240 : index
    %c0_150 = arith.constant 0 : index
    %171 = vector.load %arg11[%c240, %c0_150] : memref<288x16xf32, #tpu.memory_space<vmem>>, vector<8x16xf32>
    %c30 = arith.constant 30 : index
    %c0_151 = arith.constant 0 : index
    %c0_152 = arith.constant 0 : index
    %172 = vector.load %arg4[%c30, %c0_151, %c0_152] : memref<36x16x128xf32, #tpu.memory_space<vmem>>, vector<1x16x128xf32>
    %173 = vector.shape_cast %172 : vector<1x16x128xf32> to vector<16x128xf32>
    %cst_153 = arith.constant dense<0.000000e+00> : vector<8x128xf32>
    %174 = tpu.matmul %171, %173, %cst_153 {dimension_numbers = #tpu.dot_dimension_numbers<[1], [0], [0], [1], [0, 0, 1, 1], [], []>} : vector<8x16xf32>, vector<16x128xf32>, vector<8x128xf32> -> vector<8x128xf32>
    %175 = arith.addf %170, %174 : vector<8x128xf32>
    %c248 = arith.constant 248 : index
    %c0_154 = arith.constant 0 : index
    %176 = vector.load %arg11[%c248, %c0_154] : memref<288x16xf32, #tpu.memory_space<vmem>>, vector<8x16xf32>
    %c31 = arith.constant 31 : index
    %c0_155 = arith.constant 0 : index
    %c0_156 = arith.constant 0 : index
    %177 = vector.load %arg4[%c31, %c0_155, %c0_156] : memref<36x16x128xf32, #tpu.memory_space<vmem>>, vector<1x16x128xf32>
    %178 = vector.shape_cast %177 : vector<1x16x128xf32> to vector<16x128xf32>
    %cst_157 = arith.constant dense<0.000000e+00> : vector<8x128xf32>
    %179 = tpu.matmul %176, %178, %cst_157 {dimension_numbers = #tpu.dot_dimension_numbers<[1], [0], [0], [1], [0, 0, 1, 1], [], []>} : vector<8x16xf32>, vector<16x128xf32>, vector<8x128xf32> -> vector<8x128xf32>
    %180 = arith.addf %175, %179 : vector<8x128xf32>
    %c256 = arith.constant 256 : index
    %c0_158 = arith.constant 0 : index
    %181 = vector.load %arg11[%c256, %c0_158] : memref<288x16xf32, #tpu.memory_space<vmem>>, vector<8x16xf32>
    %c32_159 = arith.constant 32 : index
    %c0_160 = arith.constant 0 : index
    %c0_161 = arith.constant 0 : index
    %182 = vector.load %arg4[%c32_159, %c0_160, %c0_161] : memref<36x16x128xf32, #tpu.memory_space<vmem>>, vector<1x16x128xf32>
    %183 = vector.shape_cast %182 : vector<1x16x128xf32> to vector<16x128xf32>
    %cst_162 = arith.constant dense<0.000000e+00> : vector<8x128xf32>
    %184 = tpu.matmul %181, %183, %cst_162 {dimension_numbers = #tpu.dot_dimension_numbers<[1], [0], [0], [1], [0, 0, 1, 1], [], []>} : vector<8x16xf32>, vector<16x128xf32>, vector<8x128xf32> -> vector<8x128xf32>
    %185 = arith.addf %180, %184 : vector<8x128xf32>
    %c264 = arith.constant 264 : index
    %c0_163 = arith.constant 0 : index
    %186 = vector.load %arg11[%c264, %c0_163] : memref<288x16xf32, #tpu.memory_space<vmem>>, vector<8x16xf32>
    %c33 = arith.constant 33 : index
    %c0_164 = arith.constant 0 : index
    %c0_165 = arith.constant 0 : index
    %187 = vector.load %arg4[%c33, %c0_164, %c0_165] : memref<36x16x128xf32, #tpu.memory_space<vmem>>, vector<1x16x128xf32>
    %188 = vector.shape_cast %187 : vector<1x16x128xf32> to vector<16x128xf32>
    %cst_166 = arith.constant dense<0.000000e+00> : vector<8x128xf32>
    %189 = tpu.matmul %186, %188, %cst_166 {dimension_numbers = #tpu.dot_dimension_numbers<[1], [0], [0], [1], [0, 0, 1, 1], [], []>} : vector<8x16xf32>, vector<16x128xf32>, vector<8x128xf32> -> vector<8x128xf32>
    %190 = arith.addf %185, %189 : vector<8x128xf32>
    %c272 = arith.constant 272 : index
    %c0_167 = arith.constant 0 : index
    %191 = vector.load %arg11[%c272, %c0_167] : memref<288x16xf32, #tpu.memory_space<vmem>>, vector<8x16xf32>
    %c34 = arith.constant 34 : index
    %c0_168 = arith.constant 0 : index
    %c0_169 = arith.constant 0 : index
    %192 = vector.load %arg4[%c34, %c0_168, %c0_169] : memref<36x16x128xf32, #tpu.memory_space<vmem>>, vector<1x16x128xf32>
    %193 = vector.shape_cast %192 : vector<1x16x128xf32> to vector<16x128xf32>
    %cst_170 = arith.constant dense<0.000000e+00> : vector<8x128xf32>
    %194 = tpu.matmul %191, %193, %cst_170 {dimension_numbers = #tpu.dot_dimension_numbers<[1], [0], [0], [1], [0, 0, 1, 1], [], []>} : vector<8x16xf32>, vector<16x128xf32>, vector<8x128xf32> -> vector<8x128xf32>
    %195 = arith.addf %190, %194 : vector<8x128xf32>
    %c280 = arith.constant 280 : index
    %c0_171 = arith.constant 0 : index
    %196 = vector.load %arg11[%c280, %c0_171] : memref<288x16xf32, #tpu.memory_space<vmem>>, vector<8x16xf32>
    %c35 = arith.constant 35 : index
    %c0_172 = arith.constant 0 : index
    %c0_173 = arith.constant 0 : index
    %197 = vector.load %arg4[%c35, %c0_172, %c0_173] : memref<36x16x128xf32, #tpu.memory_space<vmem>>, vector<1x16x128xf32>
    %198 = vector.shape_cast %197 : vector<1x16x128xf32> to vector<16x128xf32>
    %cst_174 = arith.constant dense<0.000000e+00> : vector<8x128xf32>
    %199 = tpu.matmul %196, %198, %cst_174 {dimension_numbers = #tpu.dot_dimension_numbers<[1], [0], [0], [1], [0, 0, 1, 1], [], []>} : vector<8x16xf32>, vector<16x128xf32>, vector<8x128xf32> -> vector<8x128xf32>
    %200 = arith.addf %195, %199 : vector<8x128xf32>
    %c0_175 = arith.constant 0 : index
    %c0_176 = arith.constant 0 : index
    %201 = vector.load %arg5[%c0_175, %c0_176] : memref<1x128xf32, #tpu.memory_space<vmem>>, vector<1x128xf32>
    %202 = vector.broadcast %201 : vector<1x128xf32> to vector<8x128xf32>
    %203 = arith.addf %200, %202 : vector<8x128xf32>
    %cst_177 = arith.constant 0.000000e+00 : f32
    %204 = vector.broadcast %cst_177 : f32 to vector<8x128xf32>
    %205 = arith.maximumf %203, %204 : vector<8x128xf32>
    %c0_178 = arith.constant 0 : index
    %c0_179 = arith.constant 0 : index
    %206 = vector.load %arg6[%c0_178, %c0_179] : memref<128x64xf32, #tpu.memory_space<vmem>>, vector<128x64xf32>
    %cst_180 = arith.constant dense<0.000000e+00> : vector<8x64xf32>
    %207 = tpu.matmul %205, %206, %cst_180 {dimension_numbers = #tpu.dot_dimension_numbers<[1], [0], [0], [1], [0, 0, 1, 1], [], []>} : vector<8x128xf32>, vector<128x64xf32>, vector<8x64xf32> -> vector<8x64xf32>
    %c0_181 = arith.constant 0 : index
    %c0_182 = arith.constant 0 : index
    %208 = vector.load %arg7[%c0_181, %c0_182] : memref<1x64xf32, #tpu.memory_space<vmem>>, vector<1x64xf32>
    %209 = vector.broadcast %208 : vector<1x64xf32> to vector<8x64xf32>
    %210 = arith.addf %207, %209 : vector<8x64xf32>
    %cst_183 = arith.constant 0.000000e+00 : f32
    %211 = vector.broadcast %cst_183 : f32 to vector<8x64xf32>
    %212 = arith.maximumf %210, %211 : vector<8x64xf32>
    %c0_184 = arith.constant 0 : index
    %c0_185 = arith.constant 0 : index
    %213 = vector.load %arg8[%c0_184, %c0_185] : memref<64x10xf32, #tpu.memory_space<vmem>>, vector<64x10xf32>
    %cst_186 = arith.constant dense<0.000000e+00> : vector<8x10xf32>
    %214 = tpu.matmul %212, %213, %cst_186 {dimension_numbers = #tpu.dot_dimension_numbers<[1], [0], [0], [1], [0, 0, 1, 1], [], []>} : vector<8x64xf32>, vector<64x10xf32>, vector<8x10xf32> -> vector<8x10xf32>
    %c0_187 = arith.constant 0 : index
    %c0_188 = arith.constant 0 : index
    %215 = vector.load %arg9[%c0_187, %c0_188] : memref<1x10xf32, #tpu.memory_space<vmem>>, vector<1x10xf32>
    %216 = vector.broadcast %215 : vector<1x10xf32> to vector<8x10xf32>
    %217 = arith.addf %214, %216 : vector<8x10xf32>
    %c0_189 = arith.constant 0 : index
    %c0_190 = arith.constant 0 : index
    %218 = vector.load %arg10[%c0_189, %c0_190] : memref<8x10xf32, #tpu.memory_space<vmem>>, vector<8x10xf32>
    tpu.vector_store %arg10[%c0_189, %c0_190], %217 {strides = array<i32>} : memref<8x10xf32, #tpu.memory_space<vmem>>, vector<8x10xf32>,
    return
  }
  func.func @transform_0(%arg0: i32) -> (i32, i32, i32, i32) {
    %c0_i32 = arith.constant 0 : i32
    %c0_i32_0 = arith.constant 0 : i32
    %c0_i32_1 = arith.constant 0 : i32
    %c0_i32_2 = arith.constant 0 : i32
    return %arg0, %c0_i32, %c0_i32_0, %c0_i32_1 : i32, i32, i32, i32
  }
  func.func @transform_1(%arg0: i32) -> (i32, i32) {
    %c0_i32 = arith.constant 0 : i32
    %c0_i32_0 = arith.constant 0 : i32
    %c0_i32_1 = arith.constant 0 : i32
    return %c0_i32, %c0_i32_0 : i32, i32
  }
  func.func @transform_2(%arg0: i32) -> (i32, i32) {
    %c0_i32 = arith.constant 0 : i32
    %c0_i32_0 = arith.constant 0 : i32
    %c0_i32_1 = arith.constant 0 : i32
    return %c0_i32, %c0_i32_0 : i32, i32
  }
  func.func @transform_3(%arg0: i32) -> (i32, i32, i32) {
    %c0_i32 = arith.constant 0 : i32
    %c0_i32_0 = arith.constant 0 : i32
    %c0_i32_1 = arith.constant 0 : i32
    %c0_i32_2 = arith.constant 0 : i32
    return %c0_i32, %c0_i32_0, %c0_i32_1 : i32, i32, i32
  }
  func.func @transform_4(%arg0: i32) -> (i32, i32) {
    %c0_i32 = arith.constant 0 : i32
    %c0_i32_0 = arith.constant 0 : i32
    %c0_i32_1 = arith.constant 0 : i32
    return %c0_i32, %c0_i32_0 : i32, i32
  }
  func.func @transform_5(%arg0: i32) -> (i32, i32) {
    %c0_i32 = arith.constant 0 : i32
    %c0_i32_0 = arith.constant 0 : i32
    %c0_i32_1 = arith.constant 0 : i32
    return %c0_i32, %c0_i32_0 : i32, i32
  }
  func.func @transform_6(%arg0: i32) -> (i32, i32) {
    %c0_i32 = arith.constant 0 : i32
    %c0_i32_0 = arith.constant 0 : i32
    %c0_i32_1 = arith.constant 0 : i32
    return %c0_i32, %c0_i32_0 : i32, i32
  }
  func.func @transform_7(%arg0: i32) -> (i32, i32) {
    %c0_i32 = arith.constant 0 : i32
    %c0_i32_0 = arith.constant 0 : i32
    %c0_i32_1 = arith.constant 0 : i32
    return %c0_i32, %c0_i32_0 : i32, i32
  }
  func.func @transform_8(%arg0: i32) -> (i32, i32) {
    %c0_i32 = arith.constant 0 : i32
    %c0_i32_0 = arith.constant 0 : i32
    %c0_i32_1 = arith.constant 0 : i32
    return %c0_i32, %c0_i32_0 : i32, i32
  }
  func.func @transform_9(%arg0: i32) -> (i32, i32) {
    %c0_i32 = arith.constant 0 : i32
    %c0_i32_0 = arith.constant 0 : i32
    return %arg0, %c0_i32 : i32, i32
  }
}

</mosaic_0001>

<llo_original>
// kernel: cifar_convo_forward.2
$region0: #{cifar_convo_forward.2}
  #allocation0 [shape = 'u32[]', space=smem, size = 0x4, offset = 0x4, fixed_abs, tag = 'smem constant byte address 0x4 - core index']
  #allocation1 [shape = 'u32[72,128]{1,0:T(1,128)}', space=vmem, size = 0x9000, scoped, tag = 'internal scratch']
  %s0 = inlined_call_operand.vmem [shape: f32[2,4,1800,75], index: 0, kind: input, shape index: {}]
  %s1 = inlined_call_operand.vmem [shape: f32[75,6], index: 1, kind: input, shape index: {}]
  %s2 = inlined_call_operand.vmem [shape: f32[1,6], index: 2, kind: input, shape index: {}]
  %s3 = inlined_call_operand.vmem [shape: f32[3600,6], index: 3, kind: output, shape index: {}]
  %s4 = sld [smem:[#allocation0]]
  $region45: #{cifar_convo_forward.2} parent=0
    _
  %s6 = ssub.s32 1, %s4
  %s7 = scalar_select 0, %s6, %s4
  loop: start=0, step=1, limit=4
  $region2: #{cifar_convo_forward.2} parent=0 // loop_pre_header
    _
  $region3: #{cifar_convo_forward.2} parent=0 // loop_header
    %s9 = sphi 0, %s13
    %p10 = scmp.ge.s32.totalorder %s9, 4
    %s19 = sphi 0, %s21
    %s22 = sphi 0, %s19
    %s23 = sphi 0, %s22
    %s39 = sphi 0, %s23
    %s43 = sphi 0, %s43
    %s45 = sphi 0, %s43
    %s46 = sphi 0, %s45
    %s60 = sphi 0, %s46
    %s64 = sphi 0, %s64
    %s66 = sphi 0, %s64
    %s67 = sphi 0, %s66
    %s81 = sphi 0, %s67
    %s87 = sphi 0, %s89
    %s90 = sphi 0, %s87
    %s91 = sphi 0, %s90
    %s107 = sphi 0, %s91
  $region4: #{cifar_convo_forward.2} parent=0 // loop_header_branch
    %12 = sbr.rel (%p10) target = $region8
  $region5: #{cifar_convo_forward.2} parent=0 // loop_body
    %s14 = ssub.s32 %s9, 1
    %s15 = ssub.s32 %s9, 2
    %s16 = sadd.s32 %s9, 1
    %s17 = ssub.s32 %s9, %s16
    %p18 = scmp.eq.s32.totalorder %s17, 0
    %s20 = sadd.s32 %s19, 1
    %s21 = scalar_select %p18, %s19, %s20
    %p24 = pneg %p18
    %p25 = scmp.eq.s32.totalorder %s9, 1
    %p26 = por %p24, %p25
    %p27 = scmp.ne.s32.totalorder %s19, %s22
    %p28 = scmp.eq.s32.totalorder %s9, 0
    %p29 = por %p27, %p28
    %p30 = scmp.ne.s32.totalorder %s19, %s22
    %p31 = scmp.eq.s32.totalorder %s14, 1
    %p32 = por %p30, %p31
    %p33 = scmp.ne.s32.totalorder %s22, %s23
    %p34 = scmp.eq.s32.totalorder %s14, 0
    %p35 = por %p33, %p34
    %p36 = scmp.ne.s32.totalorder %s22, %s23
    %p37 = scmp.eq.s32.totalorder %s15, 1
    %p38 = por %p36, %p37
    %p40 = scmp.ne.s32.totalorder %s23, %s39
    %p41 = scmp.eq.s32.totalorder %s15, 0
    %p42 = por %p40, %p41
    %s44 = sadd.s32 %s43, 1
    %p47 = scmp.eq.s32.totalorder %s9, 1
    %p48 = scmp.ne.s32.totalorder %s43, %s45
    %p49 = scmp.eq.s32.totalorder %s9, 0
    %p50 = por %p48, %p49
    %p51 = scmp.ne.s32.totalorder %s43, %s45
    %p52 = scmp.eq.s32.totalorder %s14, 1
    %p53 = por %p51, %p52
    %p54 = scmp.ne.s32.totalorder %s45, %s46
    %p55 = scmp.eq.s32.totalorder %s14, 0
    %p56 = por %p54, %p55
    %p57 = scmp.ne.s32.totalorder %s45, %s46
    %p58 = scmp.eq.s32.totalorder %s15, 1
    %p59 = por %p57, %p58
    %p61 = scmp.ne.s32.totalorder %s46, %s60
    %p62 = scmp.eq.s32.totalorder %s15, 0
    %p63 = por %p61, %p62
    %s65 = sadd.s32 %s64, 1
    %p68 = scmp.eq.s32.totalorder %s9, 1
    %p69 = scmp.ne.s32.totalorder %s64, %s66
    %p70 = scmp.eq.s32.totalorder %s9, 0
    %p71 = por %p69, %p70
    %p72 = scmp.ne.s32.totalorder %s64, %s66
    %p73 = scmp.eq.s32.totalorder %s14, 1
    %p74 = por %p72, %p73
    %p75 = scmp.ne.s32.totalorder %s66, %s67
    %p76 = scmp.eq.s32.totalorder %s14, 0
    %p77 = por %p75, %p76
    %p78 = scmp.ne.s32.totalorder %s66, %s67
    %p79 = scmp.eq.s32.totalorder %s15, 1
    %p80 = por %p78, %p79
    %p82 = scmp.ne.s32.totalorder %s67, %s81
    %p83 = scmp.eq.s32.totalorder %s15, 0
    %p84 = por %p82, %p83
    %s85 = ssub.s32 %s9, %s16
    %p86 = scmp.eq.s32.totalorder %s85, 0
    %s88 = sadd.s32 %s87, 1
    %s89 = scalar_select %p86, %s87, %s88
    %p92 = pneg %p86
    %p93 = scmp.eq.s32.totalorder %s9, 1
    %p94 = por %p92, %p93
    %p95 = scmp.ne.s32.totalorder %s87, %s90
    %p96 = scmp.eq.s32.totalorder %s9, 0
    %p97 = por %p95, %p96
    %p98 = scmp.ne.s32.totalorder %s87, %s90
    %p99 = scmp.eq.s32.totalorder %s14, 1
    %p100 = por %p98, %p99
    %p101 = scmp.ne.s32.totalorder %s90, %s91
    %p102 = scmp.eq.s32.totalorder %s14, 0
    %p103 = por %p101, %p102
    %p104 = scmp.ne.s32.totalorder %s90, %s91
    %p105 = scmp.eq.s32.totalorder %s15, 1
    %p106 = por %p104, %p105
    %p108 = scmp.ne.s32.totalorder %s91, %s107
    %p109 = scmp.eq.s32.totalorder %s15, 0
    %p110 = por %p108, %p109
    %p111 = scmp.le.s32.totalorder 1, %s9
    %p112 = scmp.lt.s32.totalorder %s9, 3
    %p113 = pnand %p111, %p112
    %p114 = pneg %p113
    // Predicated region
    $region9: #{cifar_convo_forward.2} parent=5 // pred_check
      _
    $region10: #{cifar_convo_forward.2} parent=5 // pred_check_branch
      %116 = sbr.rel (%p113) target = $region12
    $region11: #{cifar_convo_forward.2} parent=5 // pred_region
      %s117 = ssub.s32 %s9, 1
      // Predicated region
      $region13: #{cifar_convo_forward.2} parent=11 // pred_check
        %p118 = pneg %p56
      $region14: #{cifar_convo_forward.2} parent=11 // pred_check_branch
        %120 = sbr.rel (%p118) target = $region16
      $region15: #{cifar_convo_forward.2} parent=11 // pred_region
        _
      $region16: #{cifar_convo_forward.2} parent=11 // pred_fallthru
        _
      // Predicated region
      $region17: #{cifar_convo_forward.2} parent=11 // pred_check
        %p121 = pneg %p77
      $region18: #{cifar_convo_forward.2} parent=11 // pred_check_branch
        %123 = sbr.rel (%p121) target = $region20
      $region19: #{cifar_convo_forward.2} parent=11 // pred_region
        _
      $region20: #{cifar_convo_forward.2} parent=11 // pred_fallthru
        _
    $region12: #{cifar_convo_forward.2} parent=5 // pred_fallthru
      _
    %p124 = scmp.lt.s32.totalorder %s9, 2
    // Predicated region
    $region21: #{cifar_convo_forward.2} parent=5 // pred_check
      %p125 = pneg %p124
    $region22: #{cifar_convo_forward.2} parent=5 // pred_check_branch
      %127 = sbr.rel (%p125) target = $region24
    $region23: #{cifar_convo_forward.2} parent=5 // pred_region
      // Predicated region
      $region25: #{cifar_convo_forward.2} parent=23 // pred_check
        %p128 = pneg %p29
      $region26: #{cifar_convo_forward.2} parent=23 // pred_check_branch
        %130 = sbr.rel (%p128) target = $region28
      $region27: #{cifar_convo_forward.2} parent=23 // pred_region
        %p131 = scmp.lt.s32.totalorder %s9, 1
        %s132 = scalar_select %p131, %s9, 1
        %s133 = smul.addr %s132, 900
        %s134 = smul.addr %s133, 8
        %s135 = scalar_lea.vmem %s0, %s134
      $region28: #{cifar_convo_forward.2} parent=23 // pred_fallthru
        _
    $region24: #{cifar_convo_forward.2} parent=5 // pred_fallthru
      _
    %p136 = scmp.le.s32.totalorder 1, %s9
    %p137 = scmp.lt.s32.totalorder %s9, 3
    %p138 = pnand %p136, %p137
    %p139 = pneg %p138
    // Predicated region
    $region29: #{cifar_convo_forward.2} parent=5 // pred_check
      _
    $region30: #{cifar_convo_forward.2} parent=5 // pred_check_branch
      %141 = sbr.rel (%p138) target = $region32
    $region31: #{cifar_convo_forward.2} parent=5 // pred_region
      %s142 = ssub.s32 %s9, 1
      %p143 = scmp.lt.s32.totalorder %s14, 1
      %s144 = scalar_select %p143, %s14, 1
      %s145 = smul.addr %s144, 900
      %s146 = smul.addr %s145, 8
      %s147 = scalar_lea.vmem %s0, %s146
      %p148 = pneg %p35
      %p149 = pneg %p32
      %p150 = pneg %p56
      %p151 = pneg %p53
      %p152 = pneg %p77
      %p153 = pneg %p74
      %p154 = pneg %p103
      %p155 = pneg %p100
      %s156 = smul.u32 225, %s14
      %p157 = scmp.lt.s32.totalorder %s156, 449
      %s158 = scalar_select %p157, %s156, 449
      %s159 = smul.addr %s158, 8
      %s160 = scalar_lea.vmem %s3, %s159
      %p161 = scmp.lt.s32.totalorder %s14, 1
      %s162 = scalar_select %p161, %s14, 1
      %s163 = smul.addr %s162, 900
      %s164 = smul.addr %s163, 8
      %s165 = scalar_lea.vmem %s0, %s164
      %s166 = smul.u32 225, %s14
      %p167 = scmp.lt.s32.totalorder %s166, 449
      %s168 = scalar_select %p167, %s166, 449
      %s169 = smul.addr %s168, 8
      %s170 = scalar_lea.vmem %s3, %s169
      %s171 = smul.u32 225, %s14
      %v172 = vld [vmem:[%s1] sm:$0xff]
      %v173 = vld [vmem:[%s1 + $0x8] sm:$0xff]
      %v174 = vld [vmem:[%s1 + $0x10] sm:$0xff]
      %v175 = vld [vmem:[%s1 + $0x18] sm:$0xff]
      %v176 = vld [vmem:[%s1 + $0x20] sm:$0xff]
      %v177 = vld [vmem:[%s1 + $0x28] sm:$0xff]
      %v178 = vld [vmem:[%s1 + $0x30] sm:$0xff]
      %v179 = vld [vmem:[%s1 + $0x38] sm:$0xff]
      %v180 = vld [vmem:[%s1 + $0x40] sm:$0xff]
      %v181 = vld [vmem:[%s1 + $0x48] sm:$0x7]
      %v182 = vld [vmem:[%s165] sm:$0xff]
      %v183 = vld [vmem:[%s165 + $0x8] sm:$0xff]
      %v184 = vld [vmem:[%s165 + $0x10] sm:$0xff]
      %v185 = vld [vmem:[%s165 + $0x18] sm:$0xff]
      %v186 = vld [vmem:[%s165 + $0x20] sm:$0xff]
      %v187 = vld [vmem:[%s165 + $0x28] sm:$0xff]
      %v188 = vld [vmem:[%s165 + $0x30] sm:$0xff]
      %v189 = vld [vmem:[%s165 + $0x38] sm:$0xff]
      %v190 = vld [vmem:[%s165 + $0x40] sm:$0xff]
      %v191 = vld [vmem:[%s165 + $0x48] sm:$0xff]
      %v192 = vld [vmem:[%s165 + $0x50] sm:$0xff]
      %v193 = vld [vmem:[%s165 + $0x58] sm:$0xff]
      %v194 = vld [vmem:[%s165 + $0x60] sm:$0xff]
      %v195 = vld [vmem:[%s165 + $0x68] sm:$0xff]
      %v196 = vld [vmem:[%s165 + $0x70] sm:$0xff]
      %v197 = vld [vmem:[%s165 + $0x78] sm:$0xff]
      %v198 = vld [vmem:[%s165 + $0x80] sm:$0xff]
      %v199 = vld [vmem:[%s165 + $0x88] sm:$0xff]
      %v200 = vld [vmem:[%s165 + $0x90] sm:$0xff]
      %v201 = vld [vmem:[%s165 + $0x98] sm:$0xff]
      %v202 = vld [vmem:[%s165 + $0xa0] sm:$0xff]
      %v203 = vld [vmem:[%s165 + $0xa8] sm:$0xff]
      %v204 = vld [vmem:[%s165 + $0xb0] sm:$0xff]
      %v205 = vld [vmem:[%s165 + $0xb8] sm:$0xff]
      %v206 = vld [vmem:[%s165 + $0xc0] sm:$0xff]
      %v207 = vld [vmem:[%s165 + $0xc8] sm:$0xff]
      %v208 = vld [vmem:[%s165 + $0xd0] sm:$0xff]
      %v209 = vld [vmem:[%s165 + $0xd8] sm:$0xff]
      %v210 = vld [vmem:[%s165 + $0xe0] sm:$0xff]
      %v211 = vld [vmem:[%s165 + $0xe8] sm:$0xff]
      %v212 = vld [vmem:[%s165 + $0xf0] sm:$0xff]
      %v213 = vld [vmem:[%s165 + $0xf8] sm:$0xff]
      %v214 = vld [vmem:[%s165 + $0x100] sm:$0xff]
      %v215 = vld [vmem:[%s165 + $0x108] sm:$0xff]
      %v216 = vld [vmem:[%s165 + $0x110] sm:$0xff]
      %v217 = vld [vmem:[%s165 + $0x118] sm:$0xff]
      %v218 = vld [vmem:[%s165 + $0x120] sm:$0xff]
      %v219 = vld [vmem:[%s165 + $0x128] sm:$0xff]
      %v220 = vld [vmem:[%s165 + $0x130] sm:$0xff]
      %v221 = vld [vmem:[%s165 + $0x138] sm:$0xff]
      %v222 = vld [vmem:[%s165 + $0x140] sm:$0xff]
      %v223 = vld [vmem:[%s165 + $0x148] sm:$0xff]
      %v224 = vld [vmem:[%s165 + $0x150] sm:$0xff]
      %v225 = vld [vmem:[%s165 + $0x158] sm:$0xff]
      %v226 = vld [vmem:[%s165 + $0x160] sm:$0xff]
      %v227 = vld [vmem:[%s165 + $0x168] sm:$0xff]
      %v228 = vld [vmem:[%s165 + $0x170] sm:$0xff]
      %v229 = vld [vmem:[%s165 + $0x178] sm:$0xff]
      %v230 = vld [vmem:[%s165 + $0x180] sm:$0xff]
      %v231 = vld [vmem:[%s165 + $0x188] sm:$0xff]
      %v232 = vld [vmem:[%s165 + $0x190] sm:$0xff]
      %v233 = vld [vmem:[%s165 + $0x198] sm:$0xff]
      %v234 = vld [vmem:[%s165 + $0x1a0] sm:$0xff]
      %v235 = vld [vmem:[%s165 + $0x1a8] sm:$0xff]
      %v236 = vld [vmem:[%s165 + $0x1b0] sm:$0xff]
      %v237 = vld [vmem:[%s165 + $0x1b8] sm:$0xff]
      %v238 = vld [vmem:[%s165 + $0x1c0] sm:$0xff]
      %v239 = vld [vmem:[%s165 + $0x1c8] sm:$0xff]
      %v240 = vld [vmem:[%s165 + $0x1d0] sm:$0xff]
      %v241 = vld [vmem:[%s165 + $0x1d8] sm:$0xff]
      %v242 = vld [vmem:[%s165 + $0x1e0] sm:$0xff]
      %v243 = vld [vmem:[%s165 + $0x1e8] sm:$0xff]
      %v244 = vld [vmem:[%s165 + $0x1f0] sm:$0xff]
      %v245 = vld [vmem:[%s165 + $0x1f8] sm:$0xff]
      %v246 = vld [vmem:[%s165 + $0x200] sm:$0xff]
      %v247 = vld [vmem:[%s165 + $0x208] sm:$0xff]
      %v248 = vld [vmem:[%s165 + $0x210] sm:$0xff]
      %v249 = vld [vmem:[%s165 + $0x218] sm:$0xff]
      %v250 = vld [vmem:[%s165 + $0x220] sm:$0xff]
      %v251 = vld [vmem:[%s165 + $0x228] sm:$0xff]
      %v252 = vld [vmem:[%s165 + $0x230] sm:$0xff]
      %v253 = vld [vmem:[%s165 + $0x238] sm:$0xff]
      %v254 = vld [vmem:[%s165 + $0x240] sm:$0xff]
      %v255 = vld [vmem:[%s165 + $0x248] sm:$0xff]
      %v256 = vld [vmem:[%s165 + $0x250] sm:$0xff]
      %v257 = vld [vmem:[%s165 + $0x258] sm:$0xff]
      %v258 = vld [vmem:[%s165 + $0x260] sm:$0xff]
      %v259 = vld [vmem:[%s165 + $0x268] sm:$0xff]
      %v260 = vld [vmem:[%s165 + $0x270] sm:$0xff]
      %v261 = vld [vmem:[%s165 + $0x278] sm:$0xff]
      %v262 = vld [vmem:[%s165 + $0x280] sm:$0xff]
      %v263 = vld [vmem:[%s165 + $0x288] sm:$0xff]
      %v264 = vld [vmem:[%s165 + $0x290] sm:$0xff]
      %v265 = vld [vmem:[%s165 + $0x298] sm:$0xff]
      %v266 = vld [vmem:[%s165 + $0x2a0] sm:$0xff]
      %v267 = vld [vmem:[%s165 + $0x2a8] sm:$0xff]
      %v268 = vld [vmem:[%s165 + $0x2b0] sm:$0xff]
      %v269 = vld [vmem:[%s165 + $0x2b8] sm:$0xff]
      %v270 = vld [vmem:[%s165 + $0x2c0] sm:$0xff]
      %v271 = vld [vmem:[%s165 + $0x2c8] sm:$0xff]
      %v272 = vld [vmem:[%s165 + $0x2d0] sm:$0xff]
      %v273 = vld [vmem:[%s165 + $0x2d8] sm:$0xff]
      %v274 = vld [vmem:[%s165 + $0x2e0] sm:$0xff]
      %v275 = vld [vmem:[%s165 + $0x2e8] sm:$0xff]
      %v276 = vld [vmem:[%s165 + $0x2f0] sm:$0xff]
      %v277 = vld [vmem:[%s165 + $0x2f8] sm:$0xff]
      %v278 = vld [vmem:[%s165 + $0x300] sm:$0xff]
      %v279 = vld [vmem:[%s165 + $0x308] sm:$0xff]
      %v280 = vld [vmem:[%s165 + $0x310] sm:$0xff]
      %v281 = vld [vmem:[%s165 + $0x318] sm:$0xff]
      %v282 = vld [vmem:[%s165 + $0x320] sm:$0xff]
      %v283 = vld [vmem:[%s165 + $0x328] sm:$0xff]
      %v284 = vld [vmem:[%s165 + $0x330] sm:$0xff]
      %v285 = vld [vmem:[%s165 + $0x338] sm:$0xff]
      %v286 = vld [vmem:[%s165 + $0x340] sm:$0xff]
      %v287 = vld [vmem:[%s165 + $0x348] sm:$0xff]
      %v288 = vld [vmem:[%s165 + $0x350] sm:$0xff]
      %v289 = vld [vmem:[%s165 + $0x358] sm:$0xff]
      %v290 = vld [vmem:[%s165 + $0x360] sm:$0xff]
      %v291 = vld [vmem:[%s165 + $0x368] sm:$0xff]
      %v292 = vld [vmem:[%s165 + $0x370] sm:$0xff]
      %v293 = vld [vmem:[%s165 + $0x378] sm:$0xff]
      %v294 = vld [vmem:[%s165 + $0x380] sm:$0xff]
      %v295 = vld [vmem:[%s165 + $0x388] sm:$0xff]
      %v296 = vld [vmem:[%s165 + $0x390] sm:$0xff]
      %v297 = vld [vmem:[%s165 + $0x398] sm:$0xff]
      %v298 = vld [vmem:[%s165 + $0x3a0] sm:$0xff]
      %v299 = vld [vmem:[%s165 + $0x3a8] sm:$0xff]
      %v300 = vld [vmem:[%s165 + $0x3b0] sm:$0xff]
      %v301 = vld [vmem:[%s165 + $0x3b8] sm:$0xff]
      %v302 = vld [vmem:[%s165 + $0x3c0] sm:$0xff]
      %v303 = vld [vmem:[%s165 + $0x3c8] sm:$0xff]
      %v304 = vld [vmem:[%s165 + $0x3d0] sm:$0xff]
      %v305 = vld [vmem:[%s165 + $0x3d8] sm:$0xff]
      %v306 = vld [vmem:[%s165 + $0x3e0] sm:$0xff]
      %v307 = vld [vmem:[%s165 + $0x3e8] sm:$0xff]
      %v308 = vld [vmem:[%s165 + $0x3f0] sm:$0xff]
      %v309 = vld [vmem:[%s165 + $0x3f8] sm:$0xff]
      %v310 = vld [vmem:[%s165 + $0x400] sm:$0xff]
      %v311 = vld [vmem:[%s165 + $0x408] sm:$0xff]
      %v312 = vld [vmem:[%s165 + $0x410] sm:$0xff]
      %v313 = vld [vmem:[%s165 + $0x418] sm:$0xff]
      %v314 = vld [vmem:[%s165 + $0x420] sm:$0xff]
      %v315 = vld [vmem:[%s165 + $0x428] sm:$0xff]
      %v316 = vld [vmem:[%s165 + $0x430] sm:$0xff]
      %v317 = vld [vmem:[%s165 + $0x438] sm:$0xff]
      %v318 = vld [vmem:[%s165 + $0x440] sm:$0xff]
      %v319 = vld [vmem:[%s165 + $0x448] sm:$0xff]
      %v320 = vld [vmem:[%s165 + $0x450] sm:$0xff]
      %v321 = vld [vmem:[%s165 + $0x458] sm:$0xff]
      %v322 = vld [vmem:[%s165 + $0x460] sm:$0xff]
      %v323 = vld [vmem:[%s165 + $0x468] sm:$0xff]
      %v324 = vld [vmem:[%s165 + $0x470] sm:$0xff]
      %v325 = vld [vmem:[%s165 + $0x478] sm:$0xff]
      %v326 = vld [vmem:[%s165 + $0x480] sm:$0xff]
      %v327 = vld [vmem:[%s165 + $0x488] sm:$0xff]
      %v328 = vld [vmem:[%s165 + $0x490] sm:$0xff]
      %v329 = vld [vmem:[%s165 + $0x498] sm:$0xff]
      %v330 = vld [vmem:[%s165 + $0x4a0] sm:$0xff]
      %v331 = vld [vmem:[%s165 + $0x4a8] sm:$0xff]
      %v332 = vld [vmem:[%s165 + $0x4b0] sm:$0xff]
      %v333 = vld [vmem:[%s165 + $0x4b8] sm:$0xff]
      %v334 = vld [vmem:[%s165 + $0x4c0] sm:$0xff]
      %v335 = vld [vmem:[%s165 + $0x4c8] sm:$0xff]
      %v336 = vld [vmem:[%s165 + $0x4d0] sm:$0xff]
      %v337 = vld [vmem:[%s165 + $0x4d8] sm:$0xff]
      %v338 = vld [vmem:[%s165 + $0x4e0] sm:$0xff]
      %v339 = vld [vmem:[%s165 + $0x4e8] sm:$0xff]
      %v340 = vld [vmem:[%s165 + $0x4f0] sm:$0xff]
      %v341 = vld [vmem:[%s165 + $0x4f8] sm:$0xff]
      %v342 = vld [vmem:[%s165 + $0x500] sm:$0xff]
      %v343 = vld [vmem:[%s165 + $0x508] sm:$0xff]
      %v344 = vld [vmem:[%s165 + $0x510] sm:$0xff]
      %v345 = vld [vmem:[%s165 + $0x518] sm:$0xff]
      %v346 = vld [vmem:[%s165 + $0x520] sm:$0xff]
      %v347 = vld [vmem:[%s165 + $0x528] sm:$0xff]
      %v348 = vld [vmem:[%s165 + $0x530] sm:$0xff]
      %v349 = vld [vmem:[%s165 + $0x538] sm:$0xff]
      %v350 = vld [vmem:[%s165 + $0x540] sm:$0xff]
      %v351 = vld [vmem:[%s165 + $0x548] sm:$0xff]
      %v352 = vld [vmem:[%s165 + $0x550] sm:$0xff]
      %v353 = vld [vmem:[%s165 + $0x558] sm:$0xff]
      %v354 = vld [vmem:[%s165 + $0x560] sm:$0xff]
      %v355 = vld [vmem:[%s165 + $0x568] sm:$0xff]
      %v356 = vld [vmem:[%s165 + $0x570] sm:$0xff]
      %v357 = vld [vmem:[%s165 + $0x578] sm:$0xff]
      %v358 = vld [vmem:[%s165 + $0x580] sm:$0xff]
      %v359 = vld [vmem:[%s165 + $0x588] sm:$0xff]
      %v360 = vld [vmem:[%s165 + $0x590] sm:$0xff]
      %v361 = vld [vmem:[%s165 + $0x598] sm:$0xff]
      %v362 = vld [vmem:[%s165 + $0x5a0] sm:$0xff]
      %v363 = vld [vmem:[%s165 + $0x5a8] sm:$0xff]
      %v364 = vld [vmem:[%s165 + $0x5b0] sm:$0xff]
      %v365 = vld [vmem:[%s165 + $0x5b8] sm:$0xff]
      %v366 = vld [vmem:[%s165 + $0x5c0] sm:$0xff]
      %v367 = vld [vmem:[%s165 + $0x5c8] sm:$0xff]
      %v368 = vld [vmem:[%s165 + $0x5d0] sm:$0xff]
      %v369 = vld [vmem:[%s165 + $0x5d8] sm:$0xff]
      %v370 = vld [vmem:[%s165 + $0x5e0] sm:$0xff]
      %v371 = vld [vmem:[%s165 + $0x5e8] sm:$0xff]
      %v372 = vld [vmem:[%s165 + $0x5f0] sm:$0xff]
      %v373 = vld [vmem:[%s165 + $0x5f8] sm:$0xff]
      %v374 = vld [vmem:[%s165 + $0x600] sm:$0xff]
      %v375 = vld [vmem:[%s165 + $0x608] sm:$0xff]
      %v376 = vld [vmem:[%s165 + $0x610] sm:$0xff]
      %v377 = vld [vmem:[%s165 + $0x618] sm:$0xff]
      %v378 = vld [vmem:[%s165 + $0x620] sm:$0xff]
      %v379 = vld [vmem:[%s165 + $0x628] sm:$0xff]
      %v380 = vld [vmem:[%s165 + $0x630] sm:$0xff]
      %v381 = vld [vmem:[%s165 + $0x638] sm:$0xff]
      %v382 = vld [vmem:[%s165 + $0x640] sm:$0xff]
      %v383 = vld [vmem:[%s165 + $0x648] sm:$0xff]
      %v384 = vld [vmem:[%s165 + $0x650] sm:$0xff]
      %v385 = vld [vmem:[%s165 + $0x658] sm:$0xff]
      %v386 = vld [vmem:[%s165 + $0x660] sm:$0xff]
      %v387 = vld [vmem:[%s165 + $0x668] sm:$0xff]
      %v388 = vld [vmem:[%s165 + $0x670] sm:$0xff]
      %v389 = vld [vmem:[%s165 + $0x678] sm:$0xff]
      %v390 = vld [vmem:[%s165 + $0x680] sm:$0xff]
      %v391 = vld [vmem:[%s165 + $0x688] sm:$0xff]
      %v392 = vld [vmem:[%s165 + $0x690] sm:$0xff]
      %v393 = vld [vmem:[%s165 + $0x698] sm:$0xff]
      %v394 = vld [vmem:[%s165 + $0x6a0] sm:$0xff]
      %v395 = vld [vmem:[%s165 + $0x6a8] sm:$0xff]
      %v396 = vld [vmem:[%s165 + $0x6b0] sm:$0xff]
      %v397 = vld [vmem:[%s165 + $0x6b8] sm:$0xff]
      %v398 = vld [vmem:[%s165 + $0x6c0] sm:$0xff]
      %v399 = vld [vmem:[%s165 + $0x6c8] sm:$0xff]
      %v400 = vld [vmem:[%s165 + $0x6d0] sm:$0xff]
      %v401 = vld [vmem:[%s165 + $0x6d8] sm:$0xff]
      %v402 = vld [vmem:[%s165 + $0x6e0] sm:$0xff]
      %v403 = vld [vmem:[%s165 + $0x6e8] sm:$0xff]
      %v404 = vld [vmem:[%s165 + $0x6f0] sm:$0xff]
      %v405 = vld [vmem:[%s165 + $0x6f8] sm:$0xff]
      %v406 = vld [vmem:[%s165 + $0x700] sm:$0xff]
      %vm407 = vcmask 613376
      %v409 = vsel %vm407, %v182, 0
      %v412 = vsel %vm407, %v183, 0
      %v415 = vsel %vm407, %v184, 0
      %v418 = vsel %vm407, %v185, 0
      %v421 = vsel %vm407, %v186, 0
      %v424 = vsel %vm407, %v187, 0
      %v427 = vsel %vm407, %v188, 0
      %v430 = vsel %vm407, %v189, 0
      %v433 = vsel %vm407, %v190, 0
      %v436 = vsel %vm407, %v191, 0
      %v439 = vsel %vm407, %v192, 0
      %v442 = vsel %vm407, %v193, 0
      %v445 = vsel %vm407, %v194, 0
      %v448 = vsel %vm407, %v195, 0
      %v451 = vsel %vm407, %v196, 0
      %v454 = vsel %vm407, %v197, 0
      %v457 = vsel %vm407, %v198, 0
      %v460 = vsel %vm407, %v199, 0
      %v463 = vsel %vm407, %v200, 0
      %v466 = vsel %vm407, %v201, 0
      %v469 = vsel %vm407, %v202, 0
      %v472 = vsel %vm407, %v203, 0
      %v475 = vsel %vm407, %v204, 0
      %v478 = vsel %vm407, %v205, 0
      %v481 = vsel %vm407, %v206, 0
      %v484 = vsel %vm407, %v207, 0
      %v487 = vsel %vm407, %v208, 0
      %v490 = vsel %vm407, %v209, 0
      %v493 = vsel %vm407, %v210, 0
      %v496 = vsel %vm407, %v211, 0
      %v499 = vsel %vm407, %v212, 0
      %v502 = vsel %vm407, %v213, 0
      %v505 = vsel %vm407, %v214, 0
      %v508 = vsel %vm407, %v215, 0
      %v511 = vsel %vm407, %v216, 0
      %v514 = vsel %vm407, %v217, 0
      %v517 = vsel %vm407, %v218, 0
      %v520 = vsel %vm407, %v219, 0
      %v523 = vsel %vm407, %v220, 0
      %v526 = vsel %vm407, %v221, 0
      %v529 = vsel %vm407, %v222, 0
      %v532 = vsel %vm407, %v223, 0
      %v535 = vsel %vm407, %v224, 0
      %v538 = vsel %vm407, %v225, 0
      %v541 = vsel %vm407, %v226, 0
      %v544 = vsel %vm407, %v227, 0
      %v547 = vsel %vm407, %v228, 0
      %v550 = vsel %vm407, %v229, 0
      %v553 = vsel %vm407, %v230, 0
      %v556 = vsel %vm407, %v231, 0
      %v559 = vsel %vm407, %v232, 0
      %v562 = vsel %vm407, %v233, 0
      %v565 = vsel %vm407, %v234, 0
      %v568 = vsel %vm407, %v235, 0
      %v571 = vsel %vm407, %v236, 0
      %v574 = vsel %vm407, %v237, 0
      %v577 = vsel %vm407, %v238, 0
      %v580 = vsel %vm407, %v239, 0
      %v583 = vsel %vm407, %v240, 0
      %v586 = vsel %vm407, %v241, 0
      %v589 = vsel %vm407, %v242, 0
      %v592 = vsel %vm407, %v243, 0
      %v595 = vsel %vm407, %v244, 0
      %v598 = vsel %vm407, %v245, 0
      %v601 = vsel %vm407, %v246, 0
      %v604 = vsel %vm407, %v247, 0
      %v607 = vsel %vm407, %v248, 0
      %v610 = vsel %vm407, %v249, 0
      %v613 = vsel %vm407, %v250, 0
      %v616 = vsel %vm407, %v251, 0
      %v619 = vsel %vm407, %v252, 0
      %v622 = vsel %vm407, %v253, 0
      %v625 = vsel %vm407, %v254, 0
      %v628 = vsel %vm407, %v255, 0
      %v631 = vsel %vm407, %v256, 0
      %v634 = vsel %vm407, %v257, 0
      %v637 = vsel %vm407, %v258, 0
      %v640 = vsel %vm407, %v259, 0
      %v643 = vsel %vm407, %v260, 0
      %v646 = vsel %vm407, %v261, 0
      %v649 = vsel %vm407, %v262, 0
      %v652 = vsel %vm407, %v263, 0
      %v655 = vsel %vm407, %v264, 0
      %v658 = vsel %vm407, %v265, 0
      %v661 = vsel %vm407, %v266, 0
      %v664 = vsel %vm407, %v267, 0
      %v667 = vsel %vm407, %v268, 0
      %v670 = vsel %vm407, %v269, 0
      %v673 = vsel %vm407, %v270, 0
      %v676 = vsel %vm407, %v271, 0
      %v679 = vsel %vm407, %v272, 0
      %v682 = vsel %vm407, %v273, 0
      %v685 = vsel %vm407, %v274, 0
      %v688 = vsel %vm407, %v275, 0
      %v691 = vsel %vm407, %v276, 0
      %v694 = vsel %vm407, %v277, 0
      %v697 = vsel %vm407, %v278, 0
      %v700 = vsel %vm407, %v279, 0
      %v703 = vsel %vm407, %v280, 0
      %v706 = vsel %vm407, %v281, 0
      %v709 = vsel %vm407, %v282, 0
      %v712 = vsel %vm407, %v283, 0
      %v715 = vsel %vm407, %v284, 0
      %v718 = vsel %vm407, %v285, 0
      %v721 = vsel %vm407, %v286, 0
      %v724 = vsel %vm407, %v287, 0
      %v727 = vsel %vm407, %v288, 0
      %v730 = vsel %vm407, %v289, 0
      %v733 = vsel %vm407, %v290, 0
      %v736 = vsel %vm407, %v291, 0
      %v739 = vsel %vm407, %v292, 0
      %v742 = vsel %vm407, %v293, 0
      %v745 = vsel %vm407, %v294, 0
      %v748 = vsel %vm407, %v295, 0
      %v751 = vsel %vm407, %v296, 0
      %v754 = vsel %vm407, %v297, 0
      %v757 = vsel %vm407, %v298, 0
      %v760 = vsel %vm407, %v299, 0
      %v763 = vsel %vm407, %v300, 0
      %v766 = vsel %vm407, %v301, 0
      %v769 = vsel %vm407, %v302, 0
      %v772 = vsel %vm407, %v303, 0
      %v775 = vsel %vm407, %v304, 0
      %v778 = vsel %vm407, %v305, 0
      %v781 = vsel %vm407, %v306, 0
      %v784 = vsel %vm407, %v307, 0
      %v787 = vsel %vm407, %v308, 0
      %v790 = vsel %vm407, %v309, 0
      %v793 = vsel %vm407, %v310, 0
      %v796 = vsel %vm407, %v311, 0
      %v799 = vsel %vm407, %v312, 0
      %v802 = vsel %vm407, %v313, 0
      %v805 = vsel %vm407, %v314, 0
      %v808 = vsel %vm407, %v315, 0
      %v811 = vsel %vm407, %v316, 0
      %v814 = vsel %vm407, %v317, 0
      %v817 = vsel %vm407, %v318, 0
      %v820 = vsel %vm407, %v319, 0
      %v823 = vsel %vm407, %v320, 0
      %v826 = vsel %vm407, %v321, 0
      %v829 = vsel %vm407, %v322, 0
      %v832 = vsel %vm407, %v323, 0
      %v835 = vsel %vm407, %v324, 0
      %v838 = vsel %vm407, %v325, 0
      %v841 = vsel %vm407, %v326, 0
      %v844 = vsel %vm407, %v327, 0
      %v847 = vsel %vm407, %v328, 0
      %v850 = vsel %vm407, %v329, 0
      %v853 = vsel %vm407, %v330, 0
      %v856 = vsel %vm407, %v331, 0
      %v859 = vsel %vm407, %v332, 0
      %v862 = vsel %vm407, %v333, 0
      %v865 = vsel %vm407, %v334, 0
      %v868 = vsel %vm407, %v335, 0
      %v871 = vsel %vm407, %v336, 0
      %v874 = vsel %vm407, %v337, 0
      %v877 = vsel %vm407, %v338, 0
      %v880 = vsel %vm407, %v339, 0
      %v883 = vsel %vm407, %v340, 0
      %v886 = vsel %vm407, %v341, 0
      %v889 = vsel %vm407, %v342, 0
      %v892 = vsel %vm407, %v343, 0
      %v895 = vsel %vm407, %v344, 0
      %v898 = vsel %vm407, %v345, 0
      %v901 = vsel %vm407, %v346, 0
      %v904 = vsel %vm407, %v347, 0
      %v907 = vsel %vm407, %v348, 0
      %v910 = vsel %vm407, %v349, 0
      %v913 = vsel %vm407, %v350, 0
      %v916 = vsel %vm407, %v351, 0
      %v919 = vsel %vm407, %v352, 0
      %v922 = vsel %vm407, %v353, 0
      %v925 = vsel %vm407, %v354, 0
      %v928 = vsel %vm407, %v355, 0
      %v931 = vsel %vm407, %v356, 0
      %v934 = vsel %vm407, %v357, 0
      %v937 = vsel %vm407, %v358, 0
      %v940 = vsel %vm407, %v359, 0
      %v943 = vsel %vm407, %v360, 0
      %v946 = vsel %vm407, %v361, 0
      %v949 = vsel %vm407, %v362, 0
      %v952 = vsel %vm407, %v363, 0
      %v955 = vsel %vm407, %v364, 0
      %v958 = vsel %vm407, %v365, 0
      %v961 = vsel %vm407, %v366, 0
      %v964 = vsel %vm407, %v367, 0
      %v967 = vsel %vm407, %v368, 0
      %v970 = vsel %vm407, %v369, 0
      %v973 = vsel %vm407, %v370, 0
      %v976 = vsel %vm407, %v371, 0
      %v979 = vsel %vm407, %v372, 0
      %v982 = vsel %vm407, %v373, 0
      %v985 = vsel %vm407, %v374, 0
      %v988 = vsel %vm407, %v375, 0
      %v991 = vsel %vm407, %v376, 0
      %v994 = vsel %vm407, %v377, 0
      %v997 = vsel %vm407, %v378, 0
      %v1000 = vsel %vm407, %v379, 0
      %v1003 = vsel %vm407, %v380, 0
      %v1006 = vsel %vm407, %v381, 0
      %v1009 = vsel %vm407, %v382, 0
      %v1012 = vsel %vm407, %v383, 0
      %v1015 = vsel %vm407, %v384, 0
      %v1018 = vsel %vm407, %v385, 0
      %v1021 = vsel %vm407, %v386, 0
      %v1024 = vsel %vm407, %v387, 0
      %v1027 = vsel %vm407, %v388, 0
      %v1030 = vsel %vm407, %v389, 0
      %v1033 = vsel %vm407, %v390, 0
      %v1036 = vsel %vm407, %v391, 0
      %v1039 = vsel %vm407, %v392, 0
      %v1042 = vsel %vm407, %v393, 0
      %v1045 = vsel %vm407, %v394, 0
      %v1048 = vsel %vm407, %v395, 0
      %v1051 = vsel %vm407, %v396, 0
      %v1054 = vsel %vm407, %v397, 0
      %v1057 = vsel %vm407, %v398, 0
      %v1060 = vsel %vm407, %v399, 0
      %v1063 = vsel %vm407, %v400, 0
      %v1066 = vsel %vm407, %v401, 0
      %v1069 = vsel %vm407, %v402, 0
      %v1072 = vsel %vm407, %v403, 0
      %v1075 = vsel %vm407, %v404, 0
      %v1078 = vsel %vm407, %v405, 0
      %v1081 = vsel %vm407, %v406, 0
      %vm1083 = vcmask 1042432
      %v1085 = vsel %vm1083, %v181, 0
      %1087 = vmatpush.msra.mxu0 0.0
      %1088 = vmatpush.msra.mxu0 0.0
      %1089 = vmatpush.msra.mxu0 0.0
      %1090 = vmatpush.msra.mxu0 0.0
      %1091 = vmatpush.msra.mxu0 0.0
      %1092 = vmatpush.msra.mxu0 0.0
      %1093 = vmatpush.msra.mxu0 %v1085
      %1094 = vmatpush.msra.mxu0 %v180
      %1095 = vmatpush.msra.mxu0 %v179
      %1096 = vmatpush.msra.mxu0 %v178
      %1097 = vmatpush.msra.mxu0 %v177
      %1098 = vmatpush.msra.mxu0 %v176
      %1099 = vmatpush.msra.mxu0 %v175
      %1100 = vmatpush.msra.mxu0 %v174
      %1101 = vmatpush.msra.mxu0 %v173
      %1102 = vmatpush.msra.mxu0 %v172
      %1103 = vmatmul.f32.gmra.mxu0 %v409
      %v1104 = vpop.f32.mrf.mxu0
      %v1105 = vadd.f32 0.0, %v1104
      %1106 = vmatmul.f32.gmra.mxu0 %v412
      %v1107 = vpop.f32.mrf.mxu0
      %v1108 = vadd.f32 0.0, %v1107
      %1109 = vmatmul.f32.gmra.mxu0 %v415
      %v1110 = vpop.f32.mrf.mxu0
      %v1111 = vadd.f32 0.0, %v1110
      %1112 = vmatmul.f32.gmra.mxu0 %v418
      %v1113 = vpop.f32.mrf.mxu0
      %v1114 = vadd.f32 0.0, %v1113
      %1115 = vmatmul.f32.gmra.mxu0 %v421
      %v1116 = vpop.f32.mrf.mxu0
      %v1117 = vadd.f32 0.0, %v1116
      %1118 = vmatmul.f32.gmra.mxu0 %v424
      %v1119 = vpop.f32.mrf.mxu0
      %v1120 = vadd.f32 0.0, %v1119
      %1121 = vmatmul.f32.gmra.mxu0 %v427
      %v1122 = vpop.f32.mrf.mxu0
      %v1123 = vadd.f32 0.0, %v1122
      %1124 = vmatmul.f32.gmra.mxu0 %v430
      %v1125 = vpop.f32.mrf.mxu0
      %v1126 = vadd.f32 0.0, %v1125
      %1127 = vmatmul.f32.gmra.mxu0 %v433
      %v1128 = vpop.f32.mrf.mxu0
      %v1129 = vadd.f32 0.0, %v1128
      %1130 = vmatmul.f32.gmra.mxu0 %v436
      %v1131 = vpop.f32.mrf.mxu0
      %v1132 = vadd.f32 0.0, %v1131
      %1133 = vmatmul.f32.gmra.mxu0 %v439
      %v1134 = vpop.f32.mrf.mxu0
      %v1135 = vadd.f32 0.0, %v1134
      %1136 = vmatmul.f32.gmra.mxu0 %v442
      %v1137 = vpop.f32.mrf.mxu0
      %v1138 = vadd.f32 0.0, %v1137
      %1139 = vmatmul.f32.gmra.mxu0 %v445
      %v1140 = vpop.f32.mrf.mxu0
      %v1141 = vadd.f32 0.0, %v1140
      %1142 = vmatmul.f32.gmra.mxu0 %v448
      %v1143 = vpop.f32.mrf.mxu0
      %v1144 = vadd.f32 0.0, %v1143
      %1145 = vmatmul.f32.gmra.mxu0 %v451
      %v1146 = vpop.f32.mrf.mxu0
      %v1147 = vadd.f32 0.0, %v1146
      %1148 = vmatmul.f32.gmra.mxu0 %v454
      %v1149 = vpop.f32.mrf.mxu0
      %v1150 = vadd.f32 0.0, %v1149
      %1151 = vmatmul.f32.gmra.mxu0 %v457
      %v1152 = vpop.f32.mrf.mxu0
      %v1153 = vadd.f32 0.0, %v1152
      %1154 = vmatmul.f32.gmra.mxu0 %v460
      %v1155 = vpop.f32.mrf.mxu0
      %v1156 = vadd.f32 0.0, %v1155
      %1157 = vmatmul.f32.gmra.mxu0 %v463
      %v1158 = vpop.f32.mrf.mxu0
      %v1159 = vadd.f32 0.0, %v1158
      %1160 = vmatmul.f32.gmra.mxu0 %v466
      %v1161 = vpop.f32.mrf.mxu0
      %v1162 = vadd.f32 0.0, %v1161
      %1163 = vmatmul.f32.gmra.mxu0 %v469
      %v1164 = vpop.f32.mrf.mxu0
      %v1165 = vadd.f32 0.0, %v1164
      %1166 = vmatmul.f32.gmra.mxu0 %v472
      %v1167 = vpop.f32.mrf.mxu0
      %v1168 = vadd.f32 0.0, %v1167
      %1169 = vmatmul.f32.gmra.mxu0 %v475
      %v1170 = vpop.f32.mrf.mxu0
      %v1171 = vadd.f32 0.0, %v1170
      %1172 = vmatmul.f32.gmra.mxu0 %v478
      %v1173 = vpop.f32.mrf.mxu0
      %v1174 = vadd.f32 0.0, %v1173
      %1175 = vmatmul.f32.gmra.mxu0 %v481
      %v1176 = vpop.f32.mrf.mxu0
      %v1177 = vadd.f32 0.0, %v1176
      %1178 = vmatmul.f32.gmra.mxu0 %v484
      %v1179 = vpop.f32.mrf.mxu0
      %v1180 = vadd.f32 0.0, %v1179
      %1181 = vmatmul.f32.gmra.mxu0 %v487
      %v1182 = vpop.f32.mrf.mxu0
      %v1183 = vadd.f32 0.0, %v1182
      %1184 = vmatmul.f32.gmra.mxu0 %v490
      %v1185 = vpop.f32.mrf.mxu0
      %v1186 = vadd.f32 0.0, %v1185
      %1187 = vmatmul.f32.gmra.mxu0 %v493
      %v1188 = vpop.f32.mrf.mxu0
      %v1189 = vadd.f32 0.0, %v1188
      %1190 = vmatmul.f32.gmra.mxu0 %v496
      %v1191 = vpop.f32.mrf.mxu0
      %v1192 = vadd.f32 0.0, %v1191
      %1193 = vmatmul.f32.gmra.mxu0 %v499
      %v1194 = vpop.f32.mrf.mxu0
      %v1195 = vadd.f32 0.0, %v1194
      %1196 = vmatmul.f32.gmra.mxu0 %v502
      %v1197 = vpop.f32.mrf.mxu0
      %v1198 = vadd.f32 0.0, %v1197
      %1199 = vmatmul.f32.gmra.mxu0 %v505
      %v1200 = vpop.f32.mrf.mxu0
      %v1201 = vadd.f32 0.0, %v1200
      %1202 = vmatmul.f32.gmra.mxu0 %v508
      %v1203 = vpop.f32.mrf.mxu0
      %v1204 = vadd.f32 0.0, %v1203
      %1205 = vmatmul.f32.gmra.mxu0 %v511
      %v1206 = vpop.f32.mrf.mxu0
      %v1207 = vadd.f32 0.0, %v1206
      %1208 = vmatmul.f32.gmra.mxu0 %v514
      %v1209 = vpop.f32.mrf.mxu0
      %v1210 = vadd.f32 0.0, %v1209
      %1211 = vmatmul.f32.gmra.mxu0 %v517
      %v1212 = vpop.f32.mrf.mxu0
      %v1213 = vadd.f32 0.0, %v1212
      %1214 = vmatmul.f32.gmra.mxu0 %v520
      %v1215 = vpop.f32.mrf.mxu0
      %v1216 = vadd.f32 0.0, %v1215
      %1217 = vmatmul.f32.gmra.mxu0 %v523
      %v1218 = vpop.f32.mrf.mxu0
      %v1219 = vadd.f32 0.0, %v1218
      %1220 = vmatmul.f32.gmra.mxu0 %v526
      %v1221 = vpop.f32.mrf.mxu0
      %v1222 = vadd.f32 0.0, %v1221
      %1223 = vmatmul.f32.gmra.mxu0 %v529
      %v1224 = vpop.f32.mrf.mxu0
      %v1225 = vadd.f32 0.0, %v1224
      %1226 = vmatmul.f32.gmra.mxu0 %v532
      %v1227 = vpop.f32.mrf.mxu0
      %v1228 = vadd.f32 0.0, %v1227
      %1229 = vmatmul.f32.gmra.mxu0 %v535
      %v1230 = vpop.f32.mrf.mxu0
      %v1231 = vadd.f32 0.0, %v1230
      %1232 = vmatmul.f32.gmra.mxu0 %v538
      %v1233 = vpop.f32.mrf.mxu0
      %v1234 = vadd.f32 0.0, %v1233
      %1235 = vmatmul.f32.gmra.mxu0 %v541
      %v1236 = vpop.f32.mrf.mxu0
      %v1237 = vadd.f32 0.0, %v1236
      %1238 = vmatmul.f32.gmra.mxu0 %v544
      %v1239 = vpop.f32.mrf.mxu0
      %v1240 = vadd.f32 0.0, %v1239
      %1241 = vmatmul.f32.gmra.mxu0 %v547
      %v1242 = vpop.f32.mrf.mxu0
      %v1243 = vadd.f32 0.0, %v1242
      %1244 = vmatmul.f32.gmra.mxu0 %v550
      %v1245 = vpop.f32.mrf.mxu0
      %v1246 = vadd.f32 0.0, %v1245
      %1247 = vmatmul.f32.gmra.mxu0 %v553
      %v1248 = vpop.f32.mrf.mxu0
      %v1249 = vadd.f32 0.0, %v1248
      %1250 = vmatmul.f32.gmra.mxu0 %v556
      %v1251 = vpop.f32.mrf.mxu0
      %v1252 = vadd.f32 0.0, %v1251
      %1253 = vmatmul.f32.gmra.mxu0 %v559
      %v1254 = vpop.f32.mrf.mxu0
      %v1255 = vadd.f32 0.0, %v1254
      %1256 = vmatmul.f32.gmra.mxu0 %v562
      %v1257 = vpop.f32.mrf.mxu0
      %v1258 = vadd.f32 0.0, %v1257
      %1259 = vmatmul.f32.gmra.mxu0 %v565
      %v1260 = vpop.f32.mrf.mxu0
      %v1261 = vadd.f32 0.0, %v1260
      %1262 = vmatmul.f32.gmra.mxu0 %v568
      %v1263 = vpop.f32.mrf.mxu0
      %v1264 = vadd.f32 0.0, %v1263
      %1265 = vmatmul.f32.gmra.mxu0 %v571
      %v1266 = vpop.f32.mrf.mxu0
      %v1267 = vadd.f32 0.0, %v1266
      %1268 = vmatmul.f32.gmra.mxu0 %v574
      %v1269 = vpop.f32.mrf.mxu0
      %v1270 = vadd.f32 0.0, %v1269
      %1271 = vmatmul.f32.gmra.mxu0 %v577
      %v1272 = vpop.f32.mrf.mxu0
      %v1273 = vadd.f32 0.0, %v1272
      %1274 = vmatmul.f32.gmra.mxu0 %v580
      %v1275 = vpop.f32.mrf.mxu0
      %v1276 = vadd.f32 0.0, %v1275
      %1277 = vmatmul.f32.gmra.mxu0 %v583
      %v1278 = vpop.f32.mrf.mxu0
      %v1279 = vadd.f32 0.0, %v1278
      %1280 = vmatmul.f32.gmra.mxu0 %v586
      %v1281 = vpop.f32.mrf.mxu0
      %v1282 = vadd.f32 0.0, %v1281
      %1283 = vmatmul.f32.gmra.mxu0 %v589
      %v1284 = vpop.f32.mrf.mxu0
      %v1285 = vadd.f32 0.0, %v1284
      %1286 = vmatmul.f32.gmra.mxu0 %v592
      %v1287 = vpop.f32.mrf.mxu0
      %v1288 = vadd.f32 0.0, %v1287
      %1289 = vmatmul.f32.gmra.mxu0 %v595
      %v1290 = vpop.f32.mrf.mxu0
      %v1291 = vadd.f32 0.0, %v1290
      %1292 = vmatmul.f32.gmra.mxu0 %v598
      %v1293 = vpop.f32.mrf.mxu0
      %v1294 = vadd.f32 0.0, %v1293
      %1295 = vmatmul.f32.gmra.mxu0 %v601
      %v1296 = vpop.f32.mrf.mxu0
      %v1297 = vadd.f32 0.0, %v1296
      %1298 = vmatmul.f32.gmra.mxu0 %v604
      %v1299 = vpop.f32.mrf.mxu0
      %v1300 = vadd.f32 0.0, %v1299
      %1301 = vmatmul.f32.gmra.mxu0 %v607
      %v1302 = vpop.f32.mrf.mxu0
      %v1303 = vadd.f32 0.0, %v1302
      %1304 = vmatmul.f32.gmra.mxu0 %v610
      %v1305 = vpop.f32.mrf.mxu0
      %v1306 = vadd.f32 0.0, %v1305
      %1307 = vmatmul.f32.gmra.mxu0 %v613
      %v1308 = vpop.f32.mrf.mxu0
      %v1309 = vadd.f32 0.0, %v1308
      %1310 = vmatmul.f32.gmra.mxu0 %v616
      %v1311 = vpop.f32.mrf.mxu0
      %v1312 = vadd.f32 0.0, %v1311
      %1313 = vmatmul.f32.gmra.mxu0 %v619
      %v1314 = vpop.f32.mrf.mxu0
      %v1315 = vadd.f32 0.0, %v1314
      %1316 = vmatmul.f32.gmra.mxu0 %v622
      %v1317 = vpop.f32.mrf.mxu0
      %v1318 = vadd.f32 0.0, %v1317
      %1319 = vmatmul.f32.gmra.mxu0 %v625
      %v1320 = vpop.f32.mrf.mxu0
      %v1321 = vadd.f32 0.0, %v1320
      %1322 = vmatmul.f32.gmra.mxu0 %v628
      %v1323 = vpop.f32.mrf.mxu0
      %v1324 = vadd.f32 0.0, %v1323
      %1325 = vmatmul.f32.gmra.mxu0 %v631
      %v1326 = vpop.f32.mrf.mxu0
      %v1327 = vadd.f32 0.0, %v1326
      %1328 = vmatmul.f32.gmra.mxu0 %v634
      %v1329 = vpop.f32.mrf.mxu0
      %v1330 = vadd.f32 0.0, %v1329
      %1331 = vmatmul.f32.gmra.mxu0 %v637
      %v1332 = vpop.f32.mrf.mxu0
      %v1333 = vadd.f32 0.0, %v1332
      %1334 = vmatmul.f32.gmra.mxu0 %v640
      %v1335 = vpop.f32.mrf.mxu0
      %v1336 = vadd.f32 0.0, %v1335
      %1337 = vmatmul.f32.gmra.mxu0 %v643
      %v1338 = vpop.f32.mrf.mxu0
      %v1339 = vadd.f32 0.0, %v1338
      %1340 = vmatmul.f32.gmra.mxu0 %v646
      %v1341 = vpop.f32.mrf.mxu0
      %v1342 = vadd.f32 0.0, %v1341
      %1343 = vmatmul.f32.gmra.mxu0 %v649
      %v1344 = vpop.f32.mrf.mxu0
      %v1345 = vadd.f32 0.0, %v1344
      %1346 = vmatmul.f32.gmra.mxu0 %v652
      %v1347 = vpop.f32.mrf.mxu0
      %v1348 = vadd.f32 0.0, %v1347
      %1349 = vmatmul.f32.gmra.mxu0 %v655
      %v1350 = vpop.f32.mrf.mxu0
      %v1351 = vadd.f32 0.0, %v1350
      %1352 = vmatmul.f32.gmra.mxu0 %v658
      %v1353 = vpop.f32.mrf.mxu0
      %v1354 = vadd.f32 0.0, %v1353
      %1355 = vmatmul.f32.gmra.mxu0 %v661
      %v1356 = vpop.f32.mrf.mxu0
      %v1357 = vadd.f32 0.0, %v1356
      %1358 = vmatmul.f32.gmra.mxu0 %v664
      %v1359 = vpop.f32.mrf.mxu0
      %v1360 = vadd.f32 0.0, %v1359
      %1361 = vmatmul.f32.gmra.mxu0 %v667
      %v1362 = vpop.f32.mrf.mxu0
      %v1363 = vadd.f32 0.0, %v1362
      %1364 = vmatmul.f32.gmra.mxu0 %v670
      %v1365 = vpop.f32.mrf.mxu0
      %v1366 = vadd.f32 0.0, %v1365
      %1367 = vmatmul.f32.gmra.mxu0 %v673
      %v1368 = vpop.f32.mrf.mxu0
      %v1369 = vadd.f32 0.0, %v1368
      %1370 = vmatmul.f32.gmra.mxu0 %v676
      %v1371 = vpop.f32.mrf.mxu0
      %v1372 = vadd.f32 0.0, %v1371
      %1373 = vmatmul.f32.gmra.mxu0 %v679
      %v1374 = vpop.f32.mrf.mxu0
      %v1375 = vadd.f32 0.0, %v1374
      %1376 = vmatmul.f32.gmra.mxu0 %v682
      %v1377 = vpop.f32.mrf.mxu0
      %v1378 = vadd.f32 0.0, %v1377
      %1379 = vmatmul.f32.gmra.mxu0 %v685
      %v1380 = vpop.f32.mrf.mxu0
      %v1381 = vadd.f32 0.0, %v1380
      %1382 = vmatmul.f32.gmra.mxu0 %v688
      %v1383 = vpop.f32.mrf.mxu0
      %v1384 = vadd.f32 0.0, %v1383
      %1385 = vmatmul.f32.gmra.mxu0 %v691
      %v1386 = vpop.f32.mrf.mxu0
      %v1387 = vadd.f32 0.0, %v1386
      %1388 = vmatmul.f32.gmra.mxu0 %v694
      %v1389 = vpop.f32.mrf.mxu0
      %v1390 = vadd.f32 0.0, %v1389
      %1391 = vmatmul.f32.gmra.mxu0 %v697
      %v1392 = vpop.f32.mrf.mxu0
      %v1393 = vadd.f32 0.0, %v1392
      %1394 = vmatmul.f32.gmra.mxu0 %v700
      %v1395 = vpop.f32.mrf.mxu0
      %v1396 = vadd.f32 0.0, %v1395
      %1397 = vmatmul.f32.gmra.mxu0 %v703
      %v1398 = vpop.f32.mrf.mxu0
      %v1399 = vadd.f32 0.0, %v1398
      %1400 = vmatmul.f32.gmra.mxu0 %v706
      %v1401 = vpop.f32.mrf.mxu0
      %v1402 = vadd.f32 0.0, %v1401
      %1403 = vmatmul.f32.gmra.mxu0 %v709
      %v1404 = vpop.f32.mrf.mxu0
      %v1405 = vadd.f32 0.0, %v1404
      %1406 = vmatmul.f32.gmra.mxu0 %v712
      %v1407 = vpop.f32.mrf.mxu0
      %v1408 = vadd.f32 0.0, %v1407
      %1409 = vmatmul.f32.gmra.mxu0 %v715
      %v1410 = vpop.f32.mrf.mxu0
      %v1411 = vadd.f32 0.0, %v1410
      %1412 = vmatmul.f32.gmra.mxu0 %v718
      %v1413 = vpop.f32.mrf.mxu0
      %v1414 = vadd.f32 0.0, %v1413
      %1415 = vmatmul.f32.gmra.mxu0 %v721
      %v1416 = vpop.f32.mrf.mxu0
      %v1417 = vadd.f32 0.0, %v1416
      %1418 = vmatmul.f32.gmra.mxu0 %v724
      %v1419 = vpop.f32.mrf.mxu0
      %v1420 = vadd.f32 0.0, %v1419
      %1421 = vmatmul.f32.gmra.mxu0 %v727
      %v1422 = vpop.f32.mrf.mxu0
      %v1423 = vadd.f32 0.0, %v1422
      %1424 = vmatmul.f32.gmra.mxu0 %v730
      %v1425 = vpop.f32.mrf.mxu0
      %v1426 = vadd.f32 0.0, %v1425
      %1427 = vmatmul.f32.gmra.mxu0 %v733
      %v1428 = vpop.f32.mrf.mxu0
      %v1429 = vadd.f32 0.0, %v1428
      %1430 = vmatmul.f32.gmra.mxu0 %v736
      %v1431 = vpop.f32.mrf.mxu0
      %v1432 = vadd.f32 0.0, %v1431
      %1433 = vmatmul.f32.gmra.mxu0 %v739
      %v1434 = vpop.f32.mrf.mxu0
      %v1435 = vadd.f32 0.0, %v1434
      %1436 = vmatmul.f32.gmra.mxu0 %v742
      %v1437 = vpop.f32.mrf.mxu0
      %v1438 = vadd.f32 0.0, %v1437
      %1439 = vmatmul.f32.gmra.mxu0 %v745
      %v1440 = vpop.f32.mrf.mxu0
      %v1441 = vadd.f32 0.0, %v1440
      %1442 = vmatmul.f32.gmra.mxu0 %v748
      %v1443 = vpop.f32.mrf.mxu0
      %v1444 = vadd.f32 0.0, %v1443
      %1445 = vmatmul.f32.gmra.mxu0 %v751
      %v1446 = vpop.f32.mrf.mxu0
      %v1447 = vadd.f32 0.0, %v1446
      %1448 = vmatmul.f32.gmra.mxu0 %v754
      %v1449 = vpop.f32.mrf.mxu0
      %v1450 = vadd.f32 0.0, %v1449
      %1451 = vmatmul.f32.gmra.mxu0 %v757
      %v1452 = vpop.f32.mrf.mxu0
      %v1453 = vadd.f32 0.0, %v1452
      %1454 = vmatmul.f32.gmra.mxu0 %v760
      %v1455 = vpop.f32.mrf.mxu0
      %v1456 = vadd.f32 0.0, %v1455
      %1457 = vmatmul.f32.gmra.mxu0 %v763
      %v1458 = vpop.f32.mrf.mxu0
      %v1459 = vadd.f32 0.0, %v1458
      %1460 = vmatmul.f32.gmra.mxu0 %v766
      %v1461 = vpop.f32.mrf.mxu0
      %v1462 = vadd.f32 0.0, %v1461
      %1463 = vmatmul.f32.gmra.mxu0 %v769
      %v1464 = vpop.f32.mrf.mxu0
      %v1465 = vadd.f32 0.0, %v1464
      %1466 = vmatmul.f32.gmra.mxu0 %v772
      %v1467 = vpop.f32.mrf.mxu0
      %v1468 = vadd.f32 0.0, %v1467
      %1469 = vmatmul.f32.gmra.mxu0 %v775
      %v1470 = vpop.f32.mrf.mxu0
      %v1471 = vadd.f32 0.0, %v1470
      %1472 = vmatmul.f32.gmra.mxu0 %v778
      %v1473 = vpop.f32.mrf.mxu0
      %v1474 = vadd.f32 0.0, %v1473
      %1475 = vmatmul.f32.gmra.mxu0 %v781
      %v1476 = vpop.f32.mrf.mxu0
      %v1477 = vadd.f32 0.0, %v1476
      %1478 = vmatmul.f32.gmra.mxu0 %v784
      %v1479 = vpop.f32.mrf.mxu0
      %v1480 = vadd.f32 0.0, %v1479
      %1481 = vmatmul.f32.gmra.mxu0 %v787
      %v1482 = vpop.f32.mrf.mxu0
      %v1483 = vadd.f32 0.0, %v1482
      %1484 = vmatmul.f32.gmra.mxu0 %v790
      %v1485 = vpop.f32.mrf.mxu0
      %v1486 = vadd.f32 0.0, %v1485
      %1487 = vmatmul.f32.gmra.mxu0 %v793
      %v1488 = vpop.f32.mrf.mxu0
      %v1489 = vadd.f32 0.0, %v1488
      %1490 = vmatmul.f32.gmra.mxu0 %v796
      %v1491 = vpop.f32.mrf.mxu0
      %v1492 = vadd.f32 0.0, %v1491
      %1493 = vmatmul.f32.gmra.mxu0 %v799
      %v1494 = vpop.f32.mrf.mxu0
      %v1495 = vadd.f32 0.0, %v1494
      %1496 = vmatmul.f32.gmra.mxu0 %v802
      %v1497 = vpop.f32.mrf.mxu0
      %v1498 = vadd.f32 0.0, %v1497
      %1499 = vmatmul.f32.gmra.mxu0 %v805
      %v1500 = vpop.f32.mrf.mxu0
      %v1501 = vadd.f32 0.0, %v1500
      %1502 = vmatmul.f32.gmra.mxu0 %v808
      %v1503 = vpop.f32.mrf.mxu0
      %v1504 = vadd.f32 0.0, %v1503
      %1505 = vmatmul.f32.gmra.mxu0 %v811
      %v1506 = vpop.f32.mrf.mxu0
      %v1507 = vadd.f32 0.0, %v1506
      %1508 = vmatmul.f32.gmra.mxu0 %v814
      %v1509 = vpop.f32.mrf.mxu0
      %v1510 = vadd.f32 0.0, %v1509
      %1511 = vmatmul.f32.gmra.mxu0 %v817
      %v1512 = vpop.f32.mrf.mxu0
      %v1513 = vadd.f32 0.0, %v1512
      %1514 = vmatmul.f32.gmra.mxu0 %v820
      %v1515 = vpop.f32.mrf.mxu0
      %v1516 = vadd.f32 0.0, %v1515
      %1517 = vmatmul.f32.gmra.mxu0 %v823
      %v1518 = vpop.f32.mrf.mxu0
      %v1519 = vadd.f32 0.0, %v1518
      %1520 = vmatmul.f32.gmra.mxu0 %v826
      %v1521 = vpop.f32.mrf.mxu0
      %v1522 = vadd.f32 0.0, %v1521
      %1523 = vmatmul.f32.gmra.mxu0 %v829
      %v1524 = vpop.f32.mrf.mxu0
      %v1525 = vadd.f32 0.0, %v1524
      %1526 = vmatmul.f32.gmra.mxu0 %v832
      %v1527 = vpop.f32.mrf.mxu0
      %v1528 = vadd.f32 0.0, %v1527
      %1529 = vmatmul.f32.gmra.mxu0 %v835
      %v1530 = vpop.f32.mrf.mxu0
      %v1531 = vadd.f32 0.0, %v1530
      %1532 = vmatmul.f32.gmra.mxu0 %v838
      %v1533 = vpop.f32.mrf.mxu0
      %v1534 = vadd.f32 0.0, %v1533
      %1535 = vmatmul.f32.gmra.mxu0 %v841
      %v1536 = vpop.f32.mrf.mxu0
      %v1537 = vadd.f32 0.0, %v1536
      %1538 = vmatmul.f32.gmra.mxu0 %v844
      %v1539 = vpop.f32.mrf.mxu0
      %v1540 = vadd.f32 0.0, %v1539
      %1541 = vmatmul.f32.gmra.mxu0 %v847
      %v1542 = vpop.f32.mrf.mxu0
      %v1543 = vadd.f32 0.0, %v1542
      %1544 = vmatmul.f32.gmra.mxu0 %v850
      %v1545 = vpop.f32.mrf.mxu0
      %v1546 = vadd.f32 0.0, %v1545
      %1547 = vmatmul.f32.gmra.mxu0 %v853
      %v1548 = vpop.f32.mrf.mxu0
      %v1549 = vadd.f32 0.0, %v1548
      %1550 = vmatmul.f32.gmra.mxu0 %v856
      %v1551 = vpop.f32.mrf.mxu0
      %v1552 = vadd.f32 0.0, %v1551
      %1553 = vmatmul.f32.gmra.mxu0 %v859
      %v1554 = vpop.f32.mrf.mxu0
      %v1555 = vadd.f32 0.0, %v1554
      %1556 = vmatmul.f32.gmra.mxu0 %v862
      %v1557 = vpop.f32.mrf.mxu0
      %v1558 = vadd.f32 0.0, %v1557
      %1559 = vmatmul.f32.gmra.mxu0 %v865
      %v1560 = vpop.f32.mrf.mxu0
      %v1561 = vadd.f32 0.0, %v1560
      %1562 = vmatmul.f32.gmra.mxu0 %v868
      %v1563 = vpop.f32.mrf.mxu0
      %v1564 = vadd.f32 0.0, %v1563
      %1565 = vmatmul.f32.gmra.mxu0 %v871
      %v1566 = vpop.f32.mrf.mxu0
      %v1567 = vadd.f32 0.0, %v1566
      %1568 = vmatmul.f32.gmra.mxu0 %v874
      %v1569 = vpop.f32.mrf.mxu0
      %v1570 = vadd.f32 0.0, %v1569
      %1571 = vmatmul.f32.gmra.mxu0 %v877
      %v1572 = vpop.f32.mrf.mxu0
      %v1573 = vadd.f32 0.0, %v1572
      %1574 = vmatmul.f32.gmra.mxu0 %v880
      %v1575 = vpop.f32.mrf.mxu0
      %v1576 = vadd.f32 0.0, %v1575
      %1577 = vmatmul.f32.gmra.mxu0 %v883
      %v1578 = vpop.f32.mrf.mxu0
      %v1579 = vadd.f32 0.0, %v1578
      %1580 = vmatmul.f32.gmra.mxu0 %v886
      %v1581 = vpop.f32.mrf.mxu0
      %v1582 = vadd.f32 0.0, %v1581
      %1583 = vmatmul.f32.gmra.mxu0 %v889
      %v1584 = vpop.f32.mrf.mxu0
      %v1585 = vadd.f32 0.0, %v1584
      %1586 = vmatmul.f32.gmra.mxu0 %v892
      %v1587 = vpop.f32.mrf.mxu0
      %v1588 = vadd.f32 0.0, %v1587
      %1589 = vmatmul.f32.gmra.mxu0 %v895
      %v1590 = vpop.f32.mrf.mxu0
      %v1591 = vadd.f32 0.0, %v1590
      %1592 = vmatmul.f32.gmra.mxu0 %v898
      %v1593 = vpop.f32.mrf.mxu0
      %v1594 = vadd.f32 0.0, %v1593
      %1595 = vmatmul.f32.gmra.mxu0 %v901
      %v1596 = vpop.f32.mrf.mxu0
      %v1597 = vadd.f32 0.0, %v1596
      %1598 = vmatmul.f32.gmra.mxu0 %v904
      %v1599 = vpop.f32.mrf.mxu0
      %v1600 = vadd.f32 0.0, %v1599
      %1601 = vmatmul.f32.gmra.mxu0 %v907
      %v1602 = vpop.f32.mrf.mxu0
      %v1603 = vadd.f32 0.0, %v1602
      %1604 = vmatmul.f32.gmra.mxu0 %v910
      %v1605 = vpop.f32.mrf.mxu0
      %v1606 = vadd.f32 0.0, %v1605
      %1607 = vmatmul.f32.gmra.mxu0 %v913
      %v1608 = vpop.f32.mrf.mxu0
      %v1609 = vadd.f32 0.0, %v1608
      %1610 = vmatmul.f32.gmra.mxu0 %v916
      %v1611 = vpop.f32.mrf.mxu0
      %v1612 = vadd.f32 0.0, %v1611
      %1613 = vmatmul.f32.gmra.mxu0 %v919
      %v1614 = vpop.f32.mrf.mxu0
      %v1615 = vadd.f32 0.0, %v1614
      %1616 = vmatmul.f32.gmra.mxu0 %v922
      %v1617 = vpop.f32.mrf.mxu0
      %v1618 = vadd.f32 0.0, %v1617
      %1619 = vmatmul.f32.gmra.mxu0 %v925
      %v1620 = vpop.f32.mrf.mxu0
      %v1621 = vadd.f32 0.0, %v1620
      %1622 = vmatmul.f32.gmra.mxu0 %v928
      %v1623 = vpop.f32.mrf.mxu0
      %v1624 = vadd.f32 0.0, %v1623
      %1625 = vmatmul.f32.gmra.mxu0 %v931
      %v1626 = vpop.f32.mrf.mxu0
      %v1627 = vadd.f32 0.0, %v1626
      %1628 = vmatmul.f32.gmra.mxu0 %v934
      %v1629 = vpop.f32.mrf.mxu0
      %v1630 = vadd.f32 0.0, %v1629
      %1631 = vmatmul.f32.gmra.mxu0 %v937
      %v1632 = vpop.f32.mrf.mxu0
      %v1633 = vadd.f32 0.0, %v1632
      %1634 = vmatmul.f32.gmra.mxu0 %v940
      %v1635 = vpop.f32.mrf.mxu0
      %v1636 = vadd.f32 0.0, %v1635
      %1637 = vmatmul.f32.gmra.mxu0 %v943
      %v1638 = vpop.f32.mrf.mxu0
      %v1639 = vadd.f32 0.0, %v1638
      %1640 = vmatmul.f32.gmra.mxu0 %v946
      %v1641 = vpop.f32.mrf.mxu0
      %v1642 = vadd.f32 0.0, %v1641
      %1643 = vmatmul.f32.gmra.mxu0 %v949
      %v1644 = vpop.f32.mrf.mxu0
      %v1645 = vadd.f32 0.0, %v1644
      %1646 = vmatmul.f32.gmra.mxu0 %v952
      %v1647 = vpop.f32.mrf.mxu0
      %v1648 = vadd.f32 0.0, %v1647
      %1649 = vmatmul.f32.gmra.mxu0 %v955
      %v1650 = vpop.f32.mrf.mxu0
      %v1651 = vadd.f32 0.0, %v1650
      %1652 = vmatmul.f32.gmra.mxu0 %v958
      %v1653 = vpop.f32.mrf.mxu0
      %v1654 = vadd.f32 0.0, %v1653
      %1655 = vmatmul.f32.gmra.mxu0 %v961
      %v1656 = vpop.f32.mrf.mxu0
      %v1657 = vadd.f32 0.0, %v1656
      %1658 = vmatmul.f32.gmra.mxu0 %v964
      %v1659 = vpop.f32.mrf.mxu0
      %v1660 = vadd.f32 0.0, %v1659
      %1661 = vmatmul.f32.gmra.mxu0 %v967
      %v1662 = vpop.f32.mrf.mxu0
      %v1663 = vadd.f32 0.0, %v1662
      %1664 = vmatmul.f32.gmra.mxu0 %v970
      %v1665 = vpop.f32.mrf.mxu0
      %v1666 = vadd.f32 0.0, %v1665
      %1667 = vmatmul.f32.gmra.mxu0 %v973
      %v1668 = vpop.f32.mrf.mxu0
      %v1669 = vadd.f32 0.0, %v1668
      %1670 = vmatmul.f32.gmra.mxu0 %v976
      %v1671 = vpop.f32.mrf.mxu0
      %v1672 = vadd.f32 0.0, %v1671
      %1673 = vmatmul.f32.gmra.mxu0 %v979
      %v1674 = vpop.f32.mrf.mxu0
      %v1675 = vadd.f32 0.0, %v1674
      %1676 = vmatmul.f32.gmra.mxu0 %v982
      %v1677 = vpop.f32.mrf.mxu0
      %v1678 = vadd.f32 0.0, %v1677
      %1679 = vmatmul.f32.gmra.mxu0 %v985
      %v1680 = vpop.f32.mrf.mxu0
      %v1681 = vadd.f32 0.0, %v1680
      %1682 = vmatmul.f32.gmra.mxu0 %v988
      %v1683 = vpop.f32.mrf.mxu0
      %v1684 = vadd.f32 0.0, %v1683
      %1685 = vmatmul.f32.gmra.mxu0 %v991
      %v1686 = vpop.f32.mrf.mxu0
      %v1687 = vadd.f32 0.0, %v1686
      %1688 = vmatmul.f32.gmra.mxu0 %v994
      %v1689 = vpop.f32.mrf.mxu0
      %v1690 = vadd.f32 0.0, %v1689
      %1691 = vmatmul.f32.gmra.mxu0 %v997
      %v1692 = vpop.f32.mrf.mxu0
      %v1693 = vadd.f32 0.0, %v1692
      %1694 = vmatmul.f32.gmra.mxu0 %v1000
      %v1695 = vpop.f32.mrf.mxu0
      %v1696 = vadd.f32 0.0, %v1695
      %1697 = vmatmul.f32.gmra.mxu0 %v1003
      %v1698 = vpop.f32.mrf.mxu0
      %v1699 = vadd.f32 0.0, %v1698
      %1700 = vmatmul.f32.gmra.mxu0 %v1006
      %v1701 = vpop.f32.mrf.mxu0
      %v1702 = vadd.f32 0.0, %v1701
      %1703 = vmatmul.f32.gmra.mxu0 %v1009
      %v1704 = vpop.f32.mrf.mxu0
      %v1705 = vadd.f32 0.0, %v1704
      %1706 = vmatmul.f32.gmra.mxu0 %v1012
      %v1707 = vpop.f32.mrf.mxu0
      %v1708 = vadd.f32 0.0, %v1707
      %1709 = vmatmul.f32.gmra.mxu0 %v1015
      %v1710 = vpop.f32.mrf.mxu0
      %v1711 = vadd.f32 0.0, %v1710
      %1712 = vmatmul.f32.gmra.mxu0 %v1018
      %v1713 = vpop.f32.mrf.mxu0
      %v1714 = vadd.f32 0.0, %v1713
      %1715 = vmatmul.f32.gmra.mxu0 %v1021
      %v1716 = vpop.f32.mrf.mxu0
      %v1717 = vadd.f32 0.0, %v1716
      %1718 = vmatmul.f32.gmra.mxu0 %v1024
      %v1719 = vpop.f32.mrf.mxu0
      %v1720 = vadd.f32 0.0, %v1719
      %1721 = vmatmul.f32.gmra.mxu0 %v1027
      %v1722 = vpop.f32.mrf.mxu0
      %v1723 = vadd.f32 0.0, %v1722
      %1724 = vmatmul.f32.gmra.mxu0 %v1030
      %v1725 = vpop.f32.mrf.mxu0
      %v1726 = vadd.f32 0.0, %v1725
      %1727 = vmatmul.f32.gmra.mxu0 %v1033
      %v1728 = vpop.f32.mrf.mxu0
      %v1729 = vadd.f32 0.0, %v1728
      %1730 = vmatmul.f32.gmra.mxu0 %v1036
      %v1731 = vpop.f32.mrf.mxu0
      %v1732 = vadd.f32 0.0, %v1731
      %1733 = vmatmul.f32.gmra.mxu0 %v1039
      %v1734 = vpop.f32.mrf.mxu0
      %v1735 = vadd.f32 0.0, %v1734
      %1736 = vmatmul.f32.gmra.mxu0 %v1042
      %v1737 = vpop.f32.mrf.mxu0
      %v1738 = vadd.f32 0.0, %v1737
      %1739 = vmatmul.f32.gmra.mxu0 %v1045
      %v1740 = vpop.f32.mrf.mxu0
      %v1741 = vadd.f32 0.0, %v1740
      %1742 = vmatmul.f32.gmra.mxu0 %v1048
      %v1743 = vpop.f32.mrf.mxu0
      %v1744 = vadd.f32 0.0, %v1743
      %1745 = vmatmul.f32.gmra.mxu0 %v1051
      %v1746 = vpop.f32.mrf.mxu0
      %v1747 = vadd.f32 0.0, %v1746
      %1748 = vmatmul.f32.gmra.mxu0 %v1054
      %v1749 = vpop.f32.mrf.mxu0
      %v1750 = vadd.f32 0.0, %v1749
      %1751 = vmatmul.f32.gmra.mxu0 %v1057
      %v1752 = vpop.f32.mrf.mxu0
      %v1753 = vadd.f32 0.0, %v1752
      %1754 = vmatmul.f32.gmra.mxu0 %v1060
      %v1755 = vpop.f32.mrf.mxu0
      %v1756 = vadd.f32 0.0, %v1755
      %1757 = vmatmul.f32.gmra.mxu0 %v1063
      %v1758 = vpop.f32.mrf.mxu0
      %v1759 = vadd.f32 0.0, %v1758
      %1760 = vmatmul.f32.gmra.mxu0 %v1066
      %v1761 = vpop.f32.mrf.mxu0
      %v1762 = vadd.f32 0.0, %v1761
      %1763 = vmatmul.f32.gmra.mxu0 %v1069
      %v1764 = vpop.f32.mrf.mxu0
      %v1765 = vadd.f32 0.0, %v1764
      %1766 = vmatmul.f32.gmra.mxu0 %v1072
      %v1767 = vpop.f32.mrf.mxu0
      %v1768 = vadd.f32 0.0, %v1767
      %1769 = vmatmul.f32.gmra.mxu0 %v1075
      %v1770 = vpop.f32.mrf.mxu0
      %v1771 = vadd.f32 0.0, %v1770
      %1772 = vmatmul.f32.gmra.mxu0 %v1078
      %v1773 = vpop.f32.mrf.mxu0
      %v1774 = vadd.f32 0.0, %v1773
      %1775 = vmatmul.f32.gmra.mxu0 %v1081
      %v1776 = vpop.f32.mrf.mxu0
      %v1777 = vadd.f32 0.0, %v1776
      %1778 = vdwg.mxu0
      %s1779 = scalar_lea.vmem %s165, 1800
      %v1780 = vld [vmem:[%s1779] sm:$0xff]
      %v1781 = vld [vmem:[%s1779 + $0x8] sm:$0xff]
      %v1782 = vld [vmem:[%s1779 + $0x10] sm:$0xff]
      %v1783 = vld [vmem:[%s1779 + $0x18] sm:$0xff]
      %v1784 = vld [vmem:[%s1779 + $0x20] sm:$0xff]
      %v1785 = vld [vmem:[%s1779 + $0x28] sm:$0xff]
      %v1786 = vld [vmem:[%s1779 + $0x30] sm:$0xff]
      %v1787 = vld [vmem:[%s1779 + $0x38] sm:$0xff]
      %v1788 = vld [vmem:[%s1779 + $0x40] sm:$0xff]
      %v1789 = vld [vmem:[%s1779 + $0x48] sm:$0xff]
      %v1790 = vld [vmem:[%s1779 + $0x50] sm:$0xff]
      %v1791 = vld [vmem:[%s1779 + $0x58] sm:$0xff]
      %v1792 = vld [vmem:[%s1779 + $0x60] sm:$0xff]
      %v1793 = vld [vmem:[%s1779 + $0x68] sm:$0xff]
      %v1794 = vld [vmem:[%s1779 + $0x70] sm:$0xff]
      %v1795 = vld [vmem:[%s1779 + $0x78] sm:$0xff]
      %v1796 = vld [vmem:[%s1779 + $0x80] sm:$0xff]
      %v1797 = vld [vmem:[%s1779 + $0x88] sm:$0xff]
      %v1798 = vld [vmem:[%s1779 + $0x90] sm:$0xff]
      %v1799 = vld [vmem:[%s1779 + $0x98] sm:$0xff]
      %v1800 = vld [vmem:[%s1779 + $0xa0] sm:$0xff]
      %v1801 = vld [vmem:[%s1779 + $0xa8] sm:$0xff]
      %v1802 = vld [vmem:[%s1779 + $0xb0] sm:$0xff]
      %v1803 = vld [vmem:[%s1779 + $0xb8] sm:$0xff]
      %v1804 = vld [vmem:[%s1779 + $0xc0] sm:$0xff]
      %v1805 = vld [vmem:[%s1779 + $0xc8] sm:$0xff]
      %v1806 = vld [vmem:[%s1779 + $0xd0] sm:$0xff]
      %v1807 = vld [vmem:[%s1779 + $0xd8] sm:$0xff]
      %v1808 = vld [vmem:[%s1779 + $0xe0] sm:$0xff]
      %v1809 = vld [vmem:[%s1779 + $0xe8] sm:$0xff]
      %v1810 = vld [vmem:[%s1779 + $0xf0] sm:$0xff]
      %v1811 = vld [vmem:[%s1779 + $0xf8] sm:$0xff]
      %v1812 = vld [vmem:[%s1779 + $0x100] sm:$0xff]
      %v1813 = vld [vmem:[%s1779 + $0x108] sm:$0xff]
      %v1814 = vld [vmem:[%s1779 + $0x110] sm:$0xff]
      %v1815 = vld [vmem:[%s1779 + $0x118] sm:$0xff]
      %v1816 = vld [vmem:[%s1779 + $0x120] sm:$0xff]
      %v1817 = vld [vmem:[%s1779 + $0x128] sm:$0xff]
      %v1818 = vld [vmem:[%s1779 + $0x130] sm:$0xff]
      %v1819 = vld [vmem:[%s1779 + $0x138] sm:$0xff]
      %v1820 = vld [vmem:[%s1779 + $0x140] sm:$0xff]
      %v1821 = vld [vmem:[%s1779 + $0x148] sm:$0xff]
      %v1822 = vld [vmem:[%s1779 + $0x150] sm:$0xff]
      %v1823 = vld [vmem:[%s1779 + $0x158] sm:$0xff]
      %v1824 = vld [vmem:[%s1779 + $0x160] sm:$0xff]
      %v1825 = vld [vmem:[%s1779 + $0x168] sm:$0xff]
      %v1826 = vld [vmem:[%s1779 + $0x170] sm:$0xff]
      %v1827 = vld [vmem:[%s1779 + $0x178] sm:$0xff]
      %v1828 = vld [vmem:[%s1779 + $0x180] sm:$0xff]
      %v1829 = vld [vmem:[%s1779 + $0x188] sm:$0xff]
      %v1830 = vld [vmem:[%s1779 + $0x190] sm:$0xff]
      %v1831 = vld [vmem:[%s1779 + $0x198] sm:$0xff]
      %v1832 = vld [vmem:[%s1779 + $0x1a0] sm:$0xff]
      %v1833 = vld [vmem:[%s1779 + $0x1a8] sm:$0xff]
      %v1834 = vld [vmem:[%s1779 + $0x1b0] sm:$0xff]
      %v1835 = vld [vmem:[%s1779 + $0x1b8] sm:$0xff]
      %v1836 = vld [vmem:[%s1779 + $0x1c0] sm:$0xff]
      %v1837 = vld [vmem:[%s1779 + $0x1c8] sm:$0xff]
      %v1838 = vld [vmem:[%s1779 + $0x1d0] sm:$0xff]
      %v1839 = vld [vmem:[%s1779 + $0x1d8] sm:$0xff]
      %v1840 = vld [vmem:[%s1779 + $0x1e0] sm:$0xff]
      %v1841 = vld [vmem:[%s1779 + $0x1e8] sm:$0xff]
      %v1842 = vld [vmem:[%s1779 + $0x1f0] sm:$0xff]
      %v1843 = vld [vmem:[%s1779 + $0x1f8] sm:$0xff]
      %v1844 = vld [vmem:[%s1779 + $0x200] sm:$0xff]
      %v1845 = vld [vmem:[%s1779 + $0x208] sm:$0xff]
      %v1846 = vld [vmem:[%s1779 + $0x210] sm:$0xff]
      %v1847 = vld [vmem:[%s1779 + $0x218] sm:$0xff]
      %v1848 = vld [vmem:[%s1779 + $0x220] sm:$0xff]
      %v1849 = vld [vmem:[%s1779 + $0x228] sm:$0xff]
      %v1850 = vld [vmem:[%s1779 + $0x230] sm:$0xff]
      %v1851 = vld [vmem:[%s1779 + $0x238] sm:$0xff]
      %v1852 = vld [vmem:[%s1779 + $0x240] sm:$0xff]
      %v1853 = vld [vmem:[%s1779 + $0x248] sm:$0xff]
      %v1854 = vld [vmem:[%s1779 + $0x250] sm:$0xff]
      %v1855 = vld [vmem:[%s1779 + $0x258] sm:$0xff]
      %v1856 = vld [vmem:[%s1779 + $0x260] sm:$0xff]
      %v1857 = vld [vmem:[%s1779 + $0x268] sm:$0xff]
      %v1858 = vld [vmem:[%s1779 + $0x270] sm:$0xff]
      %v1859 = vld [vmem:[%s1779 + $0x278] sm:$0xff]
      %v1860 = vld [vmem:[%s1779 + $0x280] sm:$0xff]
      %v1861 = vld [vmem:[%s1779 + $0x288] sm:$0xff]
      %v1862 = vld [vmem:[%s1779 + $0x290] sm:$0xff]
      %v1863 = vld [vmem:[%s1779 + $0x298] sm:$0xff]
      %v1864 = vld [vmem:[%s1779 + $0x2a0] sm:$0xff]
      %v1865 = vld [vmem:[%s1779 + $0x2a8] sm:$0xff]
      %v1866 = vld [vmem:[%s1779 + $0x2b0] sm:$0xff]
      %v1867 = vld [vmem:[%s1779 + $0x2b8] sm:$0xff]
      %v1868 = vld [vmem:[%s1779 + $0x2c0] sm:$0xff]
      %v1869 = vld [vmem:[%s1779 + $0x2c8] sm:$0xff]
      %v1870 = vld [vmem:[%s1779 + $0x2d0] sm:$0xff]
      %v1871 = vld [vmem:[%s1779 + $0x2d8] sm:$0xff]
      %v1872 = vld [vmem:[%s1779 + $0x2e0] sm:$0xff]
      %v1873 = vld [vmem:[%s1779 + $0x2e8] sm:$0xff]
      %v1874 = vld [vmem:[%s1779 + $0x2f0] sm:$0xff]
      %v1875 = vld [vmem:[%s1779 + $0x2f8] sm:$0xff]
      %v1876 = vld [vmem:[%s1779 + $0x300] sm:$0xff]
      %v1877 = vld [vmem:[%s1779 + $0x308] sm:$0xff]
      %v1878 = vld [vmem:[%s1779 + $0x310] sm:$0xff]
      %v1879 = vld [vmem:[%s1779 + $0x318] sm:$0xff]
      %v1880 = vld [vmem:[%s1779 + $0x320] sm:$0xff]
      %v1881 = vld [vmem:[%s1779 + $0x328] sm:$0xff]
      %v1882 = vld [vmem:[%s1779 + $0x330] sm:$0xff]
      %v1883 = vld [vmem:[%s1779 + $0x338] sm:$0xff]
      %v1884 = vld [vmem:[%s1779 + $0x340] sm:$0xff]
      %v1885 = vld [vmem:[%s1779 + $0x348] sm:$0xff]
      %v1886 = vld [vmem:[%s1779 + $0x350] sm:$0xff]
      %v1887 = vld [vmem:[%s1779 + $0x358] sm:$0xff]
      %v1888 = vld [vmem:[%s1779 + $0x360] sm:$0xff]
      %v1889 = vld [vmem:[%s1779 + $0x368] sm:$0xff]
      %v1890 = vld [vmem:[%s1779 + $0x370] sm:$0xff]
      %v1891 = vld [vmem:[%s1779 + $0x378] sm:$0xff]
      %v1892 = vld [vmem:[%s1779 + $0x380] sm:$0xff]
      %v1893 = vld [vmem:[%s1779 + $0x388] sm:$0xff]
      %v1894 = vld [vmem:[%s1779 + $0x390] sm:$0xff]
      %v1895 = vld [vmem:[%s1779 + $0x398] sm:$0xff]
      %v1896 = vld [vmem:[%s1779 + $0x3a0] sm:$0xff]
      %v1897 = vld [vmem:[%s1779 + $0x3a8] sm:$0xff]
      %v1898 = vld [vmem:[%s1779 + $0x3b0] sm:$0xff]
      %v1899 = vld [vmem:[%s1779 + $0x3b8] sm:$0xff]
      %v1900 = vld [vmem:[%s1779 + $0x3c0] sm:$0xff]
      %v1901 = vld [vmem:[%s1779 + $0x3c8] sm:$0xff]
      %v1902 = vld [vmem:[%s1779 + $0x3d0] sm:$0xff]
      %v1903 = vld [vmem:[%s1779 + $0x3d8] sm:$0xff]
      %v1904 = vld [vmem:[%s1779 + $0x3e0] sm:$0xff]
      %v1905 = vld [vmem:[%s1779 + $0x3e8] sm:$0xff]
      %v1906 = vld [vmem:[%s1779 + $0x3f0] sm:$0xff]
      %v1907 = vld [vmem:[%s1779 + $0x3f8] sm:$0xff]
      %v1908 = vld [vmem:[%s1779 + $0x400] sm:$0xff]
      %v1909 = vld [vmem:[%s1779 + $0x408] sm:$0xff]
      %v1910 = vld [vmem:[%s1779 + $0x410] sm:$0xff]
      %v1911 = vld [vmem:[%s1779 + $0x418] sm:$0xff]
      %v1912 = vld [vmem:[%s1779 + $0x420] sm:$0xff]
      %v1913 = vld [vmem:[%s1779 + $0x428] sm:$0xff]
      %v1914 = vld [vmem:[%s1779 + $0x430] sm:$0xff]
      %v1915 = vld [vmem:[%s1779 + $0x438] sm:$0xff]
      %v1916 = vld [vmem:[%s1779 + $0x440] sm:$0xff]
      %v1917 = vld [vmem:[%s1779 + $0x448] sm:$0xff]
      %v1918 = vld [vmem:[%s1779 + $0x450] sm:$0xff]
      %v1919 = vld [vmem:[%s1779 + $0x458] sm:$0xff]
      %v1920 = vld [vmem:[%s1779 + $0x460] sm:$0xff]
      %v1921 = vld [vmem:[%s1779 + $0x468] sm:$0xff]
      %v1922 = vld [vmem:[%s1779 + $0x470] sm:$0xff]
      %v1923 = vld [vmem:[%s1779 + $0x478] sm:$0xff]
      %v1924 = vld [vmem:[%s1779 + $0x480] sm:$0xff]
      %v1925 = vld [vmem:[%s1779 + $0x488] sm:$0xff]
      %v1926 = vld [vmem:[%s1779 + $0x490] sm:$0xff]
      %v1927 = vld [vmem:[%s1779 + $0x498] sm:$0xff]
      %v1928 = vld [vmem:[%s1779 + $0x4a0] sm:$0xff]
      %v1929 = vld [vmem:[%s1779 + $0x4a8] sm:$0xff]
      %v1930 = vld [vmem:[%s1779 + $0x4b0] sm:$0xff]
      %v1931 = vld [vmem:[%s1779 + $0x4b8] sm:$0xff]
      %v1932 = vld [vmem:[%s1779 + $0x4c0] sm:$0xff]
      %v1933 = vld [vmem:[%s1779 + $0x4c8] sm:$0xff]
      %v1934 = vld [vmem:[%s1779 + $0x4d0] sm:$0xff]
      %v1935 = vld [vmem:[%s1779 + $0x4d8] sm:$0xff]
      %v1936 = vld [vmem:[%s1779 + $0x4e0] sm:$0xff]
      %v1937 = vld [vmem:[%s1779 + $0x4e8] sm:$0xff]
      %v1938 = vld [vmem:[%s1779 + $0x4f0] sm:$0xff]
      %v1939 = vld [vmem:[%s1779 + $0x4f8] sm:$0xff]
      %v1940 = vld [vmem:[%s1779 + $0x500] sm:$0xff]
      %v1941 = vld [vmem:[%s1779 + $0x508] sm:$0xff]
      %v1942 = vld [vmem:[%s1779 + $0x510] sm:$0xff]
      %v1943 = vld [vmem:[%s1779 + $0x518] sm:$0xff]
      %v1944 = vld [vmem:[%s1779 + $0x520] sm:$0xff]
      %v1945 = vld [vmem:[%s1779 + $0x528] sm:$0xff]
      %v1946 = vld [vmem:[%s1779 + $0x530] sm:$0xff]
      %v1947 = vld [vmem:[%s1779 + $0x538] sm:$0xff]
      %v1948 = vld [vmem:[%s1779 + $0x540] sm:$0xff]
      %v1949 = vld [vmem:[%s1779 + $0x548] sm:$0xff]
      %v1950 = vld [vmem:[%s1779 + $0x550] sm:$0xff]
      %v1951 = vld [vmem:[%s1779 + $0x558] sm:$0xff]
      %v1952 = vld [vmem:[%s1779 + $0x560] sm:$0xff]
      %v1953 = vld [vmem:[%s1779 + $0x568] sm:$0xff]
      %v1954 = vld [vmem:[%s1779 + $0x570] sm:$0xff]
      %v1955 = vld [vmem:[%s1779 + $0x578] sm:$0xff]
      %v1956 = vld [vmem:[%s1779 + $0x580] sm:$0xff]
      %v1957 = vld [vmem:[%s1779 + $0x588] sm:$0xff]
      %v1958 = vld [vmem:[%s1779 + $0x590] sm:$0xff]
      %v1959 = vld [vmem:[%s1779 + $0x598] sm:$0xff]
      %v1960 = vld [vmem:[%s1779 + $0x5a0] sm:$0xff]
      %v1961 = vld [vmem:[%s1779 + $0x5a8] sm:$0xff]
      %v1962 = vld [vmem:[%s1779 + $0x5b0] sm:$0xff]
      %v1963 = vld [vmem:[%s1779 + $0x5b8] sm:$0xff]
      %v1964 = vld [vmem:[%s1779 + $0x5c0] sm:$0xff]
      %v1965 = vld [vmem:[%s1779 + $0x5c8] sm:$0xff]
      %v1966 = vld [vmem:[%s1779 + $0x5d0] sm:$0xff]
      %v1967 = vld [vmem:[%s1779 + $0x5d8] sm:$0xff]
      %v1968 = vld [vmem:[%s1779 + $0x5e0] sm:$0xff]
      %v1969 = vld [vmem:[%s1779 + $0x5e8] sm:$0xff]
      %v1970 = vld [vmem:[%s1779 + $0x5f0] sm:$0xff]
      %v1971 = vld [vmem:[%s1779 + $0x5f8] sm:$0xff]
      %v1972 = vld [vmem:[%s1779 + $0x600] sm:$0xff]
      %v1973 = vld [vmem:[%s1779 + $0x608] sm:$0xff]
      %v1974 = vld [vmem:[%s1779 + $0x610] sm:$0xff]
      %v1975 = vld [vmem:[%s1779 + $0x618] sm:$0xff]
      %v1976 = vld [vmem:[%s1779 + $0x620] sm:$0xff]
      %v1977 = vld [vmem:[%s1779 + $0x628] sm:$0xff]
      %v1978 = vld [vmem:[%s1779 + $0x630] sm:$0xff]
      %v1979 = vld [vmem:[%s1779 + $0x638] sm:$0xff]
      %v1980 = vld [vmem:[%s1779 + $0x640] sm:$0xff]
      %v1981 = vld [vmem:[%s1779 + $0x648] sm:$0xff]
      %v1982 = vld [vmem:[%s1779 + $0x650] sm:$0xff]
      %v1983 = vld [vmem:[%s1779 + $0x658] sm:$0xff]
      %v1984 = vld [vmem:[%s1779 + $0x660] sm:$0xff]
      %v1985 = vld [vmem:[%s1779 + $0x668] sm:$0xff]
      %v1986 = vld [vmem:[%s1779 + $0x670] sm:$0xff]
      %v1987 = vld [vmem:[%s1779 + $0x678] sm:$0xff]
      %v1988 = vld [vmem:[%s1779 + $0x680] sm:$0xff]
      %v1989 = vld [vmem:[%s1779 + $0x688] sm:$0xff]
      %v1990 = vld [vmem:[%s1779 + $0x690] sm:$0xff]
      %v1991 = vld [vmem:[%s1779 + $0x698] sm:$0xff]
      %v1992 = vld [vmem:[%s1779 + $0x6a0] sm:$0xff]
      %v1993 = vld [vmem:[%s1779 + $0x6a8] sm:$0xff]
      %v1994 = vld [vmem:[%s1779 + $0x6b0] sm:$0xff]
      %v1995 = vld [vmem:[%s1779 + $0x6b8] sm:$0xff]
      %v1996 = vld [vmem:[%s1779 + $0x6c0] sm:$0xff]
      %v1997 = vld [vmem:[%s1779 + $0x6c8] sm:$0xff]
      %v1998 = vld [vmem:[%s1779 + $0x6d0] sm:$0xff]
      %v1999 = vld [vmem:[%s1779 + $0x6d8] sm:$0xff]
      %v2000 = vld [vmem:[%s1779 + $0x6e0] sm:$0xff]
      %v2001 = vld [vmem:[%s1779 + $0x6e8] sm:$0xff]
      %v2002 = vld [vmem:[%s1779 + $0x6f0] sm:$0xff]
      %v2003 = vld [vmem:[%s1779 + $0x6f8] sm:$0xff]
      %v2004 = vld [vmem:[%s1779 + $0x700] sm:$0xff]
      %v2006 = vsel %vm407, %v1780, 0
      %v2009 = vsel %vm407, %v1781, 0
      %v2012 = vsel %vm407, %v1782, 0
      %v2015 = vsel %vm407, %v1783, 0
      %v2018 = vsel %vm407, %v1784, 0
      %v2021 = vsel %vm407, %v1785, 0
      %v2024 = vsel %vm407, %v1786, 0
      %v2027 = vsel %vm407, %v1787, 0
      %v2030 = vsel %vm407, %v1788, 0
      %v2033 = vsel %vm407, %v1789, 0
      %v2036 = vsel %vm407, %v1790, 0
      %v2039 = vsel %vm407, %v1791, 0
      %v2042 = vsel %vm407, %v1792, 0
      %v2045 = vsel %vm407, %v1793, 0
      %v2048 = vsel %vm407, %v1794, 0
      %v2051 = vsel %vm407, %v1795, 0
      %v2054 = vsel %vm407, %v1796, 0
      %v2057 = vsel %vm407, %v1797, 0
      %v2060 = vsel %vm407, %v1798, 0
      %v2063 = vsel %vm407, %v1799, 0
      %v2066 = vsel %vm407, %v1800, 0
      %v2069 = vsel %vm407, %v1801, 0
      %v2072 = vsel %vm407, %v1802, 0
      %v2075 = vsel %vm407, %v1803, 0
      %v2078 = vsel %vm407, %v1804, 0
      %v2081 = vsel %vm407, %v1805, 0
      %v2084 = vsel %vm407, %v1806, 0
      %v2087 = vsel %vm407, %v1807, 0
      %v2090 = vsel %vm407, %v1808, 0
      %v2093 = vsel %vm407, %v1809, 0
      %v2096 = vsel %vm407, %v1810, 0
      %v2099 = vsel %vm407, %v1811, 0
      %v2102 = vsel %vm407, %v1812, 0
      %v2105 = vsel %vm407, %v1813, 0
      %v2108 = vsel %vm407, %v1814, 0
      %v2111 = vsel %vm407, %v1815, 0
      %v2114 = vsel %vm407, %v1816, 0
      %v2117 = vsel %vm407, %v1817, 0
      %v2120 = vsel %vm407, %v1818, 0
      %v2123 = vsel %vm407, %v1819, 0
      %v2126 = vsel %vm407, %v1820, 0
      %v2129 = vsel %vm407, %v1821, 0
      %v2132 = vsel %vm407, %v1822, 0
      %v2135 = vsel %vm407, %v1823, 0
      %v2138 = vsel %vm407, %v1824, 0
      %v2141 = vsel %vm407, %v1825, 0
      %v2144 = vsel %vm407, %v1826, 0
      %v2147 = vsel %vm407, %v1827, 0
      %v2150 = vsel %vm407, %v1828, 0
      %v2153 = vsel %vm407, %v1829, 0
      %v2156 = vsel %vm407, %v1830, 0
      %v2159 = vsel %vm407, %v1831, 0
      %v2162 = vsel %vm407, %v1832, 0
      %v2165 = vsel %vm407, %v1833, 0
      %v2168 = vsel %vm407, %v1834, 0
      %v2171 = vsel %vm407, %v1835, 0
      %v2174 = vsel %vm407, %v1836, 0
      %v2177 = vsel %vm407, %v1837, 0
      %v2180 = vsel %vm407, %v1838, 0
      %v2183 = vsel %vm407, %v1839, 0
      %v2186 = vsel %vm407, %v1840, 0
      %v2189 = vsel %vm407, %v1841, 0
      %v2192 = vsel %vm407, %v1842, 0
      %v2195 = vsel %vm407, %v1843, 0
      %v2198 = vsel %vm407, %v1844, 0
      %v2201 = vsel %vm407, %v1845, 0
      %v2204 = vsel %vm407, %v1846, 0
      %v2207 = vsel %vm407, %v1847, 0
      %v2210 = vsel %vm407, %v1848, 0
      %v2213 = vsel %vm407, %v1849, 0
      %v2216 = vsel %vm407, %v1850, 0
      %v2219 = vsel %vm407, %v1851, 0
      %v2222 = vsel %vm407, %v1852, 0
      %v2225 = vsel %vm407, %v1853, 0
      %v2228 = vsel %vm407, %v1854, 0
      %v2231 = vsel %vm407, %v1855, 0
      %v2234 = vsel %vm407, %v1856, 0
      %v2237 = vsel %vm407, %v1857, 0
      %v2240 = vsel %vm407, %v1858, 0
      %v2243 = vsel %vm407, %v1859, 0
      %v2246 = vsel %vm407, %v1860, 0
      %v2249 = vsel %vm407, %v1861, 0
      %v2252 = vsel %vm407, %v1862, 0
      %v2255 = vsel %vm407, %v1863, 0
      %v2258 = vsel %vm407, %v1864, 0
      %v2261 = vsel %vm407, %v1865, 0
      %v2264 = vsel %vm407, %v1866, 0
      %v2267 = vsel %vm407, %v1867, 0
      %v2270 = vsel %vm407, %v1868, 0
      %v2273 = vsel %vm407, %v1869, 0
      %v2276 = vsel %vm407, %v1870, 0
      %v2279 = vsel %vm407, %v1871, 0
      %v2282 = vsel %vm407, %v1872, 0
      %v2285 = vsel %vm407, %v1873, 0
      %v2288 = vsel %vm407, %v1874, 0
      %v2291 = vsel %vm407, %v1875, 0
      %v2294 = vsel %vm407, %v1876, 0
      %v2297 = vsel %vm407, %v1877, 0
      %v2300 = vsel %vm407, %v1878, 0
      %v2303 = vsel %vm407, %v1879, 0
      %v2306 = vsel %vm407, %v1880, 0
      %v2309 = vsel %vm407, %v1881, 0
      %v2312 = vsel %vm407, %v1882, 0
      %v2315 = vsel %vm407, %v1883, 0
      %v2318 = vsel %vm407, %v1884, 0
      %v2321 = vsel %vm407, %v1885, 0
      %v2324 = vsel %vm407, %v1886, 0
      %v2327 = vsel %vm407, %v1887, 0
      %v2330 = vsel %vm407, %v1888, 0
      %v2333 = vsel %vm407, %v1889, 0
      %v2336 = vsel %vm407, %v1890, 0
      %v2339 = vsel %vm407, %v1891, 0
      %v2342 = vsel %vm407, %v1892, 0
      %v2345 = vsel %vm407, %v1893, 0
      %v2348 = vsel %vm407, %v1894, 0
      %v2351 = vsel %vm407, %v1895, 0
      %v2354 = vsel %vm407, %v1896, 0
      %v2357 = vsel %vm407, %v1897, 0
      %v2360 = vsel %vm407, %v1898, 0
      %v2363 = vsel %vm407, %v1899, 0
      %v2366 = vsel %vm407, %v1900, 0
      %v2369 = vsel %vm407, %v1901, 0
      %v2372 = vsel %vm407, %v1902, 0
      %v2375 = vsel %vm407, %v1903, 0
      %v2378 = vsel %vm407, %v1904, 0
      %v2381 = vsel %vm407, %v1905, 0
      %v2384 = vsel %vm407, %v1906, 0
      %v2387 = vsel %vm407, %v1907, 0
      %v2390 = vsel %vm407, %v1908, 0
      %v2393 = vsel %vm407, %v1909, 0
      %v2396 = vsel %vm407, %v1910, 0
      %v2399 = vsel %vm407, %v1911, 0
      %v2402 = vsel %vm407, %v1912, 0
      %v2405 = vsel %vm407, %v1913, 0
      %v2408 = vsel %vm407, %v1914, 0
      %v2411 = vsel %vm407, %v1915, 0
      %v2414 = vsel %vm407, %v1916, 0
      %v2417 = vsel %vm407, %v1917, 0
      %v2420 = vsel %vm407, %v1918, 0
      %v2423 = vsel %vm407, %v1919, 0
      %v2426 = vsel %vm407, %v1920, 0
      %v2429 = vsel %vm407, %v1921, 0
      %v2432 = vsel %vm407, %v1922, 0
      %v2435 = vsel %vm407, %v1923, 0
      %v2438 = vsel %vm407, %v1924, 0
      %v2441 = vsel %vm407, %v1925, 0
      %v2444 = vsel %vm407, %v1926, 0
      %v2447 = vsel %vm407, %v1927, 0
      %v2450 = vsel %vm407, %v1928, 0
      %v2453 = vsel %vm407, %v1929, 0
      %v2456 = vsel %vm407, %v1930, 0
      %v2459 = vsel %vm407, %v1931, 0
      %v2462 = vsel %vm407, %v1932, 0
      %v2465 = vsel %vm407, %v1933, 0
      %v2468 = vsel %vm407, %v1934, 0
      %v2471 = vsel %vm407, %v1935, 0
      %v2474 = vsel %vm407, %v1936, 0
      %v2477 = vsel %vm407, %v1937, 0
      %v2480 = vsel %vm407, %v1938, 0
      %v2483 = vsel %vm407, %v1939, 0
      %v2486 = vsel %vm407, %v1940, 0
      %v2489 = vsel %vm407, %v1941, 0
      %v2492 = vsel %vm407, %v1942, 0
      %v2495 = vsel %vm407, %v1943, 0
      %v2498 = vsel %vm407, %v1944, 0
      %v2501 = vsel %vm407, %v1945, 0
      %v2504 = vsel %vm407, %v1946, 0
      %v2507 = vsel %vm407, %v1947, 0
      %v2510 = vsel %vm407, %v1948, 0
      %v2513 = vsel %vm407, %v1949, 0
      %v2516 = vsel %vm407, %v1950, 0
      %v2519 = vsel %vm407, %v1951, 0
      %v2522 = vsel %vm407, %v1952, 0
      %v2525 = vsel %vm407, %v1953, 0
      %v2528 = vsel %vm407, %v1954, 0
      %v2531 = vsel %vm407, %v1955, 0
      %v2534 = vsel %vm407, %v1956, 0
      %v2537 = vsel %vm407, %v1957, 0
      %v2540 = vsel %vm407, %v1958, 0
      %v2543 = vsel %vm407, %v1959, 0
      %v2546 = vsel %vm407, %v1960, 0
      %v2549 = vsel %vm407, %v1961, 0
      %v2552 = vsel %vm407, %v1962, 0
      %v2555 = vsel %vm407, %v1963, 0
      %v2558 = vsel %vm407, %v1964, 0
      %v2561 = vsel %vm407, %v1965, 0
      %v2564 = vsel %vm407, %v1966, 0
      %v2567 = vsel %vm407, %v1967, 0
      %v2570 = vsel %vm407, %v1968, 0
      %v2573 = vsel %vm407, %v1969, 0
      %v2576 = vsel %vm407, %v1970, 0
      %v2579 = vsel %vm407, %v1971, 0
      %v2582 = vsel %vm407, %v1972, 0
      %v2585 = vsel %vm407, %v1973, 0
      %v2588 = vsel %vm407, %v1974, 0
      %v2591 = vsel %vm407, %v1975, 0
      %v2594 = vsel %vm407, %v1976, 0
      %v2597 = vsel %vm407, %v1977, 0
      %v2600 = vsel %vm407, %v1978, 0
      %v2603 = vsel %vm407, %v1979, 0
      %v2606 = vsel %vm407, %v1980, 0
      %v2609 = vsel %vm407, %v1981, 0
      %v2612 = vsel %vm407, %v1982, 0
      %v2615 = vsel %vm407, %v1983, 0
      %v2618 = vsel %vm407, %v1984, 0
      %v2621 = vsel %vm407, %v1985, 0
      %v2624 = vsel %vm407, %v1986, 0
      %v2627 = vsel %vm407, %v1987, 0
      %v2630 = vsel %vm407, %v1988, 0
      %v2633 = vsel %vm407, %v1989, 0
      %v2636 = vsel %vm407, %v1990, 0
      %v2639 = vsel %vm407, %v1991, 0
      %v2642 = vsel %vm407, %v1992, 0
      %v2645 = vsel %vm407, %v1993, 0
      %v2648 = vsel %vm407, %v1994, 0
      %v2651 = vsel %vm407, %v1995, 0
      %v2654 = vsel %vm407, %v1996, 0
      %v2657 = vsel %vm407, %v1997, 0
      %v2660 = vsel %vm407, %v1998, 0
      %v2663 = vsel %vm407, %v1999, 0
      %v2666 = vsel %vm407, %v2000, 0
      %v2669 = vsel %vm407, %v2001, 0
      %v2672 = vsel %vm407, %v2002, 0
      %v2675 = vsel %vm407, %v2003, 0
      %v2678 = vsel %vm407, %v2004, 0
      %2680 = vmatpush.msra.mxu0 0.0
      %2681 = vmatpush.msra.mxu0 0.0
      %2682 = vmatpush.msra.mxu0 0.0
      %2683 = vmatpush.msra.mxu0 0.0
      %2684 = vmatpush.msra.mxu0 0.0
      %2685 = vmatpush.msra.mxu0 0.0
      %2686 = vmatpush.msra.mxu0 %v1085
      %2687 = vmatpush.msra.mxu0 %v180
      %2688 = vmatpush.msra.mxu0 %v179
      %2689 = vmatpush.msra.mxu0 %v178
      %2690 = vmatpush.msra.mxu0 %v177
      %2691 = vmatpush.msra.mxu0 %v176
      %2692 = vmatpush.msra.mxu0 %v175
      %2693 = vmatpush.msra.mxu0 %v174
      %2694 = vmatpush.msra.mxu0 %v173
      %2695 = vmatpush.msra.mxu0 %v172
      %2696 = vmatmul.f32.gmra.mxu0 %v2006
      %v2697 = vpop.f32.mrf.mxu0
      %v2698 = vadd.f32 0.0, %v2697
      %2699 = vmatmul.f32.gmra.mxu0 %v2009
      %v2700 = vpop.f32.mrf.mxu0
      %v2701 = vadd.f32 0.0, %v2700
      %2702 = vmatmul.f32.gmra.mxu0 %v2012
      %v2703 = vpop.f32.mrf.mxu0
      %v2704 = vadd.f32 0.0, %v2703
      %2705 = vmatmul.f32.gmra.mxu0 %v2015
      %v2706 = vpop.f32.mrf.mxu0
      %v2707 = vadd.f32 0.0, %v2706
      %2708 = vmatmul.f32.gmra.mxu0 %v2018
      %v2709 = vpop.f32.mrf.mxu0
      %v2710 = vadd.f32 0.0, %v2709
      %2711 = vmatmul.f32.gmra.mxu0 %v2021
      %v2712 = vpop.f32.mrf.mxu0
      %v2713 = vadd.f32 0.0, %v2712
      %2714 = vmatmul.f32.gmra.mxu0 %v2024
      %v2715 = vpop.f32.mrf.mxu0
      %v2716 = vadd.f32 0.0, %v2715
      %2717 = vmatmul.f32.gmra.mxu0 %v2027
      %v2718 = vpop.f32.mrf.mxu0
      %v2719 = vadd.f32 0.0, %v2718
      %2720 = vmatmul.f32.gmra.mxu0 %v2030
      %v2721 = vpop.f32.mrf.mxu0
      %v2722 = vadd.f32 0.0, %v2721
      %2723 = vmatmul.f32.gmra.mxu0 %v2033
      %v2724 = vpop.f32.mrf.mxu0
      %v2725 = vadd.f32 0.0, %v2724
      %2726 = vmatmul.f32.gmra.mxu0 %v2036
      %v2727 = vpop.f32.mrf.mxu0
      %v2728 = vadd.f32 0.0, %v2727
      %2729 = vmatmul.f32.gmra.mxu0 %v2039
      %v2730 = vpop.f32.mrf.mxu0
      %v2731 = vadd.f32 0.0, %v2730
      %2732 = vmatmul.f32.gmra.mxu0 %v2042
      %v2733 = vpop.f32.mrf.mxu0
      %v2734 = vadd.f32 0.0, %v2733
      %2735 = vmatmul.f32.gmra.mxu0 %v2045
      %v2736 = vpop.f32.mrf.mxu0
      %v2737 = vadd.f32 0.0, %v2736
      %2738 = vmatmul.f32.gmra.mxu0 %v2048
      %v2739 = vpop.f32.mrf.mxu0
      %v2740 = vadd.f32 0.0, %v2739
      %2741 = vmatmul.f32.gmra.mxu0 %v2051
      %v2742 = vpop.f32.mrf.mxu0
      %v2743 = vadd.f32 0.0, %v2742
      %2744 = vmatmul.f32.gmra.mxu0 %v2054
      %v2745 = vpop.f32.mrf.mxu0
      %v2746 = vadd.f32 0.0, %v2745
      %2747 = vmatmul.f32.gmra.mxu0 %v2057
      %v2748 = vpop.f32.mrf.mxu0
      %v2749 = vadd.f32 0.0, %v2748
      %2750 = vmatmul.f32.gmra.mxu0 %v2060
      %v2751 = vpop.f32.mrf.mxu0
      %v2752 = vadd.f32 0.0, %v2751
      %2753 = vmatmul.f32.gmra.mxu0 %v2063
      %v2754 = vpop.f32.mrf.mxu0
      %v2755 = vadd.f32 0.0, %v2754
      %2756 = vmatmul.f32.gmra.mxu0 %v2066
      %v2757 = vpop.f32.mrf.mxu0
      %v2758 = vadd.f32 0.0, %v2757
      %2759 = vmatmul.f32.gmra.mxu0 %v2069
      %v2760 = vpop.f32.mrf.mxu0
      %v2761 = vadd.f32 0.0, %v2760
      %2762 = vmatmul.f32.gmra.mxu0 %v2072
      %v2763 = vpop.f32.mrf.mxu0
      %v2764 = vadd.f32 0.0, %v2763
      %2765 = vmatmul.f32.gmra.mxu0 %v2075
      %v2766 = vpop.f32.mrf.mxu0
      %v2767 = vadd.f32 0.0, %v2766
      %2768 = vmatmul.f32.gmra.mxu0 %v2078
      %v2769 = vpop.f32.mrf.mxu0
      %v2770 = vadd.f32 0.0, %v2769
      %2771 = vmatmul.f32.gmra.mxu0 %v2081
      %v2772 = vpop.f32.mrf.mxu0
      %v2773 = vadd.f32 0.0, %v2772
      %2774 = vmatmul.f32.gmra.mxu0 %v2084
      %v2775 = vpop.f32.mrf.mxu0
      %v2776 = vadd.f32 0.0, %v2775
      %2777 = vmatmul.f32.gmra.mxu0 %v2087
      %v2778 = vpop.f32.mrf.mxu0
      %v2779 = vadd.f32 0.0, %v2778
      %2780 = vmatmul.f32.gmra.mxu0 %v2090
      %v2781 = vpop.f32.mrf.mxu0
      %v2782 = vadd.f32 0.0, %v2781
      %2783 = vmatmul.f32.gmra.mxu0 %v2093
      %v2784 = vpop.f32.mrf.mxu0
      %v2785 = vadd.f32 0.0, %v2784
      %2786 = vmatmul.f32.gmra.mxu0 %v2096
      %v2787 = vpop.f32.mrf.mxu0
      %v2788 = vadd.f32 0.0, %v2787
      %2789 = vmatmul.f32.gmra.mxu0 %v2099
      %v2790 = vpop.f32.mrf.mxu0
      %v2791 = vadd.f32 0.0, %v2790
      %2792 = vmatmul.f32.gmra.mxu0 %v2102
      %v2793 = vpop.f32.mrf.mxu0
      %v2794 = vadd.f32 0.0, %v2793
      %2795 = vmatmul.f32.gmra.mxu0 %v2105
      %v2796 = vpop.f32.mrf.mxu0
      %v2797 = vadd.f32 0.0, %v2796
      %2798 = vmatmul.f32.gmra.mxu0 %v2108
      %v2799 = vpop.f32.mrf.mxu0
      %v2800 = vadd.f32 0.0, %v2799
      %2801 = vmatmul.f32.gmra.mxu0 %v2111
      %v2802 = vpop.f32.mrf.mxu0
      %v2803 = vadd.f32 0.0, %v2802
      %2804 = vmatmul.f32.gmra.mxu0 %v2114
      %v2805 = vpop.f32.mrf.mxu0
      %v2806 = vadd.f32 0.0, %v2805
      %2807 = vmatmul.f32.gmra.mxu0 %v2117
      %v2808 = vpop.f32.mrf.mxu0
      %v2809 = vadd.f32 0.0, %v2808
      %2810 = vmatmul.f32.gmra.mxu0 %v2120
      %v2811 = vpop.f32.mrf.mxu0
      %v2812 = vadd.f32 0.0, %v2811
      %2813 = vmatmul.f32.gmra.mxu0 %v2123
      %v2814 = vpop.f32.mrf.mxu0
      %v2815 = vadd.f32 0.0, %v2814
      %2816 = vmatmul.f32.gmra.mxu0 %v2126
      %v2817 = vpop.f32.mrf.mxu0
      %v2818 = vadd.f32 0.0, %v2817
      %2819 = vmatmul.f32.gmra.mxu0 %v2129
      %v2820 = vpop.f32.mrf.mxu0
      %v2821 = vadd.f32 0.0, %v2820
      %2822 = vmatmul.f32.gmra.mxu0 %v2132
      %v2823 = vpop.f32.mrf.mxu0
      %v2824 = vadd.f32 0.0, %v2823
      %2825 = vmatmul.f32.gmra.mxu0 %v2135
      %v2826 = vpop.f32.mrf.mxu0
      %v2827 = vadd.f32 0.0, %v2826
      %2828 = vmatmul.f32.gmra.mxu0 %v2138
      %v2829 = vpop.f32.mrf.mxu0
      %v2830 = vadd.f32 0.0, %v2829
      %2831 = vmatmul.f32.gmra.mxu0 %v2141
      %v2832 = vpop.f32.mrf.mxu0
      %v2833 = vadd.f32 0.0, %v2832
      %2834 = vmatmul.f32.gmra.mxu0 %v2144
      %v2835 = vpop.f32.mrf.mxu0
      %v2836 = vadd.f32 0.0, %v2835
      %2837 = vmatmul.f32.gmra.mxu0 %v2147
      %v2838 = vpop.f32.mrf.mxu0
      %v2839 = vadd.f32 0.0, %v2838
      %2840 = vmatmul.f32.gmra.mxu0 %v2150
      %v2841 = vpop.f32.mrf.mxu0
      %v2842 = vadd.f32 0.0, %v2841
      %2843 = vmatmul.f32.gmra.mxu0 %v2153
      %v2844 = vpop.f32.mrf.mxu0
      %v2845 = vadd.f32 0.0, %v2844
      %2846 = vmatmul.f32.gmra.mxu0 %v2156
      %v2847 = vpop.f32.mrf.mxu0
      %v2848 = vadd.f32 0.0, %v2847
      %2849 = vmatmul.f32.gmra.mxu0 %v2159
      %v2850 = vpop.f32.mrf.mxu0
      %v2851 = vadd.f32 0.0, %v2850
      %2852 = vmatmul.f32.gmra.mxu0 %v2162
      %v2853 = vpop.f32.mrf.mxu0
      %v2854 = vadd.f32 0.0, %v2853
      %2855 = vmatmul.f32.gmra.mxu0 %v2165
      %v2856 = vpop.f32.mrf.mxu0
      %v2857 = vadd.f32 0.0, %v2856
      %2858 = vmatmul.f32.gmra.mxu0 %v2168
      %v2859 = vpop.f32.mrf.mxu0
      %v2860 = vadd.f32 0.0, %v2859
      %2861 = vmatmul.f32.gmra.mxu0 %v2171
      %v2862 = vpop.f32.mrf.mxu0
      %v2863 = vadd.f32 0.0, %v2862
      %2864 = vmatmul.f32.gmra.mxu0 %v2174
      %v2865 = vpop.f32.mrf.mxu0
      %v2866 = vadd.f32 0.0, %v2865
      %2867 = vmatmul.f32.gmra.mxu0 %v2177
      %v2868 = vpop.f32.mrf.mxu0
      %v2869 = vadd.f32 0.0, %v2868
      %2870 = vmatmul.f32.gmra.mxu0 %v2180
      %v2871 = vpop.f32.mrf.mxu0
      %v2872 = vadd.f32 0.0, %v2871
      %2873 = vmatmul.f32.gmra.mxu0 %v2183
      %v2874 = vpop.f32.mrf.mxu0
      %v2875 = vadd.f32 0.0, %v2874
      %2876 = vmatmul.f32.gmra.mxu0 %v2186
      %v2877 = vpop.f32.mrf.mxu0
      %v2878 = vadd.f32 0.0, %v2877
      %2879 = vmatmul.f32.gmra.mxu0 %v2189
      %v2880 = vpop.f32.mrf.mxu0
      %v2881 = vadd.f32 0.0, %v2880
      %2882 = vmatmul.f32.gmra.mxu0 %v2192
      %v2883 = vpop.f32.mrf.mxu0
      %v2884 = vadd.f32 0.0, %v2883
      %2885 = vmatmul.f32.gmra.mxu0 %v2195
      %v2886 = vpop.f32.mrf.mxu0
      %v2887 = vadd.f32 0.0, %v2886
      %2888 = vmatmul.f32.gmra.mxu0 %v2198
      %v2889 = vpop.f32.mrf.mxu0
      %v2890 = vadd.f32 0.0, %v2889
      %2891 = vmatmul.f32.gmra.mxu0 %v2201
      %v2892 = vpop.f32.mrf.mxu0
      %v2893 = vadd.f32 0.0, %v2892
      %2894 = vmatmul.f32.gmra.mxu0 %v2204
      %v2895 = vpop.f32.mrf.mxu0
      %v2896 = vadd.f32 0.0, %v2895
      %2897 = vmatmul.f32.gmra.mxu0 %v2207
      %v2898 = vpop.f32.mrf.mxu0
      %v2899 = vadd.f32 0.0, %v2898
      %2900 = vmatmul.f32.gmra.mxu0 %v2210
      %v2901 = vpop.f32.mrf.mxu0
      %v2902 = vadd.f32 0.0, %v2901
      %2903 = vmatmul.f32.gmra.mxu0 %v2213
      %v2904 = vpop.f32.mrf.mxu0
      %v2905 = vadd.f32 0.0, %v2904
      %2906 = vmatmul.f32.gmra.mxu0 %v2216
      %v2907 = vpop.f32.mrf.mxu0
      %v2908 = vadd.f32 0.0, %v2907
      %2909 = vmatmul.f32.gmra.mxu0 %v2219
      %v2910 = vpop.f32.mrf.mxu0
      %v2911 = vadd.f32 0.0, %v2910
      %2912 = vmatmul.f32.gmra.mxu0 %v2222
      %v2913 = vpop.f32.mrf.mxu0
      %v2914 = vadd.f32 0.0, %v2913
      %2915 = vmatmul.f32.gmra.mxu0 %v2225
      %v2916 = vpop.f32.mrf.mxu0
      %v2917 = vadd.f32 0.0, %v2916
      %2918 = vmatmul.f32.gmra.mxu0 %v2228
      %v2919 = vpop.f32.mrf.mxu0
      %v2920 = vadd.f32 0.0, %v2919
      %2921 = vmatmul.f32.gmra.mxu0 %v2231
      %v2922 = vpop.f32.mrf.mxu0
      %v2923 = vadd.f32 0.0, %v2922
      %2924 = vmatmul.f32.gmra.mxu0 %v2234
      %v2925 = vpop.f32.mrf.mxu0
      %v2926 = vadd.f32 0.0, %v2925
      %2927 = vmatmul.f32.gmra.mxu0 %v2237
      %v2928 = vpop.f32.mrf.mxu0
      %v2929 = vadd.f32 0.0, %v2928
      %2930 = vmatmul.f32.gmra.mxu0 %v2240
      %v2931 = vpop.f32.mrf.mxu0
      %v2932 = vadd.f32 0.0, %v2931
      %2933 = vmatmul.f32.gmra.mxu0 %v2243
      %v2934 = vpop.f32.mrf.mxu0
      %v2935 = vadd.f32 0.0, %v2934
      %2936 = vmatmul.f32.gmra.mxu0 %v2246
      %v2937 = vpop.f32.mrf.mxu0
      %v2938 = vadd.f32 0.0, %v2937
      %2939 = vmatmul.f32.gmra.mxu0 %v2249
      %v2940 = vpop.f32.mrf.mxu0
      %v2941 = vadd.f32 0.0, %v2940
      %2942 = vmatmul.f32.gmra.mxu0 %v2252
      %v2943 = vpop.f32.mrf.mxu0
      %v2944 = vadd.f32 0.0, %v2943
      %2945 = vmatmul.f32.gmra.mxu0 %v2255
      %v2946 = vpop.f32.mrf.mxu0
      %v2947 = vadd.f32 0.0, %v2946
      %2948 = vmatmul.f32.gmra.mxu0 %v2258
      %v2949 = vpop.f32.mrf.mxu0
      %v2950 = vadd.f32 0.0, %v2949
      %2951 = vmatmul.f32.gmra.mxu0 %v2261
      %v2952 = vpop.f32.mrf.mxu0
      %v2953 = vadd.f32 0.0, %v2952
      %2954 = vmatmul.f32.gmra.mxu0 %v2264
      %v2955 = vpop.f32.mrf.mxu0
      %v2956 = vadd.f32 0.0, %v2955
      %2957 = vmatmul.f32.gmra.mxu0 %v2267
      %v2958 = vpop.f32.mrf.mxu0
      %v2959 = vadd.f32 0.0, %v2958
      %2960 = vmatmul.f32.gmra.mxu0 %v2270
      %v2961 = vpop.f32.mrf.mxu0
      %v2962 = vadd.f32 0.0, %v2961
      %2963 = vmatmul.f32.gmra.mxu0 %v2273
      %v2964 = vpop.f32.mrf.mxu0
      %v2965 = vadd.f32 0.0, %v2964
      %2966 = vmatmul.f32.gmra.mxu0 %v2276
      %v2967 = vpop.f32.mrf.mxu0
      %v2968 = vadd.f32 0.0, %v2967
      %2969 = vmatmul.f32.gmra.mxu0 %v2279
      %v2970 = vpop.f32.mrf.mxu0
      %v2971 = vadd.f32 0.0, %v2970
      %2972 = vmatmul.f32.gmra.mxu0 %v2282
      %v2973 = vpop.f32.mrf.mxu0
      %v2974 = vadd.f32 0.0, %v2973
      %2975 = vmatmul.f32.gmra.mxu0 %v2285
      %v2976 = vpop.f32.mrf.mxu0
      %v2977 = vadd.f32 0.0, %v2976
      %2978 = vmatmul.f32.gmra.mxu0 %v2288
      %v2979 = vpop.f32.mrf.mxu0
      %v2980 = vadd.f32 0.0, %v2979
      %2981 = vmatmul.f32.gmra.mxu0 %v2291
      %v2982 = vpop.f32.mrf.mxu0
      %v2983 = vadd.f32 0.0, %v2982
      %2984 = vmatmul.f32.gmra.mxu0 %v2294
      %v2985 = vpop.f32.mrf.mxu0
      %v2986 = vadd.f32 0.0, %v2985
      %2987 = vmatmul.f32.gmra.mxu0 %v2297
      %v2988 = vpop.f32.mrf.mxu0
      %v2989 = vadd.f32 0.0, %v2988
      %2990 = vmatmul.f32.gmra.mxu0 %v2300
      %v2991 = vpop.f32.mrf.mxu0
      %v2992 = vadd.f32 0.0, %v2991
      %2993 = vmatmul.f32.gmra.mxu0 %v2303
      %v2994 = vpop.f32.mrf.mxu0
      %v2995 = vadd.f32 0.0, %v2994
      %2996 = vmatmul.f32.gmra.mxu0 %v2306
      %v2997 = vpop.f32.mrf.mxu0
      %v2998 = vadd.f32 0.0, %v2997
      %2999 = vmatmul.f32.gmra.mxu0 %v2309
      %v3000 = vpop.f32.mrf.mxu0
      %v3001 = vadd.f32 0.0, %v3000
      %3002 = vmatmul.f32.gmra.mxu0 %v2312
      %v3003 = vpop.f32.mrf.mxu0
      %v3004 = vadd.f32 0.0, %v3003
      %3005 = vmatmul.f32.gmra.mxu0 %v2315
      %v3006 = vpop.f32.mrf.mxu0
      %v3007 = vadd.f32 0.0, %v3006
      %3008 = vmatmul.f32.gmra.mxu0 %v2318
      %v3009 = vpop.f32.mrf.mxu0
      %v3010 = vadd.f32 0.0, %v3009
      %3011 = vmatmul.f32.gmra.mxu0 %v2321
      %v3012 = vpop.f32.mrf.mxu0
      %v3013 = vadd.f32 0.0, %v3012
      %3014 = vmatmul.f32.gmra.mxu0 %v2324
      %v3015 = vpop.f32.mrf.mxu0
      %v3016 = vadd.f32 0.0, %v3015
      %3017 = vmatmul.f32.gmra.mxu0 %v2327
      %v3018 = vpop.f32.mrf.mxu0
      %v3019 = vadd.f32 0.0, %v3018
      %3020 = vmatmul.f32.gmra.mxu0 %v2330
      %v3021 = vpop.f32.mrf.mxu0
      %v3022 = vadd.f32 0.0, %v3021
      %3023 = vmatmul.f32.gmra.mxu0 %v2333
      %v3024 = vpop.f32.mrf.mxu0
      %v3025 = vadd.f32 0.0, %v3024
      %3026 = vmatmul.f32.gmra.mxu0 %v2336
      %v3027 = vpop.f32.mrf.mxu0
      %v3028 = vadd.f32 0.0, %v3027
      %3029 = vmatmul.f32.gmra.mxu0 %v2339
      %v3030 = vpop.f32.mrf.mxu0
      %v3031 = vadd.f32 0.0, %v3030
      %3032 = vmatmul.f32.gmra.mxu0 %v2342
      %v3033 = vpop.f32.mrf.mxu0
      %v3034 = vadd.f32 0.0, %v3033
      %3035 = vmatmul.f32.gmra.mxu0 %v2345
      %v3036 = vpop.f32.mrf.mxu0
      %v3037 = vadd.f32 0.0, %v3036
      %3038 = vmatmul.f32.gmra.mxu0 %v2348
      %v3039 = vpop.f32.mrf.mxu0
      %v3040 = vadd.f32 0.0, %v3039
      %3041 = vmatmul.f32.gmra.mxu0 %v2351
      %v3042 = vpop.f32.mrf.mxu0
      %v3043 = vadd.f32 0.0, %v3042
      %3044 = vmatmul.f32.gmra.mxu0 %v2354
      %v3045 = vpop.f32.mrf.mxu0
      %v3046 = vadd.f32 0.0, %v3045
      %3047 = vmatmul.f32.gmra.mxu0 %v2357
      %v3048 = vpop.f32.mrf.mxu0
      %v3049 = vadd.f32 0.0, %v3048
      %3050 = vmatmul.f32.gmra.mxu0 %v2360
      %v3051 = vpop.f32.mrf.mxu0
      %v3052 = vadd.f32 0.0, %v3051
      %3053 = vmatmul.f32.gmra.mxu0 %v2363
      %v3054 = vpop.f32.mrf.mxu0
      %v3055 = vadd.f32 0.0, %v3054
      %3056 = vmatmul.f32.gmra.mxu0 %v2366
      %v3057 = vpop.f32.mrf.mxu0
      %v3058 = vadd.f32 0.0, %v3057
      %3059 = vmatmul.f32.gmra.mxu0 %v2369
      %v3060 = vpop.f32.mrf.mxu0
      %v3061 = vadd.f32 0.0, %v3060
      %3062 = vmatmul.f32.gmra.mxu0 %v2372
      %v3063 = vpop.f32.mrf.mxu0
      %v3064 = vadd.f32 0.0, %v3063
      %3065 = vmatmul.f32.gmra.mxu0 %v2375
      %v3066 = vpop.f32.mrf.mxu0
      %v3067 = vadd.f32 0.0, %v3066
      %3068 = vmatmul.f32.gmra.mxu0 %v2378
      %v3069 = vpop.f32.mrf.mxu0
      %v3070 = vadd.f32 0.0, %v3069
      %3071 = vmatmul.f32.gmra.mxu0 %v2381
      %v3072 = vpop.f32.mrf.mxu0
      %v3073 = vadd.f32 0.0, %v3072
      %3074 = vmatmul.f32.gmra.mxu0 %v2384
      %v3075 = vpop.f32.mrf.mxu0
      %v3076 = vadd.f32 0.0, %v3075
      %3077 = vmatmul.f32.gmra.mxu0 %v2387
      %v3078 = vpop.f32.mrf.mxu0
      %v3079 = vadd.f32 0.0, %v3078
      %3080 = vmatmul.f32.gmra.mxu0 %v2390
      %v3081 = vpop.f32.mrf.mxu0
      %v3082 = vadd.f32 0.0, %v3081
      %3083 = vmatmul.f32.gmra.mxu0 %v2393
      %v3084 = vpop.f32.mrf.mxu0
      %v3085 = vadd.f32 0.0, %v3084
      %3086 = vmatmul.f32.gmra.mxu0 %v2396
      %v3087 = vpop.f32.mrf.mxu0
      %v3088 = vadd.f32 0.0, %v3087
      %3089 = vmatmul.f32.gmra.mxu0 %v2399
      %v3090 = vpop.f32.mrf.mxu0
      %v3091 = vadd.f32 0.0, %v3090
      %3092 = vmatmul.f32.gmra.mxu0 %v2402
      %v3093 = vpop.f32.mrf.mxu0
      %v3094 = vadd.f32 0.0, %v3093
      %3095 = vmatmul.f32.gmra.mxu0 %v2405
      %v3096 = vpop.f32.mrf.mxu0
      %v3097 = vadd.f32 0.0, %v3096
      %3098 = vmatmul.f32.gmra.mxu0 %v2408
      %v3099 = vpop.f32.mrf.mxu0
      %v3100 = vadd.f32 0.0, %v3099
      %3101 = vmatmul.f32.gmra.mxu0 %v2411
      %v3102 = vpop.f32.mrf.mxu0
      %v3103 = vadd.f32 0.0, %v3102
      %3104 = vmatmul.f32.gmra.mxu0 %v2414
      %v3105 = vpop.f32.mrf.mxu0
      %v3106 = vadd.f32 0.0, %v3105
      %3107 = vmatmul.f32.gmra.mxu0 %v2417
      %v3108 = vpop.f32.mrf.mxu0
      %v3109 = vadd.f32 0.0, %v3108
      %3110 = vmatmul.f32.gmra.mxu0 %v2420
      %v3111 = vpop.f32.mrf.mxu0
      %v3112 = vadd.f32 0.0, %v3111
      %3113 = vmatmul.f32.gmra.mxu0 %v2423
      %v3114 = vpop.f32.mrf.mxu0
      %v3115 = vadd.f32 0.0, %v3114
      %3116 = vmatmul.f32.gmra.mxu0 %v2426
      %v3117 = vpop.f32.mrf.mxu0
      %v3118 = vadd.f32 0.0, %v3117
      %3119 = vmatmul.f32.gmra.mxu0 %v2429
      %v3120 = vpop.f32.mrf.mxu0
      %v3121 = vadd.f32 0.0, %v3120
      %3122 = vmatmul.f32.gmra.mxu0 %v2432
      %v3123 = vpop.f32.mrf.mxu0
      %v3124 = vadd.f32 0.0, %v3123
      %3125 = vmatmul.f32.gmra.mxu0 %v2435
      %v3126 = vpop.f32.mrf.mxu0
      %v3127 = vadd.f32 0.0, %v3126
      %3128 = vmatmul.f32.gmra.mxu0 %v2438
      %v3129 = vpop.f32.mrf.mxu0
      %v3130 = vadd.f32 0.0, %v3129
      %3131 = vmatmul.f32.gmra.mxu0 %v2441
      %v3132 = vpop.f32.mrf.mxu0
      %v3133 = vadd.f32 0.0, %v3132
      %3134 = vmatmul.f32.gmra.mxu0 %v2444
      %v3135 = vpop.f32.mrf.mxu0
      %v3136 = vadd.f32 0.0, %v3135
      %3137 = vmatmul.f32.gmra.mxu0 %v2447
      %v3138 = vpop.f32.mrf.mxu0
      %v3139 = vadd.f32 0.0, %v3138
      %3140 = vmatmul.f32.gmra.mxu0 %v2450
      %v3141 = vpop.f32.mrf.mxu0
      %v3142 = vadd.f32 0.0, %v3141
      %3143 = vmatmul.f32.gmra.mxu0 %v2453
      %v3144 = vpop.f32.mrf.mxu0
      %v3145 = vadd.f32 0.0, %v3144
      %3146 = vmatmul.f32.gmra.mxu0 %v2456
      %v3147 = vpop.f32.mrf.mxu0
      %v3148 = vadd.f32 0.0, %v3147
      %3149 = vmatmul.f32.gmra.mxu0 %v2459
      %v3150 = vpop.f32.mrf.mxu0
      %v3151 = vadd.f32 0.0, %v3150
      %3152 = vmatmul.f32.gmra.mxu0 %v2462
      %v3153 = vpop.f32.mrf.mxu0
      %v3154 = vadd.f32 0.0, %v3153
      %3155 = vmatmul.f32.gmra.mxu0 %v2465
      %v3156 = vpop.f32.mrf.mxu0
      %v3157 = vadd.f32 0.0, %v3156
      %3158 = vmatmul.f32.gmra.mxu0 %v2468
      %v3159 = vpop.f32.mrf.mxu0
      %v3160 = vadd.f32 0.0, %v3159
      %3161 = vmatmul.f32.gmra.mxu0 %v2471
      %v3162 = vpop.f32.mrf.mxu0
      %v3163 = vadd.f32 0.0, %v3162
      %3164 = vmatmul.f32.gmra.mxu0 %v2474
      %v3165 = vpop.f32.mrf.mxu0
      %v3166 = vadd.f32 0.0, %v3165
      %3167 = vmatmul.f32.gmra.mxu0 %v2477
      %v3168 = vpop.f32.mrf.mxu0
      %v3169 = vadd.f32 0.0, %v3168
      %3170 = vmatmul.f32.gmra.mxu0 %v2480
      %v3171 = vpop.f32.mrf.mxu0
      %v3172 = vadd.f32 0.0, %v3171
      %3173 = vmatmul.f32.gmra.mxu0 %v2483
      %v3174 = vpop.f32.mrf.mxu0
      %v3175 = vadd.f32 0.0, %v3174
      %3176 = vmatmul.f32.gmra.mxu0 %v2486
      %v3177 = vpop.f32.mrf.mxu0
      %v3178 = vadd.f32 0.0, %v3177
      %3179 = vmatmul.f32.gmra.mxu0 %v2489
      %v3180 = vpop.f32.mrf.mxu0
      %v3181 = vadd.f32 0.0, %v3180
      %3182 = vmatmul.f32.gmra.mxu0 %v2492
      %v3183 = vpop.f32.mrf.mxu0
      %v3184 = vadd.f32 0.0, %v3183
      %3185 = vmatmul.f32.gmra.mxu0 %v2495
      %v3186 = vpop.f32.mrf.mxu0
      %v3187 = vadd.f32 0.0, %v3186
      %3188 = vmatmul.f32.gmra.mxu0 %v2498
      %v3189 = vpop.f32.mrf.mxu0
      %v3190 = vadd.f32 0.0, %v3189
      %3191 = vmatmul.f32.gmra.mxu0 %v2501
      %v3192 = vpop.f32.mrf.mxu0
      %v3193 = vadd.f32 0.0, %v3192
      %3194 = vmatmul.f32.gmra.mxu0 %v2504
      %v3195 = vpop.f32.mrf.mxu0
      %v3196 = vadd.f32 0.0, %v3195
      %3197 = vmatmul.f32.gmra.mxu0 %v2507
      %v3198 = vpop.f32.mrf.mxu0
      %v3199 = vadd.f32 0.0, %v3198
      %3200 = vmatmul.f32.gmra.mxu0 %v2510
      %v3201 = vpop.f32.mrf.mxu0
      %v3202 = vadd.f32 0.0, %v3201
      %3203 = vmatmul.f32.gmra.mxu0 %v2513
      %v3204 = vpop.f32.mrf.mxu0
      %v3205 = vadd.f32 0.0, %v3204
      %3206 = vmatmul.f32.gmra.mxu0 %v2516
      %v3207 = vpop.f32.mrf.mxu0
      %v3208 = vadd.f32 0.0, %v3207
      %3209 = vmatmul.f32.gmra.mxu0 %v2519
      %v3210 = vpop.f32.mrf.mxu0
      %v3211 = vadd.f32 0.0, %v3210
      %3212 = vmatmul.f32.gmra.mxu0 %v2522
      %v3213 = vpop.f32.mrf.mxu0
      %v3214 = vadd.f32 0.0, %v3213
      %3215 = vmatmul.f32.gmra.mxu0 %v2525
      %v3216 = vpop.f32.mrf.mxu0
      %v3217 = vadd.f32 0.0, %v3216
      %3218 = vmatmul.f32.gmra.mxu0 %v2528
      %v3219 = vpop.f32.mrf.mxu0
      %v3220 = vadd.f32 0.0, %v3219
      %3221 = vmatmul.f32.gmra.mxu0 %v2531
      %v3222 = vpop.f32.mrf.mxu0
      %v3223 = vadd.f32 0.0, %v3222
      %3224 = vmatmul.f32.gmra.mxu0 %v2534
      %v3225 = vpop.f32.mrf.mxu0
      %v3226 = vadd.f32 0.0, %v3225
      %3227 = vmatmul.f32.gmra.mxu0 %v2537
      %v3228 = vpop.f32.mrf.mxu0
      %v3229 = vadd.f32 0.0, %v3228
      %3230 = vmatmul.f32.gmra.mxu0 %v2540
      %v3231 = vpop.f32.mrf.mxu0
      %v3232 = vadd.f32 0.0, %v3231
      %3233 = vmatmul.f32.gmra.mxu0 %v2543
      %v3234 = vpop.f32.mrf.mxu0
      %v3235 = vadd.f32 0.0, %v3234
      %3236 = vmatmul.f32.gmra.mxu0 %v2546
      %v3237 = vpop.f32.mrf.mxu0
      %v3238 = vadd.f32 0.0, %v3237
      %3239 = vmatmul.f32.gmra.mxu0 %v2549
      %v3240 = vpop.f32.mrf.mxu0
      %v3241 = vadd.f32 0.0, %v3240
      %3242 = vmatmul.f32.gmra.mxu0 %v2552
      %v3243 = vpop.f32.mrf.mxu0
      %v3244 = vadd.f32 0.0, %v3243
      %3245 = vmatmul.f32.gmra.mxu0 %v2555
      %v3246 = vpop.f32.mrf.mxu0
      %v3247 = vadd.f32 0.0, %v3246
      %3248 = vmatmul.f32.gmra.mxu0 %v2558
      %v3249 = vpop.f32.mrf.mxu0
      %v3250 = vadd.f32 0.0, %v3249
      %3251 = vmatmul.f32.gmra.mxu0 %v2561
      %v3252 = vpop.f32.mrf.mxu0
      %v3253 = vadd.f32 0.0, %v3252
      %3254 = vmatmul.f32.gmra.mxu0 %v2564
      %v3255 = vpop.f32.mrf.mxu0
      %v3256 = vadd.f32 0.0, %v3255
      %3257 = vmatmul.f32.gmra.mxu0 %v2567
      %v3258 = vpop.f32.mrf.mxu0
      %v3259 = vadd.f32 0.0, %v3258
      %3260 = vmatmul.f32.gmra.mxu0 %v2570
      %v3261 = vpop.f32.mrf.mxu0
      %v3262 = vadd.f32 0.0, %v3261
      %3263 = vmatmul.f32.gmra.mxu0 %v2573
      %v3264 = vpop.f32.mrf.mxu0
      %v3265 = vadd.f32 0.0, %v3264
      %3266 = vmatmul.f32.gmra.mxu0 %v2576
      %v3267 = vpop.f32.mrf.mxu0
      %v3268 = vadd.f32 0.0, %v3267
      %3269 = vmatmul.f32.gmra.mxu0 %v2579
      %v3270 = vpop.f32.mrf.mxu0
      %v3271 = vadd.f32 0.0, %v3270
      %3272 = vmatmul.f32.gmra.mxu0 %v2582
      %v3273 = vpop.f32.mrf.mxu0
      %v3274 = vadd.f32 0.0, %v3273
      %3275 = vmatmul.f32.gmra.mxu0 %v2585
      %v3276 = vpop.f32.mrf.mxu0
      %v3277 = vadd.f32 0.0, %v3276
      %3278 = vmatmul.f32.gmra.mxu0 %v2588
      %v3279 = vpop.f32.mrf.mxu0
      %v3280 = vadd.f32 0.0, %v3279
      %3281 = vmatmul.f32.gmra.mxu0 %v2591
      %v3282 = vpop.f32.mrf.mxu0
      %v3283 = vadd.f32 0.0, %v3282
      %3284 = vmatmul.f32.gmra.mxu0 %v2594
      %v3285 = vpop.f32.mrf.mxu0
      %v3286 = vadd.f32 0.0, %v3285
      %3287 = vmatmul.f32.gmra.mxu0 %v2597
      %v3288 = vpop.f32.mrf.mxu0
      %v3289 = vadd.f32 0.0, %v3288
      %3290 = vmatmul.f32.gmra.mxu0 %v2600
      %v3291 = vpop.f32.mrf.mxu0
      %v3292 = vadd.f32 0.0, %v3291
      %3293 = vmatmul.f32.gmra.mxu0 %v2603
      %v3294 = vpop.f32.mrf.mxu0
      %v3295 = vadd.f32 0.0, %v3294
      %3296 = vmatmul.f32.gmra.mxu0 %v2606
      %v3297 = vpop.f32.mrf.mxu0
      %v3298 = vadd.f32 0.0, %v3297
      %3299 = vmatmul.f32.gmra.mxu0 %v2609
      %v3300 = vpop.f32.mrf.mxu0
      %v3301 = vadd.f32 0.0, %v3300
      %3302 = vmatmul.f32.gmra.mxu0 %v2612
      %v3303 = vpop.f32.mrf.mxu0
      %v3304 = vadd.f32 0.0, %v3303
      %3305 = vmatmul.f32.gmra.mxu0 %v2615
      %v3306 = vpop.f32.mrf.mxu0
      %v3307 = vadd.f32 0.0, %v3306
      %3308 = vmatmul.f32.gmra.mxu0 %v2618
      %v3309 = vpop.f32.mrf.mxu0
      %v3310 = vadd.f32 0.0, %v3309
      %3311 = vmatmul.f32.gmra.mxu0 %v2621
      %v3312 = vpop.f32.mrf.mxu0
      %v3313 = vadd.f32 0.0, %v3312
      %3314 = vmatmul.f32.gmra.mxu0 %v2624
      %v3315 = vpop.f32.mrf.mxu0
      %v3316 = vadd.f32 0.0, %v3315
      %3317 = vmatmul.f32.gmra.mxu0 %v2627
      %v3318 = vpop.f32.mrf.mxu0
      %v3319 = vadd.f32 0.0, %v3318
      %3320 = vmatmul.f32.gmra.mxu0 %v2630
      %v3321 = vpop.f32.mrf.mxu0
      %v3322 = vadd.f32 0.0, %v3321
      %3323 = vmatmul.f32.gmra.mxu0 %v2633
      %v3324 = vpop.f32.mrf.mxu0
      %v3325 = vadd.f32 0.0, %v3324
      %3326 = vmatmul.f32.gmra.mxu0 %v2636
      %v3327 = vpop.f32.mrf.mxu0
      %v3328 = vadd.f32 0.0, %v3327
      %3329 = vmatmul.f32.gmra.mxu0 %v2639
      %v3330 = vpop.f32.mrf.mxu0
      %v3331 = vadd.f32 0.0, %v3330
      %3332 = vmatmul.f32.gmra.mxu0 %v2642
      %v3333 = vpop.f32.mrf.mxu0
      %v3334 = vadd.f32 0.0, %v3333
      %3335 = vmatmul.f32.gmra.mxu0 %v2645
      %v3336 = vpop.f32.mrf.mxu0
      %v3337 = vadd.f32 0.0, %v3336
      %3338 = vmatmul.f32.gmra.mxu0 %v2648
      %v3339 = vpop.f32.mrf.mxu0
      %v3340 = vadd.f32 0.0, %v3339
      %3341 = vmatmul.f32.gmra.mxu0 %v2651
      %v3342 = vpop.f32.mrf.mxu0
      %v3343 = vadd.f32 0.0, %v3342
      %3344 = vmatmul.f32.gmra.mxu0 %v2654
      %v3345 = vpop.f32.mrf.mxu0
      %v3346 = vadd.f32 0.0, %v3345
      %3347 = vmatmul.f32.gmra.mxu0 %v2657
      %v3348 = vpop.f32.mrf.mxu0
      %v3349 = vadd.f32 0.0, %v3348
      %3350 = vmatmul.f32.gmra.mxu0 %v2660
      %v3351 = vpop.f32.mrf.mxu0
      %v3352 = vadd.f32 0.0, %v3351
      %3353 = vmatmul.f32.gmra.mxu0 %v2663
      %v3354 = vpop.f32.mrf.mxu0
      %v3355 = vadd.f32 0.0, %v3354
      %3356 = vmatmul.f32.gmra.mxu0 %v2666
      %v3357 = vpop.f32.mrf.mxu0
      %v3358 = vadd.f32 0.0, %v3357
      %3359 = vmatmul.f32.gmra.mxu0 %v2669
      %v3360 = vpop.f32.mrf.mxu0
      %v3361 = vadd.f32 0.0, %v3360
      %3362 = vmatmul.f32.gmra.mxu0 %v2672
      %v3363 = vpop.f32.mrf.mxu0
      %v3364 = vadd.f32 0.0, %v3363
      %3365 = vmatmul.f32.gmra.mxu0 %v2675
      %v3366 = vpop.f32.mrf.mxu0
      %v3367 = vadd.f32 0.0, %v3366
      %3368 = vmatmul.f32.gmra.mxu0 %v2678
      %v3369 = vpop.f32.mrf.mxu0
      %v3370 = vadd.f32 0.0, %v3369
      %3371 = vdwg.mxu0
      %v3372 = vmax.f32 %v1105, %v2698
      %v3373 = vmax.f32 %v1108, %v2701
      %v3374 = vmax.f32 %v1111, %v2704
      %v3375 = vmax.f32 %v1114, %v2707
      %v3376 = vmax.f32 %v1117, %v2710
      %v3377 = vmax.f32 %v1120, %v2713
      %v3378 = vmax.f32 %v1123, %v2716
      %v3379 = vmax.f32 %v1126, %v2719
      %v3380 = vmax.f32 %v1129, %v2722
      %v3381 = vmax.f32 %v1132, %v2725
      %v3382 = vmax.f32 %v1135, %v2728
      %v3383 = vmax.f32 %v1138, %v2731
      %v3384 = vmax.f32 %v1141, %v2734
      %v3385 = vmax.f32 %v1144, %v2737
      %v3386 = vmax.f32 %v1147, %v2740
      %v3387 = vmax.f32 %v1150, %v2743
      %v3388 = vmax.f32 %v1153, %v2746
      %v3389 = vmax.f32 %v1156, %v2749
      %v3390 = vmax.f32 %v1159, %v2752
      %v3391 = vmax.f32 %v1162, %v2755
      %v3392 = vmax.f32 %v1165, %v2758
      %v3393 = vmax.f32 %v1168, %v2761
      %v3394 = vmax.f32 %v1171, %v2764
      %v3395 = vmax.f32 %v1174, %v2767
      %v3396 = vmax.f32 %v1177, %v2770
      %v3397 = vmax.f32 %v1180, %v2773
      %v3398 = vmax.f32 %v1183, %v2776
      %v3399 = vmax.f32 %v1186, %v2779
      %v3400 = vmax.f32 %v1189, %v2782
      %v3401 = vmax.f32 %v1192, %v2785
      %v3402 = vmax.f32 %v1195, %v2788
      %v3403 = vmax.f32 %v1198, %v2791
      %v3404 = vmax.f32 %v1201, %v2794
      %v3405 = vmax.f32 %v1204, %v2797
      %v3406 = vmax.f32 %v1207, %v2800
      %v3407 = vmax.f32 %v1210, %v2803
      %v3408 = vmax.f32 %v1213, %v2806
      %v3409 = vmax.f32 %v1216, %v2809
      %v3410 = vmax.f32 %v1219, %v2812
      %v3411 = vmax.f32 %v1222, %v2815
      %v3412 = vmax.f32 %v1225, %v2818
      %v3413 = vmax.f32 %v1228, %v2821
      %v3414 = vmax.f32 %v1231, %v2824
      %v3415 = vmax.f32 %v1234, %v2827
      %v3416 = vmax.f32 %v1237, %v2830
      %v3417 = vmax.f32 %v1240, %v2833
      %v3418 = vmax.f32 %v1243, %v2836
      %v3419 = vmax.f32 %v1246, %v2839
      %v3420 = vmax.f32 %v1249, %v2842
      %v3421 = vmax.f32 %v1252, %v2845
      %v3422 = vmax.f32 %v1255, %v2848
      %v3423 = vmax.f32 %v1258, %v2851
      %v3424 = vmax.f32 %v1261, %v2854
      %v3425 = vmax.f32 %v1264, %v2857
      %v3426 = vmax.f32 %v1267, %v2860
      %v3427 = vmax.f32 %v1270, %v2863
      %v3428 = vmax.f32 %v1273, %v2866
      %v3429 = vmax.f32 %v1276, %v2869
      %v3430 = vmax.f32 %v1279, %v2872
      %v3431 = vmax.f32 %v1282, %v2875
      %v3432 = vmax.f32 %v1285, %v2878
      %v3433 = vmax.f32 %v1288, %v2881
      %v3434 = vmax.f32 %v1291, %v2884
      %v3435 = vmax.f32 %v1294, %v2887
      %v3436 = vmax.f32 %v1297, %v2890
      %v3437 = vmax.f32 %v1300, %v2893
      %v3438 = vmax.f32 %v1303, %v2896
      %v3439 = vmax.f32 %v1306, %v2899
      %v3440 = vmax.f32 %v1309, %v2902
      %v3441 = vmax.f32 %v1312, %v2905
      %v3442 = vmax.f32 %v1315, %v2908
      %v3443 = vmax.f32 %v1318, %v2911
      %v3444 = vmax.f32 %v1321, %v2914
      %v3445 = vmax.f32 %v1324, %v2917
      %v3446 = vmax.f32 %v1327, %v2920
      %v3447 = vmax.f32 %v1330, %v2923
      %v3448 = vmax.f32 %v1333, %v2926
      %v3449 = vmax.f32 %v1336, %v2929
      %v3450 = vmax.f32 %v1339, %v2932
      %v3451 = vmax.f32 %v1342, %v2935
      %v3452 = vmax.f32 %v1345, %v2938
      %v3453 = vmax.f32 %v1348, %v2941
      %v3454 = vmax.f32 %v1351, %v2944
      %v3455 = vmax.f32 %v1354, %v2947
      %v3456 = vmax.f32 %v1357, %v2950
      %v3457 = vmax.f32 %v1360, %v2953
      %v3458 = vmax.f32 %v1363, %v2956
      %v3459 = vmax.f32 %v1366, %v2959
      %v3460 = vmax.f32 %v1369, %v2962
      %v3461 = vmax.f32 %v1372, %v2965
      %v3462 = vmax.f32 %v1375, %v2968
      %v3463 = vmax.f32 %v1378, %v2971
      %v3464 = vmax.f32 %v1381, %v2974
      %v3465 = vmax.f32 %v1384, %v2977
      %v3466 = vmax.f32 %v1387, %v2980
      %v3467 = vmax.f32 %v1390, %v2983
      %v3468 = vmax.f32 %v1393, %v2986
      %v3469 = vmax.f32 %v1396, %v2989
      %v3470 = vmax.f32 %v1399, %v2992
      %v3471 = vmax.f32 %v1402, %v2995
      %v3472 = vmax.f32 %v1405, %v2998
      %v3473 = vmax.f32 %v1408, %v3001
      %v3474 = vmax.f32 %v1411, %v3004
      %v3475 = vmax.f32 %v1414, %v3007
      %v3476 = vmax.f32 %v1417, %v3010
      %v3477 = vmax.f32 %v1420, %v3013
      %v3478 = vmax.f32 %v1423, %v3016
      %v3479 = vmax.f32 %v1426, %v3019
      %v3480 = vmax.f32 %v1429, %v3022
      %v3481 = vmax.f32 %v1432, %v3025
      %v3482 = vmax.f32 %v1435, %v3028
      %v3483 = vmax.f32 %v1438, %v3031
      %v3484 = vmax.f32 %v1441, %v3034
      %v3485 = vmax.f32 %v1444, %v3037
      %v3486 = vmax.f32 %v1447, %v3040
      %v3487 = vmax.f32 %v1450, %v3043
      %v3488 = vmax.f32 %v1453, %v3046
      %v3489 = vmax.f32 %v1456, %v3049
      %v3490 = vmax.f32 %v1459, %v3052
      %v3491 = vmax.f32 %v1462, %v3055
      %v3492 = vmax.f32 %v1465, %v3058
      %v3493 = vmax.f32 %v1468, %v3061
      %v3494 = vmax.f32 %v1471, %v3064
      %v3495 = vmax.f32 %v1474, %v3067
      %v3496 = vmax.f32 %v1477, %v3070
      %v3497 = vmax.f32 %v1480, %v3073
      %v3498 = vmax.f32 %v1483, %v3076
      %v3499 = vmax.f32 %v1486, %v3079
      %v3500 = vmax.f32 %v1489, %v3082
      %v3501 = vmax.f32 %v1492, %v3085
      %v3502 = vmax.f32 %v1495, %v3088
      %v3503 = vmax.f32 %v1498, %v3091
      %v3504 = vmax.f32 %v1501, %v3094
      %v3505 = vmax.f32 %v1504, %v3097
      %v3506 = vmax.f32 %v1507, %v3100
      %v3507 = vmax.f32 %v1510, %v3103
      %v3508 = vmax.f32 %v1513, %v3106
      %v3509 = vmax.f32 %v1516, %v3109
      %v3510 = vmax.f32 %v1519, %v3112
      %v3511 = vmax.f32 %v1522, %v3115
      %v3512 = vmax.f32 %v1525, %v3118
      %v3513 = vmax.f32 %v1528, %v3121
      %v3514 = vmax.f32 %v1531, %v3124
      %v3515 = vmax.f32 %v1534, %v3127
      %v3516 = vmax.f32 %v1537, %v3130
      %v3517 = vmax.f32 %v1540, %v3133
      %v3518 = vmax.f32 %v1543, %v3136
      %v3519 = vmax.f32 %v1546, %v3139
      %v3520 = vmax.f32 %v1549, %v3142
      %v3521 = vmax.f32 %v1552, %v3145
      %v3522 = vmax.f32 %v1555, %v3148
      %v3523 = vmax.f32 %v1558, %v3151
      %v3524 = vmax.f32 %v1561, %v3154
      %v3525 = vmax.f32 %v1564, %v3157
      %v3526 = vmax.f32 %v1567, %v3160
      %v3527 = vmax.f32 %v1570, %v3163
      %v3528 = vmax.f32 %v1573, %v3166
      %v3529 = vmax.f32 %v1576, %v3169
      %v3530 = vmax.f32 %v1579, %v3172
      %v3531 = vmax.f32 %v1582, %v3175
      %v3532 = vmax.f32 %v1585, %v3178
      %v3533 = vmax.f32 %v1588, %v3181
      %v3534 = vmax.f32 %v1591, %v3184
      %v3535 = vmax.f32 %v1594, %v3187
      %v3536 = vmax.f32 %v1597, %v3190
      %v3537 = vmax.f32 %v1600, %v3193
      %v3538 = vmax.f32 %v1603, %v3196
      %v3539 = vmax.f32 %v1606, %v3199
      %v3540 = vmax.f32 %v1609, %v3202
      %v3541 = vmax.f32 %v1612, %v3205
      %v3542 = vmax.f32 %v1615, %v3208
      %v3543 = vmax.f32 %v1618, %v3211
      %v3544 = vmax.f32 %v1621, %v3214
      %v3545 = vmax.f32 %v1624, %v3217
      %v3546 = vmax.f32 %v1627, %v3220
      %v3547 = vmax.f32 %v1630, %v3223
      %v3548 = vmax.f32 %v1633, %v3226
      %v3549 = vmax.f32 %v1636, %v3229
      %v3550 = vmax.f32 %v1639, %v3232
      %v3551 = vmax.f32 %v1642, %v3235
      %v3552 = vmax.f32 %v1645, %v3238
      %v3553 = vmax.f32 %v1648, %v3241
      %v3554 = vmax.f32 %v1651, %v3244
      %v3555 = vmax.f32 %v1654, %v3247
      %v3556 = vmax.f32 %v1657, %v3250
      %v3557 = vmax.f32 %v1660, %v3253
      %v3558 = vmax.f32 %v1663, %v3256
      %v3559 = vmax.f32 %v1666, %v3259
      %v3560 = vmax.f32 %v1669, %v3262
      %v3561 = vmax.f32 %v1672, %v3265
      %v3562 = vmax.f32 %v1675, %v3268
      %v3563 = vmax.f32 %v1678, %v3271
      %v3564 = vmax.f32 %v1681, %v3274
      %v3565 = vmax.f32 %v1684, %v3277
      %v3566 = vmax.f32 %v1687, %v3280
      %v3567 = vmax.f32 %v1690, %v3283
      %v3568 = vmax.f32 %v1693, %v3286
      %v3569 = vmax.f32 %v1696, %v3289
      %v3570 = vmax.f32 %v1699, %v3292
      %v3571 = vmax.f32 %v1702, %v3295
      %v3572 = vmax.f32 %v1705, %v3298
      %v3573 = vmax.f32 %v1708, %v3301
      %v3574 = vmax.f32 %v1711, %v3304
      %v3575 = vmax.f32 %v1714, %v3307
      %v3576 = vmax.f32 %v1717, %v3310
      %v3577 = vmax.f32 %v1720, %v3313
      %v3578 = vmax.f32 %v1723, %v3316
      %v3579 = vmax.f32 %v1726, %v3319
      %v3580 = vmax.f32 %v1729, %v3322
      %v3581 = vmax.f32 %v1732, %v3325
      %v3582 = vmax.f32 %v1735, %v3328
      %v3583 = vmax.f32 %v1738, %v3331
      %v3584 = vmax.f32 %v1741, %v3334
      %v3585 = vmax.f32 %v1744, %v3337
      %v3586 = vmax.f32 %v1747, %v3340
      %v3587 = vmax.f32 %v1750, %v3343
      %v3588 = vmax.f32 %v1753, %v3346
      %v3589 = vmax.f32 %v1756, %v3349
      %v3590 = vmax.f32 %v1759, %v3352
      %v3591 = vmax.f32 %v1762, %v3355
      %v3592 = vmax.f32 %v1765, %v3358
      %v3593 = vmax.f32 %v1768, %v3361
      %v3594 = vmax.f32 %v1771, %v3364
      %v3595 = vmax.f32 %v1774, %v3367
      %v3596 = vmax.f32 %v1777, %v3370
      %s3597 = scalar_lea.vmem %s165, 3600
      %v3598 = vld [vmem:[%s3597] sm:$0xff]
      %v3599 = vld [vmem:[%s3597 + $0x8] sm:$0xff]
      %v3600 = vld [vmem:[%s3597 + $0x10] sm:$0xff]
      %v3601 = vld [vmem:[%s3597 + $0x18] sm:$0xff]
      %v3602 = vld [vmem:[%s3597 + $0x20] sm:$0xff]
      %v3603 = vld [vmem:[%s3597 + $0x28] sm:$0xff]
      %v3604 = vld [vmem:[%s3597 + $0x30] sm:$0xff]
      %v3605 = vld [vmem:[%s3597 + $0x38] sm:$0xff]
      %v3606 = vld [vmem:[%s3597 + $0x40] sm:$0xff]
      %v3607 = vld [vmem:[%s3597 + $0x48] sm:$0xff]
      %v3608 = vld [vmem:[%s3597 + $0x50] sm:$0xff]
      %v3609 = vld [vmem:[%s3597 + $0x58] sm:$0xff]
      %v3610 = vld [vmem:[%s3597 + $0x60] sm:$0xff]
      %v3611 = vld [vmem:[%s3597 + $0x68] sm:$0xff]
      %v3612 = vld [vmem:[%s3597 + $0x70] sm:$0xff]
      %v3613 = vld [vmem:[%s3597 + $0x78] sm:$0xff]
      %v3614 = vld [vmem:[%s3597 + $0x80] sm:$0xff]
      %v3615 = vld [vmem:[%s3597 + $0x88] sm:$0xff]
      %v3616 = vld [vmem:[%s3597 + $0x90] sm:$0xff]
      %v3617 = vld [vmem:[%s3597 + $0x98] sm:$0xff]
      %v3618 = vld [vmem:[%s3597 + $0xa0] sm:$0xff]
      %v3619 = vld [vmem:[%s3597 + $0xa8] sm:$0xff]
      %v3620 = vld [vmem:[%s3597 + $0xb0] sm:$0xff]
      %v3621 = vld [vmem:[%s3597 + $0xb8] sm:$0xff]
      %v3622 = vld [vmem:[%s3597 + $0xc0] sm:$0xff]
      %v3623 = vld [vmem:[%s3597 + $0xc8] sm:$0xff]
      %v3624 = vld [vmem:[%s3597 + $0xd0] sm:$0xff]
      %v3625 = vld [vmem:[%s3597 + $0xd8] sm:$0xff]
      %v3626 = vld [vmem:[%s3597 + $0xe0] sm:$0xff]
      %v3627 = vld [vmem:[%s3597 + $0xe8] sm:$0xff]
      %v3628 = vld [vmem:[%s3597 + $0xf0] sm:$0xff]
      %v3629 = vld [vmem:[%s3597 + $0xf8] sm:$0xff]
      %v3630 = vld [vmem:[%s3597 + $0x100] sm:$0xff]
      %v3631 = vld [vmem:[%s3597 + $0x108] sm:$0xff]
      %v3632 = vld [vmem:[%s3597 + $0x110] sm:$0xff]
      %v3633 = vld [vmem:[%s3597 + $0x118] sm:$0xff]
      %v3634 = vld [vmem:[%s3597 + $0x120] sm:$0xff]
      %v3635 = vld [vmem:[%s3597 + $0x128] sm:$0xff]
      %v3636 = vld [vmem:[%s3597 + $0x130] sm:$0xff]
      %v3637 = vld [vmem:[%s3597 + $0x138] sm:$0xff]
      %v3638 = vld [vmem:[%s3597 + $0x140] sm:$0xff]
      %v3639 = vld [vmem:[%s3597 + $0x148] sm:$0xff]
      %v3640 = vld [vmem:[%s3597 + $0x150] sm:$0xff]
      %v3641 = vld [vmem:[%s3597 + $0x158] sm:$0xff]
      %v3642 = vld [vmem:[%s3597 + $0x160] sm:$0xff]
      %v3643 = vld [vmem:[%s3597 + $0x168] sm:$0xff]
      %v3644 = vld [vmem:[%s3597 + $0x170] sm:$0xff]
      %v3645 = vld [vmem:[%s3597 + $0x178] sm:$0xff]
      %v3646 = vld [vmem:[%s3597 + $0x180] sm:$0xff]
      %v3647 = vld [vmem:[%s3597 + $0x188] sm:$0xff]
      %v3648 = vld [vmem:[%s3597 + $0x190] sm:$0xff]
      %v3649 = vld [vmem:[%s3597 + $0x198] sm:$0xff]
      %v3650 = vld [vmem:[%s3597 + $0x1a0] sm:$0xff]
      %v3651 = vld [vmem:[%s3597 + $0x1a8] sm:$0xff]
      %v3652 = vld [vmem:[%s3597 + $0x1b0] sm:$0xff]
      %v3653 = vld [vmem:[%s3597 + $0x1b8] sm:$0xff]
      %v3654 = vld [vmem:[%s3597 + $0x1c0] sm:$0xff]
      %v3655 = vld [vmem:[%s3597 + $0x1c8] sm:$0xff]
      %v3656 = vld [vmem:[%s3597 + $0x1d0] sm:$0xff]
      %v3657 = vld [vmem:[%s3597 + $0x1d8] sm:$0xff]
      %v3658 = vld [vmem:[%s3597 + $0x1e0] sm:$0xff]
      %v3659 = vld [vmem:[%s3597 + $0x1e8] sm:$0xff]
      %v3660 = vld [vmem:[%s3597 + $0x1f0] sm:$0xff]
      %v3661 = vld [vmem:[%s3597 + $0x1f8] sm:$0xff]
      %v3662 = vld [vmem:[%s3597 + $0x200] sm:$0xff]
      %v3663 = vld [vmem:[%s3597 + $0x208] sm:$0xff]
      %v3664 = vld [vmem:[%s3597 + $0x210] sm:$0xff]
      %v3665 = vld [vmem:[%s3597 + $0x218] sm:$0xff]
      %v3666 = vld [vmem:[%s3597 + $0x220] sm:$0xff]
      %v3667 = vld [vmem:[%s3597 + $0x228] sm:$0xff]
      %v3668 = vld [vmem:[%s3597 + $0x230] sm:$0xff]
      %v3669 = vld [vmem:[%s3597 + $0x238] sm:$0xff]
      %v3670 = vld [vmem:[%s3597 + $0x240] sm:$0xff]
      %v3671 = vld [vmem:[%s3597 + $0x248] sm:$0xff]
      %v3672 = vld [vmem:[%s3597 + $0x250] sm:$0xff]
      %v3673 = vld [vmem:[%s3597 + $0x258] sm:$0xff]
      %v3674 = vld [vmem:[%s3597 + $0x260] sm:$0xff]
      %v3675 = vld [vmem:[%s3597 + $0x268] sm:$0xff]
      %v3676 = vld [vmem:[%s3597 + $0x270] sm:$0xff]
      %v3677 = vld [vmem:[%s3597 + $0x278] sm:$0xff]
      %v3678 = vld [vmem:[%s3597 + $0x280] sm:$0xff]
      %v3679 = vld [vmem:[%s3597 + $0x288] sm:$0xff]
      %v3680 = vld [vmem:[%s3597 + $0x290] sm:$0xff]
      %v3681 = vld [vmem:[%s3597 + $0x298] sm:$0xff]
      %v3682 = vld [vmem:[%s3597 + $0x2a0] sm:$0xff]
      %v3683 = vld [vmem:[%s3597 + $0x2a8] sm:$0xff]
      %v3684 = vld [vmem:[%s3597 + $0x2b0] sm:$0xff]
      %v3685 = vld [vmem:[%s3597 + $0x2b8] sm:$0xff]
      %v3686 = vld [vmem:[%s3597 + $0x2c0] sm:$0xff]
      %v3687 = vld [vmem:[%s3597 + $0x2c8] sm:$0xff]
      %v3688 = vld [vmem:[%s3597 + $0x2d0] sm:$0xff]
      %v3689 = vld [vmem:[%s3597 + $0x2d8] sm:$0xff]
      %v3690 = vld [vmem:[%s3597 + $0x2e0] sm:$0xff]
      %v3691 = vld [vmem:[%s3597 + $0x2e8] sm:$0xff]
      %v3692 = vld [vmem:[%s3597 + $0x2f0] sm:$0xff]
      %v3693 = vld [vmem:[%s3597 + $0x2f8] sm:$0xff]
      %v3694 = vld [vmem:[%s3597 + $0x300] sm:$0xff]
      %v3695 = vld [vmem:[%s3597 + $0x308] sm:$0xff]
      %v3696 = vld [vmem:[%s3597 + $0x310] sm:$0xff]
      %v3697 = vld [vmem:[%s3597 + $0x318] sm:$0xff]
      %v3698 = vld [vmem:[%s3597 + $0x320] sm:$0xff]
      %v3699 = vld [vmem:[%s3597 + $0x328] sm:$0xff]
      %v3700 = vld [vmem:[%s3597 + $0x330] sm:$0xff]
      %v3701 = vld [vmem:[%s3597 + $0x338] sm:$0xff]
      %v3702 = vld [vmem:[%s3597 + $0x340] sm:$0xff]
      %v3703 = vld [vmem:[%s3597 + $0x348] sm:$0xff]
      %v3704 = vld [vmem:[%s3597 + $0x350] sm:$0xff]
      %v3705 = vld [vmem:[%s3597 + $0x358] sm:$0xff]
      %v3706 = vld [vmem:[%s3597 + $0x360] sm:$0xff]
      %v3707 = vld [vmem:[%s3597 + $0x368] sm:$0xff]
      %v3708 = vld [vmem:[%s3597 + $0x370] sm:$0xff]
      %v3709 = vld [vmem:[%s3597 + $0x378] sm:$0xff]
      %v3710 = vld [vmem:[%s3597 + $0x380] sm:$0xff]
      %v3711 = vld [vmem:[%s3597 + $0x388] sm:$0xff]
      %v3712 = vld [vmem:[%s3597 + $0x390] sm:$0xff]
      %v3713 = vld [vmem:[%s3597 + $0x398] sm:$0xff]
      %v3714 = vld [vmem:[%s3597 + $0x3a0] sm:$0xff]
      %v3715 = vld [vmem:[%s3597 + $0x3a8] sm:$0xff]
      %v3716 = vld [vmem:[%s3597 + $0x3b0] sm:$0xff]
      %v3717 = vld [vmem:[%s3597 + $0x3b8] sm:$0xff]
      %v3718 = vld [vmem:[%s3597 + $0x3c0] sm:$0xff]
      %v3719 = vld [vmem:[%s3597 + $0x3c8] sm:$0xff]
      %v3720 = vld [vmem:[%s3597 + $0x3d0] sm:$0xff]
      %v3721 = vld [vmem:[%s3597 + $0x3d8] sm:$0xff]
      %v3722 = vld [vmem:[%s3597 + $0x3e0] sm:$0xff]
      %v3723 = vld [vmem:[%s3597 + $0x3e8] sm:$0xff]
      %v3724 = vld [vmem:[%s3597 + $0x3f0] sm:$0xff]
      %v3725 = vld [vmem:[%s3597 + $0x3f8] sm:$0xff]
      %v3726 = vld [vmem:[%s3597 + $0x400] sm:$0xff]
      %v3727 = vld [vmem:[%s3597 + $0x408] sm:$0xff]
      %v3728 = vld [vmem:[%s3597 + $0x410] sm:$0xff]
      %v3729 = vld [vmem:[%s3597 + $0x418] sm:$0xff]
      %v3730 = vld [vmem:[%s3597 + $0x420] sm:$0xff]
      %v3731 = vld [vmem:[%s3597 + $0x428] sm:$0xff]
      %v3732 = vld [vmem:[%s3597 + $0x430] sm:$0xff]
      %v3733 = vld [vmem:[%s3597 + $0x438] sm:$0xff]
      %v3734 = vld [vmem:[%s3597 + $0x440] sm:$0xff]
      %v3735 = vld [vmem:[%s3597 + $0x448] sm:$0xff]
      %v3736 = vld [vmem:[%s3597 + $0x450] sm:$0xff]
      %v3737 = vld [vmem:[%s3597 + $0x458] sm:$0xff]
      %v3738 = vld [vmem:[%s3597 + $0x460] sm:$0xff]
      %v3739 = vld [vmem:[%s3597 + $0x468] sm:$0xff]
      %v3740 = vld [vmem:[%s3597 + $0x470] sm:$0xff]
      %v3741 = vld [vmem:[%s3597 + $0x478] sm:$0xff]
      %v3742 = vld [vmem:[%s3597 + $0x480] sm:$0xff]
      %v3743 = vld [vmem:[%s3597 + $0x488] sm:$0xff]
      %v3744 = vld [vmem:[%s3597 + $0x490] sm:$0xff]
      %v3745 = vld [vmem:[%s3597 + $0x498] sm:$0xff]
      %v3746 = vld [vmem:[%s3597 + $0x4a0] sm:$0xff]
      %v3747 = vld [vmem:[%s3597 + $0x4a8] sm:$0xff]
      %v3748 = vld [vmem:[%s3597 + $0x4b0] sm:$0xff]
      %v3749 = vld [vmem:[%s3597 + $0x4b8] sm:$0xff]
      %v3750 = vld [vmem:[%s3597 + $0x4c0] sm:$0xff]
      %v3751 = vld [vmem:[%s3597 + $0x4c8] sm:$0xff]
      %v3752 = vld [vmem:[%s3597 + $0x4d0] sm:$0xff]
      %v3753 = vld [vmem:[%s3597 + $0x4d8] sm:$0xff]
      %v3754 = vld [vmem:[%s3597 + $0x4e0] sm:$0xff]
      %v3755 = vld [vmem:[%s3597 + $0x4e8] sm:$0xff]
      %v3756 = vld [vmem:[%s3597 + $0x4f0] sm:$0xff]
      %v3757 = vld [vmem:[%s3597 + $0x4f8] sm:$0xff]
      %v3758 = vld [vmem:[%s3597 + $0x500] sm:$0xff]
      %v3759 = vld [vmem:[%s3597 + $0x508] sm:$0xff]
      %v3760 = vld [vmem:[%s3597 + $0x510] sm:$0xff]
      %v3761 = vld [vmem:[%s3597 + $0x518] sm:$0xff]
      %v3762 = vld [vmem:[%s3597 + $0x520] sm:$0xff]
      %v3763 = vld [vmem:[%s3597 + $0x528] sm:$0xff]
      %v3764 = vld [vmem:[%s3597 + $0x530] sm:$0xff]
      %v3765 = vld [vmem:[%s3597 + $0x538] sm:$0xff]
      %v3766 = vld [vmem:[%s3597 + $0x540] sm:$0xff]
      %v3767 = vld [vmem:[%s3597 + $0x548] sm:$0xff]
      %v3768 = vld [vmem:[%s3597 + $0x550] sm:$0xff]
      %v3769 = vld [vmem:[%s3597 + $0x558] sm:$0xff]
      %v3770 = vld [vmem:[%s3597 + $0x560] sm:$0xff]
      %v3771 = vld [vmem:[%s3597 + $0x568] sm:$0xff]
      %v3772 = vld [vmem:[%s3597 + $0x570] sm:$0xff]
      %v3773 = vld [vmem:[%s3597 + $0x578] sm:$0xff]
      %v3774 = vld [vmem:[%s3597 + $0x580] sm:$0xff]
      %v3775 = vld [vmem:[%s3597 + $0x588] sm:$0xff]
      %v3776 = vld [vmem:[%s3597 + $0x590] sm:$0xff]
      %v3777 = vld [vmem:[%s3597 + $0x598] sm:$0xff]
      %v3778 = vld [vmem:[%s3597 + $0x5a0] sm:$0xff]
      %v3779 = vld [vmem:[%s3597 + $0x5a8] sm:$0xff]
      %v3780 = vld [vmem:[%s3597 + $0x5b0] sm:$0xff]
      %v3781 = vld [vmem:[%s3597 + $0x5b8] sm:$0xff]
      %v3782 = vld [vmem:[%s3597 + $0x5c0] sm:$0xff]
      %v3783 = vld [vmem:[%s3597 + $0x5c8] sm:$0xff]
      %v3784 = vld [vmem:[%s3597 + $0x5d0] sm:$0xff]
      %v3785 = vld [vmem:[%s3597 + $0x5d8] sm:$0xff]
      %v3786 = vld [vmem:[%s3597 + $0x5e0] sm:$0xff]
      %v3787 = vld [vmem:[%s3597 + $0x5e8] sm:$0xff]
      %v3788 = vld [vmem:[%s3597 + $0x5f0] sm:$0xff]
      %v3789 = vld [vmem:[%s3597 + $0x5f8] sm:$0xff]
      %v3790 = vld [vmem:[%s3597 + $0x600] sm:$0xff]
      %v3791 = vld [vmem:[%s3597 + $0x608] sm:$0xff]
      %v3792 = vld [vmem:[%s3597 + $0x610] sm:$0xff]
      %v3793 = vld [vmem:[%s3597 + $0x618] sm:$0xff]
      %v3794 = vld [vmem:[%s3597 + $0x620] sm:$0xff]
      %v3795 = vld [vmem:[%s3597 + $0x628] sm:$0xff]
      %v3796 = vld [vmem:[%s3597 + $0x630] sm:$0xff]
      %v3797 = vld [vmem:[%s3597 + $0x638] sm:$0xff]
      %v3798 = vld [vmem:[%s3597 + $0x640] sm:$0xff]
      %v3799 = vld [vmem:[%s3597 + $0x648] sm:$0xff]
      %v3800 = vld [vmem:[%s3597 + $0x650] sm:$0xff]
      %v3801 = vld [vmem:[%s3597 + $0x658] sm:$0xff]
      %v3802 = vld [vmem:[%s3597 + $0x660] sm:$0xff]
      %v3803 = vld [vmem:[%s3597 + $0x668] sm:$0xff]
      %v3804 = vld [vmem:[%s3597 + $0x670] sm:$0xff]
      %v3805 = vld [vmem:[%s3597 + $0x678] sm:$0xff]
      %v3806 = vld [vmem:[%s3597 + $0x680] sm:$0xff]
      %v3807 = vld [vmem:[%s3597 + $0x688] sm:$0xff]
      %v3808 = vld [vmem:[%s3597 + $0x690] sm:$0xff]
      %v3809 = vld [vmem:[%s3597 + $0x698] sm:$0xff]
      %v3810 = vld [vmem:[%s3597 + $0x6a0] sm:$0xff]
      %v3811 = vld [vmem:[%s3597 + $0x6a8] sm:$0xff]
      %v3812 = vld [vmem:[%s3597 + $0x6b0] sm:$0xff]
      %v3813 = vld [vmem:[%s3597 + $0x6b8] sm:$0xff]
      %v3814 = vld [vmem:[%s3597 + $0x6c0] sm:$0xff]
      %v3815 = vld [vmem:[%s3597 + $0x6c8] sm:$0xff]
      %v3816 = vld [vmem:[%s3597 + $0x6d0] sm:$0xff]
      %v3817 = vld [vmem:[%s3597 + $0x6d8] sm:$0xff]
      %v3818 = vld [vmem:[%s3597 + $0x6e0] sm:$0xff]
      %v3819 = vld [vmem:[%s3597 + $0x6e8] sm:$0xff]
      %v3820 = vld [vmem:[%s3597 + $0x6f0] sm:$0xff]
      %v3821 = vld [vmem:[%s3597 + $0x6f8] sm:$0xff]
      %v3822 = vld [vmem:[%s3597 + $0x700] sm:$0xff]
      %v3824 = vsel %vm407, %v3598, 0
      %v3827 = vsel %vm407, %v3599, 0
      %v3830 = vsel %vm407, %v3600, 0
      %v3833 = vsel %vm407, %v3601, 0
      %v3836 = vsel %vm407, %v3602, 0
      %v3839 = vsel %vm407, %v3603, 0
      %v3842 = vsel %vm407, %v3604, 0
      %v3845 = vsel %vm407, %v3605, 0
      %v3848 = vsel %vm407, %v3606, 0
      %v3851 = vsel %vm407, %v3607, 0
      %v3854 = vsel %vm407, %v3608, 0
      %v3857 = vsel %vm407, %v3609, 0
      %v3860 = vsel %vm407, %v3610, 0
      %v3863 = vsel %vm407, %v3611, 0
      %v3866 = vsel %vm407, %v3612, 0
      %v3869 = vsel %vm407, %v3613, 0
      %v3872 = vsel %vm407, %v3614, 0
      %v3875 = vsel %vm407, %v3615, 0
      %v3878 = vsel %vm407, %v3616, 0
      %v3881 = vsel %vm407, %v3617, 0
      %v3884 = vsel %vm407, %v3618, 0
      %v3887 = vsel %vm407, %v3619, 0
      %v3890 = vsel %vm407, %v3620, 0
      %v3893 = vsel %vm407, %v3621, 0
      %v3896 = vsel %vm407, %v3622, 0
      %v3899 = vsel %vm407, %v3623, 0
      %v3902 = vsel %vm407, %v3624, 0
      %v3905 = vsel %vm407, %v3625, 0
      %v3908 = vsel %vm407, %v3626, 0
      %v3911 = vsel %vm407, %v3627, 0
      %v3914 = vsel %vm407, %v3628, 0
      %v3917 = vsel %vm407, %v3629, 0
      %v3920 = vsel %vm407, %v3630, 0
      %v3923 = vsel %vm407, %v3631, 0
      %v3926 = vsel %vm407, %v3632, 0
      %v3929 = vsel %vm407, %v3633, 0
      %v3932 = vsel %vm407, %v3634, 0
      %v3935 = vsel %vm407, %v3635, 0
      %v3938 = vsel %vm407, %v3636, 0
      %v3941 = vsel %vm407, %v3637, 0
      %v3944 = vsel %vm407, %v3638, 0
      %v3947 = vsel %vm407, %v3639, 0
      %v3950 = vsel %vm407, %v3640, 0
      %v3953 = vsel %vm407, %v3641, 0
      %v3956 = vsel %vm407, %v3642, 0
      %v3959 = vsel %vm407, %v3643, 0
      %v3962 = vsel %vm407, %v3644, 0
      %v3965 = vsel %vm407, %v3645, 0
      %v3968 = vsel %vm407, %v3646, 0
      %v3971 = vsel %vm407, %v3647, 0
      %v3974 = vsel %vm407, %v3648, 0
      %v3977 = vsel %vm407, %v3649, 0
      %v3980 = vsel %vm407, %v3650, 0
      %v3983 = vsel %vm407, %v3651, 0
      %v3986 = vsel %vm407, %v3652, 0
      %v3989 = vsel %vm407, %v3653, 0
      %v3992 = vsel %vm407, %v3654, 0
      %v3995 = vsel %vm407, %v3655, 0
      %v3998 = vsel %vm407, %v3656, 0
      %v4001 = vsel %vm407, %v3657, 0
      %v4004 = vsel %vm407, %v3658, 0
      %v4007 = vsel %vm407, %v3659, 0
      %v4010 = vsel %vm407, %v3660, 0
      %v4013 = vsel %vm407, %v3661, 0
      %v4016 = vsel %vm407, %v3662, 0
      %v4019 = vsel %vm407, %v3663, 0
      %v4022 = vsel %vm407, %v3664, 0
      %v4025 = vsel %vm407, %v3665, 0
      %v4028 = vsel %vm407, %v3666, 0
      %v4031 = vsel %vm407, %v3667, 0
      %v4034 = vsel %vm407, %v3668, 0
      %v4037 = vsel %vm407, %v3669, 0
      %v4040 = vsel %vm407, %v3670, 0
      %v4043 = vsel %vm407, %v3671, 0
      %v4046 = vsel %vm407, %v3672, 0
      %v4049 = vsel %vm407, %v3673, 0
      %v4052 = vsel %vm407, %v3674, 0
      %v4055 = vsel %vm407, %v3675, 0
      %v4058 = vsel %vm407, %v3676, 0
      %v4061 = vsel %vm407, %v3677, 0
      %v4064 = vsel %vm407, %v3678, 0
      %v4067 = vsel %vm407, %v3679, 0
      %v4070 = vsel %vm407, %v3680, 0
      %v4073 = vsel %vm407, %v3681, 0
      %v4076 = vsel %vm407, %v3682, 0
      %v4079 = vsel %vm407, %v3683, 0
      %v4082 = vsel %vm407, %v3684, 0
      %v4085 = vsel %vm407, %v3685, 0
      %v4088 = vsel %vm407, %v3686, 0
      %v4091 = vsel %vm407, %v3687, 0
      %v4094 = vsel %vm407, %v3688, 0
      %v4097 = vsel %vm407, %v3689, 0
      %v4100 = vsel %vm407, %v3690, 0
      %v4103 = vsel %vm407, %v3691, 0
      %v4106 = vsel %vm407, %v3692, 0
      %v4109 = vsel %vm407, %v3693, 0
      %v4112 = vsel %vm407, %v3694, 0
      %v4115 = vsel %vm407, %v3695, 0
      %v4118 = vsel %vm407, %v3696, 0
      %v4121 = vsel %vm407, %v3697, 0
      %v4124 = vsel %vm407, %v3698, 0
      %v4127 = vsel %vm407, %v3699, 0
      %v4130 = vsel %vm407, %v3700, 0
      %v4133 = vsel %vm407, %v3701, 0
      %v4136 = vsel %vm407, %v3702, 0
      %v4139 = vsel %vm407, %v3703, 0
      %v4142 = vsel %vm407, %v3704, 0
      %v4145 = vsel %vm407, %v3705, 0
      %v4148 = vsel %vm407, %v3706, 0
      %v4151 = vsel %vm407, %v3707, 0
      %v4154 = vsel %vm407, %v3708, 0
      %v4157 = vsel %vm407, %v3709, 0
      %v4160 = vsel %vm407, %v3710, 0
      %v4163 = vsel %vm407, %v3711, 0
      %v4166 = vsel %vm407, %v3712, 0
      %v4169 = vsel %vm407, %v3713, 0
      %v4172 = vsel %vm407, %v3714, 0
      %v4175 = vsel %vm407, %v3715, 0
      %v4178 = vsel %vm407, %v3716, 0
      %v4181 = vsel %vm407, %v3717, 0
      %v4184 = vsel %vm407, %v3718, 0
      %v4187 = vsel %vm407, %v3719, 0
      %v4190 = vsel %vm407, %v3720, 0
      %v4193 = vsel %vm407, %v3721, 0
      %v4196 = vsel %vm407, %v3722, 0
      %v4199 = vsel %vm407, %v3723, 0
      %v4202 = vsel %vm407, %v3724, 0
      %v4205 = vsel %vm407, %v3725, 0
      %v4208 = vsel %vm407, %v3726, 0
      %v4211 = vsel %vm407, %v3727, 0
      %v4214 = vsel %vm407, %v3728, 0
      %v4217 = vsel %vm407, %v3729, 0
      %v4220 = vsel %vm407, %v3730, 0
      %v4223 = vsel %vm407, %v3731, 0
      %v4226 = vsel %vm407, %v3732, 0
      %v4229 = vsel %vm407, %v3733, 0
      %v4232 = vsel %vm407, %v3734, 0
      %v4235 = vsel %vm407, %v3735, 0
      %v4238 = vsel %vm407, %v3736, 0
      %v4241 = vsel %vm407, %v3737, 0
      %v4244 = vsel %vm407, %v3738, 0
      %v4247 = vsel %vm407, %v3739, 0
      %v4250 = vsel %vm407, %v3740, 0
      %v4253 = vsel %vm407, %v3741, 0
      %v4256 = vsel %vm407, %v3742, 0
      %v4259 = vsel %vm407, %v3743, 0
      %v4262 = vsel %vm407, %v3744, 0
      %v4265 = vsel %vm407, %v3745, 0
      %v4268 = vsel %vm407, %v3746, 0
      %v4271 = vsel %vm407, %v3747, 0
      %v4274 = vsel %vm407, %v3748, 0
      %v4277 = vsel %vm407, %v3749, 0
      %v4280 = vsel %vm407, %v3750, 0
      %v4283 = vsel %vm407, %v3751, 0
      %v4286 = vsel %vm407, %v3752, 0
      %v4289 = vsel %vm407, %v3753, 0
      %v4292 = vsel %vm407, %v3754, 0
      %v4295 = vsel %vm407, %v3755, 0
      %v4298 = vsel %vm407, %v3756, 0
      %v4301 = vsel %vm407, %v3757, 0
      %v4304 = vsel %vm407, %v3758, 0
      %v4307 = vsel %vm407, %v3759, 0
      %v4310 = vsel %vm407, %v3760, 0
      %v4313 = vsel %vm407, %v3761, 0
      %v4316 = vsel %vm407, %v3762, 0
      %v4319 = vsel %vm407, %v3763, 0
      %v4322 = vsel %vm407, %v3764, 0
      %v4325 = vsel %vm407, %v3765, 0
      %v4328 = vsel %vm407, %v3766, 0
      %v4331 = vsel %vm407, %v3767, 0
      %v4334 = vsel %vm407, %v3768, 0
      %v4337 = vsel %vm407, %v3769, 0
      %v4340 = vsel %vm407, %v3770, 0
      %v4343 = vsel %vm407, %v3771, 0
      %v4346 = vsel %vm407, %v3772, 0
      %v4349 = vsel %vm407, %v3773, 0
      %v4352 = vsel %vm407, %v3774, 0
      %v4355 = vsel %vm407, %v3775, 0
      %v4358 = vsel %vm407, %v3776, 0
      %v4361 = vsel %vm407, %v3777, 0
      %v4364 = vsel %vm407, %v3778, 0
      %v4367 = vsel %vm407, %v3779, 0
      %v4370 = vsel %vm407, %v3780, 0
      %v4373 = vsel %vm407, %v3781, 0
      %v4376 = vsel %vm407, %v3782, 0
      %v4379 = vsel %vm407, %v3783, 0
      %v4382 = vsel %vm407, %v3784, 0
      %v4385 = vsel %vm407, %v3785, 0
      %v4388 = vsel %vm407, %v3786, 0
      %v4391 = vsel %vm407, %v3787, 0
      %v4394 = vsel %vm407, %v3788, 0
      %v4397 = vsel %vm407, %v3789, 0
      %v4400 = vsel %vm407, %v3790, 0
      %v4403 = vsel %vm407, %v3791, 0
      %v4406 = vsel %vm407, %v3792, 0
      %v4409 = vsel %vm407, %v3793, 0
      %v4412 = vsel %vm407, %v3794, 0
      %v4415 = vsel %vm407, %v3795, 0
      %v4418 = vsel %vm407, %v3796, 0
      %v4421 = vsel %vm407, %v3797, 0
      %v4424 = vsel %vm407, %v3798, 0
      %v4427 = vsel %vm407, %v3799, 0
      %v4430 = vsel %vm407, %v3800, 0
      %v4433 = vsel %vm407, %v3801, 0
      %v4436 = vsel %vm407, %v3802, 0
      %v4439 = vsel %vm407, %v3803, 0
      %v4442 = vsel %vm407, %v3804, 0
      %v4445 = vsel %vm407, %v3805, 0
      %v4448 = vsel %vm407, %v3806, 0
      %v4451 = vsel %vm407, %v3807, 0
      %v4454 = vsel %vm407, %v3808, 0
      %v4457 = vsel %vm407, %v3809, 0
      %v4460 = vsel %vm407, %v3810, 0
      %v4463 = vsel %vm407, %v3811, 0
      %v4466 = vsel %vm407, %v3812, 0
      %v4469 = vsel %vm407, %v3813, 0
      %v4472 = vsel %vm407, %v3814, 0
      %v4475 = vsel %vm407, %v3815, 0
      %v4478 = vsel %vm407, %v3816, 0
      %v4481 = vsel %vm407, %v3817, 0
      %v4484 = vsel %vm407, %v3818, 0
      %v4487 = vsel %vm407, %v3819, 0
      %v4490 = vsel %vm407, %v3820, 0
      %v4493 = vsel %vm407, %v3821, 0
      %v4496 = vsel %vm407, %v3822, 0
      %4498 = vmatpush.msra.mxu0 0.0
      %4499 = vmatpush.msra.mxu0 0.0
      %4500 = vmatpush.msra.mxu0 0.0
      %4501 = vmatpush.msra.mxu0 0.0
      %4502 = vmatpush.msra.mxu0 0.0
      %4503 = vmatpush.msra.mxu0 0.0
      %4504 = vmatpush.msra.mxu0 %v1085
      %4505 = vmatpush.msra.mxu0 %v180
      %4506 = vmatpush.msra.mxu0 %v179
      %4507 = vmatpush.msra.mxu0 %v178
      %4508 = vmatpush.msra.mxu0 %v177
      %4509 = vmatpush.msra.mxu0 %v176
      %4510 = vmatpush.msra.mxu0 %v175
      %4511 = vmatpush.msra.mxu0 %v174
      %4512 = vmatpush.msra.mxu0 %v173
      %4513 = vmatpush.msra.mxu0 %v172
      %4514 = vmatmul.f32.gmra.mxu0 %v3824
      %v4515 = vpop.f32.mrf.mxu0
      %v4516 = vadd.f32 0.0, %v4515
      %4517 = vmatmul.f32.gmra.mxu0 %v3827
      %v4518 = vpop.f32.mrf.mxu0
      %v4519 = vadd.f32 0.0, %v4518
      %4520 = vmatmul.f32.gmra.mxu0 %v3830
      %v4521 = vpop.f32.mrf.mxu0
      %v4522 = vadd.f32 0.0, %v4521
      %4523 = vmatmul.f32.gmra.mxu0 %v3833
      %v4524 = vpop.f32.mrf.mxu0
      %v4525 = vadd.f32 0.0, %v4524
      %4526 = vmatmul.f32.gmra.mxu0 %v3836
      %v4527 = vpop.f32.mrf.mxu0
      %v4528 = vadd.f32 0.0, %v4527
      %4529 = vmatmul.f32.gmra.mxu0 %v3839
      %v4530 = vpop.f32.mrf.mxu0
      %v4531 = vadd.f32 0.0, %v4530
      %4532 = vmatmul.f32.gmra.mxu0 %v3842
      %v4533 = vpop.f32.mrf.mxu0
      %v4534 = vadd.f32 0.0, %v4533
      %4535 = vmatmul.f32.gmra.mxu0 %v3845
      %v4536 = vpop.f32.mrf.mxu0
      %v4537 = vadd.f32 0.0, %v4536
      %4538 = vmatmul.f32.gmra.mxu0 %v3848
      %v4539 = vpop.f32.mrf.mxu0
      %v4540 = vadd.f32 0.0, %v4539
      %4541 = vmatmul.f32.gmra.mxu0 %v3851
      %v4542 = vpop.f32.mrf.mxu0
      %v4543 = vadd.f32 0.0, %v4542
      %4544 = vmatmul.f32.gmra.mxu0 %v3854
      %v4545 = vpop.f32.mrf.mxu0
      %v4546 = vadd.f32 0.0, %v4545
      %4547 = vmatmul.f32.gmra.mxu0 %v3857
      %v4548 = vpop.f32.mrf.mxu0
      %v4549 = vadd.f32 0.0, %v4548
      %4550 = vmatmul.f32.gmra.mxu0 %v3860
      %v4551 = vpop.f32.mrf.mxu0
      %v4552 = vadd.f32 0.0, %v4551
      %4553 = vmatmul.f32.gmra.mxu0 %v3863
      %v4554 = vpop.f32.mrf.mxu0
      %v4555 = vadd.f32 0.0, %v4554
      %4556 = vmatmul.f32.gmra.mxu0 %v3866
      %v4557 = vpop.f32.mrf.mxu0
      %v4558 = vadd.f32 0.0, %v4557
      %4559 = vmatmul.f32.gmra.mxu0 %v3869
      %v4560 = vpop.f32.mrf.mxu0
      %v4561 = vadd.f32 0.0, %v4560
      %4562 = vmatmul.f32.gmra.mxu0 %v3872
      %v4563 = vpop.f32.mrf.mxu0
      %v4564 = vadd.f32 0.0, %v4563
      %4565 = vmatmul.f32.gmra.mxu0 %v3875
      %v4566 = vpop.f32.mrf.mxu0
      %v4567 = vadd.f32 0.0, %v4566
      %4568 = vmatmul.f32.gmra.mxu0 %v3878
      %v4569 = vpop.f32.mrf.mxu0
      %v4570 = vadd.f32 0.0, %v4569
      %4571 = vmatmul.f32.gmra.mxu0 %v3881
      %v4572 = vpop.f32.mrf.mxu0
      %v4573 = vadd.f32 0.0, %v4572
      %4574 = vmatmul.f32.gmra.mxu0 %v3884
      %v4575 = vpop.f32.mrf.mxu0
      %v4576 = vadd.f32 0.0, %v4575
      %4577 = vmatmul.f32.gmra.mxu0 %v3887
      %v4578 = vpop.f32.mrf.mxu0
      %v4579 = vadd.f32 0.0, %v4578
      %4580 = vmatmul.f32.gmra.mxu0 %v3890
      %v4581 = vpop.f32.mrf.mxu0
      %v4582 = vadd.f32 0.0, %v4581
      %4583 = vmatmul.f32.gmra.mxu0 %v3893
      %v4584 = vpop.f32.mrf.mxu0
      %v4585 = vadd.f32 0.0, %v4584
      %4586 = vmatmul.f32.gmra.mxu0 %v3896
      %v4587 = vpop.f32.mrf.mxu0
      %v4588 = vadd.f32 0.0, %v4587
      %4589 = vmatmul.f32.gmra.mxu0 %v3899
      %v4590 = vpop.f32.mrf.mxu0
      %v4591 = vadd.f32 0.0, %v4590
      %4592 = vmatmul.f32.gmra.mxu0 %v3902
      %v4593 = vpop.f32.mrf.mxu0
      %v4594 = vadd.f32 0.0, %v4593
      %4595 = vmatmul.f32.gmra.mxu0 %v3905
      %v4596 = vpop.f32.mrf.mxu0
      %v4597 = vadd.f32 0.0, %v4596
      %4598 = vmatmul.f32.gmra.mxu0 %v3908
      %v4599 = vpop.f32.mrf.mxu0
      %v4600 = vadd.f32 0.0, %v4599
      %4601 = vmatmul.f32.gmra.mxu0 %v3911
      %v4602 = vpop.f32.mrf.mxu0
      %v4603 = vadd.f32 0.0, %v4602
      %4604 = vmatmul.f32.gmra.mxu0 %v3914
      %v4605 = vpop.f32.mrf.mxu0
      %v4606 = vadd.f32 0.0, %v4605
      %4607 = vmatmul.f32.gmra.mxu0 %v3917
      %v4608 = vpop.f32.mrf.mxu0
      %v4609 = vadd.f32 0.0, %v4608
      %4610 = vmatmul.f32.gmra.mxu0 %v3920
      %v4611 = vpop.f32.mrf.mxu0
      %v4612 = vadd.f32 0.0, %v4611
      %4613 = vmatmul.f32.gmra.mxu0 %v3923
      %v4614 = vpop.f32.mrf.mxu0
      %v4615 = vadd.f32 0.0, %v4614
      %4616 = vmatmul.f32.gmra.mxu0 %v3926
      %v4617 = vpop.f32.mrf.mxu0
      %v4618 = vadd.f32 0.0, %v4617
      %4619 = vmatmul.f32.gmra.mxu0 %v3929
      %v4620 = vpop.f32.mrf.mxu0
      %v4621 = vadd.f32 0.0, %v4620
      %4622 = vmatmul.f32.gmra.mxu0 %v3932
      %v4623 = vpop.f32.mrf.mxu0
      %v4624 = vadd.f32 0.0, %v4623
      %4625 = vmatmul.f32.gmra.mxu0 %v3935
      %v4626 = vpop.f32.mrf.mxu0
      %v4627 = vadd.f32 0.0, %v4626
      %4628 = vmatmul.f32.gmra.mxu0 %v3938
      %v4629 = vpop.f32.mrf.mxu0
      %v4630 = vadd.f32 0.0, %v4629
      %4631 = vmatmul.f32.gmra.mxu0 %v3941
      %v4632 = vpop.f32.mrf.mxu0
      %v4633 = vadd.f32 0.0, %v4632
      %4634 = vmatmul.f32.gmra.mxu0 %v3944
      %v4635 = vpop.f32.mrf.mxu0
      %v4636 = vadd.f32 0.0, %v4635
      %4637 = vmatmul.f32.gmra.mxu0 %v3947
      %v4638 = vpop.f32.mrf.mxu0
      %v4639 = vadd.f32 0.0, %v4638
      %4640 = vmatmul.f32.gmra.mxu0 %v3950
      %v4641 = vpop.f32.mrf.mxu0
      %v4642 = vadd.f32 0.0, %v4641
      %4643 = vmatmul.f32.gmra.mxu0 %v3953
      %v4644 = vpop.f32.mrf.mxu0
      %v4645 = vadd.f32 0.0, %v4644
      %4646 = vmatmul.f32.gmra.mxu0 %v3956
      %v4647 = vpop.f32.mrf.mxu0
      %v4648 = vadd.f32 0.0, %v4647
      %4649 = vmatmul.f32.gmra.mxu0 %v3959
      %v4650 = vpop.f32.mrf.mxu0
      %v4651 = vadd.f32 0.0, %v4650
      %4652 = vmatmul.f32.gmra.mxu0 %v3962
      %v4653 = vpop.f32.mrf.mxu0
      %v4654 = vadd.f32 0.0, %v4653
      %4655 = vmatmul.f32.gmra.mxu0 %v3965
      %v4656 = vpop.f32.mrf.mxu0
      %v4657 = vadd.f32 0.0, %v4656
      %4658 = vmatmul.f32.gmra.mxu0 %v3968
      %v4659 = vpop.f32.mrf.mxu0
      %v4660 = vadd.f32 0.0, %v4659
      %4661 = vmatmul.f32.gmra.mxu0 %v3971
      %v4662 = vpop.f32.mrf.mxu0
      %v4663 = vadd.f32 0.0, %v4662
      %4664 = vmatmul.f32.gmra.mxu0 %v3974
      %v4665 = vpop.f32.mrf.mxu0
      %v4666 = vadd.f32 0.0, %v4665
      %4667 = vmatmul.f32.gmra.mxu0 %v3977
      %v4668 = vpop.f32.mrf.mxu0
      %v4669 = vadd.f32 0.0, %v4668
      %4670 = vmatmul.f32.gmra.mxu0 %v3980
      %v4671 = vpop.f32.mrf.mxu0
      %v4672 = vadd.f32 0.0, %v4671
      %4673 = vmatmul.f32.gmra.mxu0 %v3983
      %v4674 = vpop.f32.mrf.mxu0
      %v4675 = vadd.f32 0.0, %v4674
      %4676 = vmatmul.f32.gmra.mxu0 %v3986
      %v4677 = vpop.f32.mrf.mxu0
      %v4678 = vadd.f32 0.0, %v4677
      %4679 = vmatmul.f32.gmra.mxu0 %v3989
      %v4680 = vpop.f32.mrf.mxu0
      %v4681 = vadd.f32 0.0, %v4680
      %4682 = vmatmul.f32.gmra.mxu0 %v3992
      %v4683 = vpop.f32.mrf.mxu0
      %v4684 = vadd.f32 0.0, %v4683
      %4685 = vmatmul.f32.gmra.mxu0 %v3995
      %v4686 = vpop.f32.mrf.mxu0
      %v4687 = vadd.f32 0.0, %v4686
      %4688 = vmatmul.f32.gmra.mxu0 %v3998
      %v4689 = vpop.f32.mrf.mxu0
      %v4690 = vadd.f32 0.0, %v4689
      %4691 = vmatmul.f32.gmra.mxu0 %v4001
      %v4692 = vpop.f32.mrf.mxu0
      %v4693 = vadd.f32 0.0, %v4692
      %4694 = vmatmul.f32.gmra.mxu0 %v4004
      %v4695 = vpop.f32.mrf.mxu0
      %v4696 = vadd.f32 0.0, %v4695
      %4697 = vmatmul.f32.gmra.mxu0 %v4007
      %v4698 = vpop.f32.mrf.mxu0
      %v4699 = vadd.f32 0.0, %v4698
      %4700 = vmatmul.f32.gmra.mxu0 %v4010
      %v4701 = vpop.f32.mrf.mxu0
      %v4702 = vadd.f32 0.0, %v4701
      %4703 = vmatmul.f32.gmra.mxu0 %v4013
      %v4704 = vpop.f32.mrf.mxu0
      %v4705 = vadd.f32 0.0, %v4704
      %4706 = vmatmul.f32.gmra.mxu0 %v4016
      %v4707 = vpop.f32.mrf.mxu0
      %v4708 = vadd.f32 0.0, %v4707
      %4709 = vmatmul.f32.gmra.mxu0 %v4019
      %v4710 = vpop.f32.mrf.mxu0
      %v4711 = vadd.f32 0.0, %v4710
      %4712 = vmatmul.f32.gmra.mxu0 %v4022
      %v4713 = vpop.f32.mrf.mxu0
      %v4714 = vadd.f32 0.0, %v4713
      %4715 = vmatmul.f32.gmra.mxu0 %v4025
      %v4716 = vpop.f32.mrf.mxu0
      %v4717 = vadd.f32 0.0, %v4716
      %4718 = vmatmul.f32.gmra.mxu0 %v4028
      %v4719 = vpop.f32.mrf.mxu0
      %v4720 = vadd.f32 0.0, %v4719
      %4721 = vmatmul.f32.gmra.mxu0 %v4031
      %v4722 = vpop.f32.mrf.mxu0
      %v4723 = vadd.f32 0.0, %v4722
      %4724 = vmatmul.f32.gmra.mxu0 %v4034
      %v4725 = vpop.f32.mrf.mxu0
      %v4726 = vadd.f32 0.0, %v4725
      %4727 = vmatmul.f32.gmra.mxu0 %v4037
      %v4728 = vpop.f32.mrf.mxu0
      %v4729 = vadd.f32 0.0, %v4728
      %4730 = vmatmul.f32.gmra.mxu0 %v4040
      %v4731 = vpop.f32.mrf.mxu0
      %v4732 = vadd.f32 0.0, %v4731
      %4733 = vmatmul.f32.gmra.mxu0 %v4043
      %v4734 = vpop.f32.mrf.mxu0
      %v4735 = vadd.f32 0.0, %v4734
      %4736 = vmatmul.f32.gmra.mxu0 %v4046
      %v4737 = vpop.f32.mrf.mxu0
      %v4738 = vadd.f32 0.0, %v4737
      %4739 = vmatmul.f32.gmra.mxu0 %v4049
      %v4740 = vpop.f32.mrf.mxu0
      %v4741 = vadd.f32 0.0, %v4740
      %4742 = vmatmul.f32.gmra.mxu0 %v4052
      %v4743 = vpop.f32.mrf.mxu0
      %v4744 = vadd.f32 0.0, %v4743
      %4745 = vmatmul.f32.gmra.mxu0 %v4055
      %v4746 = vpop.f32.mrf.mxu0
      %v4747 = vadd.f32 0.0, %v4746
      %4748 = vmatmul.f32.gmra.mxu0 %v4058
      %v4749 = vpop.f32.mrf.mxu0
      %v4750 = vadd.f32 0.0, %v4749
      %4751 = vmatmul.f32.gmra.mxu0 %v4061
      %v4752 = vpop.f32.mrf.mxu0
      %v4753 = vadd.f32 0.0, %v4752
      %4754 = vmatmul.f32.gmra.mxu0 %v4064
      %v4755 = vpop.f32.mrf.mxu0
      %v4756 = vadd.f32 0.0, %v4755
      %4757 = vmatmul.f32.gmra.mxu0 %v4067
      %v4758 = vpop.f32.mrf.mxu0
      %v4759 = vadd.f32 0.0, %v4758
      %4760 = vmatmul.f32.gmra.mxu0 %v4070
      %v4761 = vpop.f32.mrf.mxu0
      %v4762 = vadd.f32 0.0, %v4761
      %4763 = vmatmul.f32.gmra.mxu0 %v4073
      %v4764 = vpop.f32.mrf.mxu0
      %v4765 = vadd.f32 0.0, %v4764
      %4766 = vmatmul.f32.gmra.mxu0 %v4076
      %v4767 = vpop.f32.mrf.mxu0
      %v4768 = vadd.f32 0.0, %v4767
      %4769 = vmatmul.f32.gmra.mxu0 %v4079
      %v4770 = vpop.f32.mrf.mxu0
      %v4771 = vadd.f32 0.0, %v4770
      %4772 = vmatmul.f32.gmra.mxu0 %v4082
      %v4773 = vpop.f32.mrf.mxu0
      %v4774 = vadd.f32 0.0, %v4773
      %4775 = vmatmul.f32.gmra.mxu0 %v4085
      %v4776 = vpop.f32.mrf.mxu0
      %v4777 = vadd.f32 0.0, %v4776
      %4778 = vmatmul.f32.gmra.mxu0 %v4088
      %v4779 = vpop.f32.mrf.mxu0
      %v4780 = vadd.f32 0.0, %v4779
      %4781 = vmatmul.f32.gmra.mxu0 %v4091
      %v4782 = vpop.f32.mrf.mxu0
      %v4783 = vadd.f32 0.0, %v4782
      %4784 = vmatmul.f32.gmra.mxu0 %v4094
      %v4785 = vpop.f32.mrf.mxu0
      %v4786 = vadd.f32 0.0, %v4785
      %4787 = vmatmul.f32.gmra.mxu0 %v4097
      %v4788 = vpop.f32.mrf.mxu0
      %v4789 = vadd.f32 0.0, %v4788
      %4790 = vmatmul.f32.gmra.mxu0 %v4100
      %v4791 = vpop.f32.mrf.mxu0
      %v4792 = vadd.f32 0.0, %v4791
      %4793 = vmatmul.f32.gmra.mxu0 %v4103
      %v4794 = vpop.f32.mrf.mxu0
      %v4795 = vadd.f32 0.0, %v4794
      %4796 = vmatmul.f32.gmra.mxu0 %v4106
      %v4797 = vpop.f32.mrf.mxu0
      %v4798 = vadd.f32 0.0, %v4797
      %4799 = vmatmul.f32.gmra.mxu0 %v4109
      %v4800 = vpop.f32.mrf.mxu0
      %v4801 = vadd.f32 0.0, %v4800
      %4802 = vmatmul.f32.gmra.mxu0 %v4112
      %v4803 = vpop.f32.mrf.mxu0
      %v4804 = vadd.f32 0.0, %v4803
      %4805 = vmatmul.f32.gmra.mxu0 %v4115
      %v4806 = vpop.f32.mrf.mxu0
      %v4807 = vadd.f32 0.0, %v4806
      %4808 = vmatmul.f32.gmra.mxu0 %v4118
      %v4809 = vpop.f32.mrf.mxu0
      %v4810 = vadd.f32 0.0, %v4809
      %4811 = vmatmul.f32.gmra.mxu0 %v4121
      %v4812 = vpop.f32.mrf.mxu0
      %v4813 = vadd.f32 0.0, %v4812
      %4814 = vmatmul.f32.gmra.mxu0 %v4124
      %v4815 = vpop.f32.mrf.mxu0
      %v4816 = vadd.f32 0.0, %v4815
      %4817 = vmatmul.f32.gmra.mxu0 %v4127
      %v4818 = vpop.f32.mrf.mxu0
      %v4819 = vadd.f32 0.0, %v4818
      %4820 = vmatmul.f32.gmra.mxu0 %v4130
      %v4821 = vpop.f32.mrf.mxu0
      %v4822 = vadd.f32 0.0, %v4821
      %4823 = vmatmul.f32.gmra.mxu0 %v4133
      %v4824 = vpop.f32.mrf.mxu0
      %v4825 = vadd.f32 0.0, %v4824
      %4826 = vmatmul.f32.gmra.mxu0 %v4136
      %v4827 = vpop.f32.mrf.mxu0
      %v4828 = vadd.f32 0.0, %v4827
      %4829 = vmatmul.f32.gmra.mxu0 %v4139
      %v4830 = vpop.f32.mrf.mxu0
      %v4831 = vadd.f32 0.0, %v4830
      %4832 = vmatmul.f32.gmra.mxu0 %v4142
      %v4833 = vpop.f32.mrf.mxu0
      %v4834 = vadd.f32 0.0, %v4833
      %4835 = vmatmul.f32.gmra.mxu0 %v4145
      %v4836 = vpop.f32.mrf.mxu0
      %v4837 = vadd.f32 0.0, %v4836
      %4838 = vmatmul.f32.gmra.mxu0 %v4148
      %v4839 = vpop.f32.mrf.mxu0
      %v4840 = vadd.f32 0.0, %v4839
      %4841 = vmatmul.f32.gmra.mxu0 %v4151
      %v4842 = vpop.f32.mrf.mxu0
      %v4843 = vadd.f32 0.0, %v4842
      %4844 = vmatmul.f32.gmra.mxu0 %v4154
      %v4845 = vpop.f32.mrf.mxu0
      %v4846 = vadd.f32 0.0, %v4845
      %4847 = vmatmul.f32.gmra.mxu0 %v4157
      %v4848 = vpop.f32.mrf.mxu0
      %v4849 = vadd.f32 0.0, %v4848
      %4850 = vmatmul.f32.gmra.mxu0 %v4160
      %v4851 = vpop.f32.mrf.mxu0
      %v4852 = vadd.f32 0.0, %v4851
      %4853 = vmatmul.f32.gmra.mxu0 %v4163
      %v4854 = vpop.f32.mrf.mxu0
      %v4855 = vadd.f32 0.0, %v4854
      %4856 = vmatmul.f32.gmra.mxu0 %v4166
      %v4857 = vpop.f32.mrf.mxu0
      %v4858 = vadd.f32 0.0, %v4857
      %4859 = vmatmul.f32.gmra.mxu0 %v4169
      %v4860 = vpop.f32.mrf.mxu0
      %v4861 = vadd.f32 0.0, %v4860
      %4862 = vmatmul.f32.gmra.mxu0 %v4172
      %v4863 = vpop.f32.mrf.mxu0
      %v4864 = vadd.f32 0.0, %v4863
      %4865 = vmatmul.f32.gmra.mxu0 %v4175
      %v4866 = vpop.f32.mrf.mxu0
      %v4867 = vadd.f32 0.0, %v4866
      %4868 = vmatmul.f32.gmra.mxu0 %v4178
      %v4869 = vpop.f32.mrf.mxu0
      %v4870 = vadd.f32 0.0, %v4869
      %4871 = vmatmul.f32.gmra.mxu0 %v4181
      %v4872 = vpop.f32.mrf.mxu0
      %v4873 = vadd.f32 0.0, %v4872
      %4874 = vmatmul.f32.gmra.mxu0 %v4184
      %v4875 = vpop.f32.mrf.mxu0
      %v4876 = vadd.f32 0.0, %v4875
      %4877 = vmatmul.f32.gmra.mxu0 %v4187
      %v4878 = vpop.f32.mrf.mxu0
      %v4879 = vadd.f32 0.0, %v4878
      %4880 = vmatmul.f32.gmra.mxu0 %v4190
      %v4881 = vpop.f32.mrf.mxu0
      %v4882 = vadd.f32 0.0, %v4881
      %4883 = vmatmul.f32.gmra.mxu0 %v4193
      %v4884 = vpop.f32.mrf.mxu0
      %v4885 = vadd.f32 0.0, %v4884
      %4886 = vmatmul.f32.gmra.mxu0 %v4196
      %v4887 = vpop.f32.mrf.mxu0
      %v4888 = vadd.f32 0.0, %v4887
      %4889 = vmatmul.f32.gmra.mxu0 %v4199
      %v4890 = vpop.f32.mrf.mxu0
      %v4891 = vadd.f32 0.0, %v4890
      %4892 = vmatmul.f32.gmra.mxu0 %v4202
      %v4893 = vpop.f32.mrf.mxu0
      %v4894 = vadd.f32 0.0, %v4893
      %4895 = vmatmul.f32.gmra.mxu0 %v4205
      %v4896 = vpop.f32.mrf.mxu0
      %v4897 = vadd.f32 0.0, %v4896
      %4898 = vmatmul.f32.gmra.mxu0 %v4208
      %v4899 = vpop.f32.mrf.mxu0
      %v4900 = vadd.f32 0.0, %v4899
      %4901 = vmatmul.f32.gmra.mxu0 %v4211
      %v4902 = vpop.f32.mrf.mxu0
      %v4903 = vadd.f32 0.0, %v4902
      %4904 = vmatmul.f32.gmra.mxu0 %v4214
      %v4905 = vpop.f32.mrf.mxu0
      %v4906 = vadd.f32 0.0, %v4905
      %4907 = vmatmul.f32.gmra.mxu0 %v4217
      %v4908 = vpop.f32.mrf.mxu0
      %v4909 = vadd.f32 0.0, %v4908
      %4910 = vmatmul.f32.gmra.mxu0 %v4220
      %v4911 = vpop.f32.mrf.mxu0
      %v4912 = vadd.f32 0.0, %v4911
      %4913 = vmatmul.f32.gmra.mxu0 %v4223
      %v4914 = vpop.f32.mrf.mxu0
      %v4915 = vadd.f32 0.0, %v4914
      %4916 = vmatmul.f32.gmra.mxu0 %v4226
      %v4917 = vpop.f32.mrf.mxu0
      %v4918 = vadd.f32 0.0, %v4917
      %4919 = vmatmul.f32.gmra.mxu0 %v4229
      %v4920 = vpop.f32.mrf.mxu0
      %v4921 = vadd.f32 0.0, %v4920
      %4922 = vmatmul.f32.gmra.mxu0 %v4232
      %v4923 = vpop.f32.mrf.mxu0
      %v4924 = vadd.f32 0.0, %v4923
      %4925 = vmatmul.f32.gmra.mxu0 %v4235
      %v4926 = vpop.f32.mrf.mxu0
      %v4927 = vadd.f32 0.0, %v4926
      %4928 = vmatmul.f32.gmra.mxu0 %v4238
      %v4929 = vpop.f32.mrf.mxu0
      %v4930 = vadd.f32 0.0, %v4929
      %4931 = vmatmul.f32.gmra.mxu0 %v4241
      %v4932 = vpop.f32.mrf.mxu0
      %v4933 = vadd.f32 0.0, %v4932
      %4934 = vmatmul.f32.gmra.mxu0 %v4244
      %v4935 = vpop.f32.mrf.mxu0
      %v4936 = vadd.f32 0.0, %v4935
      %4937 = vmatmul.f32.gmra.mxu0 %v4247
      %v4938 = vpop.f32.mrf.mxu0
      %v4939 = vadd.f32 0.0, %v4938
      %4940 = vmatmul.f32.gmra.mxu0 %v4250
      %v4941 = vpop.f32.mrf.mxu0
      %v4942 = vadd.f32 0.0, %v4941
      %4943 = vmatmul.f32.gmra.mxu0 %v4253
      %v4944 = vpop.f32.mrf.mxu0
      %v4945 = vadd.f32 0.0, %v4944
      %4946 = vmatmul.f32.gmra.mxu0 %v4256
      %v4947 = vpop.f32.mrf.mxu0
      %v4948 = vadd.f32 0.0, %v4947
      %4949 = vmatmul.f32.gmra.mxu0 %v4259
      %v4950 = vpop.f32.mrf.mxu0
      %v4951 = vadd.f32 0.0, %v4950
      %4952 = vmatmul.f32.gmra.mxu0 %v4262
      %v4953 = vpop.f32.mrf.mxu0
      %v4954 = vadd.f32 0.0, %v4953
      %4955 = vmatmul.f32.gmra.mxu0 %v4265
      %v4956 = vpop.f32.mrf.mxu0
      %v4957 = vadd.f32 0.0, %v4956
      %4958 = vmatmul.f32.gmra.mxu0 %v4268
      %v4959 = vpop.f32.mrf.mxu0
      %v4960 = vadd.f32 0.0, %v4959
      %4961 = vmatmul.f32.gmra.mxu0 %v4271
      %v4962 = vpop.f32.mrf.mxu0
      %v4963 = vadd.f32 0.0, %v4962
      %4964 = vmatmul.f32.gmra.mxu0 %v4274
      %v4965 = vpop.f32.mrf.mxu0
      %v4966 = vadd.f32 0.0, %v4965
      %4967 = vmatmul.f32.gmra.mxu0 %v4277
      %v4968 = vpop.f32.mrf.mxu0
      %v4969 = vadd.f32 0.0, %v4968
      %4970 = vmatmul.f32.gmra.mxu0 %v4280
      %v4971 = vpop.f32.mrf.mxu0
      %v4972 = vadd.f32 0.0, %v4971
      %4973 = vmatmul.f32.gmra.mxu0 %v4283
      %v4974 = vpop.f32.mrf.mxu0
      %v4975 = vadd.f32 0.0, %v4974
      %4976 = vmatmul.f32.gmra.mxu0 %v4286
      %v4977 = vpop.f32.mrf.mxu0
      %v4978 = vadd.f32 0.0, %v4977
      %4979 = vmatmul.f32.gmra.mxu0 %v4289
      %v4980 = vpop.f32.mrf.mxu0
      %v4981 = vadd.f32 0.0, %v4980
      %4982 = vmatmul.f32.gmra.mxu0 %v4292
      %v4983 = vpop.f32.mrf.mxu0
      %v4984 = vadd.f32 0.0, %v4983
      %4985 = vmatmul.f32.gmra.mxu0 %v4295
      %v4986 = vpop.f32.mrf.mxu0
      %v4987 = vadd.f32 0.0, %v4986
      %4988 = vmatmul.f32.gmra.mxu0 %v4298
      %v4989 = vpop.f32.mrf.mxu0
      %v4990 = vadd.f32 0.0, %v4989
      %4991 = vmatmul.f32.gmra.mxu0 %v4301
      %v4992 = vpop.f32.mrf.mxu0
      %v4993 = vadd.f32 0.0, %v4992
      %4994 = vmatmul.f32.gmra.mxu0 %v4304
      %v4995 = vpop.f32.mrf.mxu0
      %v4996 = vadd.f32 0.0, %v4995
      %4997 = vmatmul.f32.gmra.mxu0 %v4307
      %v4998 = vpop.f32.mrf.mxu0
      %v4999 = vadd.f32 0.0, %v4998
      %5000 = vmatmul.f32.gmra.mxu0 %v4310
      %v5001 = vpop.f32.mrf.mxu0
      %v5002 = vadd.f32 0.0, %v5001
      %5003 = vmatmul.f32.gmra.mxu0 %v4313
      %v5004 = vpop.f32.mrf.mxu0
      %v5005 = vadd.f32 0.0, %v5004
      %5006 = vmatmul.f32.gmra.mxu0 %v4316
      %v5007 = vpop.f32.mrf.mxu0
      %v5008 = vadd.f32 0.0, %v5007
      %5009 = vmatmul.f32.gmra.mxu0 %v4319
      %v5010 = vpop.f32.mrf.mxu0
      %v5011 = vadd.f32 0.0, %v5010
      %5012 = vmatmul.f32.gmra.mxu0 %v4322
      %v5013 = vpop.f32.mrf.mxu0
      %v5014 = vadd.f32 0.0, %v5013
      %5015 = vmatmul.f32.gmra.mxu0 %v4325
      %v5016 = vpop.f32.mrf.mxu0
      %v5017 = vadd.f32 0.0, %v5016
      %5018 = vmatmul.f32.gmra.mxu0 %v4328
      %v5019 = vpop.f32.mrf.mxu0
      %v5020 = vadd.f32 0.0, %v5019
      %5021 = vmatmul.f32.gmra.mxu0 %v4331
      %v5022 = vpop.f32.mrf.mxu0
      %v5023 = vadd.f32 0.0, %v5022
      %5024 = vmatmul.f32.gmra.mxu0 %v4334
      %v5025 = vpop.f32.mrf.mxu0
      %v5026 = vadd.f32 0.0, %v5025
      %5027 = vmatmul.f32.gmra.mxu0 %v4337
      %v5028 = vpop.f32.mrf.mxu0
      %v5029 = vadd.f32 0.0, %v5028
      %5030 = vmatmul.f32.gmra.mxu0 %v4340
      %v5031 = vpop.f32.mrf.mxu0
      %v5032 = vadd.f32 0.0, %v5031
      %5033 = vmatmul.f32.gmra.mxu0 %v4343
      %v5034 = vpop.f32.mrf.mxu0
      %v5035 = vadd.f32 0.0, %v5034
      %5036 = vmatmul.f32.gmra.mxu0 %v4346
      %v5037 = vpop.f32.mrf.mxu0
      %v5038 = vadd.f32 0.0, %v5037
      %5039 = vmatmul.f32.gmra.mxu0 %v4349
      %v5040 = vpop.f32.mrf.mxu0
      %v5041 = vadd.f32 0.0, %v5040
      %5042 = vmatmul.f32.gmra.mxu0 %v4352
      %v5043 = vpop.f32.mrf.mxu0
      %v5044 = vadd.f32 0.0, %v5043
      %5045 = vmatmul.f32.gmra.mxu0 %v4355
      %v5046 = vpop.f32.mrf.mxu0
      %v5047 = vadd.f32 0.0, %v5046
      %5048 = vmatmul.f32.gmra.mxu0 %v4358
      %v5049 = vpop.f32.mrf.mxu0
      %v5050 = vadd.f32 0.0, %v5049
      %5051 = vmatmul.f32.gmra.mxu0 %v4361
      %v5052 = vpop.f32.mrf.mxu0
      %v5053 = vadd.f32 0.0, %v5052
      %5054 = vmatmul.f32.gmra.mxu0 %v4364
      %v5055 = vpop.f32.mrf.mxu0
      %v5056 = vadd.f32 0.0, %v5055
      %5057 = vmatmul.f32.gmra.mxu0 %v4367
      %v5058 = vpop.f32.mrf.mxu0
      %v5059 = vadd.f32 0.0, %v5058
      %5060 = vmatmul.f32.gmra.mxu0 %v4370
      %v5061 = vpop.f32.mrf.mxu0
      %v5062 = vadd.f32 0.0, %v5061
      %5063 = vmatmul.f32.gmra.mxu0 %v4373
      %v5064 = vpop.f32.mrf.mxu0
      %v5065 = vadd.f32 0.0, %v5064
      %5066 = vmatmul.f32.gmra.mxu0 %v4376
      %v5067 = vpop.f32.mrf.mxu0
      %v5068 = vadd.f32 0.0, %v5067
      %5069 = vmatmul.f32.gmra.mxu0 %v4379
      %v5070 = vpop.f32.mrf.mxu0
      %v5071 = vadd.f32 0.0, %v5070
      %5072 = vmatmul.f32.gmra.mxu0 %v4382
      %v5073 = vpop.f32.mrf.mxu0
      %v5074 = vadd.f32 0.0, %v5073
      %5075 = vmatmul.f32.gmra.mxu0 %v4385
      %v5076 = vpop.f32.mrf.mxu0
      %v5077 = vadd.f32 0.0, %v5076
      %5078 = vmatmul.f32.gmra.mxu0 %v4388
      %v5079 = vpop.f32.mrf.mxu0
      %v5080 = vadd.f32 0.0, %v5079
      %5081 = vmatmul.f32.gmra.mxu0 %v4391
      %v5082 = vpop.f32.mrf.mxu0
      %v5083 = vadd.f32 0.0, %v5082
      %5084 = vmatmul.f32.gmra.mxu0 %v4394
      %v5085 = vpop.f32.mrf.mxu0
      %v5086 = vadd.f32 0.0, %v5085
      %5087 = vmatmul.f32.gmra.mxu0 %v4397
      %v5088 = vpop.f32.mrf.mxu0
      %v5089 = vadd.f32 0.0, %v5088
      %5090 = vmatmul.f32.gmra.mxu0 %v4400
      %v5091 = vpop.f32.mrf.mxu0
      %v5092 = vadd.f32 0.0, %v5091
      %5093 = vmatmul.f32.gmra.mxu0 %v4403
      %v5094 = vpop.f32.mrf.mxu0
      %v5095 = vadd.f32 0.0, %v5094
      %5096 = vmatmul.f32.gmra.mxu0 %v4406
      %v5097 = vpop.f32.mrf.mxu0
      %v5098 = vadd.f32 0.0, %v5097
      %5099 = vmatmul.f32.gmra.mxu0 %v4409
      %v5100 = vpop.f32.mrf.mxu0
      %v5101 = vadd.f32 0.0, %v5100
      %5102 = vmatmul.f32.gmra.mxu0 %v4412
      %v5103 = vpop.f32.mrf.mxu0
      %v5104 = vadd.f32 0.0, %v5103
      %5105 = vmatmul.f32.gmra.mxu0 %v4415
      %v5106 = vpop.f32.mrf.mxu0
      %v5107 = vadd.f32 0.0, %v5106
      %5108 = vmatmul.f32.gmra.mxu0 %v4418
      %v5109 = vpop.f32.mrf.mxu0
      %v5110 = vadd.f32 0.0, %v5109
      %5111 = vmatmul.f32.gmra.mxu0 %v4421
      %v5112 = vpop.f32.mrf.mxu0
      %v5113 = vadd.f32 0.0, %v5112
      %5114 = vmatmul.f32.gmra.mxu0 %v4424
      %v5115 = vpop.f32.mrf.mxu0
      %v5116 = vadd.f32 0.0, %v5115
      %5117 = vmatmul.f32.gmra.mxu0 %v4427
      %v5118 = vpop.f32.mrf.mxu0
      %v5119 = vadd.f32 0.0, %v5118
      %5120 = vmatmul.f32.gmra.mxu0 %v4430
      %v5121 = vpop.f32.mrf.mxu0
      %v5122 = vadd.f32 0.0, %v5121
      %5123 = vmatmul.f32.gmra.mxu0 %v4433
      %v5124 = vpop.f32.mrf.mxu0
      %v5125 = vadd.f32 0.0, %v5124
      %5126 = vmatmul.f32.gmra.mxu0 %v4436
      %v5127 = vpop.f32.mrf.mxu0
      %v5128 = vadd.f32 0.0, %v5127
      %5129 = vmatmul.f32.gmra.mxu0 %v4439
      %v5130 = vpop.f32.mrf.mxu0
      %v5131 = vadd.f32 0.0, %v5130
      %5132 = vmatmul.f32.gmra.mxu0 %v4442
      %v5133 = vpop.f32.mrf.mxu0
      %v5134 = vadd.f32 0.0, %v5133
      %5135 = vmatmul.f32.gmra.mxu0 %v4445
      %v5136 = vpop.f32.mrf.mxu0
      %v5137 = vadd.f32 0.0, %v5136
      %5138 = vmatmul.f32.gmra.mxu0 %v4448
      %v5139 = vpop.f32.mrf.mxu0
      %v5140 = vadd.f32 0.0, %v5139
      %5141 = vmatmul.f32.gmra.mxu0 %v4451
      %v5142 = vpop.f32.mrf.mxu0
      %v5143 = vadd.f32 0.0, %v5142
      %5144 = vmatmul.f32.gmra.mxu0 %v4454
      %v5145 = vpop.f32.mrf.mxu0
      %v5146 = vadd.f32 0.0, %v5145
      %5147 = vmatmul.f32.gmra.mxu0 %v4457
      %v5148 = vpop.f32.mrf.mxu0
      %v5149 = vadd.f32 0.0, %v5148
      %5150 = vmatmul.f32.gmra.mxu0 %v4460
      %v5151 = vpop.f32.mrf.mxu0
      %v5152 = vadd.f32 0.0, %v5151
      %5153 = vmatmul.f32.gmra.mxu0 %v4463
      %v5154 = vpop.f32.mrf.mxu0
      %v5155 = vadd.f32 0.0, %v5154
      %5156 = vmatmul.f32.gmra.mxu0 %v4466
      %v5157 = vpop.f32.mrf.mxu0
      %v5158 = vadd.f32 0.0, %v5157
      %5159 = vmatmul.f32.gmra.mxu0 %v4469
      %v5160 = vpop.f32.mrf.mxu0
      %v5161 = vadd.f32 0.0, %v5160
      %5162 = vmatmul.f32.gmra.mxu0 %v4472
      %v5163 = vpop.f32.mrf.mxu0
      %v5164 = vadd.f32 0.0, %v5163
      %5165 = vmatmul.f32.gmra.mxu0 %v4475
      %v5166 = vpop.f32.mrf.mxu0
      %v5167 = vadd.f32 0.0, %v5166
      %5168 = vmatmul.f32.gmra.mxu0 %v4478
      %v5169 = vpop.f32.mrf.mxu0
      %v5170 = vadd.f32 0.0, %v5169
      %5171 = vmatmul.f32.gmra.mxu0 %v4481
      %v5172 = vpop.f32.mrf.mxu0
      %v5173 = vadd.f32 0.0, %v5172
      %5174 = vmatmul.f32.gmra.mxu0 %v4484
      %v5175 = vpop.f32.mrf.mxu0
      %v5176 = vadd.f32 0.0, %v5175
      %5177 = vmatmul.f32.gmra.mxu0 %v4487
      %v5178 = vpop.f32.mrf.mxu0
      %v5179 = vadd.f32 0.0, %v5178
      %5180 = vmatmul.f32.gmra.mxu0 %v4490
      %v5181 = vpop.f32.mrf.mxu0
      %v5182 = vadd.f32 0.0, %v5181
      %5183 = vmatmul.f32.gmra.mxu0 %v4493
      %v5184 = vpop.f32.mrf.mxu0
      %v5185 = vadd.f32 0.0, %v5184
      %5186 = vmatmul.f32.gmra.mxu0 %v4496
      %v5187 = vpop.f32.mrf.mxu0
      %v5188 = vadd.f32 0.0, %v5187
      %5189 = vdwg.mxu0
      %v5190 = vmax.f32 %v3372, %v4516
      %v5191 = vmax.f32 %v3373, %v4519
      %v5192 = vmax.f32 %v3374, %v4522
      %v5193 = vmax.f32 %v3375, %v4525
      %v5194 = vmax.f32 %v3376, %v4528
      %v5195 = vmax.f32 %v3377, %v4531
      %v5196 = vmax.f32 %v3378, %v4534
      %v5197 = vmax.f32 %v3379, %v4537
      %v5198 = vmax.f32 %v3380, %v4540
      %v5199 = vmax.f32 %v3381, %v4543
      %v5200 = vmax.f32 %v3382, %v4546
      %v5201 = vmax.f32 %v3383, %v4549
      %v5202 = vmax.f32 %v3384, %v4552
      %v5203 = vmax.f32 %v3385, %v4555
      %v5204 = vmax.f32 %v3386, %v4558
      %v5205 = vmax.f32 %v3387, %v4561
      %v5206 = vmax.f32 %v3388, %v4564
      %v5207 = vmax.f32 %v3389, %v4567
      %v5208 = vmax.f32 %v3390, %v4570
      %v5209 = vmax.f32 %v3391, %v4573
      %v5210 = vmax.f32 %v3392, %v4576
      %v5211 = vmax.f32 %v3393, %v4579
      %v5212 = vmax.f32 %v3394, %v4582
      %v5213 = vmax.f32 %v3395, %v4585
      %v5214 = vmax.f32 %v3396, %v4588
      %v5215 = vmax.f32 %v3397, %v4591
      %v5216 = vmax.f32 %v3398, %v4594
      %v5217 = vmax.f32 %v3399, %v4597
      %v5218 = vmax.f32 %v3400, %v4600
      %v5219 = vmax.f32 %v3401, %v4603
      %v5220 = vmax.f32 %v3402, %v4606
      %v5221 = vmax.f32 %v3403, %v4609
      %v5222 = vmax.f32 %v3404, %v4612
      %v5223 = vmax.f32 %v3405, %v4615
      %v5224 = vmax.f32 %v3406, %v4618
      %v5225 = vmax.f32 %v3407, %v4621
      %v5226 = vmax.f32 %v3408, %v4624
      %v5227 = vmax.f32 %v3409, %v4627
      %v5228 = vmax.f32 %v3410, %v4630
      %v5229 = vmax.f32 %v3411, %v4633
      %v5230 = vmax.f32 %v3412, %v4636
      %v5231 = vmax.f32 %v3413, %v4639
      %v5232 = vmax.f32 %v3414, %v4642
      %v5233 = vmax.f32 %v3415, %v4645
      %v5234 = vmax.f32 %v3416, %v4648
      %v5235 = vmax.f32 %v3417, %v4651
      %v5236 = vmax.f32 %v3418, %v4654
      %v5237 = vmax.f32 %v3419, %v4657
      %v5238 = vmax.f32 %v3420, %v4660
      %v5239 = vmax.f32 %v3421, %v4663
      %v5240 = vmax.f32 %v3422, %v4666
      %v5241 = vmax.f32 %v3423, %v4669
      %v5242 = vmax.f32 %v3424, %v4672
      %v5243 = vmax.f32 %v3425, %v4675
      %v5244 = vmax.f32 %v3426, %v4678
      %v5245 = vmax.f32 %v3427, %v4681
      %v5246 = vmax.f32 %v3428, %v4684
      %v5247 = vmax.f32 %v3429, %v4687
      %v5248 = vmax.f32 %v3430, %v4690
      %v5249 = vmax.f32 %v3431, %v4693
      %v5250 = vmax.f32 %v3432, %v4696
      %v5251 = vmax.f32 %v3433, %v4699
      %v5252 = vmax.f32 %v3434, %v4702
      %v5253 = vmax.f32 %v3435, %v4705
      %v5254 = vmax.f32 %v3436, %v4708
      %v5255 = vmax.f32 %v3437, %v4711
      %v5256 = vmax.f32 %v3438, %v4714
      %v5257 = vmax.f32 %v3439, %v4717
      %v5258 = vmax.f32 %v3440, %v4720
      %v5259 = vmax.f32 %v3441, %v4723
      %v5260 = vmax.f32 %v3442, %v4726
      %v5261 = vmax.f32 %v3443, %v4729
      %v5262 = vmax.f32 %v3444, %v4732
      %v5263 = vmax.f32 %v3445, %v4735
      %v5264 = vmax.f32 %v3446, %v4738
      %v5265 = vmax.f32 %v3447, %v4741
      %v5266 = vmax.f32 %v3448, %v4744
      %v5267 = vmax.f32 %v3449, %v4747
      %v5268 = vmax.f32 %v3450, %v4750
      %v5269 = vmax.f32 %v3451, %v4753
      %v5270 = vmax.f32 %v3452, %v4756
      %v5271 = vmax.f32 %v3453, %v4759
      %v5272 = vmax.f32 %v3454, %v4762
      %v5273 = vmax.f32 %v3455, %v4765
      %v5274 = vmax.f32 %v3456, %v4768
      %v5275 = vmax.f32 %v3457, %v4771
      %v5276 = vmax.f32 %v3458, %v4774
      %v5277 = vmax.f32 %v3459, %v4777
      %v5278 = vmax.f32 %v3460, %v4780
      %v5279 = vmax.f32 %v3461, %v4783
      %v5280 = vmax.f32 %v3462, %v4786
      %v5281 = vmax.f32 %v3463, %v4789
      %v5282 = vmax.f32 %v3464, %v4792
      %v5283 = vmax.f32 %v3465, %v4795
      %v5284 = vmax.f32 %v3466, %v4798
      %v5285 = vmax.f32 %v3467, %v4801
      %v5286 = vmax.f32 %v3468, %v4804
      %v5287 = vmax.f32 %v3469, %v4807
      %v5288 = vmax.f32 %v3470, %v4810
      %v5289 = vmax.f32 %v3471, %v4813
      %v5290 = vmax.f32 %v3472, %v4816
      %v5291 = vmax.f32 %v3473, %v4819
      %v5292 = vmax.f32 %v3474, %v4822
      %v5293 = vmax.f32 %v3475, %v4825
      %v5294 = vmax.f32 %v3476, %v4828
      %v5295 = vmax.f32 %v3477, %v4831
      %v5296 = vmax.f32 %v3478, %v4834
      %v5297 = vmax.f32 %v3479, %v4837
      %v5298 = vmax.f32 %v3480, %v4840
      %v5299 = vmax.f32 %v3481, %v4843
      %v5300 = vmax.f32 %v3482, %v4846
      %v5301 = vmax.f32 %v3483, %v4849
      %v5302 = vmax.f32 %v3484, %v4852
      %v5303 = vmax.f32 %v3485, %v4855
      %v5304 = vmax.f32 %v3486, %v4858
      %v5305 = vmax.f32 %v3487, %v4861
      %v5306 = vmax.f32 %v3488, %v4864
      %v5307 = vmax.f32 %v3489, %v4867
      %v5308 = vmax.f32 %v3490, %v4870
      %v5309 = vmax.f32 %v3491, %v4873
      %v5310 = vmax.f32 %v3492, %v4876
      %v5311 = vmax.f32 %v3493, %v4879
      %v5312 = vmax.f32 %v3494, %v4882
      %v5313 = vmax.f32 %v3495, %v4885
      %v5314 = vmax.f32 %v3496, %v4888
      %v5315 = vmax.f32 %v3497, %v4891
      %v5316 = vmax.f32 %v3498, %v4894
      %v5317 = vmax.f32 %v3499, %v4897
      %v5318 = vmax.f32 %v3500, %v4900
      %v5319 = vmax.f32 %v3501, %v4903
      %v5320 = vmax.f32 %v3502, %v4906
      %v5321 = vmax.f32 %v3503, %v4909
      %v5322 = vmax.f32 %v3504, %v4912
      %v5323 = vmax.f32 %v3505, %v4915
      %v5324 = vmax.f32 %v3506, %v4918
      %v5325 = vmax.f32 %v3507, %v4921
      %v5326 = vmax.f32 %v3508, %v4924
      %v5327 = vmax.f32 %v3509, %v4927
      %v5328 = vmax.f32 %v3510, %v4930
      %v5329 = vmax.f32 %v3511, %v4933
      %v5330 = vmax.f32 %v3512, %v4936
      %v5331 = vmax.f32 %v3513, %v4939
      %v5332 = vmax.f32 %v3514, %v4942
      %v5333 = vmax.f32 %v3515, %v4945
      %v5334 = vmax.f32 %v3516, %v4948
      %v5335 = vmax.f32 %v3517, %v4951
      %v5336 = vmax.f32 %v3518, %v4954
      %v5337 = vmax.f32 %v3519, %v4957
      %v5338 = vmax.f32 %v3520, %v4960
      %v5339 = vmax.f32 %v3521, %v4963
      %v5340 = vmax.f32 %v3522, %v4966
      %v5341 = vmax.f32 %v3523, %v4969
      %v5342 = vmax.f32 %v3524, %v4972
      %v5343 = vmax.f32 %v3525, %v4975
      %v5344 = vmax.f32 %v3526, %v4978
      %v5345 = vmax.f32 %v3527, %v4981
      %v5346 = vmax.f32 %v3528, %v4984
      %v5347 = vmax.f32 %v3529, %v4987
      %v5348 = vmax.f32 %v3530, %v4990
      %v5349 = vmax.f32 %v3531, %v4993
      %v5350 = vmax.f32 %v3532, %v4996
      %v5351 = vmax.f32 %v3533, %v4999
      %v5352 = vmax.f32 %v3534, %v5002
      %v5353 = vmax.f32 %v3535, %v5005
      %v5354 = vmax.f32 %v3536, %v5008
      %v5355 = vmax.f32 %v3537, %v5011
      %v5356 = vmax.f32 %v3538, %v5014
      %v5357 = vmax.f32 %v3539, %v5017
      %v5358 = vmax.f32 %v3540, %v5020
      %v5359 = vmax.f32 %v3541, %v5023
      %v5360 = vmax.f32 %v3542, %v5026
      %v5361 = vmax.f32 %v3543, %v5029
      %v5362 = vmax.f32 %v3544, %v5032
      %v5363 = vmax.f32 %v3545, %v5035
      %v5364 = vmax.f32 %v3546, %v5038
      %v5365 = vmax.f32 %v3547, %v5041
      %v5366 = vmax.f32 %v3548, %v5044
      %v5367 = vmax.f32 %v3549, %v5047
      %v5368 = vmax.f32 %v3550, %v5050
      %v5369 = vmax.f32 %v3551, %v5053
      %v5370 = vmax.f32 %v3552, %v5056
      %v5371 = vmax.f32 %v3553, %v5059
      %v5372 = vmax.f32 %v3554, %v5062
      %v5373 = vmax.f32 %v3555, %v5065
      %v5374 = vmax.f32 %v3556, %v5068
      %v5375 = vmax.f32 %v3557, %v5071
      %v5376 = vmax.f32 %v3558, %v5074
      %v5377 = vmax.f32 %v3559, %v5077
      %v5378 = vmax.f32 %v3560, %v5080
      %v5379 = vmax.f32 %v3561, %v5083
      %v5380 = vmax.f32 %v3562, %v5086
      %v5381 = vmax.f32 %v3563, %v5089
      %v5382 = vmax.f32 %v3564, %v5092
      %v5383 = vmax.f32 %v3565, %v5095
      %v5384 = vmax.f32 %v3566, %v5098
      %v5385 = vmax.f32 %v3567, %v5101
      %v5386 = vmax.f32 %v3568, %v5104
      %v5387 = vmax.f32 %v3569, %v5107
      %v5388 = vmax.f32 %v3570, %v5110
      %v5389 = vmax.f32 %v3571, %v5113
      %v5390 = vmax.f32 %v3572, %v5116
      %v5391 = vmax.f32 %v3573, %v5119
      %v5392 = vmax.f32 %v3574, %v5122
      %v5393 = vmax.f32 %v3575, %v5125
      %v5394 = vmax.f32 %v3576, %v5128
      %v5395 = vmax.f32 %v3577, %v5131
      %v5396 = vmax.f32 %v3578, %v5134
      %v5397 = vmax.f32 %v3579, %v5137
      %v5398 = vmax.f32 %v3580, %v5140
      %v5399 = vmax.f32 %v3581, %v5143
      %v5400 = vmax.f32 %v3582, %v5146
      %v5401 = vmax.f32 %v3583, %v5149
      %v5402 = vmax.f32 %v3584, %v5152
      %v5403 = vmax.f32 %v3585, %v5155
      %v5404 = vmax.f32 %v3586, %v5158
      %v5405 = vmax.f32 %v3587, %v5161
      %v5406 = vmax.f32 %v3588, %v5164
      %v5407 = vmax.f32 %v3589, %v5167
      %v5408 = vmax.f32 %v3590, %v5170
      %v5409 = vmax.f32 %v3591, %v5173
      %v5410 = vmax.f32 %v3592, %v5176
      %v5411 = vmax.f32 %v3593, %v5179
      %v5412 = vmax.f32 %v3594, %v5182
      %v5413 = vmax.f32 %v3595, %v5185
      %v5414 = vmax.f32 %v3596, %v5188
      %s5415 = scalar_lea.vmem %s165, 5400
      %v5416 = vld [vmem:[%s5415] sm:$0xff]
      %v5417 = vld [vmem:[%s5415 + $0x8] sm:$0xff]
      %v5418 = vld [vmem:[%s5415 + $0x10] sm:$0xff]
      %v5419 = vld [vmem:[%s5415 + $0x18] sm:$0xff]
      %v5420 = vld [vmem:[%s5415 + $0x20] sm:$0xff]
      %v5421 = vld [vmem:[%s5415 + $0x28] sm:$0xff]
      %v5422 = vld [vmem:[%s5415 + $0x30] sm:$0xff]
      %v5423 = vld [vmem:[%s5415 + $0x38] sm:$0xff]
      %v5424 = vld [vmem:[%s5415 + $0x40] sm:$0xff]
      %v5425 = vld [vmem:[%s5415 + $0x48] sm:$0xff]
      %v5426 = vld [vmem:[%s5415 + $0x50] sm:$0xff]
      %v5427 = vld [vmem:[%s5415 + $0x58] sm:$0xff]
      %v5428 = vld [vmem:[%s5415 + $0x60] sm:$0xff]
      %v5429 = vld [vmem:[%s5415 + $0x68] sm:$0xff]
      %v5430 = vld [vmem:[%s5415 + $0x70] sm:$0xff]
      %v5431 = vld [vmem:[%s5415 + $0x78] sm:$0xff]
      %v5432 = vld [vmem:[%s5415 + $0x80] sm:$0xff]
      %v5433 = vld [vmem:[%s5415 + $0x88] sm:$0xff]
      %v5434 = vld [vmem:[%s5415 + $0x90] sm:$0xff]
      %v5435 = vld [vmem:[%s5415 + $0x98] sm:$0xff]
      %v5436 = vld [vmem:[%s5415 + $0xa0] sm:$0xff]
      %v5437 = vld [vmem:[%s5415 + $0xa8] sm:$0xff]
      %v5438 = vld [vmem:[%s5415 + $0xb0] sm:$0xff]
      %v5439 = vld [vmem:[%s5415 + $0xb8] sm:$0xff]
      %v5440 = vld [vmem:[%s5415 + $0xc0] sm:$0xff]
      %v5441 = vld [vmem:[%s5415 + $0xc8] sm:$0xff]
      %v5442 = vld [vmem:[%s5415 + $0xd0] sm:$0xff]
      %v5443 = vld [vmem:[%s5415 + $0xd8] sm:$0xff]
      %v5444 = vld [vmem:[%s5415 + $0xe0] sm:$0xff]
      %v5445 = vld [vmem:[%s5415 + $0xe8] sm:$0xff]
      %v5446 = vld [vmem:[%s5415 + $0xf0] sm:$0xff]
      %v5447 = vld [vmem:[%s5415 + $0xf8] sm:$0xff]
      %v5448 = vld [vmem:[%s5415 + $0x100] sm:$0xff]
      %v5449 = vld [vmem:[%s5415 + $0x108] sm:$0xff]
      %v5450 = vld [vmem:[%s5415 + $0x110] sm:$0xff]
      %v5451 = vld [vmem:[%s5415 + $0x118] sm:$0xff]
      %v5452 = vld [vmem:[%s5415 + $0x120] sm:$0xff]
      %v5453 = vld [vmem:[%s5415 + $0x128] sm:$0xff]
      %v5454 = vld [vmem:[%s5415 + $0x130] sm:$0xff]
      %v5455 = vld [vmem:[%s5415 + $0x138] sm:$0xff]
      %v5456 = vld [vmem:[%s5415 + $0x140] sm:$0xff]
      %v5457 = vld [vmem:[%s5415 + $0x148] sm:$0xff]
      %v5458 = vld [vmem:[%s5415 + $0x150] sm:$0xff]
      %v5459 = vld [vmem:[%s5415 + $0x158] sm:$0xff]
      %v5460 = vld [vmem:[%s5415 + $0x160] sm:$0xff]
      %v5461 = vld [vmem:[%s5415 + $0x168] sm:$0xff]
      %v5462 = vld [vmem:[%s5415 + $0x170] sm:$0xff]
      %v5463 = vld [vmem:[%s5415 + $0x178] sm:$0xff]
      %v5464 = vld [vmem:[%s5415 + $0x180] sm:$0xff]
      %v5465 = vld [vmem:[%s5415 + $0x188] sm:$0xff]
      %v5466 = vld [vmem:[%s5415 + $0x190] sm:$0xff]
      %v5467 = vld [vmem:[%s5415 + $0x198] sm:$0xff]
      %v5468 = vld [vmem:[%s5415 + $0x1a0] sm:$0xff]
      %v5469 = vld [vmem:[%s5415 + $0x1a8] sm:$0xff]
      %v5470 = vld [vmem:[%s5415 + $0x1b0] sm:$0xff]
      %v5471 = vld [vmem:[%s5415 + $0x1b8] sm:$0xff]
      %v5472 = vld [vmem:[%s5415 + $0x1c0] sm:$0xff]
      %v5473 = vld [vmem:[%s5415 + $0x1c8] sm:$0xff]
      %v5474 = vld [vmem:[%s5415 + $0x1d0] sm:$0xff]
      %v5475 = vld [vmem:[%s5415 + $0x1d8] sm:$0xff]
      %v5476 = vld [vmem:[%s5415 + $0x1e0] sm:$0xff]
      %v5477 = vld [vmem:[%s5415 + $0x1e8] sm:$0xff]
      %v5478 = vld [vmem:[%s5415 + $0x1f0] sm:$0xff]
      %v5479 = vld [vmem:[%s5415 + $0x1f8] sm:$0xff]
      %v5480 = vld [vmem:[%s5415 + $0x200] sm:$0xff]
      %v5481 = vld [vmem:[%s5415 + $0x208] sm:$0xff]
      %v5482 = vld [vmem:[%s5415 + $0x210] sm:$0xff]
      %v5483 = vld [vmem:[%s5415 + $0x218] sm:$0xff]
      %v5484 = vld [vmem:[%s5415 + $0x220] sm:$0xff]
      %v5485 = vld [vmem:[%s5415 + $0x228] sm:$0xff]
      %v5486 = vld [vmem:[%s5415 + $0x230] sm:$0xff]
      %v5487 = vld [vmem:[%s5415 + $0x238] sm:$0xff]
      %v5488 = vld [vmem:[%s5415 + $0x240] sm:$0xff]
      %v5489 = vld [vmem:[%s5415 + $0x248] sm:$0xff]
      %v5490 = vld [vmem:[%s5415 + $0x250] sm:$0xff]
      %v5491 = vld [vmem:[%s5415 + $0x258] sm:$0xff]
      %v5492 = vld [vmem:[%s5415 + $0x260] sm:$0xff]
      %v5493 = vld [vmem:[%s5415 + $0x268] sm:$0xff]
      %v5494 = vld [vmem:[%s5415 + $0x270] sm:$0xff]
      %v5495 = vld [vmem:[%s5415 + $0x278] sm:$0xff]
      %v5496 = vld [vmem:[%s5415 + $0x280] sm:$0xff]
      %v5497 = vld [vmem:[%s5415 + $0x288] sm:$0xff]
      %v5498 = vld [vmem:[%s5415 + $0x290] sm:$0xff]
      %v5499 = vld [vmem:[%s5415 + $0x298] sm:$0xff]
      %v5500 = vld [vmem:[%s5415 + $0x2a0] sm:$0xff]
      %v5501 = vld [vmem:[%s5415 + $0x2a8] sm:$0xff]
      %v5502 = vld [vmem:[%s5415 + $0x2b0] sm:$0xff]
      %v5503 = vld [vmem:[%s5415 + $0x2b8] sm:$0xff]
      %v5504 = vld [vmem:[%s5415 + $0x2c0] sm:$0xff]
      %v5505 = vld [vmem:[%s5415 + $0x2c8] sm:$0xff]
      %v5506 = vld [vmem:[%s5415 + $0x2d0] sm:$0xff]
      %v5507 = vld [vmem:[%s5415 + $0x2d8] sm:$0xff]
      %v5508 = vld [vmem:[%s5415 + $0x2e0] sm:$0xff]
      %v5509 = vld [vmem:[%s5415 + $0x2e8] sm:$0xff]
      %v5510 = vld [vmem:[%s5415 + $0x2f0] sm:$0xff]
      %v5511 = vld [vmem:[%s5415 + $0x2f8] sm:$0xff]
      %v5512 = vld [vmem:[%s5415 + $0x300] sm:$0xff]
      %v5513 = vld [vmem:[%s5415 + $0x308] sm:$0xff]
      %v5514 = vld [vmem:[%s5415 + $0x310] sm:$0xff]
      %v5515 = vld [vmem:[%s5415 + $0x318] sm:$0xff]
      %v5516 = vld [vmem:[%s5415 + $0x320] sm:$0xff]
      %v5517 = vld [vmem:[%s5415 + $0x328] sm:$0xff]
      %v5518 = vld [vmem:[%s5415 + $0x330] sm:$0xff]
      %v5519 = vld [vmem:[%s5415 + $0x338] sm:$0xff]
      %v5520 = vld [vmem:[%s5415 + $0x340] sm:$0xff]
      %v5521 = vld [vmem:[%s5415 + $0x348] sm:$0xff]
      %v5522 = vld [vmem:[%s5415 + $0x350] sm:$0xff]
      %v5523 = vld [vmem:[%s5415 + $0x358] sm:$0xff]
      %v5524 = vld [vmem:[%s5415 + $0x360] sm:$0xff]
      %v5525 = vld [vmem:[%s5415 + $0x368] sm:$0xff]
      %v5526 = vld [vmem:[%s5415 + $0x370] sm:$0xff]
      %v5527 = vld [vmem:[%s5415 + $0x378] sm:$0xff]
      %v5528 = vld [vmem:[%s5415 + $0x380] sm:$0xff]
      %v5529 = vld [vmem:[%s5415 + $0x388] sm:$0xff]
      %v5530 = vld [vmem:[%s5415 + $0x390] sm:$0xff]
      %v5531 = vld [vmem:[%s5415 + $0x398] sm:$0xff]
      %v5532 = vld [vmem:[%s5415 + $0x3a0] sm:$0xff]
      %v5533 = vld [vmem:[%s5415 + $0x3a8] sm:$0xff]
      %v5534 = vld [vmem:[%s5415 + $0x3b0] sm:$0xff]
      %v5535 = vld [vmem:[%s5415 + $0x3b8] sm:$0xff]
      %v5536 = vld [vmem:[%s5415 + $0x3c0] sm:$0xff]
      %v5537 = vld [vmem:[%s5415 + $0x3c8] sm:$0xff]
      %v5538 = vld [vmem:[%s5415 + $0x3d0] sm:$0xff]
      %v5539 = vld [vmem:[%s5415 + $0x3d8] sm:$0xff]
      %v5540 = vld [vmem:[%s5415 + $0x3e0] sm:$0xff]
      %v5541 = vld [vmem:[%s5415 + $0x3e8] sm:$0xff]
      %v5542 = vld [vmem:[%s5415 + $0x3f0] sm:$0xff]
      %v5543 = vld [vmem:[%s5415 + $0x3f8] sm:$0xff]
      %v5544 = vld [vmem:[%s5415 + $0x400] sm:$0xff]
      %v5545 = vld [vmem:[%s5415 + $0x408] sm:$0xff]
      %v5546 = vld [vmem:[%s5415 + $0x410] sm:$0xff]
      %v5547 = vld [vmem:[%s5415 + $0x418] sm:$0xff]
      %v5548 = vld [vmem:[%s5415 + $0x420] sm:$0xff]
      %v5549 = vld [vmem:[%s5415 + $0x428] sm:$0xff]
      %v5550 = vld [vmem:[%s5415 + $0x430] sm:$0xff]
      %v5551 = vld [vmem:[%s5415 + $0x438] sm:$0xff]
      %v5552 = vld [vmem:[%s5415 + $0x440] sm:$0xff]
      %v5553 = vld [vmem:[%s5415 + $0x448] sm:$0xff]
      %v5554 = vld [vmem:[%s5415 + $0x450] sm:$0xff]
      %v5555 = vld [vmem:[%s5415 + $0x458] sm:$0xff]
      %v5556 = vld [vmem:[%s5415 + $0x460] sm:$0xff]
      %v5557 = vld [vmem:[%s5415 + $0x468] sm:$0xff]
      %v5558 = vld [vmem:[%s5415 + $0x470] sm:$0xff]
      %v5559 = vld [vmem:[%s5415 + $0x478] sm:$0xff]
      %v5560 = vld [vmem:[%s5415 + $0x480] sm:$0xff]
      %v5561 = vld [vmem:[%s5415 + $0x488] sm:$0xff]
      %v5562 = vld [vmem:[%s5415 + $0x490] sm:$0xff]
      %v5563 = vld [vmem:[%s5415 + $0x498] sm:$0xff]
      %v5564 = vld [vmem:[%s5415 + $0x4a0] sm:$0xff]
      %v5565 = vld [vmem:[%s5415 + $0x4a8] sm:$0xff]
      %v5566 = vld [vmem:[%s5415 + $0x4b0] sm:$0xff]
      %v5567 = vld [vmem:[%s5415 + $0x4b8] sm:$0xff]
      %v5568 = vld [vmem:[%s5415 + $0x4c0] sm:$0xff]
      %v5569 = vld [vmem:[%s5415 + $0x4c8] sm:$0xff]
      %v5570 = vld [vmem:[%s5415 + $0x4d0] sm:$0xff]
      %v5571 = vld [vmem:[%s5415 + $0x4d8] sm:$0xff]
      %v5572 = vld [vmem:[%s5415 + $0x4e0] sm:$0xff]
      %v5573 = vld [vmem:[%s5415 + $0x4e8] sm:$0xff]
      %v5574 = vld [vmem:[%s5415 + $0x4f0] sm:$0xff]
      %v5575 = vld [vmem:[%s5415 + $0x4f8] sm:$0xff]
      %v5576 = vld [vmem:[%s5415 + $0x500] sm:$0xff]
      %v5577 = vld [vmem:[%s5415 + $0x508] sm:$0xff]
      %v5578 = vld [vmem:[%s5415 + $0x510] sm:$0xff]
      %v5579 = vld [vmem:[%s5415 + $0x518] sm:$0xff]
      %v5580 = vld [vmem:[%s5415 + $0x520] sm:$0xff]
      %v5581 = vld [vmem:[%s5415 + $0x528] sm:$0xff]
      %v5582 = vld [vmem:[%s5415 + $0x530] sm:$0xff]
      %v5583 = vld [vmem:[%s5415 + $0x538] sm:$0xff]
      %v5584 = vld [vmem:[%s5415 + $0x540] sm:$0xff]
      %v5585 = vld [vmem:[%s5415 + $0x548] sm:$0xff]
      %v5586 = vld [vmem:[%s5415 + $0x550] sm:$0xff]
      %v5587 = vld [vmem:[%s5415 + $0x558] sm:$0xff]
      %v5588 = vld [vmem:[%s5415 + $0x560] sm:$0xff]
      %v5589 = vld [vmem:[%s5415 + $0x568] sm:$0xff]
      %v5590 = vld [vmem:[%s5415 + $0x570] sm:$0xff]
      %v5591 = vld [vmem:[%s5415 + $0x578] sm:$0xff]
      %v5592 = vld [vmem:[%s5415 + $0x580] sm:$0xff]
      %v5593 = vld [vmem:[%s5415 + $0x588] sm:$0xff]
      %v5594 = vld [vmem:[%s5415 + $0x590] sm:$0xff]
      %v5595 = vld [vmem:[%s5415 + $0x598] sm:$0xff]
      %v5596 = vld [vmem:[%s5415 + $0x5a0] sm:$0xff]
      %v5597 = vld [vmem:[%s5415 + $0x5a8] sm:$0xff]
      %v5598 = vld [vmem:[%s5415 + $0x5b0] sm:$0xff]
      %v5599 = vld [vmem:[%s5415 + $0x5b8] sm:$0xff]
      %v5600 = vld [vmem:[%s5415 + $0x5c0] sm:$0xff]
      %v5601 = vld [vmem:[%s5415 + $0x5c8] sm:$0xff]
      %v5602 = vld [vmem:[%s5415 + $0x5d0] sm:$0xff]
      %v5603 = vld [vmem:[%s5415 + $0x5d8] sm:$0xff]
      %v5604 = vld [vmem:[%s5415 + $0x5e0] sm:$0xff]
      %v5605 = vld [vmem:[%s5415 + $0x5e8] sm:$0xff]
      %v5606 = vld [vmem:[%s5415 + $0x5f0] sm:$0xff]
      %v5607 = vld [vmem:[%s5415 + $0x5f8] sm:$0xff]
      %v5608 = vld [vmem:[%s5415 + $0x600] sm:$0xff]
      %v5609 = vld [vmem:[%s5415 + $0x608] sm:$0xff]
      %v5610 = vld [vmem:[%s5415 + $0x610] sm:$0xff]
      %v5611 = vld [vmem:[%s5415 + $0x618] sm:$0xff]
      %v5612 = vld [vmem:[%s5415 + $0x620] sm:$0xff]
      %v5613 = vld [vmem:[%s5415 + $0x628] sm:$0xff]
      %v5614 = vld [vmem:[%s5415 + $0x630] sm:$0xff]
      %v5615 = vld [vmem:[%s5415 + $0x638] sm:$0xff]
      %v5616 = vld [vmem:[%s5415 + $0x640] sm:$0xff]
      %v5617 = vld [vmem:[%s5415 + $0x648] sm:$0xff]
      %v5618 = vld [vmem:[%s5415 + $0x650] sm:$0xff]
      %v5619 = vld [vmem:[%s5415 + $0x658] sm:$0xff]
      %v5620 = vld [vmem:[%s5415 + $0x660] sm:$0xff]
      %v5621 = vld [vmem:[%s5415 + $0x668] sm:$0xff]
      %v5622 = vld [vmem:[%s5415 + $0x670] sm:$0xff]
      %v5623 = vld [vmem:[%s5415 + $0x678] sm:$0xff]
      %v5624 = vld [vmem:[%s5415 + $0x680] sm:$0xff]
      %v5625 = vld [vmem:[%s5415 + $0x688] sm:$0xff]
      %v5626 = vld [vmem:[%s5415 + $0x690] sm:$0xff]
      %v5627 = vld [vmem:[%s5415 + $0x698] sm:$0xff]
      %v5628 = vld [vmem:[%s5415 + $0x6a0] sm:$0xff]
      %v5629 = vld [vmem:[%s5415 + $0x6a8] sm:$0xff]
      %v5630 = vld [vmem:[%s5415 + $0x6b0] sm:$0xff]
      %v5631 = vld [vmem:[%s5415 + $0x6b8] sm:$0xff]
      %v5632 = vld [vmem:[%s5415 + $0x6c0] sm:$0xff]
      %v5633 = vld [vmem:[%s5415 + $0x6c8] sm:$0xff]
      %v5634 = vld [vmem:[%s5415 + $0x6d0] sm:$0xff]
      %v5635 = vld [vmem:[%s5415 + $0x6d8] sm:$0xff]
      %v5636 = vld [vmem:[%s5415 + $0x6e0] sm:$0xff]
      %v5637 = vld [vmem:[%s5415 + $0x6e8] sm:$0xff]
      %v5638 = vld [vmem:[%s5415 + $0x6f0] sm:$0xff]
      %v5639 = vld [vmem:[%s5415 + $0x6f8] sm:$0xff]
      %v5640 = vld [vmem:[%s5415 + $0x700] sm:$0xff]
      %v5642 = vsel %vm407, %v5416, 0
      %v5645 = vsel %vm407, %v5417, 0
      %v5648 = vsel %vm407, %v5418, 0
      %v5651 = vsel %vm407, %v5419, 0
      %v5654 = vsel %vm407, %v5420, 0
      %v5657 = vsel %vm407, %v5421, 0
      %v5660 = vsel %vm407, %v5422, 0
      %v5663 = vsel %vm407, %v5423, 0
      %v5666 = vsel %vm407, %v5424, 0
      %v5669 = vsel %vm407, %v5425, 0
      %v5672 = vsel %vm407, %v5426, 0
      %v5675 = vsel %vm407, %v5427, 0
      %v5678 = vsel %vm407, %v5428, 0
      %v5681 = vsel %vm407, %v5429, 0
      %v5684 = vsel %vm407, %v5430, 0
      %v5687 = vsel %vm407, %v5431, 0
      %v5690 = vsel %vm407, %v5432, 0
      %v5693 = vsel %vm407, %v5433, 0
      %v5696 = vsel %vm407, %v5434, 0
      %v5699 = vsel %vm407, %v5435, 0
      %v5702 = vsel %vm407, %v5436, 0
      %v5705 = vsel %vm407, %v5437, 0
      %v5708 = vsel %vm407, %v5438, 0
      %v5711 = vsel %vm407, %v5439, 0
      %v5714 = vsel %vm407, %v5440, 0
      %v5717 = vsel %vm407, %v5441, 0
      %v5720 = vsel %vm407, %v5442, 0
      %v5723 = vsel %vm407, %v5443, 0
      %v5726 = vsel %vm407, %v5444, 0
      %v5729 = vsel %vm407, %v5445, 0
      %v5732 = vsel %vm407, %v5446, 0
      %v5735 = vsel %vm407, %v5447, 0
      %v5738 = vsel %vm407, %v5448, 0
      %v5741 = vsel %vm407, %v5449, 0
      %v5744 = vsel %vm407, %v5450, 0
      %v5747 = vsel %vm407, %v5451, 0
      %v5750 = vsel %vm407, %v5452, 0
      %v5753 = vsel %vm407, %v5453, 0
      %v5756 = vsel %vm407, %v5454, 0
      %v5759 = vsel %vm407, %v5455, 0
      %v5762 = vsel %vm407, %v5456, 0
      %v5765 = vsel %vm407, %v5457, 0
      %v5768 = vsel %vm407, %v5458, 0
      %v5771 = vsel %vm407, %v5459, 0
      %v5774 = vsel %vm407, %v5460, 0
      %v5777 = vsel %vm407, %v5461, 0
      %v5780 = vsel %vm407, %v5462, 0
      %v5783 = vsel %vm407, %v5463, 0
      %v5786 = vsel %vm407, %v5464, 0
      %v5789 = vsel %vm407, %v5465, 0
      %v5792 = vsel %vm407, %v5466, 0
      %v5795 = vsel %vm407, %v5467, 0
      %v5798 = vsel %vm407, %v5468, 0
      %v5801 = vsel %vm407, %v5469, 0
      %v5804 = vsel %vm407, %v5470, 0
      %v5807 = vsel %vm407, %v5471, 0
      %v5810 = vsel %vm407, %v5472, 0
      %v5813 = vsel %vm407, %v5473, 0
      %v5816 = vsel %vm407, %v5474, 0
      %v5819 = vsel %vm407, %v5475, 0
      %v5822 = vsel %vm407, %v5476, 0
      %v5825 = vsel %vm407, %v5477, 0
      %v5828 = vsel %vm407, %v5478, 0
      %v5831 = vsel %vm407, %v5479, 0
      %v5834 = vsel %vm407, %v5480, 0
      %v5837 = vsel %vm407, %v5481, 0
      %v5840 = vsel %vm407, %v5482, 0
      %v5843 = vsel %vm407, %v5483, 0
      %v5846 = vsel %vm407, %v5484, 0
      %v5849 = vsel %vm407, %v5485, 0
      %v5852 = vsel %vm407, %v5486, 0
      %v5855 = vsel %vm407, %v5487, 0
      %v5858 = vsel %vm407, %v5488, 0
      %v5861 = vsel %vm407, %v5489, 0
      %v5864 = vsel %vm407, %v5490, 0
      %v5867 = vsel %vm407, %v5491, 0
      %v5870 = vsel %vm407, %v5492, 0
      %v5873 = vsel %vm407, %v5493, 0
      %v5876 = vsel %vm407, %v5494, 0
      %v5879 = vsel %vm407, %v5495, 0
      %v5882 = vsel %vm407, %v5496, 0
      %v5885 = vsel %vm407, %v5497, 0
      %v5888 = vsel %vm407, %v5498, 0
      %v5891 = vsel %vm407, %v5499, 0
      %v5894 = vsel %vm407, %v5500, 0
      %v5897 = vsel %vm407, %v5501, 0
      %v5900 = vsel %vm407, %v5502, 0
      %v5903 = vsel %vm407, %v5503, 0
      %v5906 = vsel %vm407, %v5504, 0
      %v5909 = vsel %vm407, %v5505, 0
      %v5912 = vsel %vm407, %v5506, 0
      %v5915 = vsel %vm407, %v5507, 0
      %v5918 = vsel %vm407, %v5508, 0
      %v5921 = vsel %vm407, %v5509, 0
      %v5924 = vsel %vm407, %v5510, 0
      %v5927 = vsel %vm407, %v5511, 0
      %v5930 = vsel %vm407, %v5512, 0
      %v5933 = vsel %vm407, %v5513, 0
      %v5936 = vsel %vm407, %v5514, 0
      %v5939 = vsel %vm407, %v5515, 0
      %v5942 = vsel %vm407, %v5516, 0
      %v5945 = vsel %vm407, %v5517, 0
      %v5948 = vsel %vm407, %v5518, 0
      %v5951 = vsel %vm407, %v5519, 0
      %v5954 = vsel %vm407, %v5520, 0
      %v5957 = vsel %vm407, %v5521, 0
      %v5960 = vsel %vm407, %v5522, 0
      %v5963 = vsel %vm407, %v5523, 0
      %v5966 = vsel %vm407, %v5524, 0
      %v5969 = vsel %vm407, %v5525, 0
      %v5972 = vsel %vm407, %v5526, 0
      %v5975 = vsel %vm407, %v5527, 0
      %v5978 = vsel %vm407, %v5528, 0
      %v5981 = vsel %vm407, %v5529, 0
      %v5984 = vsel %vm407, %v5530, 0
      %v5987 = vsel %vm407, %v5531, 0
      %v5990 = vsel %vm407, %v5532, 0
      %v5993 = vsel %vm407, %v5533, 0
      %v5996 = vsel %vm407, %v5534, 0
      %v5999 = vsel %vm407, %v5535, 0
      %v6002 = vsel %vm407, %v5536, 0
      %v6005 = vsel %vm407, %v5537, 0
      %v6008 = vsel %vm407, %v5538, 0
      %v6011 = vsel %vm407, %v5539, 0
      %v6014 = vsel %vm407, %v5540, 0
      %v6017 = vsel %vm407, %v5541, 0
      %v6020 = vsel %vm407, %v5542, 0
      %v6023 = vsel %vm407, %v5543, 0
      %v6026 = vsel %vm407, %v5544, 0
      %v6029 = vsel %vm407, %v5545, 0
      %v6032 = vsel %vm407, %v5546, 0
      %v6035 = vsel %vm407, %v5547, 0
      %v6038 = vsel %vm407, %v5548, 0
      %v6041 = vsel %vm407, %v5549, 0
      %v6044 = vsel %vm407, %v5550, 0
      %v6047 = vsel %vm407, %v5551, 0
      %v6050 = vsel %vm407, %v5552, 0
      %v6053 = vsel %vm407, %v5553, 0
      %v6056 = vsel %vm407, %v5554, 0
      %v6059 = vsel %vm407, %v5555, 0
      %v6062 = vsel %vm407, %v5556, 0
      %v6065 = vsel %vm407, %v5557, 0
      %v6068 = vsel %vm407, %v5558, 0
      %v6071 = vsel %vm407, %v5559, 0
      %v6074 = vsel %vm407, %v5560, 0
      %v6077 = vsel %vm407, %v5561, 0
      %v6080 = vsel %vm407, %v5562, 0
      %v6083 = vsel %vm407, %v5563, 0
      %v6086 = vsel %vm407, %v5564, 0
      %v6089 = vsel %vm407, %v5565, 0
      %v6092 = vsel %vm407, %v5566, 0
      %v6095 = vsel %vm407, %v5567, 0
      %v6098 = vsel %vm407, %v5568, 0
      %v6101 = vsel %vm407, %v5569, 0
      %v6104 = vsel %vm407, %v5570, 0
      %v6107 = vsel %vm407, %v5571, 0
      %v6110 = vsel %vm407, %v5572, 0
      %v6113 = vsel %vm407, %v5573, 0
      %v6116 = vsel %vm407, %v5574, 0
      %v6119 = vsel %vm407, %v5575, 0
      %v6122 = vsel %vm407, %v5576, 0
      %v6125 = vsel %vm407, %v5577, 0
      %v6128 = vsel %vm407, %v5578, 0
      %v6131 = vsel %vm407, %v5579, 0
      %v6134 = vsel %vm407, %v5580, 0
      %v6137 = vsel %vm407, %v5581, 0
      %v6140 = vsel %vm407, %v5582, 0
      %v6143 = vsel %vm407, %v5583, 0
      %v6146 = vsel %vm407, %v5584, 0
      %v6149 = vsel %vm407, %v5585, 0
      %v6152 = vsel %vm407, %v5586, 0
      %v6155 = vsel %vm407, %v5587, 0
      %v6158 = vsel %vm407, %v5588, 0
      %v6161 = vsel %vm407, %v5589, 0
      %v6164 = vsel %vm407, %v5590, 0
      %v6167 = vsel %vm407, %v5591, 0
      %v6170 = vsel %vm407, %v5592, 0
      %v6173 = vsel %vm407, %v5593, 0
      %v6176 = vsel %vm407, %v5594, 0
      %v6179 = vsel %vm407, %v5595, 0
      %v6182 = vsel %vm407, %v5596, 0
      %v6185 = vsel %vm407, %v5597, 0
      %v6188 = vsel %vm407, %v5598, 0
      %v6191 = vsel %vm407, %v5599, 0
      %v6194 = vsel %vm407, %v5600, 0
      %v6197 = vsel %vm407, %v5601, 0
      %v6200 = vsel %vm407, %v5602, 0
      %v6203 = vsel %vm407, %v5603, 0
      %v6206 = vsel %vm407, %v5604, 0
      %v6209 = vsel %vm407, %v5605, 0
      %v6212 = vsel %vm407, %v5606, 0
      %v6215 = vsel %vm407, %v5607, 0
      %v6218 = vsel %vm407, %v5608, 0
      %v6221 = vsel %vm407, %v5609, 0
      %v6224 = vsel %vm407, %v5610, 0
      %v6227 = vsel %vm407, %v5611, 0
      %v6230 = vsel %vm407, %v5612, 0
      %v6233 = vsel %vm407, %v5613, 0
      %v6236 = vsel %vm407, %v5614, 0
      %v6239 = vsel %vm407, %v5615, 0
      %v6242 = vsel %vm407, %v5616, 0
      %v6245 = vsel %vm407, %v5617, 0
      %v6248 = vsel %vm407, %v5618, 0
      %v6251 = vsel %vm407, %v5619, 0
      %v6254 = vsel %vm407, %v5620, 0
      %v6257 = vsel %vm407, %v5621, 0
      %v6260 = vsel %vm407, %v5622, 0
      %v6263 = vsel %vm407, %v5623, 0
      %v6266 = vsel %vm407, %v5624, 0
      %v6269 = vsel %vm407, %v5625, 0
      %v6272 = vsel %vm407, %v5626, 0
      %v6275 = vsel %vm407, %v5627, 0
      %v6278 = vsel %vm407, %v5628, 0
      %v6281 = vsel %vm407, %v5629, 0
      %v6284 = vsel %vm407, %v5630, 0
      %v6287 = vsel %vm407, %v5631, 0
      %v6290 = vsel %vm407, %v5632, 0
      %v6293 = vsel %vm407, %v5633, 0
      %v6296 = vsel %vm407, %v5634, 0
      %v6299 = vsel %vm407, %v5635, 0
      %v6302 = vsel %vm407, %v5636, 0
      %v6305 = vsel %vm407, %v5637, 0
      %v6308 = vsel %vm407, %v5638, 0
      %v6311 = vsel %vm407, %v5639, 0
      %v6314 = vsel %vm407, %v5640, 0
      %6316 = vmatpush.msra.mxu0 0.0
      %6317 = vmatpush.msra.mxu0 0.0
      %6318 = vmatpush.msra.mxu0 0.0
      %6319 = vmatpush.msra.mxu0 0.0
      %6320 = vmatpush.msra.mxu0 0.0
      %6321 = vmatpush.msra.mxu0 0.0
      %6322 = vmatpush.msra.mxu0 %v1085
      %6323 = vmatpush.msra.mxu0 %v180
      %6324 = vmatpush.msra.mxu0 %v179
      %6325 = vmatpush.msra.mxu0 %v178
      %6326 = vmatpush.msra.mxu0 %v177
      %6327 = vmatpush.msra.mxu0 %v176
      %6328 = vmatpush.msra.mxu0 %v175
      %6329 = vmatpush.msra.mxu0 %v174
      %6330 = vmatpush.msra.mxu0 %v173
      %6331 = vmatpush.msra.mxu0 %v172
      %6332 = vmatmul.f32.gmra.mxu0 %v5642
      %v6333 = vpop.f32.mrf.mxu0
      %v6334 = vadd.f32 0.0, %v6333
      %6335 = vmatmul.f32.gmra.mxu0 %v5645
      %v6336 = vpop.f32.mrf.mxu0
      %v6337 = vadd.f32 0.0, %v6336
      %6338 = vmatmul.f32.gmra.mxu0 %v5648
      %v6339 = vpop.f32.mrf.mxu0
      %v6340 = vadd.f32 0.0, %v6339
      %6341 = vmatmul.f32.gmra.mxu0 %v5651
      %v6342 = vpop.f32.mrf.mxu0
      %v6343 = vadd.f32 0.0, %v6342
      %6344 = vmatmul.f32.gmra.mxu0 %v5654
      %v6345 = vpop.f32.mrf.mxu0
      %v6346 = vadd.f32 0.0, %v6345
      %6347 = vmatmul.f32.gmra.mxu0 %v5657
      %v6348 = vpop.f32.mrf.mxu0
      %v6349 = vadd.f32 0.0, %v6348
      %6350 = vmatmul.f32.gmra.mxu0 %v5660
      %v6351 = vpop.f32.mrf.mxu0
      %v6352 = vadd.f32 0.0, %v6351
      %6353 = vmatmul.f32.gmra.mxu0 %v5663
      %v6354 = vpop.f32.mrf.mxu0
      %v6355 = vadd.f32 0.0, %v6354
      %6356 = vmatmul.f32.gmra.mxu0 %v5666
      %v6357 = vpop.f32.mrf.mxu0
      %v6358 = vadd.f32 0.0, %v6357
      %6359 = vmatmul.f32.gmra.mxu0 %v5669
      %v6360 = vpop.f32.mrf.mxu0
      %v6361 = vadd.f32 0.0, %v6360
      %6362 = vmatmul.f32.gmra.mxu0 %v5672
      %v6363 = vpop.f32.mrf.mxu0
      %v6364 = vadd.f32 0.0, %v6363
      %6365 = vmatmul.f32.gmra.mxu0 %v5675
      %v6366 = vpop.f32.mrf.mxu0
      %v6367 = vadd.f32 0.0, %v6366
      %6368 = vmatmul.f32.gmra.mxu0 %v5678
      %v6369 = vpop.f32.mrf.mxu0
      %v6370 = vadd.f32 0.0, %v6369
      %6371 = vmatmul.f32.gmra.mxu0 %v5681
      %v6372 = vpop.f32.mrf.mxu0
      %v6373 = vadd.f32 0.0, %v6372
      %6374 = vmatmul.f32.gmra.mxu0 %v5684
      %v6375 = vpop.f32.mrf.mxu0
      %v6376 = vadd.f32 0.0, %v6375
      %6377 = vmatmul.f32.gmra.mxu0 %v5687
      %v6378 = vpop.f32.mrf.mxu0
      %v6379 = vadd.f32 0.0, %v6378
      %6380 = vmatmul.f32.gmra.mxu0 %v5690
      %v6381 = vpop.f32.mrf.mxu0
      %v6382 = vadd.f32 0.0, %v6381
      %6383 = vmatmul.f32.gmra.mxu0 %v5693
      %v6384 = vpop.f32.mrf.mxu0
      %v6385 = vadd.f32 0.0, %v6384
      %6386 = vmatmul.f32.gmra.mxu0 %v5696
      %v6387 = vpop.f32.mrf.mxu0
      %v6388 = vadd.f32 0.0, %v6387
      %6389 = vmatmul.f32.gmra.mxu0 %v5699
      %v6390 = vpop.f32.mrf.mxu0
      %v6391 = vadd.f32 0.0, %v6390
      %6392 = vmatmul.f32.gmra.mxu0 %v5702
      %v6393 = vpop.f32.mrf.mxu0
      %v6394 = vadd.f32 0.0, %v6393
      %6395 = vmatmul.f32.gmra.mxu0 %v5705
      %v6396 = vpop.f32.mrf.mxu0
      %v6397 = vadd.f32 0.0, %v6396
      %6398 = vmatmul.f32.gmra.mxu0 %v5708
      %v6399 = vpop.f32.mrf.mxu0
      %v6400 = vadd.f32 0.0, %v6399
      %6401 = vmatmul.f32.gmra.mxu0 %v5711
      %v6402 = vpop.f32.mrf.mxu0
      %v6403 = vadd.f32 0.0, %v6402
      %6404 = vmatmul.f32.gmra.mxu0 %v5714
      %v6405 = vpop.f32.mrf.mxu0
      %v6406 = vadd.f32 0.0, %v6405
      %6407 = vmatmul.f32.gmra.mxu0 %v5717
      %v6408 = vpop.f32.mrf.mxu0
      %v6409 = vadd.f32 0.0, %v6408
      %6410 = vmatmul.f32.gmra.mxu0 %v5720
      %v6411 = vpop.f32.mrf.mxu0
      %v6412 = vadd.f32 0.0, %v6411
      %6413 = vmatmul.f32.gmra.mxu0 %v5723
      %v6414 = vpop.f32.mrf.mxu0
      %v6415 = vadd.f32 0.0, %v6414
      %6416 = vmatmul.f32.gmra.mxu0 %v5726
      %v6417 = vpop.f32.mrf.mxu0
      %v6418 = vadd.f32 0.0, %v6417
      %6419 = vmatmul.f32.gmra.mxu0 %v5729
      %v6420 = vpop.f32.mrf.mxu0
      %v6421 = vadd.f32 0.0, %v6420
      %6422 = vmatmul.f32.gmra.mxu0 %v5732
      %v6423 = vpop.f32.mrf.mxu0
      %v6424 = vadd.f32 0.0, %v6423
      %6425 = vmatmul.f32.gmra.mxu0 %v5735
      %v6426 = vpop.f32.mrf.mxu0
      %v6427 = vadd.f32 0.0, %v6426
      %6428 = vmatmul.f32.gmra.mxu0 %v5738
      %v6429 = vpop.f32.mrf.mxu0
      %v6430 = vadd.f32 0.0, %v6429
      %6431 = vmatmul.f32.gmra.mxu0 %v5741
      %v6432 = vpop.f32.mrf.mxu0
      %v6433 = vadd.f32 0.0, %v6432
      %6434 = vmatmul.f32.gmra.mxu0 %v5744
      %v6435 = vpop.f32.mrf.mxu0
      %v6436 = vadd.f32 0.0, %v6435
      %6437 = vmatmul.f32.gmra.mxu0 %v5747
      %v6438 = vpop.f32.mrf.mxu0
      %v6439 = vadd.f32 0.0, %v6438
      %6440 = vmatmul.f32.gmra.mxu0 %v5750
      %v6441 = vpop.f32.mrf.mxu0
      %v6442 = vadd.f32 0.0, %v6441
      %6443 = vmatmul.f32.gmra.mxu0 %v5753
      %v6444 = vpop.f32.mrf.mxu0
      %v6445 = vadd.f32 0.0, %v6444
      %6446 = vmatmul.f32.gmra.mxu0 %v5756
      %v6447 = vpop.f32.mrf.mxu0
      %v6448 = vadd.f32 0.0, %v6447
      %6449 = vmatmul.f32.gmra.mxu0 %v5759
      %v6450 = vpop.f32.mrf.mxu0
      %v6451 = vadd.f32 0.0, %v6450
      %6452 = vmatmul.f32.gmra.mxu0 %v5762
      %v6453 = vpop.f32.mrf.mxu0
      %v6454 = vadd.f32 0.0, %v6453
      %6455 = vmatmul.f32.gmra.mxu0 %v5765
      %v6456 = vpop.f32.mrf.mxu0
      %v6457 = vadd.f32 0.0, %v6456
      %6458 = vmatmul.f32.gmra.mxu0 %v5768
      %v6459 = vpop.f32.mrf.mxu0
      %v6460 = vadd.f32 0.0, %v6459
      %6461 = vmatmul.f32.gmra.mxu0 %v5771
      %v6462 = vpop.f32.mrf.mxu0
      %v6463 = vadd.f32 0.0, %v6462
      %6464 = vmatmul.f32.gmra.mxu0 %v5774
      %v6465 = vpop.f32.mrf.mxu0
      %v6466 = vadd.f32 0.0, %v6465
      %6467 = vmatmul.f32.gmra.mxu0 %v5777
      %v6468 = vpop.f32.mrf.mxu0
      %v6469 = vadd.f32 0.0, %v6468
      %6470 = vmatmul.f32.gmra.mxu0 %v5780
      %v6471 = vpop.f32.mrf.mxu0
      %v6472 = vadd.f32 0.0, %v6471
      %6473 = vmatmul.f32.gmra.mxu0 %v5783
      %v6474 = vpop.f32.mrf.mxu0
      %v6475 = vadd.f32 0.0, %v6474
      %6476 = vmatmul.f32.gmra.mxu0 %v5786
      %v6477 = vpop.f32.mrf.mxu0
      %v6478 = vadd.f32 0.0, %v6477
      %6479 = vmatmul.f32.gmra.mxu0 %v5789
      %v6480 = vpop.f32.mrf.mxu0
      %v6481 = vadd.f32 0.0, %v6480
      %6482 = vmatmul.f32.gmra.mxu0 %v5792
      %v6483 = vpop.f32.mrf.mxu0
      %v6484 = vadd.f32 0.0, %v6483
      %6485 = vmatmul.f32.gmra.mxu0 %v5795
      %v6486 = vpop.f32.mrf.mxu0
      %v6487 = vadd.f32 0.0, %v6486
      %6488 = vmatmul.f32.gmra.mxu0 %v5798
      %v6489 = vpop.f32.mrf.mxu0
      %v6490 = vadd.f32 0.0, %v6489
      %6491 = vmatmul.f32.gmra.mxu0 %v5801
      %v6492 = vpop.f32.mrf.mxu0
      %v6493 = vadd.f32 0.0, %v6492
      %6494 = vmatmul.f32.gmra.mxu0 %v5804
      %v6495 = vpop.f32.mrf.mxu0
      %v6496 = vadd.f32 0.0, %v6495
      %6497 = vmatmul.f32.gmra.mxu0 %v5807
      %v6498 = vpop.f32.mrf.mxu0
      %v6499 = vadd.f32 0.0, %v6498
      %6500 = vmatmul.f32.gmra.mxu0 %v5810
      %v6501 = vpop.f32.mrf.mxu0
      %v6502 = vadd.f32 0.0, %v6501
      %6503 = vmatmul.f32.gmra.mxu0 %v5813
      %v6504 = vpop.f32.mrf.mxu0
      %v6505 = vadd.f32 0.0, %v6504
      %6506 = vmatmul.f32.gmra.mxu0 %v5816
      %v6507 = vpop.f32.mrf.mxu0
      %v6508 = vadd.f32 0.0, %v6507
      %6509 = vmatmul.f32.gmra.mxu0 %v5819
      %v6510 = vpop.f32.mrf.mxu0
      %v6511 = vadd.f32 0.0, %v6510
      %6512 = vmatmul.f32.gmra.mxu0 %v5822
      %v6513 = vpop.f32.mrf.mxu0
      %v6514 = vadd.f32 0.0, %v6513
      %6515 = vmatmul.f32.gmra.mxu0 %v5825
      %v6516 = vpop.f32.mrf.mxu0
      %v6517 = vadd.f32 0.0, %v6516
      %6518 = vmatmul.f32.gmra.mxu0 %v5828
      %v6519 = vpop.f32.mrf.mxu0
      %v6520 = vadd.f32 0.0, %v6519
      %6521 = vmatmul.f32.gmra.mxu0 %v5831
      %v6522 = vpop.f32.mrf.mxu0
      %v6523 = vadd.f32 0.0, %v6522
      %6524 = vmatmul.f32.gmra.mxu0 %v5834
      %v6525 = vpop.f32.mrf.mxu0
      %v6526 = vadd.f32 0.0, %v6525
      %6527 = vmatmul.f32.gmra.mxu0 %v5837
      %v6528 = vpop.f32.mrf.mxu0
      %v6529 = vadd.f32 0.0, %v6528
      %6530 = vmatmul.f32.gmra.mxu0 %v5840
      %v6531 = vpop.f32.mrf.mxu0
      %v6532 = vadd.f32 0.0, %v6531
      %6533 = vmatmul.f32.gmra.mxu0 %v5843
      %v6534 = vpop.f32.mrf.mxu0
      %v6535 = vadd.f32 0.0, %v6534
      %6536 = vmatmul.f32.gmra.mxu0 %v5846
      %v6537 = vpop.f32.mrf.mxu0
      %v6538 = vadd.f32 0.0, %v6537
      %6539 = vmatmul.f32.gmra.mxu0 %v5849
      %v6540 = vpop.f32.mrf.mxu0
      %v6541 = vadd.f32 0.0, %v6540
      %6542 = vmatmul.f32.gmra.mxu0 %v5852
      %v6543 = vpop.f32.mrf.mxu0
      %v6544 = vadd.f32 0.0, %v6543
      %6545 = vmatmul.f32.gmra.mxu0 %v5855
      %v6546 = vpop.f32.mrf.mxu0
      %v6547 = vadd.f32 0.0, %v6546
      %6548 = vmatmul.f32.gmra.mxu0 %v5858
      %v6549 = vpop.f32.mrf.mxu0
      %v6550 = vadd.f32 0.0, %v6549
      %6551 = vmatmul.f32.gmra.mxu0 %v5861
      %v6552 = vpop.f32.mrf.mxu0
      %v6553 = vadd.f32 0.0, %v6552
      %6554 = vmatmul.f32.gmra.mxu0 %v5864
      %v6555 = vpop.f32.mrf.mxu0
      %v6556 = vadd.f32 0.0, %v6555
      %6557 = vmatmul.f32.gmra.mxu0 %v5867
      %v6558 = vpop.f32.mrf.mxu0
      %v6559 = vadd.f32 0.0, %v6558
      %6560 = vmatmul.f32.gmra.mxu0 %v5870
      %v6561 = vpop.f32.mrf.mxu0
      %v6562 = vadd.f32 0.0, %v6561
      %6563 = vmatmul.f32.gmra.mxu0 %v5873
      %v6564 = vpop.f32.mrf.mxu0
      %v6565 = vadd.f32 0.0, %v6564
      %6566 = vmatmul.f32.gmra.mxu0 %v5876
      %v6567 = vpop.f32.mrf.mxu0
      %v6568 = vadd.f32 0.0, %v6567
      %6569 = vmatmul.f32.gmra.mxu0 %v5879
      %v6570 = vpop.f32.mrf.mxu0
      %v6571 = vadd.f32 0.0, %v6570
      %6572 = vmatmul.f32.gmra.mxu0 %v5882
      %v6573 = vpop.f32.mrf.mxu0
      %v6574 = vadd.f32 0.0, %v6573
      %6575 = vmatmul.f32.gmra.mxu0 %v5885
      %v6576 = vpop.f32.mrf.mxu0
      %v6577 = vadd.f32 0.0, %v6576
      %6578 = vmatmul.f32.gmra.mxu0 %v5888
      %v6579 = vpop.f32.mrf.mxu0
      %v6580 = vadd.f32 0.0, %v6579
      %6581 = vmatmul.f32.gmra.mxu0 %v5891
      %v6582 = vpop.f32.mrf.mxu0
      %v6583 = vadd.f32 0.0, %v6582
      %6584 = vmatmul.f32.gmra.mxu0 %v5894
      %v6585 = vpop.f32.mrf.mxu0
      %v6586 = vadd.f32 0.0, %v6585
      %6587 = vmatmul.f32.gmra.mxu0 %v5897
      %v6588 = vpop.f32.mrf.mxu0
      %v6589 = vadd.f32 0.0, %v6588
      %6590 = vmatmul.f32.gmra.mxu0 %v5900
      %v6591 = vpop.f32.mrf.mxu0
      %v6592 = vadd.f32 0.0, %v6591
      %6593 = vmatmul.f32.gmra.mxu0 %v5903
      %v6594 = vpop.f32.mrf.mxu0
      %v6595 = vadd.f32 0.0, %v6594
      %6596 = vmatmul.f32.gmra.mxu0 %v5906
      %v6597 = vpop.f32.mrf.mxu0
      %v6598 = vadd.f32 0.0, %v6597
      %6599 = vmatmul.f32.gmra.mxu0 %v5909
      %v6600 = vpop.f32.mrf.mxu0
      %v6601 = vadd.f32 0.0, %v6600
      %6602 = vmatmul.f32.gmra.mxu0 %v5912
      %v6603 = vpop.f32.mrf.mxu0
      %v6604 = vadd.f32 0.0, %v6603
      %6605 = vmatmul.f32.gmra.mxu0 %v5915
      %v6606 = vpop.f32.mrf.mxu0
      %v6607 = vadd.f32 0.0, %v6606
      %6608 = vmatmul.f32.gmra.mxu0 %v5918
      %v6609 = vpop.f32.mrf.mxu0
      %v6610 = vadd.f32 0.0, %v6609
      %6611 = vmatmul.f32.gmra.mxu0 %v5921
      %v6612 = vpop.f32.mrf.mxu0
      %v6613 = vadd.f32 0.0, %v6612
      %6614 = vmatmul.f32.gmra.mxu0 %v5924
      %v6615 = vpop.f32.mrf.mxu0
      %v6616 = vadd.f32 0.0, %v6615
      %6617 = vmatmul.f32.gmra.mxu0 %v5927
      %v6618 = vpop.f32.mrf.mxu0
      %v6619 = vadd.f32 0.0, %v6618
      %6620 = vmatmul.f32.gmra.mxu0 %v5930
      %v6621 = vpop.f32.mrf.mxu0
      %v6622 = vadd.f32 0.0, %v6621
      %6623 = vmatmul.f32.gmra.mxu0 %v5933
      %v6624 = vpop.f32.mrf.mxu0
      %v6625 = vadd.f32 0.0, %v6624
      %6626 = vmatmul.f32.gmra.mxu0 %v5936
      %v6627 = vpop.f32.mrf.mxu0
      %v6628 = vadd.f32 0.0, %v6627
      %6629 = vmatmul.f32.gmra.mxu0 %v5939
      %v6630 = vpop.f32.mrf.mxu0
      %v6631 = vadd.f32 0.0, %v6630
      %6632 = vmatmul.f32.gmra.mxu0 %v5942
      %v6633 = vpop.f32.mrf.mxu0
      %v6634 = vadd.f32 0.0, %v6633
      %6635 = vmatmul.f32.gmra.mxu0 %v5945
      %v6636 = vpop.f32.mrf.mxu0
      %v6637 = vadd.f32 0.0, %v6636
      %6638 = vmatmul.f32.gmra.mxu0 %v5948
      %v6639 = vpop.f32.mrf.mxu0
      %v6640 = vadd.f32 0.0, %v6639
      %6641 = vmatmul.f32.gmra.mxu0 %v5951
      %v6642 = vpop.f32.mrf.mxu0
      %v6643 = vadd.f32 0.0, %v6642
      %6644 = vmatmul.f32.gmra.mxu0 %v5954
      %v6645 = vpop.f32.mrf.mxu0
      %v6646 = vadd.f32 0.0, %v6645
      %6647 = vmatmul.f32.gmra.mxu0 %v5957
      %v6648 = vpop.f32.mrf.mxu0
      %v6649 = vadd.f32 0.0, %v6648
      %6650 = vmatmul.f32.gmra.mxu0 %v5960
      %v6651 = vpop.f32.mrf.mxu0
      %v6652 = vadd.f32 0.0, %v6651
      %6653 = vmatmul.f32.gmra.mxu0 %v5963
      %v6654 = vpop.f32.mrf.mxu0
      %v6655 = vadd.f32 0.0, %v6654
      %6656 = vmatmul.f32.gmra.mxu0 %v5966
      %v6657 = vpop.f32.mrf.mxu0
      %v6658 = vadd.f32 0.0, %v6657
      %6659 = vmatmul.f32.gmra.mxu0 %v5969
      %v6660 = vpop.f32.mrf.mxu0
      %v6661 = vadd.f32 0.0, %v6660
      %6662 = vmatmul.f32.gmra.mxu0 %v5972
      %v6663 = vpop.f32.mrf.mxu0
      %v6664 = vadd.f32 0.0, %v6663
      %6665 = vmatmul.f32.gmra.mxu0 %v5975
      %v6666 = vpop.f32.mrf.mxu0
      %v6667 = vadd.f32 0.0, %v6666
      %6668 = vmatmul.f32.gmra.mxu0 %v5978
      %v6669 = vpop.f32.mrf.mxu0
      %v6670 = vadd.f32 0.0, %v6669
      %6671 = vmatmul.f32.gmra.mxu0 %v5981
      %v6672 = vpop.f32.mrf.mxu0
      %v6673 = vadd.f32 0.0, %v6672
      %6674 = vmatmul.f32.gmra.mxu0 %v5984
      %v6675 = vpop.f32.mrf.mxu0
      %v6676 = vadd.f32 0.0, %v6675
      %6677 = vmatmul.f32.gmra.mxu0 %v5987
      %v6678 = vpop.f32.mrf.mxu0
      %v6679 = vadd.f32 0.0, %v6678
      %6680 = vmatmul.f32.gmra.mxu0 %v5990
      %v6681 = vpop.f32.mrf.mxu0
      %v6682 = vadd.f32 0.0, %v6681
      %6683 = vmatmul.f32.gmra.mxu0 %v5993
      %v6684 = vpop.f32.mrf.mxu0
      %v6685 = vadd.f32 0.0, %v6684
      %6686 = vmatmul.f32.gmra.mxu0 %v5996
      %v6687 = vpop.f32.mrf.mxu0
      %v6688 = vadd.f32 0.0, %v6687
      %6689 = vmatmul.f32.gmra.mxu0 %v5999
      %v6690 = vpop.f32.mrf.mxu0
      %v6691 = vadd.f32 0.0, %v6690
      %6692 = vmatmul.f32.gmra.mxu0 %v6002
      %v6693 = vpop.f32.mrf.mxu0
      %v6694 = vadd.f32 0.0, %v6693
      %6695 = vmatmul.f32.gmra.mxu0 %v6005
      %v6696 = vpop.f32.mrf.mxu0
      %v6697 = vadd.f32 0.0, %v6696
      %6698 = vmatmul.f32.gmra.mxu0 %v6008
      %v6699 = vpop.f32.mrf.mxu0
      %v6700 = vadd.f32 0.0, %v6699
      %6701 = vmatmul.f32.gmra.mxu0 %v6011
      %v6702 = vpop.f32.mrf.mxu0
      %v6703 = vadd.f32 0.0, %v6702
      %6704 = vmatmul.f32.gmra.mxu0 %v6014
      %v6705 = vpop.f32.mrf.mxu0
      %v6706 = vadd.f32 0.0, %v6705
      %6707 = vmatmul.f32.gmra.mxu0 %v6017
      %v6708 = vpop.f32.mrf.mxu0
      %v6709 = vadd.f32 0.0, %v6708
      %6710 = vmatmul.f32.gmra.mxu0 %v6020
      %v6711 = vpop.f32.mrf.mxu0
      %v6712 = vadd.f32 0.0, %v6711
      %6713 = vmatmul.f32.gmra.mxu0 %v6023
      %v6714 = vpop.f32.mrf.mxu0
      %v6715 = vadd.f32 0.0, %v6714
      %6716 = vmatmul.f32.gmra.mxu0 %v6026
      %v6717 = vpop.f32.mrf.mxu0
      %v6718 = vadd.f32 0.0, %v6717
      %6719 = vmatmul.f32.gmra.mxu0 %v6029
      %v6720 = vpop.f32.mrf.mxu0
      %v6721 = vadd.f32 0.0, %v6720
      %6722 = vmatmul.f32.gmra.mxu0 %v6032
      %v6723 = vpop.f32.mrf.mxu0
      %v6724 = vadd.f32 0.0, %v6723
      %6725 = vmatmul.f32.gmra.mxu0 %v6035
      %v6726 = vpop.f32.mrf.mxu0
      %v6727 = vadd.f32 0.0, %v6726
      %6728 = vmatmul.f32.gmra.mxu0 %v6038
      %v6729 = vpop.f32.mrf.mxu0
      %v6730 = vadd.f32 0.0, %v6729
      %6731 = vmatmul.f32.gmra.mxu0 %v6041
      %v6732 = vpop.f32.mrf.mxu0
      %v6733 = vadd.f32 0.0, %v6732
      %6734 = vmatmul.f32.gmra.mxu0 %v6044
      %v6735 = vpop.f32.mrf.mxu0
      %v6736 = vadd.f32 0.0, %v6735
      %6737 = vmatmul.f32.gmra.mxu0 %v6047
      %v6738 = vpop.f32.mrf.mxu0
      %v6739 = vadd.f32 0.0, %v6738
      %6740 = vmatmul.f32.gmra.mxu0 %v6050
      %v6741 = vpop.f32.mrf.mxu0
      %v6742 = vadd.f32 0.0, %v6741
      %6743 = vmatmul.f32.gmra.mxu0 %v6053
      %v6744 = vpop.f32.mrf.mxu0
      %v6745 = vadd.f32 0.0, %v6744
      %6746 = vmatmul.f32.gmra.mxu0 %v6056
      %v6747 = vpop.f32.mrf.mxu0
      %v6748 = vadd.f32 0.0, %v6747
      %6749 = vmatmul.f32.gmra.mxu0 %v6059
      %v6750 = vpop.f32.mrf.mxu0
      %v6751 = vadd.f32 0.0, %v6750
      %6752 = vmatmul.f32.gmra.mxu0 %v6062
      %v6753 = vpop.f32.mrf.mxu0
      %v6754 = vadd.f32 0.0, %v6753
      %6755 = vmatmul.f32.gmra.mxu0 %v6065
      %v6756 = vpop.f32.mrf.mxu0
      %v6757 = vadd.f32 0.0, %v6756
      %6758 = vmatmul.f32.gmra.mxu0 %v6068
      %v6759 = vpop.f32.mrf.mxu0
      %v6760 = vadd.f32 0.0, %v6759
      %6761 = vmatmul.f32.gmra.mxu0 %v6071
      %v6762 = vpop.f32.mrf.mxu0
      %v6763 = vadd.f32 0.0, %v6762
      %6764 = vmatmul.f32.gmra.mxu0 %v6074
      %v6765 = vpop.f32.mrf.mxu0
      %v6766 = vadd.f32 0.0, %v6765
      %6767 = vmatmul.f32.gmra.mxu0 %v6077
      %v6768 = vpop.f32.mrf.mxu0
      %v6769 = vadd.f32 0.0, %v6768
      %6770 = vmatmul.f32.gmra.mxu0 %v6080
      %v6771 = vpop.f32.mrf.mxu0
      %v6772 = vadd.f32 0.0, %v6771
      %6773 = vmatmul.f32.gmra.mxu0 %v6083
      %v6774 = vpop.f32.mrf.mxu0
      %v6775 = vadd.f32 0.0, %v6774
      %6776 = vmatmul.f32.gmra.mxu0 %v6086
      %v6777 = vpop.f32.mrf.mxu0
      %v6778 = vadd.f32 0.0, %v6777
      %6779 = vmatmul.f32.gmra.mxu0 %v6089
      %v6780 = vpop.f32.mrf.mxu0
      %v6781 = vadd.f32 0.0, %v6780
      %6782 = vmatmul.f32.gmra.mxu0 %v6092
      %v6783 = vpop.f32.mrf.mxu0
      %v6784 = vadd.f32 0.0, %v6783
      %6785 = vmatmul.f32.gmra.mxu0 %v6095
      %v6786 = vpop.f32.mrf.mxu0
      %v6787 = vadd.f32 0.0, %v6786
      %6788 = vmatmul.f32.gmra.mxu0 %v6098
      %v6789 = vpop.f32.mrf.mxu0
      %v6790 = vadd.f32 0.0, %v6789
      %6791 = vmatmul.f32.gmra.mxu0 %v6101
      %v6792 = vpop.f32.mrf.mxu0
      %v6793 = vadd.f32 0.0, %v6792
      %6794 = vmatmul.f32.gmra.mxu0 %v6104
      %v6795 = vpop.f32.mrf.mxu0
      %v6796 = vadd.f32 0.0, %v6795
      %6797 = vmatmul.f32.gmra.mxu0 %v6107
      %v6798 = vpop.f32.mrf.mxu0
      %v6799 = vadd.f32 0.0, %v6798
      %6800 = vmatmul.f32.gmra.mxu0 %v6110
      %v6801 = vpop.f32.mrf.mxu0
      %v6802 = vadd.f32 0.0, %v6801
      %6803 = vmatmul.f32.gmra.mxu0 %v6113
      %v6804 = vpop.f32.mrf.mxu0
      %v6805 = vadd.f32 0.0, %v6804
      %6806 = vmatmul.f32.gmra.mxu0 %v6116
      %v6807 = vpop.f32.mrf.mxu0
      %v6808 = vadd.f32 0.0, %v6807
      %6809 = vmatmul.f32.gmra.mxu0 %v6119
      %v6810 = vpop.f32.mrf.mxu0
      %v6811 = vadd.f32 0.0, %v6810
      %6812 = vmatmul.f32.gmra.mxu0 %v6122
      %v6813 = vpop.f32.mrf.mxu0
      %v6814 = vadd.f32 0.0, %v6813
      %6815 = vmatmul.f32.gmra.mxu0 %v6125
      %v6816 = vpop.f32.mrf.mxu0
      %v6817 = vadd.f32 0.0, %v6816
      %6818 = vmatmul.f32.gmra.mxu0 %v6128
      %v6819 = vpop.f32.mrf.mxu0
      %v6820 = vadd.f32 0.0, %v6819
      %6821 = vmatmul.f32.gmra.mxu0 %v6131
      %v6822 = vpop.f32.mrf.mxu0
      %v6823 = vadd.f32 0.0, %v6822
      %6824 = vmatmul.f32.gmra.mxu0 %v6134
      %v6825 = vpop.f32.mrf.mxu0
      %v6826 = vadd.f32 0.0, %v6825
      %6827 = vmatmul.f32.gmra.mxu0 %v6137
      %v6828 = vpop.f32.mrf.mxu0
      %v6829 = vadd.f32 0.0, %v6828
      %6830 = vmatmul.f32.gmra.mxu0 %v6140
      %v6831 = vpop.f32.mrf.mxu0
      %v6832 = vadd.f32 0.0, %v6831
      %6833 = vmatmul.f32.gmra.mxu0 %v6143
      %v6834 = vpop.f32.mrf.mxu0
      %v6835 = vadd.f32 0.0, %v6834
      %6836 = vmatmul.f32.gmra.mxu0 %v6146
      %v6837 = vpop.f32.mrf.mxu0
      %v6838 = vadd.f32 0.0, %v6837
      %6839 = vmatmul.f32.gmra.mxu0 %v6149
      %v6840 = vpop.f32.mrf.mxu0
      %v6841 = vadd.f32 0.0, %v6840
      %6842 = vmatmul.f32.gmra.mxu0 %v6152
      %v6843 = vpop.f32.mrf.mxu0
      %v6844 = vadd.f32 0.0, %v6843
      %6845 = vmatmul.f32.gmra.mxu0 %v6155
      %v6846 = vpop.f32.mrf.mxu0
      %v6847 = vadd.f32 0.0, %v6846
      %6848 = vmatmul.f32.gmra.mxu0 %v6158
      %v6849 = vpop.f32.mrf.mxu0
      %v6850 = vadd.f32 0.0, %v6849
      %6851 = vmatmul.f32.gmra.mxu0 %v6161
      %v6852 = vpop.f32.mrf.mxu0
      %v6853 = vadd.f32 0.0, %v6852
      %6854 = vmatmul.f32.gmra.mxu0 %v6164
      %v6855 = vpop.f32.mrf.mxu0
      %v6856 = vadd.f32 0.0, %v6855
      %6857 = vmatmul.f32.gmra.mxu0 %v6167
      %v6858 = vpop.f32.mrf.mxu0
      %v6859 = vadd.f32 0.0, %v6858
      %6860 = vmatmul.f32.gmra.mxu0 %v6170
      %v6861 = vpop.f32.mrf.mxu0
      %v6862 = vadd.f32 0.0, %v6861
      %6863 = vmatmul.f32.gmra.mxu0 %v6173
      %v6864 = vpop.f32.mrf.mxu0
      %v6865 = vadd.f32 0.0, %v6864
      %6866 = vmatmul.f32.gmra.mxu0 %v6176
      %v6867 = vpop.f32.mrf.mxu0
      %v6868 = vadd.f32 0.0, %v6867
      %6869 = vmatmul.f32.gmra.mxu0 %v6179
      %v6870 = vpop.f32.mrf.mxu0
      %v6871 = vadd.f32 0.0, %v6870
      %6872 = vmatmul.f32.gmra.mxu0 %v6182
      %v6873 = vpop.f32.mrf.mxu0
      %v6874 = vadd.f32 0.0, %v6873
      %6875 = vmatmul.f32.gmra.mxu0 %v6185
      %v6876 = vpop.f32.mrf.mxu0
      %v6877 = vadd.f32 0.0, %v6876
      %6878 = vmatmul.f32.gmra.mxu0 %v6188
      %v6879 = vpop.f32.mrf.mxu0
      %v6880 = vadd.f32 0.0, %v6879
      %6881 = vmatmul.f32.gmra.mxu0 %v6191
      %v6882 = vpop.f32.mrf.mxu0
      %v6883 = vadd.f32 0.0, %v6882
      %6884 = vmatmul.f32.gmra.mxu0 %v6194
      %v6885 = vpop.f32.mrf.mxu0
      %v6886 = vadd.f32 0.0, %v6885
      %6887 = vmatmul.f32.gmra.mxu0 %v6197
      %v6888 = vpop.f32.mrf.mxu0
      %v6889 = vadd.f32 0.0, %v6888
      %6890 = vmatmul.f32.gmra.mxu0 %v6200
      %v6891 = vpop.f32.mrf.mxu0
      %v6892 = vadd.f32 0.0, %v6891
      %6893 = vmatmul.f32.gmra.mxu0 %v6203
      %v6894 = vpop.f32.mrf.mxu0
      %v6895 = vadd.f32 0.0, %v6894
      %6896 = vmatmul.f32.gmra.mxu0 %v6206
      %v6897 = vpop.f32.mrf.mxu0
      %v6898 = vadd.f32 0.0, %v6897
      %6899 = vmatmul.f32.gmra.mxu0 %v6209
      %v6900 = vpop.f32.mrf.mxu0
      %v6901 = vadd.f32 0.0, %v6900
      %6902 = vmatmul.f32.gmra.mxu0 %v6212
      %v6903 = vpop.f32.mrf.mxu0
      %v6904 = vadd.f32 0.0, %v6903
      %6905 = vmatmul.f32.gmra.mxu0 %v6215
      %v6906 = vpop.f32.mrf.mxu0
      %v6907 = vadd.f32 0.0, %v6906
      %6908 = vmatmul.f32.gmra.mxu0 %v6218
      %v6909 = vpop.f32.mrf.mxu0
      %v6910 = vadd.f32 0.0, %v6909
      %6911 = vmatmul.f32.gmra.mxu0 %v6221
      %v6912 = vpop.f32.mrf.mxu0
      %v6913 = vadd.f32 0.0, %v6912
      %6914 = vmatmul.f32.gmra.mxu0 %v6224
      %v6915 = vpop.f32.mrf.mxu0
      %v6916 = vadd.f32 0.0, %v6915
      %6917 = vmatmul.f32.gmra.mxu0 %v6227
      %v6918 = vpop.f32.mrf.mxu0
      %v6919 = vadd.f32 0.0, %v6918
      %6920 = vmatmul.f32.gmra.mxu0 %v6230
      %v6921 = vpop.f32.mrf.mxu0
      %v6922 = vadd.f32 0.0, %v6921
      %6923 = vmatmul.f32.gmra.mxu0 %v6233
      %v6924 = vpop.f32.mrf.mxu0
      %v6925 = vadd.f32 0.0, %v6924
      %6926 = vmatmul.f32.gmra.mxu0 %v6236
      %v6927 = vpop.f32.mrf.mxu0
      %v6928 = vadd.f32 0.0, %v6927
      %6929 = vmatmul.f32.gmra.mxu0 %v6239
      %v6930 = vpop.f32.mrf.mxu0
      %v6931 = vadd.f32 0.0, %v6930
      %6932 = vmatmul.f32.gmra.mxu0 %v6242
      %v6933 = vpop.f32.mrf.mxu0
      %v6934 = vadd.f32 0.0, %v6933
      %6935 = vmatmul.f32.gmra.mxu0 %v6245
      %v6936 = vpop.f32.mrf.mxu0
      %v6937 = vadd.f32 0.0, %v6936
      %6938 = vmatmul.f32.gmra.mxu0 %v6248
      %v6939 = vpop.f32.mrf.mxu0
      %v6940 = vadd.f32 0.0, %v6939
      %6941 = vmatmul.f32.gmra.mxu0 %v6251
      %v6942 = vpop.f32.mrf.mxu0
      %v6943 = vadd.f32 0.0, %v6942
      %6944 = vmatmul.f32.gmra.mxu0 %v6254
      %v6945 = vpop.f32.mrf.mxu0
      %v6946 = vadd.f32 0.0, %v6945
      %6947 = vmatmul.f32.gmra.mxu0 %v6257
      %v6948 = vpop.f32.mrf.mxu0
      %v6949 = vadd.f32 0.0, %v6948
      %6950 = vmatmul.f32.gmra.mxu0 %v6260
      %v6951 = vpop.f32.mrf.mxu0
      %v6952 = vadd.f32 0.0, %v6951
      %6953 = vmatmul.f32.gmra.mxu0 %v6263
      %v6954 = vpop.f32.mrf.mxu0
      %v6955 = vadd.f32 0.0, %v6954
      %6956 = vmatmul.f32.gmra.mxu0 %v6266
      %v6957 = vpop.f32.mrf.mxu0
      %v6958 = vadd.f32 0.0, %v6957
      %6959 = vmatmul.f32.gmra.mxu0 %v6269
      %v6960 = vpop.f32.mrf.mxu0
      %v6961 = vadd.f32 0.0, %v6960
      %6962 = vmatmul.f32.gmra.mxu0 %v6272
      %v6963 = vpop.f32.mrf.mxu0
      %v6964 = vadd.f32 0.0, %v6963
      %6965 = vmatmul.f32.gmra.mxu0 %v6275
      %v6966 = vpop.f32.mrf.mxu0
      %v6967 = vadd.f32 0.0, %v6966
      %6968 = vmatmul.f32.gmra.mxu0 %v6278
      %v6969 = vpop.f32.mrf.mxu0
      %v6970 = vadd.f32 0.0, %v6969
      %6971 = vmatmul.f32.gmra.mxu0 %v6281
      %v6972 = vpop.f32.mrf.mxu0
      %v6973 = vadd.f32 0.0, %v6972
      %6974 = vmatmul.f32.gmra.mxu0 %v6284
      %v6975 = vpop.f32.mrf.mxu0
      %v6976 = vadd.f32 0.0, %v6975
      %6977 = vmatmul.f32.gmra.mxu0 %v6287
      %v6978 = vpop.f32.mrf.mxu0
      %v6979 = vadd.f32 0.0, %v6978
      %6980 = vmatmul.f32.gmra.mxu0 %v6290
      %v6981 = vpop.f32.mrf.mxu0
      %v6982 = vadd.f32 0.0, %v6981
      %6983 = vmatmul.f32.gmra.mxu0 %v6293
      %v6984 = vpop.f32.mrf.mxu0
      %v6985 = vadd.f32 0.0, %v6984
      %6986 = vmatmul.f32.gmra.mxu0 %v6296
      %v6987 = vpop.f32.mrf.mxu0
      %v6988 = vadd.f32 0.0, %v6987
      %6989 = vmatmul.f32.gmra.mxu0 %v6299
      %v6990 = vpop.f32.mrf.mxu0
      %v6991 = vadd.f32 0.0, %v6990
      %6992 = vmatmul.f32.gmra.mxu0 %v6302
      %v6993 = vpop.f32.mrf.mxu0
      %v6994 = vadd.f32 0.0, %v6993
      %6995 = vmatmul.f32.gmra.mxu0 %v6305
      %v6996 = vpop.f32.mrf.mxu0
      %v6997 = vadd.f32 0.0, %v6996
      %6998 = vmatmul.f32.gmra.mxu0 %v6308
      %v6999 = vpop.f32.mrf.mxu0
      %v7000 = vadd.f32 0.0, %v6999
      %7001 = vmatmul.f32.gmra.mxu0 %v6311
      %v7002 = vpop.f32.mrf.mxu0
      %v7003 = vadd.f32 0.0, %v7002
      %7004 = vmatmul.f32.gmra.mxu0 %v6314
      %v7005 = vpop.f32.mrf.mxu0
      %v7006 = vadd.f32 0.0, %v7005
      %7007 = vdwg.mxu0
      %v7008 = vmax.f32 %v5190, %v6334
      %v7009 = vmax.f32 %v5191, %v6337
      %v7010 = vmax.f32 %v5192, %v6340
      %v7011 = vmax.f32 %v5193, %v6343
      %v7012 = vmax.f32 %v5194, %v6346
      %v7013 = vmax.f32 %v5195, %v6349
      %v7014 = vmax.f32 %v5196, %v6352
      %v7015 = vmax.f32 %v5197, %v6355
      %v7016 = vmax.f32 %v5198, %v6358
      %v7017 = vmax.f32 %v5199, %v6361
      %v7018 = vmax.f32 %v5200, %v6364
      %v7019 = vmax.f32 %v5201, %v6367
      %v7020 = vmax.f32 %v5202, %v6370
      %v7021 = vmax.f32 %v5203, %v6373
      %v7022 = vmax.f32 %v5204, %v6376
      %v7023 = vmax.f32 %v5205, %v6379
      %v7024 = vmax.f32 %v5206, %v6382
      %v7025 = vmax.f32 %v5207, %v6385
      %v7026 = vmax.f32 %v5208, %v6388
      %v7027 = vmax.f32 %v5209, %v6391
      %v7028 = vmax.f32 %v5210, %v6394
      %v7029 = vmax.f32 %v5211, %v6397
      %v7030 = vmax.f32 %v5212, %v6400
      %v7031 = vmax.f32 %v5213, %v6403
      %v7032 = vmax.f32 %v5214, %v6406
      %v7033 = vmax.f32 %v5215, %v6409
      %v7034 = vmax.f32 %v5216, %v6412
      %v7035 = vmax.f32 %v5217, %v6415
      %v7036 = vmax.f32 %v5218, %v6418
      %v7037 = vmax.f32 %v5219, %v6421
      %v7038 = vmax.f32 %v5220, %v6424
      %v7039 = vmax.f32 %v5221, %v6427
      %v7040 = vmax.f32 %v5222, %v6430
      %v7041 = vmax.f32 %v5223, %v6433
      %v7042 = vmax.f32 %v5224, %v6436
      %v7043 = vmax.f32 %v5225, %v6439
      %v7044 = vmax.f32 %v5226, %v6442
      %v7045 = vmax.f32 %v5227, %v6445
      %v7046 = vmax.f32 %v5228, %v6448
      %v7047 = vmax.f32 %v5229, %v6451
      %v7048 = vmax.f32 %v5230, %v6454
      %v7049 = vmax.f32 %v5231, %v6457
      %v7050 = vmax.f32 %v5232, %v6460
      %v7051 = vmax.f32 %v5233, %v6463
      %v7052 = vmax.f32 %v5234, %v6466
      %v7053 = vmax.f32 %v5235, %v6469
      %v7054 = vmax.f32 %v5236, %v6472
      %v7055 = vmax.f32 %v5237, %v6475
      %v7056 = vmax.f32 %v5238, %v6478
      %v7057 = vmax.f32 %v5239, %v6481
      %v7058 = vmax.f32 %v5240, %v6484
      %v7059 = vmax.f32 %v5241, %v6487
      %v7060 = vmax.f32 %v5242, %v6490
      %v7061 = vmax.f32 %v5243, %v6493
      %v7062 = vmax.f32 %v5244, %v6496
      %v7063 = vmax.f32 %v5245, %v6499
      %v7064 = vmax.f32 %v5246, %v6502
      %v7065 = vmax.f32 %v5247, %v6505
      %v7066 = vmax.f32 %v5248, %v6508
      %v7067 = vmax.f32 %v5249, %v6511
      %v7068 = vmax.f32 %v5250, %v6514
      %v7069 = vmax.f32 %v5251, %v6517
      %v7070 = vmax.f32 %v5252, %v6520
      %v7071 = vmax.f32 %v5253, %v6523
      %v7072 = vmax.f32 %v5254, %v6526
      %v7073 = vmax.f32 %v5255, %v6529
      %v7074 = vmax.f32 %v5256, %v6532
      %v7075 = vmax.f32 %v5257, %v6535
      %v7076 = vmax.f32 %v5258, %v6538
      %v7077 = vmax.f32 %v5259, %v6541
      %v7078 = vmax.f32 %v5260, %v6544
      %v7079 = vmax.f32 %v5261, %v6547
      %v7080 = vmax.f32 %v5262, %v6550
      %v7081 = vmax.f32 %v5263, %v6553
      %v7082 = vmax.f32 %v5264, %v6556
      %v7083 = vmax.f32 %v5265, %v6559
      %v7084 = vmax.f32 %v5266, %v6562
      %v7085 = vmax.f32 %v5267, %v6565
      %v7086 = vmax.f32 %v5268, %v6568
      %v7087 = vmax.f32 %v5269, %v6571
      %v7088 = vmax.f32 %v5270, %v6574
      %v7089 = vmax.f32 %v5271, %v6577
      %v7090 = vmax.f32 %v5272, %v6580
      %v7091 = vmax.f32 %v5273, %v6583
      %v7092 = vmax.f32 %v5274, %v6586
      %v7093 = vmax.f32 %v5275, %v6589
      %v7094 = vmax.f32 %v5276, %v6592
      %v7095 = vmax.f32 %v5277, %v6595
      %v7096 = vmax.f32 %v5278, %v6598
      %v7097 = vmax.f32 %v5279, %v6601
      %v7098 = vmax.f32 %v5280, %v6604
      %v7099 = vmax.f32 %v5281, %v6607
      %v7100 = vmax.f32 %v5282, %v6610
      %v7101 = vmax.f32 %v5283, %v6613
      %v7102 = vmax.f32 %v5284, %v6616
      %v7103 = vmax.f32 %v5285, %v6619
      %v7104 = vmax.f32 %v5286, %v6622
      %v7105 = vmax.f32 %v5287, %v6625
      %v7106 = vmax.f32 %v5288, %v6628
      %v7107 = vmax.f32 %v5289, %v6631
      %v7108 = vmax.f32 %v5290, %v6634
      %v7109 = vmax.f32 %v5291, %v6637
      %v7110 = vmax.f32 %v5292, %v6640
      %v7111 = vmax.f32 %v5293, %v6643
      %v7112 = vmax.f32 %v5294, %v6646
      %v7113 = vmax.f32 %v5295, %v6649
      %v7114 = vmax.f32 %v5296, %v6652
      %v7115 = vmax.f32 %v5297, %v6655
      %v7116 = vmax.f32 %v5298, %v6658
      %v7117 = vmax.f32 %v5299, %v6661
      %v7118 = vmax.f32 %v5300, %v6664
      %v7119 = vmax.f32 %v5301, %v6667
      %v7120 = vmax.f32 %v5302, %v6670
      %v7121 = vmax.f32 %v5303, %v6673
      %v7122 = vmax.f32 %v5304, %v6676
      %v7123 = vmax.f32 %v5305, %v6679
      %v7124 = vmax.f32 %v5306, %v6682
      %v7125 = vmax.f32 %v5307, %v6685
      %v7126 = vmax.f32 %v5308, %v6688
      %v7127 = vmax.f32 %v5309, %v6691
      %v7128 = vmax.f32 %v5310, %v6694
      %v7129 = vmax.f32 %v5311, %v6697
      %v7130 = vmax.f32 %v5312, %v6700
      %v7131 = vmax.f32 %v5313, %v6703
      %v7132 = vmax.f32 %v5314, %v6706
      %v7133 = vmax.f32 %v5315, %v6709
      %v7134 = vmax.f32 %v5316, %v6712
      %v7135 = vmax.f32 %v5317, %v6715
      %v7136 = vmax.f32 %v5318, %v6718
      %v7137 = vmax.f32 %v5319, %v6721
      %v7138 = vmax.f32 %v5320, %v6724
      %v7139 = vmax.f32 %v5321, %v6727
      %v7140 = vmax.f32 %v5322, %v6730
      %v7141 = vmax.f32 %v5323, %v6733
      %v7142 = vmax.f32 %v5324, %v6736
      %v7143 = vmax.f32 %v5325, %v6739
      %v7144 = vmax.f32 %v5326, %v6742
      %v7145 = vmax.f32 %v5327, %v6745
      %v7146 = vmax.f32 %v5328, %v6748
      %v7147 = vmax.f32 %v5329, %v6751
      %v7148 = vmax.f32 %v5330, %v6754
      %v7149 = vmax.f32 %v5331, %v6757
      %v7150 = vmax.f32 %v5332, %v6760
      %v7151 = vmax.f32 %v5333, %v6763
      %v7152 = vmax.f32 %v5334, %v6766
      %v7153 = vmax.f32 %v5335, %v6769
      %v7154 = vmax.f32 %v5336, %v6772
      %v7155 = vmax.f32 %v5337, %v6775
      %v7156 = vmax.f32 %v5338, %v6778
      %v7157 = vmax.f32 %v5339, %v6781
      %v7158 = vmax.f32 %v5340, %v6784
      %v7159 = vmax.f32 %v5341, %v6787
      %v7160 = vmax.f32 %v5342, %v6790
      %v7161 = vmax.f32 %v5343, %v6793
      %v7162 = vmax.f32 %v5344, %v6796
      %v7163 = vmax.f32 %v5345, %v6799
      %v7164 = vmax.f32 %v5346, %v6802
      %v7165 = vmax.f32 %v5347, %v6805
      %v7166 = vmax.f32 %v5348, %v6808
      %v7167 = vmax.f32 %v5349, %v6811
      %v7168 = vmax.f32 %v5350, %v6814
      %v7169 = vmax.f32 %v5351, %v6817
      %v7170 = vmax.f32 %v5352, %v6820
      %v7171 = vmax.f32 %v5353, %v6823
      %v7172 = vmax.f32 %v5354, %v6826
      %v7173 = vmax.f32 %v5355, %v6829
      %v7174 = vmax.f32 %v5356, %v6832
      %v7175 = vmax.f32 %v5357, %v6835
      %v7176 = vmax.f32 %v5358, %v6838
      %v7177 = vmax.f32 %v5359, %v6841
      %v7178 = vmax.f32 %v5360, %v6844
      %v7179 = vmax.f32 %v5361, %v6847
      %v7180 = vmax.f32 %v5362, %v6850
      %v7181 = vmax.f32 %v5363, %v6853
      %v7182 = vmax.f32 %v5364, %v6856
      %v7183 = vmax.f32 %v5365, %v6859
      %v7184 = vmax.f32 %v5366, %v6862
      %v7185 = vmax.f32 %v5367, %v6865
      %v7186 = vmax.f32 %v5368, %v6868
      %v7187 = vmax.f32 %v5369, %v6871
      %v7188 = vmax.f32 %v5370, %v6874
      %v7189 = vmax.f32 %v5371, %v6877
      %v7190 = vmax.f32 %v5372, %v6880
      %v7191 = vmax.f32 %v5373, %v6883
      %v7192 = vmax.f32 %v5374, %v6886
      %v7193 = vmax.f32 %v5375, %v6889
      %v7194 = vmax.f32 %v5376, %v6892
      %v7195 = vmax.f32 %v5377, %v6895
      %v7196 = vmax.f32 %v5378, %v6898
      %v7197 = vmax.f32 %v5379, %v6901
      %v7198 = vmax.f32 %v5380, %v6904
      %v7199 = vmax.f32 %v5381, %v6907
      %v7200 = vmax.f32 %v5382, %v6910
      %v7201 = vmax.f32 %v5383, %v6913
      %v7202 = vmax.f32 %v5384, %v6916
      %v7203 = vmax.f32 %v5385, %v6919
      %v7204 = vmax.f32 %v5386, %v6922
      %v7205 = vmax.f32 %v5387, %v6925
      %v7206 = vmax.f32 %v5388, %v6928
      %v7207 = vmax.f32 %v5389, %v6931
      %v7208 = vmax.f32 %v5390, %v6934
      %v7209 = vmax.f32 %v5391, %v6937
      %v7210 = vmax.f32 %v5392, %v6940
      %v7211 = vmax.f32 %v5393, %v6943
      %v7212 = vmax.f32 %v5394, %v6946
      %v7213 = vmax.f32 %v5395, %v6949
      %v7214 = vmax.f32 %v5396, %v6952
      %v7215 = vmax.f32 %v5397, %v6955
      %v7216 = vmax.f32 %v5398, %v6958
      %v7217 = vmax.f32 %v5399, %v6961
      %v7218 = vmax.f32 %v5400, %v6964
      %v7219 = vmax.f32 %v5401, %v6967
      %v7220 = vmax.f32 %v5402, %v6970
      %v7221 = vmax.f32 %v5403, %v6973
      %v7222 = vmax.f32 %v5404, %v6976
      %v7223 = vmax.f32 %v5405, %v6979
      %v7224 = vmax.f32 %v5406, %v6982
      %v7225 = vmax.f32 %v5407, %v6985
      %v7226 = vmax.f32 %v5408, %v6988
      %v7227 = vmax.f32 %v5409, %v6991
      %v7228 = vmax.f32 %v5410, %v6994
      %v7229 = vmax.f32 %v5411, %v6997
      %v7230 = vmax.f32 %v5412, %v7000
      %v7231 = vmax.f32 %v5413, %v7003
      %v7232 = vmax.f32 %v5414, %v7006
      %v7233 = vld [vmem:[%s2] sm:$0x1]
      %v7235 = vperm.slane %v7233, 0
      %v7237 = vadd.f32 %v7008, %v7235
      %v7238 = vadd.f32 %v7009, %v7235
      %v7239 = vadd.f32 %v7010, %v7235
      %v7240 = vadd.f32 %v7011, %v7235
      %v7241 = vadd.f32 %v7012, %v7235
      %v7242 = vadd.f32 %v7013, %v7235
      %v7243 = vadd.f32 %v7014, %v7235
      %v7244 = vadd.f32 %v7015, %v7235
      %v7245 = vadd.f32 %v7016, %v7235
      %v7246 = vadd.f32 %v7017, %v7235
      %v7247 = vadd.f32 %v7018, %v7235
      %v7248 = vadd.f32 %v7019, %v7235
      %v7249 = vadd.f32 %v7020, %v7235
      %v7250 = vadd.f32 %v7021, %v7235
      %v7251 = vadd.f32 %v7022, %v7235
      %v7252 = vadd.f32 %v7023, %v7235
      %v7253 = vadd.f32 %v7024, %v7235
      %v7254 = vadd.f32 %v7025, %v7235
      %v7255 = vadd.f32 %v7026, %v7235
      %v7256 = vadd.f32 %v7027, %v7235
      %v7257 = vadd.f32 %v7028, %v7235
      %v7258 = vadd.f32 %v7029, %v7235
      %v7259 = vadd.f32 %v7030, %v7235
      %v7260 = vadd.f32 %v7031, %v7235
      %v7261 = vadd.f32 %v7032, %v7235
      %v7262 = vadd.f32 %v7033, %v7235
      %v7263 = vadd.f32 %v7034, %v7235
      %v7264 = vadd.f32 %v7035, %v7235
      %v7265 = vadd.f32 %v7036, %v7235
      %v7266 = vadd.f32 %v7037, %v7235
      %v7267 = vadd.f32 %v7038, %v7235
      %v7268 = vadd.f32 %v7039, %v7235
      %v7269 = vadd.f32 %v7040, %v7235
      %v7270 = vadd.f32 %v7041, %v7235
      %v7271 = vadd.f32 %v7042, %v7235
      %v7272 = vadd.f32 %v7043, %v7235
      %v7273 = vadd.f32 %v7044, %v7235
      %v7274 = vadd.f32 %v7045, %v7235
      %v7275 = vadd.f32 %v7046, %v7235
      %v7276 = vadd.f32 %v7047, %v7235
      %v7277 = vadd.f32 %v7048, %v7235
      %v7278 = vadd.f32 %v7049, %v7235
      %v7279 = vadd.f32 %v7050, %v7235
      %v7280 = vadd.f32 %v7051, %v7235
      %v7281 = vadd.f32 %v7052, %v7235
      %v7282 = vadd.f32 %v7053, %v7235
      %v7283 = vadd.f32 %v7054, %v7235
      %v7284 = vadd.f32 %v7055, %v7235
      %v7285 = vadd.f32 %v7056, %v7235
      %v7286 = vadd.f32 %v7057, %v7235
      %v7287 = vadd.f32 %v7058, %v7235
      %v7288 = vadd.f32 %v7059, %v7235
      %v7289 = vadd.f32 %v7060, %v7235
      %v7290 = vadd.f32 %v7061, %v7235
      %v7291 = vadd.f32 %v7062, %v7235
      %v7292 = vadd.f32 %v7063, %v7235
      %v7293 = vadd.f32 %v7064, %v7235
      %v7294 = vadd.f32 %v7065, %v7235
      %v7295 = vadd.f32 %v7066, %v7235
      %v7296 = vadd.f32 %v7067, %v7235
      %v7297 = vadd.f32 %v7068, %v7235
      %v7298 = vadd.f32 %v7069, %v7235
      %v7299 = vadd.f32 %v7070, %v7235
      %v7300 = vadd.f32 %v7071, %v7235
      %v7301 = vadd.f32 %v7072, %v7235
      %v7302 = vadd.f32 %v7073, %v7235
      %v7303 = vadd.f32 %v7074, %v7235
      %v7304 = vadd.f32 %v7075, %v7235
      %v7305 = vadd.f32 %v7076, %v7235
      %v7306 = vadd.f32 %v7077, %v7235
      %v7307 = vadd.f32 %v7078, %v7235
      %v7308 = vadd.f32 %v7079, %v7235
      %v7309 = vadd.f32 %v7080, %v7235
      %v7310 = vadd.f32 %v7081, %v7235
      %v7311 = vadd.f32 %v7082, %v7235
      %v7312 = vadd.f32 %v7083, %v7235
      %v7313 = vadd.f32 %v7084, %v7235
      %v7314 = vadd.f32 %v7085, %v7235
      %v7315 = vadd.f32 %v7086, %v7235
      %v7316 = vadd.f32 %v7087, %v7235
      %v7317 = vadd.f32 %v7088, %v7235
      %v7318 = vadd.f32 %v7089, %v7235
      %v7319 = vadd.f32 %v7090, %v7235
      %v7320 = vadd.f32 %v7091, %v7235
      %v7321 = vadd.f32 %v7092, %v7235
      %v7322 = vadd.f32 %v7093, %v7235
      %v7323 = vadd.f32 %v7094, %v7235
      %v7324 = vadd.f32 %v7095, %v7235
      %v7325 = vadd.f32 %v7096, %v7235
      %v7326 = vadd.f32 %v7097, %v7235
      %v7327 = vadd.f32 %v7098, %v7235
      %v7328 = vadd.f32 %v7099, %v7235
      %v7329 = vadd.f32 %v7100, %v7235
      %v7330 = vadd.f32 %v7101, %v7235
      %v7331 = vadd.f32 %v7102, %v7235
      %v7332 = vadd.f32 %v7103, %v7235
      %v7333 = vadd.f32 %v7104, %v7235
      %v7334 = vadd.f32 %v7105, %v7235
      %v7335 = vadd.f32 %v7106, %v7235
      %v7336 = vadd.f32 %v7107, %v7235
      %v7337 = vadd.f32 %v7108, %v7235
      %v7338 = vadd.f32 %v7109, %v7235
      %v7339 = vadd.f32 %v7110, %v7235
      %v7340 = vadd.f32 %v7111, %v7235
      %v7341 = vadd.f32 %v7112, %v7235
      %v7342 = vadd.f32 %v7113, %v7235
      %v7343 = vadd.f32 %v7114, %v7235
      %v7344 = vadd.f32 %v7115, %v7235
      %v7345 = vadd.f32 %v7116, %v7235
      %v7346 = vadd.f32 %v7117, %v7235
      %v7347 = vadd.f32 %v7118, %v7235
      %v7348 = vadd.f32 %v7119, %v7235
      %v7349 = vadd.f32 %v7120, %v7235
      %v7350 = vadd.f32 %v7121, %v7235
      %v7351 = vadd.f32 %v7122, %v7235
      %v7352 = vadd.f32 %v7123, %v7235
      %v7353 = vadd.f32 %v7124, %v7235
      %v7354 = vadd.f32 %v7125, %v7235
      %v7355 = vadd.f32 %v7126, %v7235
      %v7356 = vadd.f32 %v7127, %v7235
      %v7357 = vadd.f32 %v7128, %v7235
      %v7358 = vadd.f32 %v7129, %v7235
      %v7359 = vadd.f32 %v7130, %v7235
      %v7360 = vadd.f32 %v7131, %v7235
      %v7361 = vadd.f32 %v7132, %v7235
      %v7362 = vadd.f32 %v7133, %v7235
      %v7363 = vadd.f32 %v7134, %v7235
      %v7364 = vadd.f32 %v7135, %v7235
      %v7365 = vadd.f32 %v7136, %v7235
      %v7366 = vadd.f32 %v7137, %v7235
      %v7367 = vadd.f32 %v7138, %v7235
      %v7368 = vadd.f32 %v7139, %v7235
      %v7369 = vadd.f32 %v7140, %v7235
      %v7370 = vadd.f32 %v7141, %v7235
      %v7371 = vadd.f32 %v7142, %v7235
      %v7372 = vadd.f32 %v7143, %v7235
      %v7373 = vadd.f32 %v7144, %v7235
      %v7374 = vadd.f32 %v7145, %v7235
      %v7375 = vadd.f32 %v7146, %v7235
      %v7376 = vadd.f32 %v7147, %v7235
      %v7377 = vadd.f32 %v7148, %v7235
      %v7378 = vadd.f32 %v7149, %v7235
      %v7379 = vadd.f32 %v7150, %v7235
      %v7380 = vadd.f32 %v7151, %v7235
      %v7381 = vadd.f32 %v7152, %v7235
      %v7382 = vadd.f32 %v7153, %v7235
      %v7383 = vadd.f32 %v7154, %v7235
      %v7384 = vadd.f32 %v7155, %v7235
      %v7385 = vadd.f32 %v7156, %v7235
      %v7386 = vadd.f32 %v7157, %v7235
      %v7387 = vadd.f32 %v7158, %v7235
      %v7388 = vadd.f32 %v7159, %v7235
      %v7389 = vadd.f32 %v7160, %v7235
      %v7390 = vadd.f32 %v7161, %v7235
      %v7391 = vadd.f32 %v7162, %v7235
      %v7392 = vadd.f32 %v7163, %v7235
      %v7393 = vadd.f32 %v7164, %v7235
      %v7394 = vadd.f32 %v7165, %v7235
      %v7395 = vadd.f32 %v7166, %v7235
      %v7396 = vadd.f32 %v7167, %v7235
      %v7397 = vadd.f32 %v7168, %v7235
      %v7398 = vadd.f32 %v7169, %v7235
      %v7399 = vadd.f32 %v7170, %v7235
      %v7400 = vadd.f32 %v7171, %v7235
      %v7401 = vadd.f32 %v7172, %v7235
      %v7402 = vadd.f32 %v7173, %v7235
      %v7403 = vadd.f32 %v7174, %v7235
      %v7404 = vadd.f32 %v7175, %v7235
      %v7405 = vadd.f32 %v7176, %v7235
      %v7406 = vadd.f32 %v7177, %v7235
      %v7407 = vadd.f32 %v7178, %v7235
      %v7408 = vadd.f32 %v7179, %v7235
      %v7409 = vadd.f32 %v7180, %v7235
      %v7410 = vadd.f32 %v7181, %v7235
      %v7411 = vadd.f32 %v7182, %v7235
      %v7412 = vadd.f32 %v7183, %v7235
      %v7413 = vadd.f32 %v7184, %v7235
      %v7414 = vadd.f32 %v7185, %v7235
      %v7415 = vadd.f32 %v7186, %v7235
      %v7416 = vadd.f32 %v7187, %v7235
      %v7417 = vadd.f32 %v7188, %v7235
      %v7418 = vadd.f32 %v7189, %v7235
      %v7419 = vadd.f32 %v7190, %v7235
      %v7420 = vadd.f32 %v7191, %v7235
      %v7421 = vadd.f32 %v7192, %v7235
      %v7422 = vadd.f32 %v7193, %v7235
      %v7423 = vadd.f32 %v7194, %v7235
      %v7424 = vadd.f32 %v7195, %v7235
      %v7425 = vadd.f32 %v7196, %v7235
      %v7426 = vadd.f32 %v7197, %v7235
      %v7427 = vadd.f32 %v7198, %v7235
      %v7428 = vadd.f32 %v7199, %v7235
      %v7429 = vadd.f32 %v7200, %v7235
      %v7430 = vadd.f32 %v7201, %v7235
      %v7431 = vadd.f32 %v7202, %v7235
      %v7432 = vadd.f32 %v7203, %v7235
      %v7433 = vadd.f32 %v7204, %v7235
      %v7434 = vadd.f32 %v7205, %v7235
      %v7435 = vadd.f32 %v7206, %v7235
      %v7436 = vadd.f32 %v7207, %v7235
      %v7437 = vadd.f32 %v7208, %v7235
      %v7438 = vadd.f32 %v7209, %v7235
      %v7439 = vadd.f32 %v7210, %v7235
      %v7440 = vadd.f32 %v7211, %v7235
      %v7441 = vadd.f32 %v7212, %v7235
      %v7442 = vadd.f32 %v7213, %v7235
      %v7443 = vadd.f32 %v7214, %v7235
      %v7444 = vadd.f32 %v7215, %v7235
      %v7445 = vadd.f32 %v7216, %v7235
      %v7446 = vadd.f32 %v7217, %v7235
      %v7447 = vadd.f32 %v7218, %v7235
      %v7448 = vadd.f32 %v7219, %v7235
      %v7449 = vadd.f32 %v7220, %v7235
      %v7450 = vadd.f32 %v7221, %v7235
      %v7451 = vadd.f32 %v7222, %v7235
      %v7452 = vadd.f32 %v7223, %v7235
      %v7453 = vadd.f32 %v7224, %v7235
      %v7454 = vadd.f32 %v7225, %v7235
      %v7455 = vadd.f32 %v7226, %v7235
      %v7456 = vadd.f32 %v7227, %v7235
      %v7457 = vadd.f32 %v7228, %v7235
      %v7458 = vadd.f32 %v7229, %v7235
      %v7459 = vadd.f32 %v7230, %v7235
      %v7460 = vadd.f32 %v7231, %v7235
      %v7461 = vadd.f32 %v7232, %v7235
      %v7462 = vmax.f32 %v7237, 0.0
      %v7463 = vmax.f32 %v7238, 0.0
      %v7464 = vmax.f32 %v7239, 0.0
      %v7465 = vmax.f32 %v7240, 0.0
      %v7466 = vmax.f32 %v7241, 0.0
      %v7467 = vmax.f32 %v7242, 0.0
      %v7468 = vmax.f32 %v7243, 0.0
      %v7469 = vmax.f32 %v7244, 0.0
      %v7470 = vmax.f32 %v7245, 0.0
      %v7471 = vmax.f32 %v7246, 0.0
      %v7472 = vmax.f32 %v7247, 0.0
      %v7473 = vmax.f32 %v7248, 0.0
      %v7474 = vmax.f32 %v7249, 0.0
      %v7475 = vmax.f32 %v7250, 0.0
      %v7476 = vmax.f32 %v7251, 0.0
      %v7477 = vmax.f32 %v7252, 0.0
      %v7478 = vmax.f32 %v7253, 0.0
      %v7479 = vmax.f32 %v7254, 0.0
      %v7480 = vmax.f32 %v7255, 0.0
      %v7481 = vmax.f32 %v7256, 0.0
      %v7482 = vmax.f32 %v7257, 0.0
      %v7483 = vmax.f32 %v7258, 0.0
      %v7484 = vmax.f32 %v7259, 0.0
      %v7485 = vmax.f32 %v7260, 0.0
      %v7486 = vmax.f32 %v7261, 0.0
      %v7487 = vmax.f32 %v7262, 0.0
      %v7488 = vmax.f32 %v7263, 0.0
      %v7489 = vmax.f32 %v7264, 0.0
      %v7490 = vmax.f32 %v7265, 0.0
      %v7491 = vmax.f32 %v7266, 0.0
      %v7492 = vmax.f32 %v7267, 0.0
      %v7493 = vmax.f32 %v7268, 0.0
      %v7494 = vmax.f32 %v7269, 0.0
      %v7495 = vmax.f32 %v7270, 0.0
      %v7496 = vmax.f32 %v7271, 0.0
      %v7497 = vmax.f32 %v7272, 0.0
      %v7498 = vmax.f32 %v7273, 0.0
      %v7499 = vmax.f32 %v7274, 0.0
      %v7500 = vmax.f32 %v7275, 0.0
      %v7501 = vmax.f32 %v7276, 0.0
      %v7502 = vmax.f32 %v7277, 0.0
      %v7503 = vmax.f32 %v7278, 0.0
      %v7504 = vmax.f32 %v7279, 0.0
      %v7505 = vmax.f32 %v7280, 0.0
      %v7506 = vmax.f32 %v7281, 0.0
      %v7507 = vmax.f32 %v7282, 0.0
      %v7508 = vmax.f32 %v7283, 0.0
      %v7509 = vmax.f32 %v7284, 0.0
      %v7510 = vmax.f32 %v7285, 0.0
      %v7511 = vmax.f32 %v7286, 0.0
      %v7512 = vmax.f32 %v7287, 0.0
      %v7513 = vmax.f32 %v7288, 0.0
      %v7514 = vmax.f32 %v7289, 0.0
      %v7515 = vmax.f32 %v7290, 0.0
      %v7516 = vmax.f32 %v7291, 0.0
      %v7517 = vmax.f32 %v7292, 0.0
      %v7518 = vmax.f32 %v7293, 0.0
      %v7519 = vmax.f32 %v7294, 0.0
      %v7520 = vmax.f32 %v7295, 0.0
      %v7521 = vmax.f32 %v7296, 0.0
      %v7522 = vmax.f32 %v7297, 0.0
      %v7523 = vmax.f32 %v7298, 0.0
      %v7524 = vmax.f32 %v7299, 0.0
      %v7525 = vmax.f32 %v7300, 0.0
      %v7526 = vmax.f32 %v7301, 0.0
      %v7527 = vmax.f32 %v7302, 0.0
      %v7528 = vmax.f32 %v7303, 0.0
      %v7529 = vmax.f32 %v7304, 0.0
      %v7530 = vmax.f32 %v7305, 0.0
      %v7531 = vmax.f32 %v7306, 0.0
      %v7532 = vmax.f32 %v7307, 0.0
      %v7533 = vmax.f32 %v7308, 0.0
      %v7534 = vmax.f32 %v7309, 0.0
      %v7535 = vmax.f32 %v7310, 0.0
      %v7536 = vmax.f32 %v7311, 0.0
      %v7537 = vmax.f32 %v7312, 0.0
      %v7538 = vmax.f32 %v7313, 0.0
      %v7539 = vmax.f32 %v7314, 0.0
      %v7540 = vmax.f32 %v7315, 0.0
      %v7541 = vmax.f32 %v7316, 0.0
      %v7542 = vmax.f32 %v7317, 0.0
      %v7543 = vmax.f32 %v7318, 0.0
      %v7544 = vmax.f32 %v7319, 0.0
      %v7545 = vmax.f32 %v7320, 0.0
      %v7546 = vmax.f32 %v7321, 0.0
      %v7547 = vmax.f32 %v7322, 0.0
      %v7548 = vmax.f32 %v7323, 0.0
      %v7549 = vmax.f32 %v7324, 0.0
      %v7550 = vmax.f32 %v7325, 0.0
      %v7551 = vmax.f32 %v7326, 0.0
      %v7552 = vmax.f32 %v7327, 0.0
      %v7553 = vmax.f32 %v7328, 0.0
      %v7554 = vmax.f32 %v7329, 0.0
      %v7555 = vmax.f32 %v7330, 0.0
      %v7556 = vmax.f32 %v7331, 0.0
      %v7557 = vmax.f32 %v7332, 0.0
      %v7558 = vmax.f32 %v7333, 0.0
      %v7559 = vmax.f32 %v7334, 0.0
      %v7560 = vmax.f32 %v7335, 0.0
      %v7561 = vmax.f32 %v7336, 0.0
      %v7562 = vmax.f32 %v7337, 0.0
      %v7563 = vmax.f32 %v7338, 0.0
      %v7564 = vmax.f32 %v7339, 0.0
      %v7565 = vmax.f32 %v7340, 0.0
      %v7566 = vmax.f32 %v7341, 0.0
      %v7567 = vmax.f32 %v7342, 0.0
      %v7568 = vmax.f32 %v7343, 0.0
      %v7569 = vmax.f32 %v7344, 0.0
      %v7570 = vmax.f32 %v7345, 0.0
      %v7571 = vmax.f32 %v7346, 0.0
      %v7572 = vmax.f32 %v7347, 0.0
      %v7573 = vmax.f32 %v7348, 0.0
      %v7574 = vmax.f32 %v7349, 0.0
      %v7575 = vmax.f32 %v7350, 0.0
      %v7576 = vmax.f32 %v7351, 0.0
      %v7577 = vmax.f32 %v7352, 0.0
      %v7578 = vmax.f32 %v7353, 0.0
      %v7579 = vmax.f32 %v7354, 0.0
      %v7580 = vmax.f32 %v7355, 0.0
      %v7581 = vmax.f32 %v7356, 0.0
      %v7582 = vmax.f32 %v7357, 0.0
      %v7583 = vmax.f32 %v7358, 0.0
      %v7584 = vmax.f32 %v7359, 0.0
      %v7585 = vmax.f32 %v7360, 0.0
      %v7586 = vmax.f32 %v7361, 0.0
      %v7587 = vmax.f32 %v7362, 0.0
      %v7588 = vmax.f32 %v7363, 0.0
      %v7589 = vmax.f32 %v7364, 0.0
      %v7590 = vmax.f32 %v7365, 0.0
      %v7591 = vmax.f32 %v7366, 0.0
      %v7592 = vmax.f32 %v7367, 0.0
      %v7593 = vmax.f32 %v7368, 0.0
      %v7594 = vmax.f32 %v7369, 0.0
      %v7595 = vmax.f32 %v7370, 0.0
      %v7596 = vmax.f32 %v7371, 0.0
      %v7597 = vmax.f32 %v7372, 0.0
      %v7598 = vmax.f32 %v7373, 0.0
      %v7599 = vmax.f32 %v7374, 0.0
      %v7600 = vmax.f32 %v7375, 0.0
      %v7601 = vmax.f32 %v7376, 0.0
      %v7602 = vmax.f32 %v7377, 0.0
      %v7603 = vmax.f32 %v7378, 0.0
      %v7604 = vmax.f32 %v7379, 0.0
      %v7605 = vmax.f32 %v7380, 0.0
      %v7606 = vmax.f32 %v7381, 0.0
      %v7607 = vmax.f32 %v7382, 0.0
      %v7608 = vmax.f32 %v7383, 0.0
      %v7609 = vmax.f32 %v7384, 0.0
      %v7610 = vmax.f32 %v7385, 0.0
      %v7611 = vmax.f32 %v7386, 0.0
      %v7612 = vmax.f32 %v7387, 0.0
      %v7613 = vmax.f32 %v7388, 0.0
      %v7614 = vmax.f32 %v7389, 0.0
      %v7615 = vmax.f32 %v7390, 0.0
      %v7616 = vmax.f32 %v7391, 0.0
      %v7617 = vmax.f32 %v7392, 0.0
      %v7618 = vmax.f32 %v7393, 0.0
      %v7619 = vmax.f32 %v7394, 0.0
      %v7620 = vmax.f32 %v7395, 0.0
      %v7621 = vmax.f32 %v7396, 0.0
      %v7622 = vmax.f32 %v7397, 0.0
      %v7623 = vmax.f32 %v7398, 0.0
      %v7624 = vmax.f32 %v7399, 0.0
      %v7625 = vmax.f32 %v7400, 0.0
      %v7626 = vmax.f32 %v7401, 0.0
      %v7627 = vmax.f32 %v7402, 0.0
      %v7628 = vmax.f32 %v7403, 0.0
      %v7629 = vmax.f32 %v7404, 0.0
      %v7630 = vmax.f32 %v7405, 0.0
      %v7631 = vmax.f32 %v7406, 0.0
      %v7632 = vmax.f32 %v7407, 0.0
      %v7633 = vmax.f32 %v7408, 0.0
      %v7634 = vmax.f32 %v7409, 0.0
      %v7635 = vmax.f32 %v7410, 0.0
      %v7636 = vmax.f32 %v7411, 0.0
      %v7637 = vmax.f32 %v7412, 0.0
      %v7638 = vmax.f32 %v7413, 0.0
      %v7639 = vmax.f32 %v7414, 0.0
      %v7640 = vmax.f32 %v7415, 0.0
      %v7641 = vmax.f32 %v7416, 0.0
      %v7642 = vmax.f32 %v7417, 0.0
      %v7643 = vmax.f32 %v7418, 0.0
      %v7644 = vmax.f32 %v7419, 0.0
      %v7645 = vmax.f32 %v7420, 0.0
      %v7646 = vmax.f32 %v7421, 0.0
      %v7647 = vmax.f32 %v7422, 0.0
      %v7648 = vmax.f32 %v7423, 0.0
      %v7649 = vmax.f32 %v7424, 0.0
      %v7650 = vmax.f32 %v7425, 0.0
      %v7651 = vmax.f32 %v7426, 0.0
      %v7652 = vmax.f32 %v7427, 0.0
      %v7653 = vmax.f32 %v7428, 0.0
      %v7654 = vmax.f32 %v7429, 0.0
      %v7655 = vmax.f32 %v7430, 0.0
      %v7656 = vmax.f32 %v7431, 0.0
      %v7657 = vmax.f32 %v7432, 0.0
      %v7658 = vmax.f32 %v7433, 0.0
      %v7659 = vmax.f32 %v7434, 0.0
      %v7660 = vmax.f32 %v7435, 0.0
      %v7661 = vmax.f32 %v7436, 0.0
      %v7662 = vmax.f32 %v7437, 0.0
      %v7663 = vmax.f32 %v7438, 0.0
      %v7664 = vmax.f32 %v7439, 0.0
      %v7665 = vmax.f32 %v7440, 0.0
      %v7666 = vmax.f32 %v7441, 0.0
      %v7667 = vmax.f32 %v7442, 0.0
      %v7668 = vmax.f32 %v7443, 0.0
      %v7669 = vmax.f32 %v7444, 0.0
      %v7670 = vmax.f32 %v7445, 0.0
      %v7671 = vmax.f32 %v7446, 0.0
      %v7672 = vmax.f32 %v7447, 0.0
      %v7673 = vmax.f32 %v7448, 0.0
      %v7674 = vmax.f32 %v7449, 0.0
      %v7675 = vmax.f32 %v7450, 0.0
      %v7676 = vmax.f32 %v7451, 0.0
      %v7677 = vmax.f32 %v7452, 0.0
      %v7678 = vmax.f32 %v7453, 0.0
      %v7679 = vmax.f32 %v7454, 0.0
      %v7680 = vmax.f32 %v7455, 0.0
      %v7681 = vmax.f32 %v7456, 0.0
      %v7682 = vmax.f32 %v7457, 0.0
      %v7683 = vmax.f32 %v7458, 0.0
      %v7684 = vmax.f32 %v7459, 0.0
      %v7685 = vmax.f32 %v7460, 0.0
      %v7686 = vmax.f32 %v7461, 0.0
      %vm7687 = vcmask 48128
      %7688 = vst.msk [vmem:[%s170] sm:$0xff] %vm7687, %v7462
      %7689 = vst.msk [vmem:[%s170 + $0x8] sm:$0xff] %vm7687, %v7463
      %7690 = vst.msk [vmem:[%s170 + $0x10] sm:$0xff] %vm7687, %v7464
      %7691 = vst.msk [vmem:[%s170 + $0x18] sm:$0xff] %vm7687, %v7465
      %7692 = vst.msk [vmem:[%s170 + $0x20] sm:$0xff] %vm7687, %v7466
      %7693 = vst.msk [vmem:[%s170 + $0x28] sm:$0xff] %vm7687, %v7467
      %7694 = vst.msk [vmem:[%s170 + $0x30] sm:$0xff] %vm7687, %v7468
      %7695 = vst.msk [vmem:[%s170 + $0x38] sm:$0xff] %vm7687, %v7469
      %7696 = vst.msk [vmem:[%s170 + $0x40] sm:$0xff] %vm7687, %v7470
      %7697 = vst.msk [vmem:[%s170 + $0x48] sm:$0xff] %vm7687, %v7471
      %7698 = vst.msk [vmem:[%s170 + $0x50] sm:$0xff] %vm7687, %v7472
      %7699 = vst.msk [vmem:[%s170 + $0x58] sm:$0xff] %vm7687, %v7473
      %7700 = vst.msk [vmem:[%s170 + $0x60] sm:$0xff] %vm7687, %v7474
      %7701 = vst.msk [vmem:[%s170 + $0x68] sm:$0xff] %vm7687, %v7475
      %7702 = vst.msk [vmem:[%s170 + $0x70] sm:$0xff] %vm7687, %v7476
      %7703 = vst.msk [vmem:[%s170 + $0x78] sm:$0xff] %vm7687, %v7477
      %7704 = vst.msk [vmem:[%s170 + $0x80] sm:$0xff] %vm7687, %v7478
      %7705 = vst.msk [vmem:[%s170 + $0x88] sm:$0xff] %vm7687, %v7479
      %7706 = vst.msk [vmem:[%s170 + $0x90] sm:$0xff] %vm7687, %v7480
      %7707 = vst.msk [vmem:[%s170 + $0x98] sm:$0xff] %vm7687, %v7481
      %7708 = vst.msk [vmem:[%s170 + $0xa0] sm:$0xff] %vm7687, %v7482
      %7709 = vst.msk [vmem:[%s170 + $0xa8] sm:$0xff] %vm7687, %v7483
      %7710 = vst.msk [vmem:[%s170 + $0xb0] sm:$0xff] %vm7687, %v7484
      %7711 = vst.msk [vmem:[%s170 + $0xb8] sm:$0xff] %vm7687, %v7485
      %7712 = vst.msk [vmem:[%s170 + $0xc0] sm:$0xff] %vm7687, %v7486
      %7713 = vst.msk [vmem:[%s170 + $0xc8] sm:$0xff] %vm7687, %v7487
      %7714 = vst.msk [vmem:[%s170 + $0xd0] sm:$0xff] %vm7687, %v7488
      %7715 = vst.msk [vmem:[%s170 + $0xd8] sm:$0xff] %vm7687, %v7489
      %7716 = vst.msk [vmem:[%s170 + $0xe0] sm:$0xff] %vm7687, %v7490
      %7717 = vst.msk [vmem:[%s170 + $0xe8] sm:$0xff] %vm7687, %v7491
      %7718 = vst.msk [vmem:[%s170 + $0xf0] sm:$0xff] %vm7687, %v7492
      %7719 = vst.msk [vmem:[%s170 + $0xf8] sm:$0xff] %vm7687, %v7493
      %7720 = vst.msk [vmem:[%s170 + $0x100] sm:$0xff] %vm7687, %v7494
      %7721 = vst.msk [vmem:[%s170 + $0x108] sm:$0xff] %vm7687, %v7495
      %7722 = vst.msk [vmem:[%s170 + $0x110] sm:$0xff] %vm7687, %v7496
      %7723 = vst.msk [vmem:[%s170 + $0x118] sm:$0xff] %vm7687, %v7497
      %7724 = vst.msk [vmem:[%s170 + $0x120] sm:$0xff] %vm7687, %v7498
      %7725 = vst.msk [vmem:[%s170 + $0x128] sm:$0xff] %vm7687, %v7499
      %7726 = vst.msk [vmem:[%s170 + $0x130] sm:$0xff] %vm7687, %v7500
      %7727 = vst.msk [vmem:[%s170 + $0x138] sm:$0xff] %vm7687, %v7501
      %7728 = vst.msk [vmem:[%s170 + $0x140] sm:$0xff] %vm7687, %v7502
      %7729 = vst.msk [vmem:[%s170 + $0x148] sm:$0xff] %vm7687, %v7503
      %7730 = vst.msk [vmem:[%s170 + $0x150] sm:$0xff] %vm7687, %v7504
      %7731 = vst.msk [vmem:[%s170 + $0x158] sm:$0xff] %vm7687, %v7505
      %7732 = vst.msk [vmem:[%s170 + $0x160] sm:$0xff] %vm7687, %v7506
      %7733 = vst.msk [vmem:[%s170 + $0x168] sm:$0xff] %vm7687, %v7507
      %7734 = vst.msk [vmem:[%s170 + $0x170] sm:$0xff] %vm7687, %v7508
      %7735 = vst.msk [vmem:[%s170 + $0x178] sm:$0xff] %vm7687, %v7509
      %7736 = vst.msk [vmem:[%s170 + $0x180] sm:$0xff] %vm7687, %v7510
      %7737 = vst.msk [vmem:[%s170 + $0x188] sm:$0xff] %vm7687, %v7511
      %7738 = vst.msk [vmem:[%s170 + $0x190] sm:$0xff] %vm7687, %v7512
      %7739 = vst.msk [vmem:[%s170 + $0x198] sm:$0xff] %vm7687, %v7513
      %7740 = vst.msk [vmem:[%s170 + $0x1a0] sm:$0xff] %vm7687, %v7514
      %7741 = vst.msk [vmem:[%s170 + $0x1a8] sm:$0xff] %vm7687, %v7515
      %7742 = vst.msk [vmem:[%s170 + $0x1b0] sm:$0xff] %vm7687, %v7516
      %7743 = vst.msk [vmem:[%s170 + $0x1b8] sm:$0xff] %vm7687, %v7517
      %7744 = vst.msk [vmem:[%s170 + $0x1c0] sm:$0xff] %vm7687, %v7518
      %7745 = vst.msk [vmem:[%s170 + $0x1c8] sm:$0xff] %vm7687, %v7519
      %7746 = vst.msk [vmem:[%s170 + $0x1d0] sm:$0xff] %vm7687, %v7520
      %7747 = vst.msk [vmem:[%s170 + $0x1d8] sm:$0xff] %vm7687, %v7521
      %7748 = vst.msk [vmem:[%s170 + $0x1e0] sm:$0xff] %vm7687, %v7522
      %7749 = vst.msk [vmem:[%s170 + $0x1e8] sm:$0xff] %vm7687, %v7523
      %7750 = vst.msk [vmem:[%s170 + $0x1f0] sm:$0xff] %vm7687, %v7524
      %7751 = vst.msk [vmem:[%s170 + $0x1f8] sm:$0xff] %vm7687, %v7525
      %7752 = vst.msk [vmem:[%s170 + $0x200] sm:$0xff] %vm7687, %v7526
      %7753 = vst.msk [vmem:[%s170 + $0x208] sm:$0xff] %vm7687, %v7527
      %7754 = vst.msk [vmem:[%s170 + $0x210] sm:$0xff] %vm7687, %v7528
      %7755 = vst.msk [vmem:[%s170 + $0x218] sm:$0xff] %vm7687, %v7529
      %7756 = vst.msk [vmem:[%s170 + $0x220] sm:$0xff] %vm7687, %v7530
      %7757 = vst.msk [vmem:[%s170 + $0x228] sm:$0xff] %vm7687, %v7531
      %7758 = vst.msk [vmem:[%s170 + $0x230] sm:$0xff] %vm7687, %v7532
      %7759 = vst.msk [vmem:[%s170 + $0x238] sm:$0xff] %vm7687, %v7533
      %7760 = vst.msk [vmem:[%s170 + $0x240] sm:$0xff] %vm7687, %v7534
      %7761 = vst.msk [vmem:[%s170 + $0x248] sm:$0xff] %vm7687, %v7535
      %7762 = vst.msk [vmem:[%s170 + $0x250] sm:$0xff] %vm7687, %v7536
      %7763 = vst.msk [vmem:[%s170 + $0x258] sm:$0xff] %vm7687, %v7537
      %7764 = vst.msk [vmem:[%s170 + $0x260] sm:$0xff] %vm7687, %v7538
      %7765 = vst.msk [vmem:[%s170 + $0x268] sm:$0xff] %vm7687, %v7539
      %7766 = vst.msk [vmem:[%s170 + $0x270] sm:$0xff] %vm7687, %v7540
      %7767 = vst.msk [vmem:[%s170 + $0x278] sm:$0xff] %vm7687, %v7541
      %7768 = vst.msk [vmem:[%s170 + $0x280] sm:$0xff] %vm7687, %v7542
      %7769 = vst.msk [vmem:[%s170 + $0x288] sm:$0xff] %vm7687, %v7543
      %7770 = vst.msk [vmem:[%s170 + $0x290] sm:$0xff] %vm7687, %v7544
      %7771 = vst.msk [vmem:[%s170 + $0x298] sm:$0xff] %vm7687, %v7545
      %7772 = vst.msk [vmem:[%s170 + $0x2a0] sm:$0xff] %vm7687, %v7546
      %7773 = vst.msk [vmem:[%s170 + $0x2a8] sm:$0xff] %vm7687, %v7547
      %7774 = vst.msk [vmem:[%s170 + $0x2b0] sm:$0xff] %vm7687, %v7548
      %7775 = vst.msk [vmem:[%s170 + $0x2b8] sm:$0xff] %vm7687, %v7549
      %7776 = vst.msk [vmem:[%s170 + $0x2c0] sm:$0xff] %vm7687, %v7550
      %7777 = vst.msk [vmem:[%s170 + $0x2c8] sm:$0xff] %vm7687, %v7551
      %7778 = vst.msk [vmem:[%s170 + $0x2d0] sm:$0xff] %vm7687, %v7552
      %7779 = vst.msk [vmem:[%s170 + $0x2d8] sm:$0xff] %vm7687, %v7553
      %7780 = vst.msk [vmem:[%s170 + $0x2e0] sm:$0xff] %vm7687, %v7554
      %7781 = vst.msk [vmem:[%s170 + $0x2e8] sm:$0xff] %vm7687, %v7555
      %7782 = vst.msk [vmem:[%s170 + $0x2f0] sm:$0xff] %vm7687, %v7556
      %7783 = vst.msk [vmem:[%s170 + $0x2f8] sm:$0xff] %vm7687, %v7557
      %7784 = vst.msk [vmem:[%s170 + $0x300] sm:$0xff] %vm7687, %v7558
      %7785 = vst.msk [vmem:[%s170 + $0x308] sm:$0xff] %vm7687, %v7559
      %7786 = vst.msk [vmem:[%s170 + $0x310] sm:$0xff] %vm7687, %v7560
      %7787 = vst.msk [vmem:[%s170 + $0x318] sm:$0xff] %vm7687, %v7561
      %7788 = vst.msk [vmem:[%s170 + $0x320] sm:$0xff] %vm7687, %v7562
      %7789 = vst.msk [vmem:[%s170 + $0x328] sm:$0xff] %vm7687, %v7563
      %7790 = vst.msk [vmem:[%s170 + $0x330] sm:$0xff] %vm7687, %v7564
      %7791 = vst.msk [vmem:[%s170 + $0x338] sm:$0xff] %vm7687, %v7565
      %7792 = vst.msk [vmem:[%s170 + $0x340] sm:$0xff] %vm7687, %v7566
      %7793 = vst.msk [vmem:[%s170 + $0x348] sm:$0xff] %vm7687, %v7567
      %7794 = vst.msk [vmem:[%s170 + $0x350] sm:$0xff] %vm7687, %v7568
      %7795 = vst.msk [vmem:[%s170 + $0x358] sm:$0xff] %vm7687, %v7569
      %7796 = vst.msk [vmem:[%s170 + $0x360] sm:$0xff] %vm7687, %v7570
      %7797 = vst.msk [vmem:[%s170 + $0x368] sm:$0xff] %vm7687, %v7571
      %7798 = vst.msk [vmem:[%s170 + $0x370] sm:$0xff] %vm7687, %v7572
      %7799 = vst.msk [vmem:[%s170 + $0x378] sm:$0xff] %vm7687, %v7573
      %7800 = vst.msk [vmem:[%s170 + $0x380] sm:$0xff] %vm7687, %v7574
      %7801 = vst.msk [vmem:[%s170 + $0x388] sm:$0xff] %vm7687, %v7575
      %7802 = vst.msk [vmem:[%s170 + $0x390] sm:$0xff] %vm7687, %v7576
      %7803 = vst.msk [vmem:[%s170 + $0x398] sm:$0xff] %vm7687, %v7577
      %7804 = vst.msk [vmem:[%s170 + $0x3a0] sm:$0xff] %vm7687, %v7578
      %7805 = vst.msk [vmem:[%s170 + $0x3a8] sm:$0xff] %vm7687, %v7579
      %7806 = vst.msk [vmem:[%s170 + $0x3b0] sm:$0xff] %vm7687, %v7580
      %7807 = vst.msk [vmem:[%s170 + $0x3b8] sm:$0xff] %vm7687, %v7581
      %7808 = vst.msk [vmem:[%s170 + $0x3c0] sm:$0xff] %vm7687, %v7582
      %7809 = vst.msk [vmem:[%s170 + $0x3c8] sm:$0xff] %vm7687, %v7583
      %7810 = vst.msk [vmem:[%s170 + $0x3d0] sm:$0xff] %vm7687, %v7584
      %7811 = vst.msk [vmem:[%s170 + $0x3d8] sm:$0xff] %vm7687, %v7585
      %7812 = vst.msk [vmem:[%s170 + $0x3e0] sm:$0xff] %vm7687, %v7586
      %7813 = vst.msk [vmem:[%s170 + $0x3e8] sm:$0xff] %vm7687, %v7587
      %7814 = vst.msk [vmem:[%s170 + $0x3f0] sm:$0xff] %vm7687, %v7588
      %7815 = vst.msk [vmem:[%s170 + $0x3f8] sm:$0xff] %vm7687, %v7589
      %7816 = vst.msk [vmem:[%s170 + $0x400] sm:$0xff] %vm7687, %v7590
      %7817 = vst.msk [vmem:[%s170 + $0x408] sm:$0xff] %vm7687, %v7591
      %7818 = vst.msk [vmem:[%s170 + $0x410] sm:$0xff] %vm7687, %v7592
      %7819 = vst.msk [vmem:[%s170 + $0x418] sm:$0xff] %vm7687, %v7593
      %7820 = vst.msk [vmem:[%s170 + $0x420] sm:$0xff] %vm7687, %v7594
      %7821 = vst.msk [vmem:[%s170 + $0x428] sm:$0xff] %vm7687, %v7595
      %7822 = vst.msk [vmem:[%s170 + $0x430] sm:$0xff] %vm7687, %v7596
      %7823 = vst.msk [vmem:[%s170 + $0x438] sm:$0xff] %vm7687, %v7597
      %7824 = vst.msk [vmem:[%s170 + $0x440] sm:$0xff] %vm7687, %v7598
      %7825 = vst.msk [vmem:[%s170 + $0x448] sm:$0xff] %vm7687, %v7599
      %7826 = vst.msk [vmem:[%s170 + $0x450] sm:$0xff] %vm7687, %v7600
      %7827 = vst.msk [vmem:[%s170 + $0x458] sm:$0xff] %vm7687, %v7601
      %7828 = vst.msk [vmem:[%s170 + $0x460] sm:$0xff] %vm7687, %v7602
      %7829 = vst.msk [vmem:[%s170 + $0x468] sm:$0xff] %vm7687, %v7603
      %7830 = vst.msk [vmem:[%s170 + $0x470] sm:$0xff] %vm7687, %v7604
      %7831 = vst.msk [vmem:[%s170 + $0x478] sm:$0xff] %vm7687, %v7605
      %7832 = vst.msk [vmem:[%s170 + $0x480] sm:$0xff] %vm7687, %v7606
      %7833 = vst.msk [vmem:[%s170 + $0x488] sm:$0xff] %vm7687, %v7607
      %7834 = vst.msk [vmem:[%s170 + $0x490] sm:$0xff] %vm7687, %v7608
      %7835 = vst.msk [vmem:[%s170 + $0x498] sm:$0xff] %vm7687, %v7609
      %7836 = vst.msk [vmem:[%s170 + $0x4a0] sm:$0xff] %vm7687, %v7610
      %7837 = vst.msk [vmem:[%s170 + $0x4a8] sm:$0xff] %vm7687, %v7611
      %7838 = vst.msk [vmem:[%s170 + $0x4b0] sm:$0xff] %vm7687, %v7612
      %7839 = vst.msk [vmem:[%s170 + $0x4b8] sm:$0xff] %vm7687, %v7613
      %7840 = vst.msk [vmem:[%s170 + $0x4c0] sm:$0xff] %vm7687, %v7614
      %7841 = vst.msk [vmem:[%s170 + $0x4c8] sm:$0xff] %vm7687, %v7615
      %7842 = vst.msk [vmem:[%s170 + $0x4d0] sm:$0xff] %vm7687, %v7616
      %7843 = vst.msk [vmem:[%s170 + $0x4d8] sm:$0xff] %vm7687, %v7617
      %7844 = vst.msk [vmem:[%s170 + $0x4e0] sm:$0xff] %vm7687, %v7618
      %7845 = vst.msk [vmem:[%s170 + $0x4e8] sm:$0xff] %vm7687, %v7619
      %7846 = vst.msk [vmem:[%s170 + $0x4f0] sm:$0xff] %vm7687, %v7620
      %7847 = vst.msk [vmem:[%s170 + $0x4f8] sm:$0xff] %vm7687, %v7621
      %7848 = vst.msk [vmem:[%s170 + $0x500] sm:$0xff] %vm7687, %v7622
      %7849 = vst.msk [vmem:[%s170 + $0x508] sm:$0xff] %vm7687, %v7623
      %7850 = vst.msk [vmem:[%s170 + $0x510] sm:$0xff] %vm7687, %v7624
      %7851 = vst.msk [vmem:[%s170 + $0x518] sm:$0xff] %vm7687, %v7625
      %7852 = vst.msk [vmem:[%s170 + $0x520] sm:$0xff] %vm7687, %v7626
      %7853 = vst.msk [vmem:[%s170 + $0x528] sm:$0xff] %vm7687, %v7627
      %7854 = vst.msk [vmem:[%s170 + $0x530] sm:$0xff] %vm7687, %v7628
      %7855 = vst.msk [vmem:[%s170 + $0x538] sm:$0xff] %vm7687, %v7629
      %7856 = vst.msk [vmem:[%s170 + $0x540] sm:$0xff] %vm7687, %v7630
      %7857 = vst.msk [vmem:[%s170 + $0x548] sm:$0xff] %vm7687, %v7631
      %7858 = vst.msk [vmem:[%s170 + $0x550] sm:$0xff] %vm7687, %v7632
      %7859 = vst.msk [vmem:[%s170 + $0x558] sm:$0xff] %vm7687, %v7633
      %7860 = vst.msk [vmem:[%s170 + $0x560] sm:$0xff] %vm7687, %v7634
      %7861 = vst.msk [vmem:[%s170 + $0x568] sm:$0xff] %vm7687, %v7635
      %7862 = vst.msk [vmem:[%s170 + $0x570] sm:$0xff] %vm7687, %v7636
      %7863 = vst.msk [vmem:[%s170 + $0x578] sm:$0xff] %vm7687, %v7637
      %7864 = vst.msk [vmem:[%s170 + $0x580] sm:$0xff] %vm7687, %v7638
      %7865 = vst.msk [vmem:[%s170 + $0x588] sm:$0xff] %vm7687, %v7639
      %7866 = vst.msk [vmem:[%s170 + $0x590] sm:$0xff] %vm7687, %v7640
      %7867 = vst.msk [vmem:[%s170 + $0x598] sm:$0xff] %vm7687, %v7641
      %7868 = vst.msk [vmem:[%s170 + $0x5a0] sm:$0xff] %vm7687, %v7642
      %7869 = vst.msk [vmem:[%s170 + $0x5a8] sm:$0xff] %vm7687, %v7643
      %7870 = vst.msk [vmem:[%s170 + $0x5b0] sm:$0xff] %vm7687, %v7644
      %7871 = vst.msk [vmem:[%s170 + $0x5b8] sm:$0xff] %vm7687, %v7645
      %7872 = vst.msk [vmem:[%s170 + $0x5c0] sm:$0xff] %vm7687, %v7646
      %7873 = vst.msk [vmem:[%s170 + $0x5c8] sm:$0xff] %vm7687, %v7647
      %7874 = vst.msk [vmem:[%s170 + $0x5d0] sm:$0xff] %vm7687, %v7648
      %7875 = vst.msk [vmem:[%s170 + $0x5d8] sm:$0xff] %vm7687, %v7649
      %7876 = vst.msk [vmem:[%s170 + $0x5e0] sm:$0xff] %vm7687, %v7650
      %7877 = vst.msk [vmem:[%s170 + $0x5e8] sm:$0xff] %vm7687, %v7651
      %7878 = vst.msk [vmem:[%s170 + $0x5f0] sm:$0xff] %vm7687, %v7652
      %7879 = vst.msk [vmem:[%s170 + $0x5f8] sm:$0xff] %vm7687, %v7653
      %7880 = vst.msk [vmem:[%s170 + $0x600] sm:$0xff] %vm7687, %v7654
      %7881 = vst.msk [vmem:[%s170 + $0x608] sm:$0xff] %vm7687, %v7655
      %7882 = vst.msk [vmem:[%s170 + $0x610] sm:$0xff] %vm7687, %v7656
      %7883 = vst.msk [vmem:[%s170 + $0x618] sm:$0xff] %vm7687, %v7657
      %7884 = vst.msk [vmem:[%s170 + $0x620] sm:$0xff] %vm7687, %v7658
      %7885 = vst.msk [vmem:[%s170 + $0x628] sm:$0xff] %vm7687, %v7659
      %7886 = vst.msk [vmem:[%s170 + $0x630] sm:$0xff] %vm7687, %v7660
      %7887 = vst.msk [vmem:[%s170 + $0x638] sm:$0xff] %vm7687, %v7661
      %7888 = vst.msk [vmem:[%s170 + $0x640] sm:$0xff] %vm7687, %v7662
      %7889 = vst.msk [vmem:[%s170 + $0x648] sm:$0xff] %vm7687, %v7663
      %7890 = vst.msk [vmem:[%s170 + $0x650] sm:$0xff] %vm7687, %v7664
      %7891 = vst.msk [vmem:[%s170 + $0x658] sm:$0xff] %vm7687, %v7665
      %7892 = vst.msk [vmem:[%s170 + $0x660] sm:$0xff] %vm7687, %v7666
      %7893 = vst.msk [vmem:[%s170 + $0x668] sm:$0xff] %vm7687, %v7667
      %7894 = vst.msk [vmem:[%s170 + $0x670] sm:$0xff] %vm7687, %v7668
      %7895 = vst.msk [vmem:[%s170 + $0x678] sm:$0xff] %vm7687, %v7669
      %7896 = vst.msk [vmem:[%s170 + $0x680] sm:$0xff] %vm7687, %v7670
      %7897 = vst.msk [vmem:[%s170 + $0x688] sm:$0xff] %vm7687, %v7671
      %7898 = vst.msk [vmem:[%s170 + $0x690] sm:$0xff] %vm7687, %v7672
      %7899 = vst.msk [vmem:[%s170 + $0x698] sm:$0xff] %vm7687, %v7673
      %7900 = vst.msk [vmem:[%s170 + $0x6a0] sm:$0xff] %vm7687, %v7674
      %7901 = vst.msk [vmem:[%s170 + $0x6a8] sm:$0xff] %vm7687, %v7675
      %7902 = vst.msk [vmem:[%s170 + $0x6b0] sm:$0xff] %vm7687, %v7676
      %7903 = vst.msk [vmem:[%s170 + $0x6b8] sm:$0xff] %vm7687, %v7677
      %7904 = vst.msk [vmem:[%s170 + $0x6c0] sm:$0xff] %vm7687, %v7678
      %7905 = vst.msk [vmem:[%s170 + $0x6c8] sm:$0xff] %vm7687, %v7679
      %7906 = vst.msk [vmem:[%s170 + $0x6d0] sm:$0xff] %vm7687, %v7680
      %7907 = vst.msk [vmem:[%s170 + $0x6d8] sm:$0xff] %vm7687, %v7681
      %7908 = vst.msk [vmem:[%s170 + $0x6e0] sm:$0xff] %vm7687, %v7682
      %7909 = vst.msk [vmem:[%s170 + $0x6e8] sm:$0xff] %vm7687, %v7683
      %7910 = vst.msk [vmem:[%s170 + $0x6f0] sm:$0xff] %vm7687, %v7684
      %7911 = vst.msk [vmem:[%s170 + $0x6f8] sm:$0xff] %vm7687, %v7685
      %7912 = vst.msk [vmem:[%s170 + $0x700] sm:$0xff] %vm7687, %v7686
      %s7913 = smul.u32 225, %s14
      %p7914 = scmp.lt.s32.totalorder %s7913, 449
      %s7915 = scalar_select %p7914, %s7913, 449
      %s7916 = smul.addr %s7915, 8
      %s7917 = scalar_lea.vmem %s3, %s7916
      // Predicated region
      $region33: #{cifar_convo_forward.2} parent=31 // pred_check
        %p7918 = pneg %p100
      $region34: #{cifar_convo_forward.2} parent=31 // pred_check_branch
        %7920 = sbr.rel (%p7918) target = $region36
      $region35: #{cifar_convo_forward.2} parent=31 // pred_region
        %s7921 = smul.u32 225, %s14
      $region36: #{cifar_convo_forward.2} parent=31 // pred_fallthru
        _
    $region32: #{cifar_convo_forward.2} parent=5 // pred_fallthru
      _
    %p7922 = scmp.le.s32.totalorder 2, %s9
    // Predicated region
    $region37: #{cifar_convo_forward.2} parent=5 // pred_check
      %p7923 = pneg %p7922
    $region38: #{cifar_convo_forward.2} parent=5 // pred_check_branch
      %7925 = sbr.rel (%p7923) target = $region40
    $region39: #{cifar_convo_forward.2} parent=5 // pred_region
      %s7926 = ssub.s32 %s9, 2
      // Predicated region
      $region41: #{cifar_convo_forward.2} parent=39 // pred_check
        %p7927 = pneg %p106
      $region42: #{cifar_convo_forward.2} parent=39 // pred_check_branch
        %7929 = sbr.rel (%p7927) target = $region44
      $region43: #{cifar_convo_forward.2} parent=39 // pred_region
        %s7930 = smul.u32 225, %s15
        %p7931 = scmp.lt.s32.totalorder %s7930, 449
        %s7932 = scalar_select %p7931, %s7930, 449
        %s7933 = smul.addr %s7932, 8
        %s7934 = scalar_lea.vmem %s3, %s7933
      $region44: #{cifar_convo_forward.2} parent=39 // pred_fallthru
        _
    $region40: #{cifar_convo_forward.2} parent=5 // pred_fallthru
      _
  $region6: #{cifar_convo_forward.2} parent=0 // loop_footer
    %s13 = sadd.s32 1, %s9
  $region7: #{cifar_convo_forward.2} parent=0 // loop_footer_branch
    %8 = sbr.rel target = $region3
  $region8: #{cifar_convo_forward.2} parent=0 // loop_exit
    _

// kernel: cifar_convo_forward.3
$region0: #{cifar_convo_forward.3}
  #allocation0 [shape = 'u32[]', space=smem, size = 0x4, offset = 0x4, fixed_abs, tag = 'smem constant byte address 0x4 - core index']
  #allocation1 [shape = 'u32[72,128]{1,0:T(1,128)}', space=vmem, size = 0x9000, scoped, tag = 'internal scratch']
  #allocation2 [shape = 'f32[288,16]{1,0:T(8,128)}', space=vmem, size = 0x24000, scoped, tag = 'scratch operand']
  %s0 = inlined_call_operand.vmem [shape: f32[2,4,288,150], index: 0, kind: input, shape index: {}]
  %s1 = inlined_call_operand.vmem [shape: f32[150,16], index: 1, kind: input, shape index: {}]
  %s2 = inlined_call_operand.vmem [shape: f32[1,16], index: 2, kind: input, shape index: {}]
  %s3 = inlined_call_operand.vmem [shape: f32[36,16,128], index: 3, kind: input, shape index: {}]
  %s4 = inlined_call_operand.vmem [shape: f32[1,128], index: 4, kind: input, shape index: {}]
  %s5 = inlined_call_operand.vmem [shape: f32[128,64], index: 5, kind: input, shape index: {}]
  %s6 = inlined_call_operand.vmem [shape: f32[1,64], index: 6, kind: input, shape index: {}]
  %s7 = inlined_call_operand.vmem [shape: f32[64,10], index: 7, kind: input, shape index: {}]
  %s8 = inlined_call_operand.vmem [shape: f32[1,10], index: 8, kind: input, shape index: {}]
  %s9 = inlined_call_operand.hbm [shape: f32[16,10], index: 9, kind: output, shape index: {}]
  %s10 = sld [smem:[#allocation0]]
  $region69: #{cifar_convo_forward.3} parent=0
    _
  %s12 = ssub.s32 1, %s10
  %s13 = scalar_select 0, %s12, %s10
  $region1: #{cifar_convo_forward.3} parent=0
    #allocation3 [shape = 'u8[8192]{0}', space=vmem, size = 0x2000, scoped, tag = 'output window, operand 0']
    #allocation4 [shape = 's32[2]{0}', space=sflag, size = 0x8, scoped, tag = 'scoped memory for cifar_convo_forward.3']
    %14 = vsyncpa [#allocation4], 0
    %s15 = scalar_lea.sflag [#allocation4], 1
    %16 = vsyncpa %s15, 0
    loop: start=0, step=1, limit=4
    $region2: #{cifar_convo_forward.3} parent=1 // loop_pre_header
      _
    $region3: #{cifar_convo_forward.3} parent=1 // loop_header
      %s18 = sphi 0, %s22
      %p19 = scmp.ge.s32.totalorder %s18, 4
      %s28 = sphi 0, %s30
      %s31 = sphi 0, %s28
      %s32 = sphi 0, %s31
      %s48 = sphi 0, %s32
      %s52 = sphi 0, %s52
      %s54 = sphi 0, %s52
      %s55 = sphi 0, %s54
      %s69 = sphi 0, %s55
      %s73 = sphi 0, %s73
      %s75 = sphi 0, %s73
      %s76 = sphi 0, %s75
      %s90 = sphi 0, %s76
      %s94 = sphi 0, %s94
      %s96 = sphi 0, %s94
      %s97 = sphi 0, %s96
      %s111 = sphi 0, %s97
      %s115 = sphi 0, %s115
      %s117 = sphi 0, %s115
      %s118 = sphi 0, %s117
      %s132 = sphi 0, %s118
      %s136 = sphi 0, %s136
      %s138 = sphi 0, %s136
      %s139 = sphi 0, %s138
      %s153 = sphi 0, %s139
      %s157 = sphi 0, %s157
      %s159 = sphi 0, %s157
      %s160 = sphi 0, %s159
      %s174 = sphi 0, %s160
      %s178 = sphi 0, %s178
      %s180 = sphi 0, %s178
      %s181 = sphi 0, %s180
      %s195 = sphi 0, %s181
      %s199 = sphi 0, %s199
      %s201 = sphi 0, %s199
      %s202 = sphi 0, %s201
      %s216 = sphi 0, %s202
      %s222 = sphi 0, %s224
      %s225 = sphi 0, %s222
      %s226 = sphi 0, %s225
      %s242 = sphi 0, %s226
    $region4: #{cifar_convo_forward.3} parent=1 // loop_header_branch
      %21 = sbr.rel (%p19) target = $region8
    $region5: #{cifar_convo_forward.3} parent=1 // loop_body
      %s23 = ssub.s32 %s18, 1
      %s24 = ssub.s32 %s18, 2
      %s25 = sadd.s32 %s18, 1
      %s26 = ssub.s32 %s18, %s25
      %p27 = scmp.eq.s32.totalorder %s26, 0
      %s29 = sadd.s32 %s28, 1
      %s30 = scalar_select %p27, %s28, %s29
      %p33 = pneg %p27
      %p34 = scmp.eq.s32.totalorder %s18, 1
      %p35 = por %p33, %p34
      %p36 = scmp.ne.s32.totalorder %s28, %s31
      %p37 = scmp.eq.s32.totalorder %s18, 0
      %p38 = por %p36, %p37
      %p39 = scmp.ne.s32.totalorder %s28, %s31
      %p40 = scmp.eq.s32.totalorder %s23, 1
      %p41 = por %p39, %p40
      %p42 = scmp.ne.s32.totalorder %s31, %s32
      %p43 = scmp.eq.s32.totalorder %s23, 0
      %p44 = por %p42, %p43
      %p45 = scmp.ne.s32.totalorder %s31, %s32
      %p46 = scmp.eq.s32.totalorder %s24, 1
      %p47 = por %p45, %p46
      %p49 = scmp.ne.s32.totalorder %s32, %s48
      %p50 = scmp.eq.s32.totalorder %s24, 0
      %p51 = por %p49, %p50
      %s53 = sadd.s32 %s52, 1
      %p56 = scmp.eq.s32.totalorder %s18, 1
      %p57 = scmp.ne.s32.totalorder %s52, %s54
      %p58 = scmp.eq.s32.totalorder %s18, 0
      %p59 = por %p57, %p58
      %p60 = scmp.ne.s32.totalorder %s52, %s54
      %p61 = scmp.eq.s32.totalorder %s23, 1
      %p62 = por %p60, %p61
      %p63 = scmp.ne.s32.totalorder %s54, %s55
      %p64 = scmp.eq.s32.totalorder %s23, 0
      %p65 = por %p63, %p64
      %p66 = scmp.ne.s32.totalorder %s54, %s55
      %p67 = scmp.eq.s32.totalorder %s24, 1
      %p68 = por %p66, %p67
      %p70 = scmp.ne.s32.totalorder %s55, %s69
      %p71 = scmp.eq.s32.totalorder %s24, 0
      %p72 = por %p70, %p71
      %s74 = sadd.s32 %s73, 1
      %p77 = scmp.eq.s32.totalorder %s18, 1
      %p78 = scmp.ne.s32.totalorder %s73, %s75
      %p79 = scmp.eq.s32.totalorder %s18, 0
      %p80 = por %p78, %p79
      %p81 = scmp.ne.s32.totalorder %s73, %s75
      %p82 = scmp.eq.s32.totalorder %s23, 1
      %p83 = por %p81, %p82
      %p84 = scmp.ne.s32.totalorder %s75, %s76
      %p85 = scmp.eq.s32.totalorder %s23, 0
      %p86 = por %p84, %p85
      %p87 = scmp.ne.s32.totalorder %s75, %s76
      %p88 = scmp.eq.s32.totalorder %s24, 1
      %p89 = por %p87, %p88
      %p91 = scmp.ne.s32.totalorder %s76, %s90
      %p92 = scmp.eq.s32.totalorder %s24, 0
      %p93 = por %p91, %p92
      %s95 = sadd.s32 %s94, 1
      %p98 = scmp.eq.s32.totalorder %s18, 1
      %p99 = scmp.ne.s32.totalorder %s94, %s96
      %p100 = scmp.eq.s32.totalorder %s18, 0
      %p101 = por %p99, %p100
      %p102 = scmp.ne.s32.totalorder %s94, %s96
      %p103 = scmp.eq.s32.totalorder %s23, 1
      %p104 = por %p102, %p103
      %p105 = scmp.ne.s32.totalorder %s96, %s97
      %p106 = scmp.eq.s32.totalorder %s23, 0
      %p107 = por %p105, %p106
      %p108 = scmp.ne.s32.totalorder %s96, %s97
      %p109 = scmp.eq.s32.totalorder %s24, 1
      %p110 = por %p108, %p109
      %p112 = scmp.ne.s32.totalorder %s97, %s111
      %p113 = scmp.eq.s32.totalorder %s24, 0
      %p114 = por %p112, %p113
      %s116 = sadd.s32 %s115, 1
      %p119 = scmp.eq.s32.totalorder %s18, 1
      %p120 = scmp.ne.s32.totalorder %s115, %s117
      %p121 = scmp.eq.s32.totalorder %s18, 0
      %p122 = por %p120, %p121
      %p123 = scmp.ne.s32.totalorder %s115, %s117
      %p124 = scmp.eq.s32.totalorder %s23, 1
      %p125 = por %p123, %p124
      %p126 = scmp.ne.s32.totalorder %s117, %s118
      %p127 = scmp.eq.s32.totalorder %s23, 0
      %p128 = por %p126, %p127
      %p129 = scmp.ne.s32.totalorder %s117, %s118
      %p130 = scmp.eq.s32.totalorder %s24, 1
      %p131 = por %p129, %p130
      %p133 = scmp.ne.s32.totalorder %s118, %s132
      %p134 = scmp.eq.s32.totalorder %s24, 0
      %p135 = por %p133, %p134
      %s137 = sadd.s32 %s136, 1
      %p140 = scmp.eq.s32.totalorder %s18, 1
      %p141 = scmp.ne.s32.totalorder %s136, %s138
      %p142 = scmp.eq.s32.totalorder %s18, 0
      %p143 = por %p141, %p142
      %p144 = scmp.ne.s32.totalorder %s136, %s138
      %p145 = scmp.eq.s32.totalorder %s23, 1
      %p146 = por %p144, %p145
      %p147 = scmp.ne.s32.totalorder %s138, %s139
      %p148 = scmp.eq.s32.totalorder %s23, 0
      %p149 = por %p147, %p148
      %p150 = scmp.ne.s32.totalorder %s138, %s139
      %p151 = scmp.eq.s32.totalorder %s24, 1
      %p152 = por %p150, %p151
      %p154 = scmp.ne.s32.totalorder %s139, %s153
      %p155 = scmp.eq.s32.totalorder %s24, 0
      %p156 = por %p154, %p155
      %s158 = sadd.s32 %s157, 1
      %p161 = scmp.eq.s32.totalorder %s18, 1
      %p162 = scmp.ne.s32.totalorder %s157, %s159
      %p163 = scmp.eq.s32.totalorder %s18, 0
      %p164 = por %p162, %p163
      %p165 = scmp.ne.s32.totalorder %s157, %s159
      %p166 = scmp.eq.s32.totalorder %s23, 1
      %p167 = por %p165, %p166
      %p168 = scmp.ne.s32.totalorder %s159, %s160
      %p169 = scmp.eq.s32.totalorder %s23, 0
      %p170 = por %p168, %p169
      %p171 = scmp.ne.s32.totalorder %s159, %s160
      %p172 = scmp.eq.s32.totalorder %s24, 1
      %p173 = por %p171, %p172
      %p175 = scmp.ne.s32.totalorder %s160, %s174
      %p176 = scmp.eq.s32.totalorder %s24, 0
      %p177 = por %p175, %p176
      %s179 = sadd.s32 %s178, 1
      %p182 = scmp.eq.s32.totalorder %s18, 1
      %p183 = scmp.ne.s32.totalorder %s178, %s180
      %p184 = scmp.eq.s32.totalorder %s18, 0
      %p185 = por %p183, %p184
      %p186 = scmp.ne.s32.totalorder %s178, %s180
      %p187 = scmp.eq.s32.totalorder %s23, 1
      %p188 = por %p186, %p187
      %p189 = scmp.ne.s32.totalorder %s180, %s181
      %p190 = scmp.eq.s32.totalorder %s23, 0
      %p191 = por %p189, %p190
      %p192 = scmp.ne.s32.totalorder %s180, %s181
      %p193 = scmp.eq.s32.totalorder %s24, 1
      %p194 = por %p192, %p193
      %p196 = scmp.ne.s32.totalorder %s181, %s195
      %p197 = scmp.eq.s32.totalorder %s24, 0
      %p198 = por %p196, %p197
      %s200 = sadd.s32 %s199, 1
      %p203 = scmp.eq.s32.totalorder %s18, 1
      %p204 = scmp.ne.s32.totalorder %s199, %s201
      %p205 = scmp.eq.s32.totalorder %s18, 0
      %p206 = por %p204, %p205
      %p207 = scmp.ne.s32.totalorder %s199, %s201
      %p208 = scmp.eq.s32.totalorder %s23, 1
      %p209 = por %p207, %p208
      %p210 = scmp.ne.s32.totalorder %s201, %s202
      %p211 = scmp.eq.s32.totalorder %s23, 0
      %p212 = por %p210, %p211
      %p213 = scmp.ne.s32.totalorder %s201, %s202
      %p214 = scmp.eq.s32.totalorder %s24, 1
      %p215 = por %p213, %p214
      %p217 = scmp.ne.s32.totalorder %s202, %s216
      %p218 = scmp.eq.s32.totalorder %s24, 0
      %p219 = por %p217, %p218
      %s220 = ssub.s32 %s18, %s25
      %p221 = scmp.eq.s32.totalorder %s220, 0
      %s223 = sadd.s32 %s222, 1
      %s224 = scalar_select %p221, %s222, %s223
      %p227 = pneg %p221
      %p228 = scmp.eq.s32.totalorder %s18, 1
      %p229 = por %p227, %p228
      %p230 = scmp.ne.s32.totalorder %s222, %s225
      %p231 = scmp.eq.s32.totalorder %s18, 0
      %p232 = por %p230, %p231
      %p233 = scmp.ne.s32.totalorder %s222, %s225
      %p234 = scmp.eq.s32.totalorder %s23, 1
      %p235 = por %p233, %p234
      %p236 = scmp.ne.s32.totalorder %s225, %s226
      %p237 = scmp.eq.s32.totalorder %s23, 0
      %p238 = por %p236, %p237
      %p239 = scmp.ne.s32.totalorder %s225, %s226
      %p240 = scmp.eq.s32.totalorder %s24, 1
      %p241 = por %p239, %p240
      %p243 = scmp.ne.s32.totalorder %s226, %s242
      %p244 = scmp.eq.s32.totalorder %s24, 0
      %p245 = por %p243, %p244
      %p246 = scmp.le.s32.totalorder 1, %s18
      %p247 = scmp.lt.s32.totalorder %s18, 3
      %p248 = pnand %p246, %p247
      %p249 = pneg %p248
      // Predicated region
      $region9: #{cifar_convo_forward.3} parent=5 // pred_check
        _
      $region10: #{cifar_convo_forward.3} parent=5 // pred_check_branch
        %251 = sbr.rel (%p248) target = $region12
      $region11: #{cifar_convo_forward.3} parent=5 // pred_region
        %s252 = ssub.s32 %s18, 1
        // Predicated region
        $region13: #{cifar_convo_forward.3} parent=11 // pred_check
          %p253 = pneg %p65
        $region14: #{cifar_convo_forward.3} parent=11 // pred_check_branch
          %255 = sbr.rel (%p253) target = $region16
        $region15: #{cifar_convo_forward.3} parent=11 // pred_region
          _
        $region16: #{cifar_convo_forward.3} parent=11 // pred_fallthru
          _
        // Predicated region
        $region17: #{cifar_convo_forward.3} parent=11 // pred_check
          %p256 = pneg %p86
        $region18: #{cifar_convo_forward.3} parent=11 // pred_check_branch
          %258 = sbr.rel (%p256) target = $region20
        $region19: #{cifar_convo_forward.3} parent=11 // pred_region
          _
        $region20: #{cifar_convo_forward.3} parent=11 // pred_fallthru
          _
        // Predicated region
        $region21: #{cifar_convo_forward.3} parent=11 // pred_check
          %p259 = pneg %p107
        $region22: #{cifar_convo_forward.3} parent=11 // pred_check_branch
          %261 = sbr.rel (%p259) target = $region24
        $region23: #{cifar_convo_forward.3} parent=11 // pred_region
          _
        $region24: #{cifar_convo_forward.3} parent=11 // pred_fallthru
          _
        // Predicated region
        $region25: #{cifar_convo_forward.3} parent=11 // pred_check
          %p262 = pneg %p128
        $region26: #{cifar_convo_forward.3} parent=11 // pred_check_branch
          %264 = sbr.rel (%p262) target = $region28
        $region27: #{cifar_convo_forward.3} parent=11 // pred_region
          _
        $region28: #{cifar_convo_forward.3} parent=11 // pred_fallthru
          _
        // Predicated region
        $region29: #{cifar_convo_forward.3} parent=11 // pred_check
          %p265 = pneg %p149
        $region30: #{cifar_convo_forward.3} parent=11 // pred_check_branch
          %267 = sbr.rel (%p265) target = $region32
        $region31: #{cifar_convo_forward.3} parent=11 // pred_region
          _
        $region32: #{cifar_convo_forward.3} parent=11 // pred_fallthru
          _
        // Predicated region
        $region33: #{cifar_convo_forward.3} parent=11 // pred_check
          %p268 = pneg %p170
        $region34: #{cifar_convo_forward.3} parent=11 // pred_check_branch
          %270 = sbr.rel (%p268) target = $region36
        $region35: #{cifar_convo_forward.3} parent=11 // pred_region
          _
        $region36: #{cifar_convo_forward.3} parent=11 // pred_fallthru
          _
        // Predicated region
        $region37: #{cifar_convo_forward.3} parent=11 // pred_check
          %p271 = pneg %p191
        $region38: #{cifar_convo_forward.3} parent=11 // pred_check_branch
          %273 = sbr.rel (%p271) target = $region40
        $region39: #{cifar_convo_forward.3} parent=11 // pred_region
          _
        $region40: #{cifar_convo_forward.3} parent=11 // pred_fallthru
          _
        // Predicated region
        $region41: #{cifar_convo_forward.3} parent=11 // pred_check
          %p274 = pneg %p212
        $region42: #{cifar_convo_forward.3} parent=11 // pred_check_branch
          %276 = sbr.rel (%p274) target = $region44
        $region43: #{cifar_convo_forward.3} parent=11 // pred_region
          _
        $region44: #{cifar_convo_forward.3} parent=11 // pred_fallthru
          _
      $region12: #{cifar_convo_forward.3} parent=5 // pred_fallthru
        _
      %p277 = scmp.lt.s32.totalorder %s18, 2
      // Predicated region
      $region45: #{cifar_convo_forward.3} parent=5 // pred_check
        %p278 = pneg %p277
      $region46: #{cifar_convo_forward.3} parent=5 // pred_check_branch
        %280 = sbr.rel (%p278) target = $region48
      $region47: #{cifar_convo_forward.3} parent=5 // pred_region
        // Predicated region
        $region49: #{cifar_convo_forward.3} parent=47 // pred_check
          %p281 = pneg %p38
        $region50: #{cifar_convo_forward.3} parent=47 // pred_check_branch
          %283 = sbr.rel (%p281) target = $region52
        $region51: #{cifar_convo_forward.3} parent=47 // pred_region
          %p284 = scmp.lt.s32.totalorder %s18, 1
          %s285 = scalar_select %p284, %s18, 1
          %s286 = smul.addr %s285, 288
          %s287 = smul.addr %s286, 8
          %s288 = scalar_lea.vmem %s0, %s287
        $region52: #{cifar_convo_forward.3} parent=47 // pred_fallthru
          _
      $region48: #{cifar_convo_forward.3} parent=5 // pred_fallthru
        _
      %p289 = scmp.le.s32.totalorder 1, %s18
      %p290 = scmp.lt.s32.totalorder %s18, 3
      %p291 = pnand %p289, %p290
      %p292 = pneg %p291
      // Predicated region
      $region53: #{cifar_convo_forward.3} parent=5 // pred_check
        _
      $region54: #{cifar_convo_forward.3} parent=5 // pred_check_branch
        %294 = sbr.rel (%p291) target = $region56
      $region55: #{cifar_convo_forward.3} parent=5 // pred_region
        %s295 = ssub.s32 %s18, 1
        %p296 = scmp.lt.s32.totalorder %s23, 1
        %s297 = scalar_select %p296, %s23, 1
        %s298 = smul.addr %s297, 288
        %s299 = smul.addr %s298, 8
        %s300 = scalar_lea.vmem %s0, %s299
        %p301 = pneg %p44
        %p302 = pneg %p41
        %p303 = pneg %p65
        %p304 = pneg %p62
        %p305 = pneg %p86
        %p306 = pneg %p83
        %p307 = pneg %p107
        %p308 = pneg %p104
        %p309 = pneg %p128
        %p310 = pneg %p125
        %p311 = pneg %p149
        %p312 = pneg %p146
        %p313 = pneg %p170
        %p314 = pneg %p167
        %p315 = pneg %p191
        %p316 = pneg %p188
        %p317 = pneg %p212
        %p318 = pneg %p209
        %p319 = pneg %p238
        %p320 = pneg %p235
        %s321 = sand.u32 %s225, 1
        %s322 = scalar_lea.sflag [#allocation4], %s321
        %s323 = sand.u32 %s225, 1
        %s324 = smul.addr %s323, 8
        %s325 = scalar_lea.vmem [#allocation3], %s324
        %p326 = scmp.lt.s32.totalorder %s23, 1
        %s327 = scalar_select %p326, %s23, 1
        %s328 = smul.addr %s327, 288
        %s329 = smul.addr %s328, 8
        %s330 = scalar_lea.vmem %s0, %s329
        %v331 = vld [vmem:[%s1] sm:$0xff]
        %v332 = vld [vmem:[%s1 + $0x8] sm:$0xff]
        %v333 = vld [vmem:[%s1 + $0x10] sm:$0xff]
        %v334 = vld [vmem:[%s1 + $0x18] sm:$0xff]
        %v335 = vld [vmem:[%s1 + $0x20] sm:$0xff]
        %v336 = vld [vmem:[%s1 + $0x28] sm:$0xff]
        %v337 = vld [vmem:[%s1 + $0x30] sm:$0xff]
        %v338 = vld [vmem:[%s1 + $0x38] sm:$0xff]
        %v339 = vld [vmem:[%s1 + $0x40] sm:$0xff]
        %v340 = vld [vmem:[%s1 + $0x48] sm:$0xff]
        %v341 = vld [vmem:[%s1 + $0x50] sm:$0xff]
        %v342 = vld [vmem:[%s1 + $0x58] sm:$0xff]
        %v343 = vld [vmem:[%s1 + $0x60] sm:$0xff]
        %v344 = vld [vmem:[%s1 + $0x68] sm:$0xff]
        %v345 = vld [vmem:[%s1 + $0x70] sm:$0xff]
        %v346 = vld [vmem:[%s1 + $0x78] sm:$0xff]
        %v347 = vld [vmem:[%s1 + $0x80] sm:$0xff]
        %v348 = vld [vmem:[%s1 + $0x88] sm:$0xff]
        %v349 = vld [vmem:[%s1 + $0x90] sm:$0x3f]
        %v350 = vld [vmem:[%s330] sm:$0xff]
        %v351 = vld [vmem:[%s330 + $0x8] sm:$0xff]
        %v352 = vld [vmem:[%s330 + $0x10] sm:$0xff]
        %v353 = vld [vmem:[%s330 + $0x18] sm:$0xff]
        %v354 = vld [vmem:[%s330 + $0x20] sm:$0xff]
        %v355 = vld [vmem:[%s330 + $0x28] sm:$0xff]
        %v356 = vld [vmem:[%s330 + $0x30] sm:$0xff]
        %v357 = vld [vmem:[%s330 + $0x38] sm:$0xff]
        %v358 = vld [vmem:[%s330 + $0x40] sm:$0xff]
        %v359 = vld [vmem:[%s330 + $0x48] sm:$0xff]
        %v360 = vld [vmem:[%s330 + $0x50] sm:$0xff]
        %v361 = vld [vmem:[%s330 + $0x58] sm:$0xff]
        %v362 = vld [vmem:[%s330 + $0x60] sm:$0xff]
        %v363 = vld [vmem:[%s330 + $0x68] sm:$0xff]
        %v364 = vld [vmem:[%s330 + $0x70] sm:$0xff]
        %v365 = vld [vmem:[%s330 + $0x78] sm:$0xff]
        %v366 = vld [vmem:[%s330 + $0x80] sm:$0xff]
        %v367 = vld [vmem:[%s330 + $0x88] sm:$0xff]
        %v368 = vld [vmem:[%s330 + $0x90] sm:$0xff]
        %v369 = vld [vmem:[%s330 + $0x98] sm:$0xff]
        %v370 = vld [vmem:[%s330 + $0xa0] sm:$0xff]
        %v371 = vld [vmem:[%s330 + $0xa8] sm:$0xff]
        %v372 = vld [vmem:[%s330 + $0xb0] sm:$0xff]
        %v373 = vld [vmem:[%s330 + $0xb8] sm:$0xff]
        %v374 = vld [vmem:[%s330 + $0xc0] sm:$0xff]
        %v375 = vld [vmem:[%s330 + $0xc8] sm:$0xff]
        %v376 = vld [vmem:[%s330 + $0xd0] sm:$0xff]
        %v377 = vld [vmem:[%s330 + $0xd8] sm:$0xff]
        %v378 = vld [vmem:[%s330 + $0xe0] sm:$0xff]
        %v379 = vld [vmem:[%s330 + $0xe8] sm:$0xff]
        %v380 = vld [vmem:[%s330 + $0xf0] sm:$0xff]
        %v381 = vld [vmem:[%s330 + $0xf8] sm:$0xff]
        %v382 = vld [vmem:[%s330 + $0x100] sm:$0xff]
        %v383 = vld [vmem:[%s330 + $0x108] sm:$0xff]
        %v384 = vld [vmem:[%s330 + $0x110] sm:$0xff]
        %v385 = vld [vmem:[%s330 + $0x118] sm:$0xff]
        %v386 = vld [vmem:[%s330 + $0x120] sm:$0xff]
        %v387 = vld [vmem:[%s330 + $0x128] sm:$0xff]
        %v388 = vld [vmem:[%s330 + $0x130] sm:$0xff]
        %v389 = vld [vmem:[%s330 + $0x138] sm:$0xff]
        %v390 = vld [vmem:[%s330 + $0x140] sm:$0xff]
        %v391 = vld [vmem:[%s330 + $0x148] sm:$0xff]
        %v392 = vld [vmem:[%s330 + $0x150] sm:$0xff]
        %v393 = vld [vmem:[%s330 + $0x158] sm:$0xff]
        %v394 = vld [vmem:[%s330 + $0x160] sm:$0xff]
        %v395 = vld [vmem:[%s330 + $0x168] sm:$0xff]
        %v396 = vld [vmem:[%s330 + $0x170] sm:$0xff]
        %v397 = vld [vmem:[%s330 + $0x178] sm:$0xff]
        %v398 = vld [vmem:[%s330 + $0x180] sm:$0xff]
        %v399 = vld [vmem:[%s330 + $0x188] sm:$0xff]
        %v400 = vld [vmem:[%s330 + $0x190] sm:$0xff]
        %v401 = vld [vmem:[%s330 + $0x198] sm:$0xff]
        %v402 = vld [vmem:[%s330 + $0x1a0] sm:$0xff]
        %v403 = vld [vmem:[%s330 + $0x1a8] sm:$0xff]
        %v404 = vld [vmem:[%s330 + $0x1b0] sm:$0xff]
        %v405 = vld [vmem:[%s330 + $0x1b8] sm:$0xff]
        %v406 = vld [vmem:[%s330 + $0x1c0] sm:$0xff]
        %v407 = vld [vmem:[%s330 + $0x1c8] sm:$0xff]
        %v408 = vld [vmem:[%s330 + $0x1d0] sm:$0xff]
        %v409 = vld [vmem:[%s330 + $0x1d8] sm:$0xff]
        %v410 = vld [vmem:[%s330 + $0x1e0] sm:$0xff]
        %v411 = vld [vmem:[%s330 + $0x1e8] sm:$0xff]
        %v412 = vld [vmem:[%s330 + $0x1f0] sm:$0xff]
        %v413 = vld [vmem:[%s330 + $0x1f8] sm:$0xff]
        %v414 = vld [vmem:[%s330 + $0x200] sm:$0xff]
        %v415 = vld [vmem:[%s330 + $0x208] sm:$0xff]
        %v416 = vld [vmem:[%s330 + $0x210] sm:$0xff]
        %v417 = vld [vmem:[%s330 + $0x218] sm:$0xff]
        %v418 = vld [vmem:[%s330 + $0x220] sm:$0xff]
        %v419 = vld [vmem:[%s330 + $0x228] sm:$0xff]
        %v420 = vld [vmem:[%s330 + $0x230] sm:$0xff]
        %v421 = vld [vmem:[%s330 + $0x238] sm:$0xff]
        %vm422 = vcmask 179200
        %v424 = vsel %vm422, %v351, 0
        %v427 = vsel %vm422, %v353, 0
        %v430 = vsel %vm422, %v355, 0
        %v433 = vsel %vm422, %v357, 0
        %v436 = vsel %vm422, %v359, 0
        %v439 = vsel %vm422, %v361, 0
        %v442 = vsel %vm422, %v363, 0
        %v445 = vsel %vm422, %v365, 0
        %v448 = vsel %vm422, %v367, 0
        %v451 = vsel %vm422, %v369, 0
        %v454 = vsel %vm422, %v371, 0
        %v457 = vsel %vm422, %v373, 0
        %v460 = vsel %vm422, %v375, 0
        %v463 = vsel %vm422, %v377, 0
        %v466 = vsel %vm422, %v379, 0
        %v469 = vsel %vm422, %v381, 0
        %v472 = vsel %vm422, %v383, 0
        %v475 = vsel %vm422, %v385, 0
        %v478 = vsel %vm422, %v387, 0
        %v481 = vsel %vm422, %v389, 0
        %v484 = vsel %vm422, %v391, 0
        %v487 = vsel %vm422, %v393, 0
        %v490 = vsel %vm422, %v395, 0
        %v493 = vsel %vm422, %v397, 0
        %v496 = vsel %vm422, %v399, 0
        %v499 = vsel %vm422, %v401, 0
        %v502 = vsel %vm422, %v403, 0
        %v505 = vsel %vm422, %v405, 0
        %v508 = vsel %vm422, %v407, 0
        %v511 = vsel %vm422, %v409, 0
        %v514 = vsel %vm422, %v411, 0
        %v517 = vsel %vm422, %v413, 0
        %v520 = vsel %vm422, %v415, 0
        %v523 = vsel %vm422, %v417, 0
        %v526 = vsel %vm422, %v419, 0
        %v529 = vsel %vm422, %v421, 0
        %vm531 = vcmask 1045504
        %v533 = vsel %vm531, %v349, 0
        %535 = vmatpush.msra.mxu0 %v346
        %536 = vmatpush.msra.mxu0 %v345
        %537 = vmatpush.msra.mxu0 %v344
        %538 = vmatpush.msra.mxu0 %v343
        %539 = vmatpush.msra.mxu0 %v342
        %540 = vmatpush.msra.mxu0 %v341
        %541 = vmatpush.msra.mxu0 %v340
        %542 = vmatpush.msra.mxu0 %v339
        %543 = vmatpush.msra.mxu0 %v338
        %544 = vmatpush.msra.mxu0 %v337
        %545 = vmatpush.msra.mxu0 %v336
        %546 = vmatpush.msra.mxu0 %v335
        %547 = vmatpush.msra.mxu0 %v334
        %548 = vmatpush.msra.mxu0 %v333
        %549 = vmatpush.msra.mxu0 %v332
        %550 = vmatpush.msra.mxu0 %v331
        %551 = vmatmul.f32.gmra.mxu0 %v350
        %v552 = vpop.f32.mrf.mxu0
        %v553 = vadd.f32 0.0, %v552
        %554 = vmatmul.f32.gmra.mxu0 %v352
        %v555 = vpop.f32.mrf.mxu0
        %v556 = vadd.f32 0.0, %v555
        %557 = vmatmul.f32.gmra.mxu0 %v354
        %v558 = vpop.f32.mrf.mxu0
        %v559 = vadd.f32 0.0, %v558
        %560 = vmatmul.f32.gmra.mxu0 %v356
        %v561 = vpop.f32.mrf.mxu0
        %v562 = vadd.f32 0.0, %v561
        %563 = vmatmul.f32.gmra.mxu0 %v358
        %v564 = vpop.f32.mrf.mxu0
        %v565 = vadd.f32 0.0, %v564
        %566 = vmatmul.f32.gmra.mxu0 %v360
        %v567 = vpop.f32.mrf.mxu0
        %v568 = vadd.f32 0.0, %v567
        %569 = vmatmul.f32.gmra.mxu0 %v362
        %v570 = vpop.f32.mrf.mxu0
        %v571 = vadd.f32 0.0, %v570
        %572 = vmatmul.f32.gmra.mxu0 %v364
        %v573 = vpop.f32.mrf.mxu0
        %v574 = vadd.f32 0.0, %v573
        %575 = vmatmul.f32.gmra.mxu0 %v366
        %v576 = vpop.f32.mrf.mxu0
        %v577 = vadd.f32 0.0, %v576
        %578 = vmatmul.f32.gmra.mxu0 %v368
        %v579 = vpop.f32.mrf.mxu0
        %v580 = vadd.f32 0.0, %v579
        %581 = vmatmul.f32.gmra.mxu0 %v370
        %v582 = vpop.f32.mrf.mxu0
        %v583 = vadd.f32 0.0, %v582
        %584 = vmatmul.f32.gmra.mxu0 %v372
        %v585 = vpop.f32.mrf.mxu0
        %v586 = vadd.f32 0.0, %v585
        %587 = vmatmul.f32.gmra.mxu0 %v374
        %v588 = vpop.f32.mrf.mxu0
        %v589 = vadd.f32 0.0, %v588
        %590 = vmatmul.f32.gmra.mxu0 %v376
        %v591 = vpop.f32.mrf.mxu0
        %v592 = vadd.f32 0.0, %v591
        %593 = vmatmul.f32.gmra.mxu0 %v378
        %v594 = vpop.f32.mrf.mxu0
        %v595 = vadd.f32 0.0, %v594
        %596 = vmatmul.f32.gmra.mxu0 %v380
        %v597 = vpop.f32.mrf.mxu0
        %v598 = vadd.f32 0.0, %v597
        %599 = vmatmul.f32.gmra.mxu0 %v382
        %v600 = vpop.f32.mrf.mxu0
        %v601 = vadd.f32 0.0, %v600
        %602 = vmatmul.f32.gmra.mxu0 %v384
        %v603 = vpop.f32.mrf.mxu0
        %v604 = vadd.f32 0.0, %v603
        %605 = vmatmul.f32.gmra.mxu0 %v386
        %v606 = vpop.f32.mrf.mxu0
        %v607 = vadd.f32 0.0, %v606
        %608 = vmatmul.f32.gmra.mxu0 %v388
        %v609 = vpop.f32.mrf.mxu0
        %v610 = vadd.f32 0.0, %v609
        %611 = vmatmul.f32.gmra.mxu0 %v390
        %v612 = vpop.f32.mrf.mxu0
        %v613 = vadd.f32 0.0, %v612
        %614 = vmatmul.f32.gmra.mxu0 %v392
        %v615 = vpop.f32.mrf.mxu0
        %v616 = vadd.f32 0.0, %v615
        %617 = vmatmul.f32.gmra.mxu0 %v394
        %v618 = vpop.f32.mrf.mxu0
        %v619 = vadd.f32 0.0, %v618
        %620 = vmatmul.f32.gmra.mxu0 %v396
        %v621 = vpop.f32.mrf.mxu0
        %v622 = vadd.f32 0.0, %v621
        %623 = vmatmul.f32.gmra.mxu0 %v398
        %v624 = vpop.f32.mrf.mxu0
        %v625 = vadd.f32 0.0, %v624
        %626 = vmatmul.f32.gmra.mxu0 %v400
        %v627 = vpop.f32.mrf.mxu0
        %v628 = vadd.f32 0.0, %v627
        %629 = vmatmul.f32.gmra.mxu0 %v402
        %v630 = vpop.f32.mrf.mxu0
        %v631 = vadd.f32 0.0, %v630
        %632 = vmatmul.f32.gmra.mxu0 %v404
        %v633 = vpop.f32.mrf.mxu0
        %v634 = vadd.f32 0.0, %v633
        %635 = vmatmul.f32.gmra.mxu0 %v406
        %v636 = vpop.f32.mrf.mxu0
        %v637 = vadd.f32 0.0, %v636
        %638 = vmatmul.f32.gmra.mxu0 %v408
        %v639 = vpop.f32.mrf.mxu0
        %v640 = vadd.f32 0.0, %v639
        %641 = vmatmul.f32.gmra.mxu0 %v410
        %v642 = vpop.f32.mrf.mxu0
        %v643 = vadd.f32 0.0, %v642
        %644 = vmatmul.f32.gmra.mxu0 %v412
        %v645 = vpop.f32.mrf.mxu0
        %v646 = vadd.f32 0.0, %v645
        %647 = vmatmul.f32.gmra.mxu0 %v414
        %v648 = vpop.f32.mrf.mxu0
        %v649 = vadd.f32 0.0, %v648
        %650 = vmatmul.f32.gmra.mxu0 %v416
        %v651 = vpop.f32.mrf.mxu0
        %v652 = vadd.f32 0.0, %v651
        %653 = vmatmul.f32.gmra.mxu0 %v418
        %v654 = vpop.f32.mrf.mxu0
        %v655 = vadd.f32 0.0, %v654
        %656 = vmatmul.f32.gmra.mxu0 %v420
        %v657 = vpop.f32.mrf.mxu0
        %v658 = vadd.f32 0.0, %v657
        %659 = vdwg.mxu0
        %660 = vmatpush.msra.mxu0 0.0
        %661 = vmatpush.msra.mxu0 0.0
        %662 = vmatpush.msra.mxu0 0.0
        %663 = vmatpush.msra.mxu0 0.0
        %664 = vmatpush.msra.mxu0 0.0
        %665 = vmatpush.msra.mxu0 0.0
        %666 = vmatpush.msra.mxu0 0.0
        %667 = vmatpush.msra.mxu0 0.0
        %668 = vmatpush.msra.mxu0 0.0
        %669 = vmatpush.msra.mxu0 0.0
        %670 = vmatpush.msra.mxu0 0.0
        %671 = vmatpush.msra.mxu0 0.0
        %672 = vmatpush.msra.mxu0 0.0
        %673 = vmatpush.msra.mxu0 %v533
        %674 = vmatpush.msra.mxu0 %v348
        %675 = vmatpush.msra.mxu0 %v347
        %676 = vmatmul.f32.gmra.mxu0 %v424
        %v677 = vpop.f32.mrf.mxu0
        %v678 = vadd.f32 %v553, %v677
        %679 = vmatmul.f32.gmra.mxu0 %v427
        %v680 = vpop.f32.mrf.mxu0
        %v681 = vadd.f32 %v556, %v680
        %682 = vmatmul.f32.gmra.mxu0 %v430
        %v683 = vpop.f32.mrf.mxu0
        %v684 = vadd.f32 %v559, %v683
        %685 = vmatmul.f32.gmra.mxu0 %v433
        %v686 = vpop.f32.mrf.mxu0
        %v687 = vadd.f32 %v562, %v686
        %688 = vmatmul.f32.gmra.mxu0 %v436
        %v689 = vpop.f32.mrf.mxu0
        %v690 = vadd.f32 %v565, %v689
        %691 = vmatmul.f32.gmra.mxu0 %v439
        %v692 = vpop.f32.mrf.mxu0
        %v693 = vadd.f32 %v568, %v692
        %694 = vmatmul.f32.gmra.mxu0 %v442
        %v695 = vpop.f32.mrf.mxu0
        %v696 = vadd.f32 %v571, %v695
        %697 = vmatmul.f32.gmra.mxu0 %v445
        %v698 = vpop.f32.mrf.mxu0
        %v699 = vadd.f32 %v574, %v698
        %700 = vmatmul.f32.gmra.mxu0 %v448
        %v701 = vpop.f32.mrf.mxu0
        %v702 = vadd.f32 %v577, %v701
        %703 = vmatmul.f32.gmra.mxu0 %v451
        %v704 = vpop.f32.mrf.mxu0
        %v705 = vadd.f32 %v580, %v704
        %706 = vmatmul.f32.gmra.mxu0 %v454
        %v707 = vpop.f32.mrf.mxu0
        %v708 = vadd.f32 %v583, %v707
        %709 = vmatmul.f32.gmra.mxu0 %v457
        %v710 = vpop.f32.mrf.mxu0
        %v711 = vadd.f32 %v586, %v710
        %712 = vmatmul.f32.gmra.mxu0 %v460
        %v713 = vpop.f32.mrf.mxu0
        %v714 = vadd.f32 %v589, %v713
        %715 = vmatmul.f32.gmra.mxu0 %v463
        %v716 = vpop.f32.mrf.mxu0
        %v717 = vadd.f32 %v592, %v716
        %718 = vmatmul.f32.gmra.mxu0 %v466
        %v719 = vpop.f32.mrf.mxu0
        %v720 = vadd.f32 %v595, %v719
        %721 = vmatmul.f32.gmra.mxu0 %v469
        %v722 = vpop.f32.mrf.mxu0
        %v723 = vadd.f32 %v598, %v722
        %724 = vmatmul.f32.gmra.mxu0 %v472
        %v725 = vpop.f32.mrf.mxu0
        %v726 = vadd.f32 %v601, %v725
        %727 = vmatmul.f32.gmra.mxu0 %v475
        %v728 = vpop.f32.mrf.mxu0
        %v729 = vadd.f32 %v604, %v728
        %730 = vmatmul.f32.gmra.mxu0 %v478
        %v731 = vpop.f32.mrf.mxu0
        %v732 = vadd.f32 %v607, %v731
        %733 = vmatmul.f32.gmra.mxu0 %v481
        %v734 = vpop.f32.mrf.mxu0
        %v735 = vadd.f32 %v610, %v734
        %736 = vmatmul.f32.gmra.mxu0 %v484
        %v737 = vpop.f32.mrf.mxu0
        %v738 = vadd.f32 %v613, %v737
        %739 = vmatmul.f32.gmra.mxu0 %v487
        %v740 = vpop.f32.mrf.mxu0
        %v741 = vadd.f32 %v616, %v740
        %742 = vmatmul.f32.gmra.mxu0 %v490
        %v743 = vpop.f32.mrf.mxu0
        %v744 = vadd.f32 %v619, %v743
        %745 = vmatmul.f32.gmra.mxu0 %v493
        %v746 = vpop.f32.mrf.mxu0
        %v747 = vadd.f32 %v622, %v746
        %748 = vmatmul.f32.gmra.mxu0 %v496
        %v749 = vpop.f32.mrf.mxu0
        %v750 = vadd.f32 %v625, %v749
        %751 = vmatmul.f32.gmra.mxu0 %v499
        %v752 = vpop.f32.mrf.mxu0
        %v753 = vadd.f32 %v628, %v752
        %754 = vmatmul.f32.gmra.mxu0 %v502
        %v755 = vpop.f32.mrf.mxu0
        %v756 = vadd.f32 %v631, %v755
        %757 = vmatmul.f32.gmra.mxu0 %v505
        %v758 = vpop.f32.mrf.mxu0
        %v759 = vadd.f32 %v634, %v758
        %760 = vmatmul.f32.gmra.mxu0 %v508
        %v761 = vpop.f32.mrf.mxu0
        %v762 = vadd.f32 %v637, %v761
        %763 = vmatmul.f32.gmra.mxu0 %v511
        %v764 = vpop.f32.mrf.mxu0
        %v765 = vadd.f32 %v640, %v764
        %766 = vmatmul.f32.gmra.mxu0 %v514
        %v767 = vpop.f32.mrf.mxu0
        %v768 = vadd.f32 %v643, %v767
        %769 = vmatmul.f32.gmra.mxu0 %v517
        %v770 = vpop.f32.mrf.mxu0
        %v771 = vadd.f32 %v646, %v770
        %772 = vmatmul.f32.gmra.mxu0 %v520
        %v773 = vpop.f32.mrf.mxu0
        %v774 = vadd.f32 %v649, %v773
        %775 = vmatmul.f32.gmra.mxu0 %v523
        %v776 = vpop.f32.mrf.mxu0
        %v777 = vadd.f32 %v652, %v776
        %778 = vmatmul.f32.gmra.mxu0 %v526
        %v779 = vpop.f32.mrf.mxu0
        %v780 = vadd.f32 %v655, %v779
        %781 = vmatmul.f32.gmra.mxu0 %v529
        %v782 = vpop.f32.mrf.mxu0
        %v783 = vadd.f32 %v658, %v782
        %784 = vdwg.mxu0
        %s785 = scalar_lea.vmem %s330, 576
        %v786 = vld [vmem:[%s785] sm:$0xff]
        %v787 = vld [vmem:[%s785 + $0x8] sm:$0xff]
        %v788 = vld [vmem:[%s785 + $0x10] sm:$0xff]
        %v789 = vld [vmem:[%s785 + $0x18] sm:$0xff]
        %v790 = vld [vmem:[%s785 + $0x20] sm:$0xff]
        %v791 = vld [vmem:[%s785 + $0x28] sm:$0xff]
        %v792 = vld [vmem:[%s785 + $0x30] sm:$0xff]
        %v793 = vld [vmem:[%s785 + $0x38] sm:$0xff]
        %v794 = vld [vmem:[%s785 + $0x40] sm:$0xff]
        %v795 = vld [vmem:[%s785 + $0x48] sm:$0xff]
        %v796 = vld [vmem:[%s785 + $0x50] sm:$0xff]
        %v797 = vld [vmem:[%s785 + $0x58] sm:$0xff]
        %v798 = vld [vmem:[%s785 + $0x60] sm:$0xff]
        %v799 = vld [vmem:[%s785 + $0x68] sm:$0xff]
        %v800 = vld [vmem:[%s785 + $0x70] sm:$0xff]
        %v801 = vld [vmem:[%s785 + $0x78] sm:$0xff]
        %v802 = vld [vmem:[%s785 + $0x80] sm:$0xff]
        %v803 = vld [vmem:[%s785 + $0x88] sm:$0xff]
        %v804 = vld [vmem:[%s785 + $0x90] sm:$0xff]
        %v805 = vld [vmem:[%s785 + $0x98] sm:$0xff]
        %v806 = vld [vmem:[%s785 + $0xa0] sm:$0xff]
        %v807 = vld [vmem:[%s785 + $0xa8] sm:$0xff]
        %v808 = vld [vmem:[%s785 + $0xb0] sm:$0xff]
        %v809 = vld [vmem:[%s785 + $0xb8] sm:$0xff]
        %v810 = vld [vmem:[%s785 + $0xc0] sm:$0xff]
        %v811 = vld [vmem:[%s785 + $0xc8] sm:$0xff]
        %v812 = vld [vmem:[%s785 + $0xd0] sm:$0xff]
        %v813 = vld [vmem:[%s785 + $0xd8] sm:$0xff]
        %v814 = vld [vmem:[%s785 + $0xe0] sm:$0xff]
        %v815 = vld [vmem:[%s785 + $0xe8] sm:$0xff]
        %v816 = vld [vmem:[%s785 + $0xf0] sm:$0xff]
        %v817 = vld [vmem:[%s785 + $0xf8] sm:$0xff]
        %v818 = vld [vmem:[%s785 + $0x100] sm:$0xff]
        %v819 = vld [vmem:[%s785 + $0x108] sm:$0xff]
        %v820 = vld [vmem:[%s785 + $0x110] sm:$0xff]
        %v821 = vld [vmem:[%s785 + $0x118] sm:$0xff]
        %v822 = vld [vmem:[%s785 + $0x120] sm:$0xff]
        %v823 = vld [vmem:[%s785 + $0x128] sm:$0xff]
        %v824 = vld [vmem:[%s785 + $0x130] sm:$0xff]
        %v825 = vld [vmem:[%s785 + $0x138] sm:$0xff]
        %v826 = vld [vmem:[%s785 + $0x140] sm:$0xff]
        %v827 = vld [vmem:[%s785 + $0x148] sm:$0xff]
        %v828 = vld [vmem:[%s785 + $0x150] sm:$0xff]
        %v829 = vld [vmem:[%s785 + $0x158] sm:$0xff]
        %v830 = vld [vmem:[%s785 + $0x160] sm:$0xff]
        %v831 = vld [vmem:[%s785 + $0x168] sm:$0xff]
        %v832 = vld [vmem:[%s785 + $0x170] sm:$0xff]
        %v833 = vld [vmem:[%s785 + $0x178] sm:$0xff]
        %v834 = vld [vmem:[%s785 + $0x180] sm:$0xff]
        %v835 = vld [vmem:[%s785 + $0x188] sm:$0xff]
        %v836 = vld [vmem:[%s785 + $0x190] sm:$0xff]
        %v837 = vld [vmem:[%s785 + $0x198] sm:$0xff]
        %v838 = vld [vmem:[%s785 + $0x1a0] sm:$0xff]
        %v839 = vld [vmem:[%s785 + $0x1a8] sm:$0xff]
        %v840 = vld [vmem:[%s785 + $0x1b0] sm:$0xff]
        %v841 = vld [vmem:[%s785 + $0x1b8] sm:$0xff]
        %v842 = vld [vmem:[%s785 + $0x1c0] sm:$0xff]
        %v843 = vld [vmem:[%s785 + $0x1c8] sm:$0xff]
        %v844 = vld [vmem:[%s785 + $0x1d0] sm:$0xff]
        %v845 = vld [vmem:[%s785 + $0x1d8] sm:$0xff]
        %v846 = vld [vmem:[%s785 + $0x1e0] sm:$0xff]
        %v847 = vld [vmem:[%s785 + $0x1e8] sm:$0xff]
        %v848 = vld [vmem:[%s785 + $0x1f0] sm:$0xff]
        %v849 = vld [vmem:[%s785 + $0x1f8] sm:$0xff]
        %v850 = vld [vmem:[%s785 + $0x200] sm:$0xff]
        %v851 = vld [vmem:[%s785 + $0x208] sm:$0xff]
        %v852 = vld [vmem:[%s785 + $0x210] sm:$0xff]
        %v853 = vld [vmem:[%s785 + $0x218] sm:$0xff]
        %v854 = vld [vmem:[%s785 + $0x220] sm:$0xff]
        %v855 = vld [vmem:[%s785 + $0x228] sm:$0xff]
        %v856 = vld [vmem:[%s785 + $0x230] sm:$0xff]
        %v857 = vld [vmem:[%s785 + $0x238] sm:$0xff]
        %v859 = vsel %vm422, %v787, 0
        %v862 = vsel %vm422, %v789, 0
        %v865 = vsel %vm422, %v791, 0
        %v868 = vsel %vm422, %v793, 0
        %v871 = vsel %vm422, %v795, 0
        %v874 = vsel %vm422, %v797, 0
        %v877 = vsel %vm422, %v799, 0
        %v880 = vsel %vm422, %v801, 0
        %v883 = vsel %vm422, %v803, 0
        %v886 = vsel %vm422, %v805, 0
        %v889 = vsel %vm422, %v807, 0
        %v892 = vsel %vm422, %v809, 0
        %v895 = vsel %vm422, %v811, 0
        %v898 = vsel %vm422, %v813, 0
        %v901 = vsel %vm422, %v815, 0
        %v904 = vsel %vm422, %v817, 0
        %v907 = vsel %vm422, %v819, 0
        %v910 = vsel %vm422, %v821, 0
        %v913 = vsel %vm422, %v823, 0
        %v916 = vsel %vm422, %v825, 0
        %v919 = vsel %vm422, %v827, 0
        %v922 = vsel %vm422, %v829, 0
        %v925 = vsel %vm422, %v831, 0
        %v928 = vsel %vm422, %v833, 0
        %v931 = vsel %vm422, %v835, 0
        %v934 = vsel %vm422, %v837, 0
        %v937 = vsel %vm422, %v839, 0
        %v940 = vsel %vm422, %v841, 0
        %v943 = vsel %vm422, %v843, 0
        %v946 = vsel %vm422, %v845, 0
        %v949 = vsel %vm422, %v847, 0
        %v952 = vsel %vm422, %v849, 0
        %v955 = vsel %vm422, %v851, 0
        %v958 = vsel %vm422, %v853, 0
        %v961 = vsel %vm422, %v855, 0
        %v964 = vsel %vm422, %v857, 0
        %966 = vmatpush.msra.mxu0 %v346
        %967 = vmatpush.msra.mxu0 %v345
        %968 = vmatpush.msra.mxu0 %v344
        %969 = vmatpush.msra.mxu0 %v343
        %970 = vmatpush.msra.mxu0 %v342
        %971 = vmatpush.msra.mxu0 %v341
        %972 = vmatpush.msra.mxu0 %v340
        %973 = vmatpush.msra.mxu0 %v339
        %974 = vmatpush.msra.mxu0 %v338
        %975 = vmatpush.msra.mxu0 %v337
        %976 = vmatpush.msra.mxu0 %v336
        %977 = vmatpush.msra.mxu0 %v335
        %978 = vmatpush.msra.mxu0 %v334
        %979 = vmatpush.msra.mxu0 %v333
        %980 = vmatpush.msra.mxu0 %v332
        %981 = vmatpush.msra.mxu0 %v331
        %982 = vmatmul.f32.gmra.mxu0 %v786
        %v983 = vpop.f32.mrf.mxu0
        %v984 = vadd.f32 0.0, %v983
        %985 = vmatmul.f32.gmra.mxu0 %v788
        %v986 = vpop.f32.mrf.mxu0
        %v987 = vadd.f32 0.0, %v986
        %988 = vmatmul.f32.gmra.mxu0 %v790
        %v989 = vpop.f32.mrf.mxu0
        %v990 = vadd.f32 0.0, %v989
        %991 = vmatmul.f32.gmra.mxu0 %v792
        %v992 = vpop.f32.mrf.mxu0
        %v993 = vadd.f32 0.0, %v992
        %994 = vmatmul.f32.gmra.mxu0 %v794
        %v995 = vpop.f32.mrf.mxu0
        %v996 = vadd.f32 0.0, %v995
        %997 = vmatmul.f32.gmra.mxu0 %v796
        %v998 = vpop.f32.mrf.mxu0
        %v999 = vadd.f32 0.0, %v998
        %1000 = vmatmul.f32.gmra.mxu0 %v798
        %v1001 = vpop.f32.mrf.mxu0
        %v1002 = vadd.f32 0.0, %v1001
        %1003 = vmatmul.f32.gmra.mxu0 %v800
        %v1004 = vpop.f32.mrf.mxu0
        %v1005 = vadd.f32 0.0, %v1004
        %1006 = vmatmul.f32.gmra.mxu0 %v802
        %v1007 = vpop.f32.mrf.mxu0
        %v1008 = vadd.f32 0.0, %v1007
        %1009 = vmatmul.f32.gmra.mxu0 %v804
        %v1010 = vpop.f32.mrf.mxu0
        %v1011 = vadd.f32 0.0, %v1010
        %1012 = vmatmul.f32.gmra.mxu0 %v806
        %v1013 = vpop.f32.mrf.mxu0
        %v1014 = vadd.f32 0.0, %v1013
        %1015 = vmatmul.f32.gmra.mxu0 %v808
        %v1016 = vpop.f32.mrf.mxu0
        %v1017 = vadd.f32 0.0, %v1016
        %1018 = vmatmul.f32.gmra.mxu0 %v810
        %v1019 = vpop.f32.mrf.mxu0
        %v1020 = vadd.f32 0.0, %v1019
        %1021 = vmatmul.f32.gmra.mxu0 %v812
        %v1022 = vpop.f32.mrf.mxu0
        %v1023 = vadd.f32 0.0, %v1022
        %1024 = vmatmul.f32.gmra.mxu0 %v814
        %v1025 = vpop.f32.mrf.mxu0
        %v1026 = vadd.f32 0.0, %v1025
        %1027 = vmatmul.f32.gmra.mxu0 %v816
        %v1028 = vpop.f32.mrf.mxu0
        %v1029 = vadd.f32 0.0, %v1028
        %1030 = vmatmul.f32.gmra.mxu0 %v818
        %v1031 = vpop.f32.mrf.mxu0
        %v1032 = vadd.f32 0.0, %v1031
        %1033 = vmatmul.f32.gmra.mxu0 %v820
        %v1034 = vpop.f32.mrf.mxu0
        %v1035 = vadd.f32 0.0, %v1034
        %1036 = vmatmul.f32.gmra.mxu0 %v822
        %v1037 = vpop.f32.mrf.mxu0
        %v1038 = vadd.f32 0.0, %v1037
        %1039 = vmatmul.f32.gmra.mxu0 %v824
        %v1040 = vpop.f32.mrf.mxu0
        %v1041 = vadd.f32 0.0, %v1040
        %1042 = vmatmul.f32.gmra.mxu0 %v826
        %v1043 = vpop.f32.mrf.mxu0
        %v1044 = vadd.f32 0.0, %v1043
        %1045 = vmatmul.f32.gmra.mxu0 %v828
        %v1046 = vpop.f32.mrf.mxu0
        %v1047 = vadd.f32 0.0, %v1046
        %1048 = vmatmul.f32.gmra.mxu0 %v830
        %v1049 = vpop.f32.mrf.mxu0
        %v1050 = vadd.f32 0.0, %v1049
        %1051 = vmatmul.f32.gmra.mxu0 %v832
        %v1052 = vpop.f32.mrf.mxu0
        %v1053 = vadd.f32 0.0, %v1052
        %1054 = vmatmul.f32.gmra.mxu0 %v834
        %v1055 = vpop.f32.mrf.mxu0
        %v1056 = vadd.f32 0.0, %v1055
        %1057 = vmatmul.f32.gmra.mxu0 %v836
        %v1058 = vpop.f32.mrf.mxu0
        %v1059 = vadd.f32 0.0, %v1058
        %1060 = vmatmul.f32.gmra.mxu0 %v838
        %v1061 = vpop.f32.mrf.mxu0
        %v1062 = vadd.f32 0.0, %v1061
        %1063 = vmatmul.f32.gmra.mxu0 %v840
        %v1064 = vpop.f32.mrf.mxu0
        %v1065 = vadd.f32 0.0, %v1064
        %1066 = vmatmul.f32.gmra.mxu0 %v842
        %v1067 = vpop.f32.mrf.mxu0
        %v1068 = vadd.f32 0.0, %v1067
        %1069 = vmatmul.f32.gmra.mxu0 %v844
        %v1070 = vpop.f32.mrf.mxu0
        %v1071 = vadd.f32 0.0, %v1070
        %1072 = vmatmul.f32.gmra.mxu0 %v846
        %v1073 = vpop.f32.mrf.mxu0
        %v1074 = vadd.f32 0.0, %v1073
        %1075 = vmatmul.f32.gmra.mxu0 %v848
        %v1076 = vpop.f32.mrf.mxu0
        %v1077 = vadd.f32 0.0, %v1076
        %1078 = vmatmul.f32.gmra.mxu0 %v850
        %v1079 = vpop.f32.mrf.mxu0
        %v1080 = vadd.f32 0.0, %v1079
        %1081 = vmatmul.f32.gmra.mxu0 %v852
        %v1082 = vpop.f32.mrf.mxu0
        %v1083 = vadd.f32 0.0, %v1082
        %1084 = vmatmul.f32.gmra.mxu0 %v854
        %v1085 = vpop.f32.mrf.mxu0
        %v1086 = vadd.f32 0.0, %v1085
        %1087 = vmatmul.f32.gmra.mxu0 %v856
        %v1088 = vpop.f32.mrf.mxu0
        %v1089 = vadd.f32 0.0, %v1088
        %1090 = vdwg.mxu0
        %1091 = vmatpush.msra.mxu0 0.0
        %1092 = vmatpush.msra.mxu0 0.0
        %1093 = vmatpush.msra.mxu0 0.0
        %1094 = vmatpush.msra.mxu0 0.0
        %1095 = vmatpush.msra.mxu0 0.0
        %1096 = vmatpush.msra.mxu0 0.0
        %1097 = vmatpush.msra.mxu0 0.0
        %1098 = vmatpush.msra.mxu0 0.0
        %1099 = vmatpush.msra.mxu0 0.0
        %1100 = vmatpush.msra.mxu0 0.0
        %1101 = vmatpush.msra.mxu0 0.0
        %1102 = vmatpush.msra.mxu0 0.0
        %1103 = vmatpush.msra.mxu0 0.0
        %1104 = vmatpush.msra.mxu0 %v533
        %1105 = vmatpush.msra.mxu0 %v348
        %1106 = vmatpush.msra.mxu0 %v347
        %1107 = vmatmul.f32.gmra.mxu0 %v859
        %v1108 = vpop.f32.mrf.mxu0
        %v1109 = vadd.f32 %v984, %v1108
        %1110 = vmatmul.f32.gmra.mxu0 %v862
        %v1111 = vpop.f32.mrf.mxu0
        %v1112 = vadd.f32 %v987, %v1111
        %1113 = vmatmul.f32.gmra.mxu0 %v865
        %v1114 = vpop.f32.mrf.mxu0
        %v1115 = vadd.f32 %v990, %v1114
        %1116 = vmatmul.f32.gmra.mxu0 %v868
        %v1117 = vpop.f32.mrf.mxu0
        %v1118 = vadd.f32 %v993, %v1117
        %1119 = vmatmul.f32.gmra.mxu0 %v871
        %v1120 = vpop.f32.mrf.mxu0
        %v1121 = vadd.f32 %v996, %v1120
        %1122 = vmatmul.f32.gmra.mxu0 %v874
        %v1123 = vpop.f32.mrf.mxu0
        %v1124 = vadd.f32 %v999, %v1123
        %1125 = vmatmul.f32.gmra.mxu0 %v877
        %v1126 = vpop.f32.mrf.mxu0
        %v1127 = vadd.f32 %v1002, %v1126
        %1128 = vmatmul.f32.gmra.mxu0 %v880
        %v1129 = vpop.f32.mrf.mxu0
        %v1130 = vadd.f32 %v1005, %v1129
        %1131 = vmatmul.f32.gmra.mxu0 %v883
        %v1132 = vpop.f32.mrf.mxu0
        %v1133 = vadd.f32 %v1008, %v1132
        %1134 = vmatmul.f32.gmra.mxu0 %v886
        %v1135 = vpop.f32.mrf.mxu0
        %v1136 = vadd.f32 %v1011, %v1135
        %1137 = vmatmul.f32.gmra.mxu0 %v889
        %v1138 = vpop.f32.mrf.mxu0
        %v1139 = vadd.f32 %v1014, %v1138
        %1140 = vmatmul.f32.gmra.mxu0 %v892
        %v1141 = vpop.f32.mrf.mxu0
        %v1142 = vadd.f32 %v1017, %v1141
        %1143 = vmatmul.f32.gmra.mxu0 %v895
        %v1144 = vpop.f32.mrf.mxu0
        %v1145 = vadd.f32 %v1020, %v1144
        %1146 = vmatmul.f32.gmra.mxu0 %v898
        %v1147 = vpop.f32.mrf.mxu0
        %v1148 = vadd.f32 %v1023, %v1147
        %1149 = vmatmul.f32.gmra.mxu0 %v901
        %v1150 = vpop.f32.mrf.mxu0
        %v1151 = vadd.f32 %v1026, %v1150
        %1152 = vmatmul.f32.gmra.mxu0 %v904
        %v1153 = vpop.f32.mrf.mxu0
        %v1154 = vadd.f32 %v1029, %v1153
        %1155 = vmatmul.f32.gmra.mxu0 %v907
        %v1156 = vpop.f32.mrf.mxu0
        %v1157 = vadd.f32 %v1032, %v1156
        %1158 = vmatmul.f32.gmra.mxu0 %v910
        %v1159 = vpop.f32.mrf.mxu0
        %v1160 = vadd.f32 %v1035, %v1159
        %1161 = vmatmul.f32.gmra.mxu0 %v913
        %v1162 = vpop.f32.mrf.mxu0
        %v1163 = vadd.f32 %v1038, %v1162
        %1164 = vmatmul.f32.gmra.mxu0 %v916
        %v1165 = vpop.f32.mrf.mxu0
        %v1166 = vadd.f32 %v1041, %v1165
        %1167 = vmatmul.f32.gmra.mxu0 %v919
        %v1168 = vpop.f32.mrf.mxu0
        %v1169 = vadd.f32 %v1044, %v1168
        %1170 = vmatmul.f32.gmra.mxu0 %v922
        %v1171 = vpop.f32.mrf.mxu0
        %v1172 = vadd.f32 %v1047, %v1171
        %1173 = vmatmul.f32.gmra.mxu0 %v925
        %v1174 = vpop.f32.mrf.mxu0
        %v1175 = vadd.f32 %v1050, %v1174
        %1176 = vmatmul.f32.gmra.mxu0 %v928
        %v1177 = vpop.f32.mrf.mxu0
        %v1178 = vadd.f32 %v1053, %v1177
        %1179 = vmatmul.f32.gmra.mxu0 %v931
        %v1180 = vpop.f32.mrf.mxu0
        %v1181 = vadd.f32 %v1056, %v1180
        %1182 = vmatmul.f32.gmra.mxu0 %v934
        %v1183 = vpop.f32.mrf.mxu0
        %v1184 = vadd.f32 %v1059, %v1183
        %1185 = vmatmul.f32.gmra.mxu0 %v937
        %v1186 = vpop.f32.mrf.mxu0
        %v1187 = vadd.f32 %v1062, %v1186
        %1188 = vmatmul.f32.gmra.mxu0 %v940
        %v1189 = vpop.f32.mrf.mxu0
        %v1190 = vadd.f32 %v1065, %v1189
        %1191 = vmatmul.f32.gmra.mxu0 %v943
        %v1192 = vpop.f32.mrf.mxu0
        %v1193 = vadd.f32 %v1068, %v1192
        %1194 = vmatmul.f32.gmra.mxu0 %v946
        %v1195 = vpop.f32.mrf.mxu0
        %v1196 = vadd.f32 %v1071, %v1195
        %1197 = vmatmul.f32.gmra.mxu0 %v949
        %v1198 = vpop.f32.mrf.mxu0
        %v1199 = vadd.f32 %v1074, %v1198
        %1200 = vmatmul.f32.gmra.mxu0 %v952
        %v1201 = vpop.f32.mrf.mxu0
        %v1202 = vadd.f32 %v1077, %v1201
        %1203 = vmatmul.f32.gmra.mxu0 %v955
        %v1204 = vpop.f32.mrf.mxu0
        %v1205 = vadd.f32 %v1080, %v1204
        %1206 = vmatmul.f32.gmra.mxu0 %v958
        %v1207 = vpop.f32.mrf.mxu0
        %v1208 = vadd.f32 %v1083, %v1207
        %1209 = vmatmul.f32.gmra.mxu0 %v961
        %v1210 = vpop.f32.mrf.mxu0
        %v1211 = vadd.f32 %v1086, %v1210
        %1212 = vmatmul.f32.gmra.mxu0 %v964
        %v1213 = vpop.f32.mrf.mxu0
        %v1214 = vadd.f32 %v1089, %v1213
        %1215 = vdwg.mxu0
        %v1216 = vmax.f32 %v678, %v1109
        %v1217 = vmax.f32 %v681, %v1112
        %v1218 = vmax.f32 %v684, %v1115
        %v1219 = vmax.f32 %v687, %v1118
        %v1220 = vmax.f32 %v690, %v1121
        %v1221 = vmax.f32 %v693, %v1124
        %v1222 = vmax.f32 %v696, %v1127
        %v1223 = vmax.f32 %v699, %v1130
        %v1224 = vmax.f32 %v702, %v1133
        %v1225 = vmax.f32 %v705, %v1136
        %v1226 = vmax.f32 %v708, %v1139
        %v1227 = vmax.f32 %v711, %v1142
        %v1228 = vmax.f32 %v714, %v1145
        %v1229 = vmax.f32 %v717, %v1148
        %v1230 = vmax.f32 %v720, %v1151
        %v1231 = vmax.f32 %v723, %v1154
        %v1232 = vmax.f32 %v726, %v1157
        %v1233 = vmax.f32 %v729, %v1160
        %v1234 = vmax.f32 %v732, %v1163
        %v1235 = vmax.f32 %v735, %v1166
        %v1236 = vmax.f32 %v738, %v1169
        %v1237 = vmax.f32 %v741, %v1172
        %v1238 = vmax.f32 %v744, %v1175
        %v1239 = vmax.f32 %v747, %v1178
        %v1240 = vmax.f32 %v750, %v1181
        %v1241 = vmax.f32 %v753, %v1184
        %v1242 = vmax.f32 %v756, %v1187
        %v1243 = vmax.f32 %v759, %v1190
        %v1244 = vmax.f32 %v762, %v1193
        %v1245 = vmax.f32 %v765, %v1196
        %v1246 = vmax.f32 %v768, %v1199
        %v1247 = vmax.f32 %v771, %v1202
        %v1248 = vmax.f32 %v774, %v1205
        %v1249 = vmax.f32 %v777, %v1208
        %v1250 = vmax.f32 %v780, %v1211
        %v1251 = vmax.f32 %v783, %v1214
        %s1252 = scalar_lea.vmem %s330, 1152
        %v1253 = vld [vmem:[%s1252] sm:$0xff]
        %v1254 = vld [vmem:[%s1252 + $0x8] sm:$0xff]
        %v1255 = vld [vmem:[%s1252 + $0x10] sm:$0xff]
        %v1256 = vld [vmem:[%s1252 + $0x18] sm:$0xff]
        %v1257 = vld [vmem:[%s1252 + $0x20] sm:$0xff]
        %v1258 = vld [vmem:[%s1252 + $0x28] sm:$0xff]
        %v1259 = vld [vmem:[%s1252 + $0x30] sm:$0xff]
        %v1260 = vld [vmem:[%s1252 + $0x38] sm:$0xff]
        %v1261 = vld [vmem:[%s1252 + $0x40] sm:$0xff]
        %v1262 = vld [vmem:[%s1252 + $0x48] sm:$0xff]
        %v1263 = vld [vmem:[%s1252 + $0x50] sm:$0xff]
        %v1264 = vld [vmem:[%s1252 + $0x58] sm:$0xff]
        %v1265 = vld [vmem:[%s1252 + $0x60] sm:$0xff]
        %v1266 = vld [vmem:[%s1252 + $0x68] sm:$0xff]
        %v1267 = vld [vmem:[%s1252 + $0x70] sm:$0xff]
        %v1268 = vld [vmem:[%s1252 + $0x78] sm:$0xff]
        %v1269 = vld [vmem:[%s1252 + $0x80] sm:$0xff]
        %v1270 = vld [vmem:[%s1252 + $0x88] sm:$0xff]
        %v1271 = vld [vmem:[%s1252 + $0x90] sm:$0xff]
        %v1272 = vld [vmem:[%s1252 + $0x98] sm:$0xff]
        %v1273 = vld [vmem:[%s1252 + $0xa0] sm:$0xff]
        %v1274 = vld [vmem:[%s1252 + $0xa8] sm:$0xff]
        %v1275 = vld [vmem:[%s1252 + $0xb0] sm:$0xff]
        %v1276 = vld [vmem:[%s1252 + $0xb8] sm:$0xff]
        %v1277 = vld [vmem:[%s1252 + $0xc0] sm:$0xff]
        %v1278 = vld [vmem:[%s1252 + $0xc8] sm:$0xff]
        %v1279 = vld [vmem:[%s1252 + $0xd0] sm:$0xff]
        %v1280 = vld [vmem:[%s1252 + $0xd8] sm:$0xff]
        %v1281 = vld [vmem:[%s1252 + $0xe0] sm:$0xff]
        %v1282 = vld [vmem:[%s1252 + $0xe8] sm:$0xff]
        %v1283 = vld [vmem:[%s1252 + $0xf0] sm:$0xff]
        %v1284 = vld [vmem:[%s1252 + $0xf8] sm:$0xff]
        %v1285 = vld [vmem:[%s1252 + $0x100] sm:$0xff]
        %v1286 = vld [vmem:[%s1252 + $0x108] sm:$0xff]
        %v1287 = vld [vmem:[%s1252 + $0x110] sm:$0xff]
        %v1288 = vld [vmem:[%s1252 + $0x118] sm:$0xff]
        %v1289 = vld [vmem:[%s1252 + $0x120] sm:$0xff]
        %v1290 = vld [vmem:[%s1252 + $0x128] sm:$0xff]
        %v1291 = vld [vmem:[%s1252 + $0x130] sm:$0xff]
        %v1292 = vld [vmem:[%s1252 + $0x138] sm:$0xff]
        %v1293 = vld [vmem:[%s1252 + $0x140] sm:$0xff]
        %v1294 = vld [vmem:[%s1252 + $0x148] sm:$0xff]
        %v1295 = vld [vmem:[%s1252 + $0x150] sm:$0xff]
        %v1296 = vld [vmem:[%s1252 + $0x158] sm:$0xff]
        %v1297 = vld [vmem:[%s1252 + $0x160] sm:$0xff]
        %v1298 = vld [vmem:[%s1252 + $0x168] sm:$0xff]
        %v1299 = vld [vmem:[%s1252 + $0x170] sm:$0xff]
        %v1300 = vld [vmem:[%s1252 + $0x178] sm:$0xff]
        %v1301 = vld [vmem:[%s1252 + $0x180] sm:$0xff]
        %v1302 = vld [vmem:[%s1252 + $0x188] sm:$0xff]
        %v1303 = vld [vmem:[%s1252 + $0x190] sm:$0xff]
        %v1304 = vld [vmem:[%s1252 + $0x198] sm:$0xff]
        %v1305 = vld [vmem:[%s1252 + $0x1a0] sm:$0xff]
        %v1306 = vld [vmem:[%s1252 + $0x1a8] sm:$0xff]
        %v1307 = vld [vmem:[%s1252 + $0x1b0] sm:$0xff]
        %v1308 = vld [vmem:[%s1252 + $0x1b8] sm:$0xff]
        %v1309 = vld [vmem:[%s1252 + $0x1c0] sm:$0xff]
        %v1310 = vld [vmem:[%s1252 + $0x1c8] sm:$0xff]
        %v1311 = vld [vmem:[%s1252 + $0x1d0] sm:$0xff]
        %v1312 = vld [vmem:[%s1252 + $0x1d8] sm:$0xff]
        %v1313 = vld [vmem:[%s1252 + $0x1e0] sm:$0xff]
        %v1314 = vld [vmem:[%s1252 + $0x1e8] sm:$0xff]
        %v1315 = vld [vmem:[%s1252 + $0x1f0] sm:$0xff]
        %v1316 = vld [vmem:[%s1252 + $0x1f8] sm:$0xff]
        %v1317 = vld [vmem:[%s1252 + $0x200] sm:$0xff]
        %v1318 = vld [vmem:[%s1252 + $0x208] sm:$0xff]
        %v1319 = vld [vmem:[%s1252 + $0x210] sm:$0xff]
        %v1320 = vld [vmem:[%s1252 + $0x218] sm:$0xff]
        %v1321 = vld [vmem:[%s1252 + $0x220] sm:$0xff]
        %v1322 = vld [vmem:[%s1252 + $0x228] sm:$0xff]
        %v1323 = vld [vmem:[%s1252 + $0x230] sm:$0xff]
        %v1324 = vld [vmem:[%s1252 + $0x238] sm:$0xff]
        %v1326 = vsel %vm422, %v1254, 0
        %v1329 = vsel %vm422, %v1256, 0
        %v1332 = vsel %vm422, %v1258, 0
        %v1335 = vsel %vm422, %v1260, 0
        %v1338 = vsel %vm422, %v1262, 0
        %v1341 = vsel %vm422, %v1264, 0
        %v1344 = vsel %vm422, %v1266, 0
        %v1347 = vsel %vm422, %v1268, 0
        %v1350 = vsel %vm422, %v1270, 0
        %v1353 = vsel %vm422, %v1272, 0
        %v1356 = vsel %vm422, %v1274, 0
        %v1359 = vsel %vm422, %v1276, 0
        %v1362 = vsel %vm422, %v1278, 0
        %v1365 = vsel %vm422, %v1280, 0
        %v1368 = vsel %vm422, %v1282, 0
        %v1371 = vsel %vm422, %v1284, 0
        %v1374 = vsel %vm422, %v1286, 0
        %v1377 = vsel %vm422, %v1288, 0
        %v1380 = vsel %vm422, %v1290, 0
        %v1383 = vsel %vm422, %v1292, 0
        %v1386 = vsel %vm422, %v1294, 0
        %v1389 = vsel %vm422, %v1296, 0
        %v1392 = vsel %vm422, %v1298, 0
        %v1395 = vsel %vm422, %v1300, 0
        %v1398 = vsel %vm422, %v1302, 0
        %v1401 = vsel %vm422, %v1304, 0
        %v1404 = vsel %vm422, %v1306, 0
        %v1407 = vsel %vm422, %v1308, 0
        %v1410 = vsel %vm422, %v1310, 0
        %v1413 = vsel %vm422, %v1312, 0
        %v1416 = vsel %vm422, %v1314, 0
        %v1419 = vsel %vm422, %v1316, 0
        %v1422 = vsel %vm422, %v1318, 0
        %v1425 = vsel %vm422, %v1320, 0
        %v1428 = vsel %vm422, %v1322, 0
        %v1431 = vsel %vm422, %v1324, 0
        %1433 = vmatpush.msra.mxu0 %v346
        %1434 = vmatpush.msra.mxu0 %v345
        %1435 = vmatpush.msra.mxu0 %v344
        %1436 = vmatpush.msra.mxu0 %v343
        %1437 = vmatpush.msra.mxu0 %v342
        %1438 = vmatpush.msra.mxu0 %v341
        %1439 = vmatpush.msra.mxu0 %v340
        %1440 = vmatpush.msra.mxu0 %v339
        %1441 = vmatpush.msra.mxu0 %v338
        %1442 = vmatpush.msra.mxu0 %v337
        %1443 = vmatpush.msra.mxu0 %v336
        %1444 = vmatpush.msra.mxu0 %v335
        %1445 = vmatpush.msra.mxu0 %v334
        %1446 = vmatpush.msra.mxu0 %v333
        %1447 = vmatpush.msra.mxu0 %v332
        %1448 = vmatpush.msra.mxu0 %v331
        %1449 = vmatmul.f32.gmra.mxu0 %v1253
        %v1450 = vpop.f32.mrf.mxu0
        %v1451 = vadd.f32 0.0, %v1450
        %1452 = vmatmul.f32.gmra.mxu0 %v1255
        %v1453 = vpop.f32.mrf.mxu0
        %v1454 = vadd.f32 0.0, %v1453
        %1455 = vmatmul.f32.gmra.mxu0 %v1257
        %v1456 = vpop.f32.mrf.mxu0
        %v1457 = vadd.f32 0.0, %v1456
        %1458 = vmatmul.f32.gmra.mxu0 %v1259
        %v1459 = vpop.f32.mrf.mxu0
        %v1460 = vadd.f32 0.0, %v1459
        %1461 = vmatmul.f32.gmra.mxu0 %v1261
        %v1462 = vpop.f32.mrf.mxu0
        %v1463 = vadd.f32 0.0, %v1462
        %1464 = vmatmul.f32.gmra.mxu0 %v1263
        %v1465 = vpop.f32.mrf.mxu0
        %v1466 = vadd.f32 0.0, %v1465
        %1467 = vmatmul.f32.gmra.mxu0 %v1265
        %v1468 = vpop.f32.mrf.mxu0
        %v1469 = vadd.f32 0.0, %v1468
        %1470 = vmatmul.f32.gmra.mxu0 %v1267
        %v1471 = vpop.f32.mrf.mxu0
        %v1472 = vadd.f32 0.0, %v1471
        %1473 = vmatmul.f32.gmra.mxu0 %v1269
        %v1474 = vpop.f32.mrf.mxu0
        %v1475 = vadd.f32 0.0, %v1474
        %1476 = vmatmul.f32.gmra.mxu0 %v1271
        %v1477 = vpop.f32.mrf.mxu0
        %v1478 = vadd.f32 0.0, %v1477
        %1479 = vmatmul.f32.gmra.mxu0 %v1273
        %v1480 = vpop.f32.mrf.mxu0
        %v1481 = vadd.f32 0.0, %v1480
        %1482 = vmatmul.f32.gmra.mxu0 %v1275
        %v1483 = vpop.f32.mrf.mxu0
        %v1484 = vadd.f32 0.0, %v1483
        %1485 = vmatmul.f32.gmra.mxu0 %v1277
        %v1486 = vpop.f32.mrf.mxu0
        %v1487 = vadd.f32 0.0, %v1486
        %1488 = vmatmul.f32.gmra.mxu0 %v1279
        %v1489 = vpop.f32.mrf.mxu0
        %v1490 = vadd.f32 0.0, %v1489
        %1491 = vmatmul.f32.gmra.mxu0 %v1281
        %v1492 = vpop.f32.mrf.mxu0
        %v1493 = vadd.f32 0.0, %v1492
        %1494 = vmatmul.f32.gmra.mxu0 %v1283
        %v1495 = vpop.f32.mrf.mxu0
        %v1496 = vadd.f32 0.0, %v1495
        %1497 = vmatmul.f32.gmra.mxu0 %v1285
        %v1498 = vpop.f32.mrf.mxu0
        %v1499 = vadd.f32 0.0, %v1498
        %1500 = vmatmul.f32.gmra.mxu0 %v1287
        %v1501 = vpop.f32.mrf.mxu0
        %v1502 = vadd.f32 0.0, %v1501
        %1503 = vmatmul.f32.gmra.mxu0 %v1289
        %v1504 = vpop.f32.mrf.mxu0
        %v1505 = vadd.f32 0.0, %v1504
        %1506 = vmatmul.f32.gmra.mxu0 %v1291
        %v1507 = vpop.f32.mrf.mxu0
        %v1508 = vadd.f32 0.0, %v1507
        %1509 = vmatmul.f32.gmra.mxu0 %v1293
        %v1510 = vpop.f32.mrf.mxu0
        %v1511 = vadd.f32 0.0, %v1510
        %1512 = vmatmul.f32.gmra.mxu0 %v1295
        %v1513 = vpop.f32.mrf.mxu0
        %v1514 = vadd.f32 0.0, %v1513
        %1515 = vmatmul.f32.gmra.mxu0 %v1297
        %v1516 = vpop.f32.mrf.mxu0
        %v1517 = vadd.f32 0.0, %v1516
        %1518 = vmatmul.f32.gmra.mxu0 %v1299
        %v1519 = vpop.f32.mrf.mxu0
        %v1520 = vadd.f32 0.0, %v1519
        %1521 = vmatmul.f32.gmra.mxu0 %v1301
        %v1522 = vpop.f32.mrf.mxu0
        %v1523 = vadd.f32 0.0, %v1522
        %1524 = vmatmul.f32.gmra.mxu0 %v1303
        %v1525 = vpop.f32.mrf.mxu0
        %v1526 = vadd.f32 0.0, %v1525
        %1527 = vmatmul.f32.gmra.mxu0 %v1305
        %v1528 = vpop.f32.mrf.mxu0
        %v1529 = vadd.f32 0.0, %v1528
        %1530 = vmatmul.f32.gmra.mxu0 %v1307
        %v1531 = vpop.f32.mrf.mxu0
        %v1532 = vadd.f32 0.0, %v1531
        %1533 = vmatmul.f32.gmra.mxu0 %v1309
        %v1534 = vpop.f32.mrf.mxu0
        %v1535 = vadd.f32 0.0, %v1534
        %1536 = vmatmul.f32.gmra.mxu0 %v1311
        %v1537 = vpop.f32.mrf.mxu0
        %v1538 = vadd.f32 0.0, %v1537
        %1539 = vmatmul.f32.gmra.mxu0 %v1313
        %v1540 = vpop.f32.mrf.mxu0
        %v1541 = vadd.f32 0.0, %v1540
        %1542 = vmatmul.f32.gmra.mxu0 %v1315
        %v1543 = vpop.f32.mrf.mxu0
        %v1544 = vadd.f32 0.0, %v1543
        %1545 = vmatmul.f32.gmra.mxu0 %v1317
        %v1546 = vpop.f32.mrf.mxu0
        %v1547 = vadd.f32 0.0, %v1546
        %1548 = vmatmul.f32.gmra.mxu0 %v1319
        %v1549 = vpop.f32.mrf.mxu0
        %v1550 = vadd.f32 0.0, %v1549
        %1551 = vmatmul.f32.gmra.mxu0 %v1321
        %v1552 = vpop.f32.mrf.mxu0
        %v1553 = vadd.f32 0.0, %v1552
        %1554 = vmatmul.f32.gmra.mxu0 %v1323
        %v1555 = vpop.f32.mrf.mxu0
        %v1556 = vadd.f32 0.0, %v1555
        %1557 = vdwg.mxu0
        %1558 = vmatpush.msra.mxu0 0.0
        %1559 = vmatpush.msra.mxu0 0.0
        %1560 = vmatpush.msra.mxu0 0.0
        %1561 = vmatpush.msra.mxu0 0.0
        %1562 = vmatpush.msra.mxu0 0.0
        %1563 = vmatpush.msra.mxu0 0.0
        %1564 = vmatpush.msra.mxu0 0.0
        %1565 = vmatpush.msra.mxu0 0.0
        %1566 = vmatpush.msra.mxu0 0.0
        %1567 = vmatpush.msra.mxu0 0.0
        %1568 = vmatpush.msra.mxu0 0.0
        %1569 = vmatpush.msra.mxu0 0.0
        %1570 = vmatpush.msra.mxu0 0.0
        %1571 = vmatpush.msra.mxu0 %v533
        %1572 = vmatpush.msra.mxu0 %v348
        %1573 = vmatpush.msra.mxu0 %v347
        %1574 = vmatmul.f32.gmra.mxu0 %v1326
        %v1575 = vpop.f32.mrf.mxu0
        %v1576 = vadd.f32 %v1451, %v1575
        %1577 = vmatmul.f32.gmra.mxu0 %v1329
        %v1578 = vpop.f32.mrf.mxu0
        %v1579 = vadd.f32 %v1454, %v1578
        %1580 = vmatmul.f32.gmra.mxu0 %v1332
        %v1581 = vpop.f32.mrf.mxu0
        %v1582 = vadd.f32 %v1457, %v1581
        %1583 = vmatmul.f32.gmra.mxu0 %v1335
        %v1584 = vpop.f32.mrf.mxu0
        %v1585 = vadd.f32 %v1460, %v1584
        %1586 = vmatmul.f32.gmra.mxu0 %v1338
        %v1587 = vpop.f32.mrf.mxu0
        %v1588 = vadd.f32 %v1463, %v1587
        %1589 = vmatmul.f32.gmra.mxu0 %v1341
        %v1590 = vpop.f32.mrf.mxu0
        %v1591 = vadd.f32 %v1466, %v1590
        %1592 = vmatmul.f32.gmra.mxu0 %v1344
        %v1593 = vpop.f32.mrf.mxu0
        %v1594 = vadd.f32 %v1469, %v1593
        %1595 = vmatmul.f32.gmra.mxu0 %v1347
        %v1596 = vpop.f32.mrf.mxu0
        %v1597 = vadd.f32 %v1472, %v1596
        %1598 = vmatmul.f32.gmra.mxu0 %v1350
        %v1599 = vpop.f32.mrf.mxu0
        %v1600 = vadd.f32 %v1475, %v1599
        %1601 = vmatmul.f32.gmra.mxu0 %v1353
        %v1602 = vpop.f32.mrf.mxu0
        %v1603 = vadd.f32 %v1478, %v1602
        %1604 = vmatmul.f32.gmra.mxu0 %v1356
        %v1605 = vpop.f32.mrf.mxu0
        %v1606 = vadd.f32 %v1481, %v1605
        %1607 = vmatmul.f32.gmra.mxu0 %v1359
        %v1608 = vpop.f32.mrf.mxu0
        %v1609 = vadd.f32 %v1484, %v1608
        %1610 = vmatmul.f32.gmra.mxu0 %v1362
        %v1611 = vpop.f32.mrf.mxu0
        %v1612 = vadd.f32 %v1487, %v1611
        %1613 = vmatmul.f32.gmra.mxu0 %v1365
        %v1614 = vpop.f32.mrf.mxu0
        %v1615 = vadd.f32 %v1490, %v1614
        %1616 = vmatmul.f32.gmra.mxu0 %v1368
        %v1617 = vpop.f32.mrf.mxu0
        %v1618 = vadd.f32 %v1493, %v1617
        %1619 = vmatmul.f32.gmra.mxu0 %v1371
        %v1620 = vpop.f32.mrf.mxu0
        %v1621 = vadd.f32 %v1496, %v1620
        %1622 = vmatmul.f32.gmra.mxu0 %v1374
        %v1623 = vpop.f32.mrf.mxu0
        %v1624 = vadd.f32 %v1499, %v1623
        %1625 = vmatmul.f32.gmra.mxu0 %v1377
        %v1626 = vpop.f32.mrf.mxu0
        %v1627 = vadd.f32 %v1502, %v1626
        %1628 = vmatmul.f32.gmra.mxu0 %v1380
        %v1629 = vpop.f32.mrf.mxu0
        %v1630 = vadd.f32 %v1505, %v1629
        %1631 = vmatmul.f32.gmra.mxu0 %v1383
        %v1632 = vpop.f32.mrf.mxu0
        %v1633 = vadd.f32 %v1508, %v1632
        %1634 = vmatmul.f32.gmra.mxu0 %v1386
        %v1635 = vpop.f32.mrf.mxu0
        %v1636 = vadd.f32 %v1511, %v1635
        %1637 = vmatmul.f32.gmra.mxu0 %v1389
        %v1638 = vpop.f32.mrf.mxu0
        %v1639 = vadd.f32 %v1514, %v1638
        %1640 = vmatmul.f32.gmra.mxu0 %v1392
        %v1641 = vpop.f32.mrf.mxu0
        %v1642 = vadd.f32 %v1517, %v1641
        %1643 = vmatmul.f32.gmra.mxu0 %v1395
        %v1644 = vpop.f32.mrf.mxu0
        %v1645 = vadd.f32 %v1520, %v1644
        %1646 = vmatmul.f32.gmra.mxu0 %v1398
        %v1647 = vpop.f32.mrf.mxu0
        %v1648 = vadd.f32 %v1523, %v1647
        %1649 = vmatmul.f32.gmra.mxu0 %v1401
        %v1650 = vpop.f32.mrf.mxu0
        %v1651 = vadd.f32 %v1526, %v1650
        %1652 = vmatmul.f32.gmra.mxu0 %v1404
        %v1653 = vpop.f32.mrf.mxu0
        %v1654 = vadd.f32 %v1529, %v1653
        %1655 = vmatmul.f32.gmra.mxu0 %v1407
        %v1656 = vpop.f32.mrf.mxu0
        %v1657 = vadd.f32 %v1532, %v1656
        %1658 = vmatmul.f32.gmra.mxu0 %v1410
        %v1659 = vpop.f32.mrf.mxu0
        %v1660 = vadd.f32 %v1535, %v1659
        %1661 = vmatmul.f32.gmra.mxu0 %v1413
        %v1662 = vpop.f32.mrf.mxu0
        %v1663 = vadd.f32 %v1538, %v1662
        %1664 = vmatmul.f32.gmra.mxu0 %v1416
        %v1665 = vpop.f32.mrf.mxu0
        %v1666 = vadd.f32 %v1541, %v1665
        %1667 = vmatmul.f32.gmra.mxu0 %v1419
        %v1668 = vpop.f32.mrf.mxu0
        %v1669 = vadd.f32 %v1544, %v1668
        %1670 = vmatmul.f32.gmra.mxu0 %v1422
        %v1671 = vpop.f32.mrf.mxu0
        %v1672 = vadd.f32 %v1547, %v1671
        %1673 = vmatmul.f32.gmra.mxu0 %v1425
        %v1674 = vpop.f32.mrf.mxu0
        %v1675 = vadd.f32 %v1550, %v1674
        %1676 = vmatmul.f32.gmra.mxu0 %v1428
        %v1677 = vpop.f32.mrf.mxu0
        %v1678 = vadd.f32 %v1553, %v1677
        %1679 = vmatmul.f32.gmra.mxu0 %v1431
        %v1680 = vpop.f32.mrf.mxu0
        %v1681 = vadd.f32 %v1556, %v1680
        %1682 = vdwg.mxu0
        %v1683 = vmax.f32 %v1216, %v1576
        %v1684 = vmax.f32 %v1217, %v1579
        %v1685 = vmax.f32 %v1218, %v1582
        %v1686 = vmax.f32 %v1219, %v1585
        %v1687 = vmax.f32 %v1220, %v1588
        %v1688 = vmax.f32 %v1221, %v1591
        %v1689 = vmax.f32 %v1222, %v1594
        %v1690 = vmax.f32 %v1223, %v1597
        %v1691 = vmax.f32 %v1224, %v1600
        %v1692 = vmax.f32 %v1225, %v1603
        %v1693 = vmax.f32 %v1226, %v1606
        %v1694 = vmax.f32 %v1227, %v1609
        %v1695 = vmax.f32 %v1228, %v1612
        %v1696 = vmax.f32 %v1229, %v1615
        %v1697 = vmax.f32 %v1230, %v1618
        %v1698 = vmax.f32 %v1231, %v1621
        %v1699 = vmax.f32 %v1232, %v1624
        %v1700 = vmax.f32 %v1233, %v1627
        %v1701 = vmax.f32 %v1234, %v1630
        %v1702 = vmax.f32 %v1235, %v1633
        %v1703 = vmax.f32 %v1236, %v1636
        %v1704 = vmax.f32 %v1237, %v1639
        %v1705 = vmax.f32 %v1238, %v1642
        %v1706 = vmax.f32 %v1239, %v1645
        %v1707 = vmax.f32 %v1240, %v1648
        %v1708 = vmax.f32 %v1241, %v1651
        %v1709 = vmax.f32 %v1242, %v1654
        %v1710 = vmax.f32 %v1243, %v1657
        %v1711 = vmax.f32 %v1244, %v1660
        %v1712 = vmax.f32 %v1245, %v1663
        %v1713 = vmax.f32 %v1246, %v1666
        %v1714 = vmax.f32 %v1247, %v1669
        %v1715 = vmax.f32 %v1248, %v1672
        %v1716 = vmax.f32 %v1249, %v1675
        %v1717 = vmax.f32 %v1250, %v1678
        %v1718 = vmax.f32 %v1251, %v1681
        %s1719 = scalar_lea.vmem %s330, 1728
        %v1720 = vld [vmem:[%s1719] sm:$0xff]
        %v1721 = vld [vmem:[%s1719 + $0x8] sm:$0xff]
        %v1722 = vld [vmem:[%s1719 + $0x10] sm:$0xff]
        %v1723 = vld [vmem:[%s1719 + $0x18] sm:$0xff]
        %v1724 = vld [vmem:[%s1719 + $0x20] sm:$0xff]
        %v1725 = vld [vmem:[%s1719 + $0x28] sm:$0xff]
        %v1726 = vld [vmem:[%s1719 + $0x30] sm:$0xff]
        %v1727 = vld [vmem:[%s1719 + $0x38] sm:$0xff]
        %v1728 = vld [vmem:[%s1719 + $0x40] sm:$0xff]
        %v1729 = vld [vmem:[%s1719 + $0x48] sm:$0xff]
        %v1730 = vld [vmem:[%s1719 + $0x50] sm:$0xff]
        %v1731 = vld [vmem:[%s1719 + $0x58] sm:$0xff]
        %v1732 = vld [vmem:[%s1719 + $0x60] sm:$0xff]
        %v1733 = vld [vmem:[%s1719 + $0x68] sm:$0xff]
        %v1734 = vld [vmem:[%s1719 + $0x70] sm:$0xff]
        %v1735 = vld [vmem:[%s1719 + $0x78] sm:$0xff]
        %v1736 = vld [vmem:[%s1719 + $0x80] sm:$0xff]
        %v1737 = vld [vmem:[%s1719 + $0x88] sm:$0xff]
        %v1738 = vld [vmem:[%s1719 + $0x90] sm:$0xff]
        %v1739 = vld [vmem:[%s1719 + $0x98] sm:$0xff]
        %v1740 = vld [vmem:[%s1719 + $0xa0] sm:$0xff]
        %v1741 = vld [vmem:[%s1719 + $0xa8] sm:$0xff]
        %v1742 = vld [vmem:[%s1719 + $0xb0] sm:$0xff]
        %v1743 = vld [vmem:[%s1719 + $0xb8] sm:$0xff]
        %v1744 = vld [vmem:[%s1719 + $0xc0] sm:$0xff]
        %v1745 = vld [vmem:[%s1719 + $0xc8] sm:$0xff]
        %v1746 = vld [vmem:[%s1719 + $0xd0] sm:$0xff]
        %v1747 = vld [vmem:[%s1719 + $0xd8] sm:$0xff]
        %v1748 = vld [vmem:[%s1719 + $0xe0] sm:$0xff]
        %v1749 = vld [vmem:[%s1719 + $0xe8] sm:$0xff]
        %v1750 = vld [vmem:[%s1719 + $0xf0] sm:$0xff]
        %v1751 = vld [vmem:[%s1719 + $0xf8] sm:$0xff]
        %v1752 = vld [vmem:[%s1719 + $0x100] sm:$0xff]
        %v1753 = vld [vmem:[%s1719 + $0x108] sm:$0xff]
        %v1754 = vld [vmem:[%s1719 + $0x110] sm:$0xff]
        %v1755 = vld [vmem:[%s1719 + $0x118] sm:$0xff]
        %v1756 = vld [vmem:[%s1719 + $0x120] sm:$0xff]
        %v1757 = vld [vmem:[%s1719 + $0x128] sm:$0xff]
        %v1758 = vld [vmem:[%s1719 + $0x130] sm:$0xff]
        %v1759 = vld [vmem:[%s1719 + $0x138] sm:$0xff]
        %v1760 = vld [vmem:[%s1719 + $0x140] sm:$0xff]
        %v1761 = vld [vmem:[%s1719 + $0x148] sm:$0xff]
        %v1762 = vld [vmem:[%s1719 + $0x150] sm:$0xff]
        %v1763 = vld [vmem:[%s1719 + $0x158] sm:$0xff]
        %v1764 = vld [vmem:[%s1719 + $0x160] sm:$0xff]
        %v1765 = vld [vmem:[%s1719 + $0x168] sm:$0xff]
        %v1766 = vld [vmem:[%s1719 + $0x170] sm:$0xff]
        %v1767 = vld [vmem:[%s1719 + $0x178] sm:$0xff]
        %v1768 = vld [vmem:[%s1719 + $0x180] sm:$0xff]
        %v1769 = vld [vmem:[%s1719 + $0x188] sm:$0xff]
        %v1770 = vld [vmem:[%s1719 + $0x190] sm:$0xff]
        %v1771 = vld [vmem:[%s1719 + $0x198] sm:$0xff]
        %v1772 = vld [vmem:[%s1719 + $0x1a0] sm:$0xff]
        %v1773 = vld [vmem:[%s1719 + $0x1a8] sm:$0xff]
        %v1774 = vld [vmem:[%s1719 + $0x1b0] sm:$0xff]
        %v1775 = vld [vmem:[%s1719 + $0x1b8] sm:$0xff]
        %v1776 = vld [vmem:[%s1719 + $0x1c0] sm:$0xff]
        %v1777 = vld [vmem:[%s1719 + $0x1c8] sm:$0xff]
        %v1778 = vld [vmem:[%s1719 + $0x1d0] sm:$0xff]
        %v1779 = vld [vmem:[%s1719 + $0x1d8] sm:$0xff]
        %v1780 = vld [vmem:[%s1719 + $0x1e0] sm:$0xff]
        %v1781 = vld [vmem:[%s1719 + $0x1e8] sm:$0xff]
        %v1782 = vld [vmem:[%s1719 + $0x1f0] sm:$0xff]
        %v1783 = vld [vmem:[%s1719 + $0x1f8] sm:$0xff]
        %v1784 = vld [vmem:[%s1719 + $0x200] sm:$0xff]
        %v1785 = vld [vmem:[%s1719 + $0x208] sm:$0xff]
        %v1786 = vld [vmem:[%s1719 + $0x210] sm:$0xff]
        %v1787 = vld [vmem:[%s1719 + $0x218] sm:$0xff]
        %v1788 = vld [vmem:[%s1719 + $0x220] sm:$0xff]
        %v1789 = vld [vmem:[%s1719 + $0x228] sm:$0xff]
        %v1790 = vld [vmem:[%s1719 + $0x230] sm:$0xff]
        %v1791 = vld [vmem:[%s1719 + $0x238] sm:$0xff]
        %v1793 = vsel %vm422, %v1721, 0
        %v1796 = vsel %vm422, %v1723, 0
        %v1799 = vsel %vm422, %v1725, 0
        %v1802 = vsel %vm422, %v1727, 0
        %v1805 = vsel %vm422, %v1729, 0
        %v1808 = vsel %vm422, %v1731, 0
        %v1811 = vsel %vm422, %v1733, 0
        %v1814 = vsel %vm422, %v1735, 0
        %v1817 = vsel %vm422, %v1737, 0
        %v1820 = vsel %vm422, %v1739, 0
        %v1823 = vsel %vm422, %v1741, 0
        %v1826 = vsel %vm422, %v1743, 0
        %v1829 = vsel %vm422, %v1745, 0
        %v1832 = vsel %vm422, %v1747, 0
        %v1835 = vsel %vm422, %v1749, 0
        %v1838 = vsel %vm422, %v1751, 0
        %v1841 = vsel %vm422, %v1753, 0
        %v1844 = vsel %vm422, %v1755, 0
        %v1847 = vsel %vm422, %v1757, 0
        %v1850 = vsel %vm422, %v1759, 0
        %v1853 = vsel %vm422, %v1761, 0
        %v1856 = vsel %vm422, %v1763, 0
        %v1859 = vsel %vm422, %v1765, 0
        %v1862 = vsel %vm422, %v1767, 0
        %v1865 = vsel %vm422, %v1769, 0
        %v1868 = vsel %vm422, %v1771, 0
        %v1871 = vsel %vm422, %v1773, 0
        %v1874 = vsel %vm422, %v1775, 0
        %v1877 = vsel %vm422, %v1777, 0
        %v1880 = vsel %vm422, %v1779, 0
        %v1883 = vsel %vm422, %v1781, 0
        %v1886 = vsel %vm422, %v1783, 0
        %v1889 = vsel %vm422, %v1785, 0
        %v1892 = vsel %vm422, %v1787, 0
        %v1895 = vsel %vm422, %v1789, 0
        %v1898 = vsel %vm422, %v1791, 0
        %1900 = vmatpush.msra.mxu0 %v346
        %1901 = vmatpush.msra.mxu0 %v345
        %1902 = vmatpush.msra.mxu0 %v344
        %1903 = vmatpush.msra.mxu0 %v343
        %1904 = vmatpush.msra.mxu0 %v342
        %1905 = vmatpush.msra.mxu0 %v341
        %1906 = vmatpush.msra.mxu0 %v340
        %1907 = vmatpush.msra.mxu0 %v339
        %1908 = vmatpush.msra.mxu0 %v338
        %1909 = vmatpush.msra.mxu0 %v337
        %1910 = vmatpush.msra.mxu0 %v336
        %1911 = vmatpush.msra.mxu0 %v335
        %1912 = vmatpush.msra.mxu0 %v334
        %1913 = vmatpush.msra.mxu0 %v333
        %1914 = vmatpush.msra.mxu0 %v332
        %1915 = vmatpush.msra.mxu0 %v331
        %1916 = vmatmul.f32.gmra.mxu0 %v1720
        %v1917 = vpop.f32.mrf.mxu0
        %v1918 = vadd.f32 0.0, %v1917
        %1919 = vmatmul.f32.gmra.mxu0 %v1722
        %v1920 = vpop.f32.mrf.mxu0
        %v1921 = vadd.f32 0.0, %v1920
        %1922 = vmatmul.f32.gmra.mxu0 %v1724
        %v1923 = vpop.f32.mrf.mxu0
        %v1924 = vadd.f32 0.0, %v1923
        %1925 = vmatmul.f32.gmra.mxu0 %v1726
        %v1926 = vpop.f32.mrf.mxu0
        %v1927 = vadd.f32 0.0, %v1926
        %1928 = vmatmul.f32.gmra.mxu0 %v1728
        %v1929 = vpop.f32.mrf.mxu0
        %v1930 = vadd.f32 0.0, %v1929
        %1931 = vmatmul.f32.gmra.mxu0 %v1730
        %v1932 = vpop.f32.mrf.mxu0
        %v1933 = vadd.f32 0.0, %v1932
        %1934 = vmatmul.f32.gmra.mxu0 %v1732
        %v1935 = vpop.f32.mrf.mxu0
        %v1936 = vadd.f32 0.0, %v1935
        %1937 = vmatmul.f32.gmra.mxu0 %v1734
        %v1938 = vpop.f32.mrf.mxu0
        %v1939 = vadd.f32 0.0, %v1938
        %1940 = vmatmul.f32.gmra.mxu0 %v1736
        %v1941 = vpop.f32.mrf.mxu0
        %v1942 = vadd.f32 0.0, %v1941
        %1943 = vmatmul.f32.gmra.mxu0 %v1738
        %v1944 = vpop.f32.mrf.mxu0
        %v1945 = vadd.f32 0.0, %v1944
        %1946 = vmatmul.f32.gmra.mxu0 %v1740
        %v1947 = vpop.f32.mrf.mxu0
        %v1948 = vadd.f32 0.0, %v1947
        %1949 = vmatmul.f32.gmra.mxu0 %v1742
        %v1950 = vpop.f32.mrf.mxu0
        %v1951 = vadd.f32 0.0, %v1950
        %1952 = vmatmul.f32.gmra.mxu0 %v1744
        %v1953 = vpop.f32.mrf.mxu0
        %v1954 = vadd.f32 0.0, %v1953
        %1955 = vmatmul.f32.gmra.mxu0 %v1746
        %v1956 = vpop.f32.mrf.mxu0
        %v1957 = vadd.f32 0.0, %v1956
        %1958 = vmatmul.f32.gmra.mxu0 %v1748
        %v1959 = vpop.f32.mrf.mxu0
        %v1960 = vadd.f32 0.0, %v1959
        %1961 = vmatmul.f32.gmra.mxu0 %v1750
        %v1962 = vpop.f32.mrf.mxu0
        %v1963 = vadd.f32 0.0, %v1962
        %1964 = vmatmul.f32.gmra.mxu0 %v1752
        %v1965 = vpop.f32.mrf.mxu0
        %v1966 = vadd.f32 0.0, %v1965
        %1967 = vmatmul.f32.gmra.mxu0 %v1754
        %v1968 = vpop.f32.mrf.mxu0
        %v1969 = vadd.f32 0.0, %v1968
        %1970 = vmatmul.f32.gmra.mxu0 %v1756
        %v1971 = vpop.f32.mrf.mxu0
        %v1972 = vadd.f32 0.0, %v1971
        %1973 = vmatmul.f32.gmra.mxu0 %v1758
        %v1974 = vpop.f32.mrf.mxu0
        %v1975 = vadd.f32 0.0, %v1974
        %1976 = vmatmul.f32.gmra.mxu0 %v1760
        %v1977 = vpop.f32.mrf.mxu0
        %v1978 = vadd.f32 0.0, %v1977
        %1979 = vmatmul.f32.gmra.mxu0 %v1762
        %v1980 = vpop.f32.mrf.mxu0
        %v1981 = vadd.f32 0.0, %v1980
        %1982 = vmatmul.f32.gmra.mxu0 %v1764
        %v1983 = vpop.f32.mrf.mxu0
        %v1984 = vadd.f32 0.0, %v1983
        %1985 = vmatmul.f32.gmra.mxu0 %v1766
        %v1986 = vpop.f32.mrf.mxu0
        %v1987 = vadd.f32 0.0, %v1986
        %1988 = vmatmul.f32.gmra.mxu0 %v1768
        %v1989 = vpop.f32.mrf.mxu0
        %v1990 = vadd.f32 0.0, %v1989
        %1991 = vmatmul.f32.gmra.mxu0 %v1770
        %v1992 = vpop.f32.mrf.mxu0
        %v1993 = vadd.f32 0.0, %v1992
        %1994 = vmatmul.f32.gmra.mxu0 %v1772
        %v1995 = vpop.f32.mrf.mxu0
        %v1996 = vadd.f32 0.0, %v1995
        %1997 = vmatmul.f32.gmra.mxu0 %v1774
        %v1998 = vpop.f32.mrf.mxu0
        %v1999 = vadd.f32 0.0, %v1998
        %2000 = vmatmul.f32.gmra.mxu0 %v1776
        %v2001 = vpop.f32.mrf.mxu0
        %v2002 = vadd.f32 0.0, %v2001
        %2003 = vmatmul.f32.gmra.mxu0 %v1778
        %v2004 = vpop.f32.mrf.mxu0
        %v2005 = vadd.f32 0.0, %v2004
        %2006 = vmatmul.f32.gmra.mxu0 %v1780
        %v2007 = vpop.f32.mrf.mxu0
        %v2008 = vadd.f32 0.0, %v2007
        %2009 = vmatmul.f32.gmra.mxu0 %v1782
        %v2010 = vpop.f32.mrf.mxu0
        %v2011 = vadd.f32 0.0, %v2010
        %2012 = vmatmul.f32.gmra.mxu0 %v1784
        %v2013 = vpop.f32.mrf.mxu0
        %v2014 = vadd.f32 0.0, %v2013
        %2015 = vmatmul.f32.gmra.mxu0 %v1786
        %v2016 = vpop.f32.mrf.mxu0
        %v2017 = vadd.f32 0.0, %v2016
        %2018 = vmatmul.f32.gmra.mxu0 %v1788
        %v2019 = vpop.f32.mrf.mxu0
        %v2020 = vadd.f32 0.0, %v2019
        %2021 = vmatmul.f32.gmra.mxu0 %v1790
        %v2022 = vpop.f32.mrf.mxu0
        %v2023 = vadd.f32 0.0, %v2022
        %2024 = vdwg.mxu0
        %2025 = vmatpush.msra.mxu0 0.0
        %2026 = vmatpush.msra.mxu0 0.0
        %2027 = vmatpush.msra.mxu0 0.0
        %2028 = vmatpush.msra.mxu0 0.0
        %2029 = vmatpush.msra.mxu0 0.0
        %2030 = vmatpush.msra.mxu0 0.0
        %2031 = vmatpush.msra.mxu0 0.0
        %2032 = vmatpush.msra.mxu0 0.0
        %2033 = vmatpush.msra.mxu0 0.0
        %2034 = vmatpush.msra.mxu0 0.0
        %2035 = vmatpush.msra.mxu0 0.0
        %2036 = vmatpush.msra.mxu0 0.0
        %2037 = vmatpush.msra.mxu0 0.0
        %2038 = vmatpush.msra.mxu0 %v533
        %2039 = vmatpush.msra.mxu0 %v348
        %2040 = vmatpush.msra.mxu0 %v347
        %2041 = vmatmul.f32.gmra.mxu0 %v1793
        %v2042 = vpop.f32.mrf.mxu0
        %v2043 = vadd.f32 %v1918, %v2042
        %2044 = vmatmul.f32.gmra.mxu0 %v1796
        %v2045 = vpop.f32.mrf.mxu0
        %v2046 = vadd.f32 %v1921, %v2045
        %2047 = vmatmul.f32.gmra.mxu0 %v1799
        %v2048 = vpop.f32.mrf.mxu0
        %v2049 = vadd.f32 %v1924, %v2048
        %2050 = vmatmul.f32.gmra.mxu0 %v1802
        %v2051 = vpop.f32.mrf.mxu0
        %v2052 = vadd.f32 %v1927, %v2051
        %2053 = vmatmul.f32.gmra.mxu0 %v1805
        %v2054 = vpop.f32.mrf.mxu0
        %v2055 = vadd.f32 %v1930, %v2054
        %2056 = vmatmul.f32.gmra.mxu0 %v1808
        %v2057 = vpop.f32.mrf.mxu0
        %v2058 = vadd.f32 %v1933, %v2057
        %2059 = vmatmul.f32.gmra.mxu0 %v1811
        %v2060 = vpop.f32.mrf.mxu0
        %v2061 = vadd.f32 %v1936, %v2060
        %2062 = vmatmul.f32.gmra.mxu0 %v1814
        %v2063 = vpop.f32.mrf.mxu0
        %v2064 = vadd.f32 %v1939, %v2063
        %2065 = vmatmul.f32.gmra.mxu0 %v1817
        %v2066 = vpop.f32.mrf.mxu0
        %v2067 = vadd.f32 %v1942, %v2066
        %2068 = vmatmul.f32.gmra.mxu0 %v1820
        %v2069 = vpop.f32.mrf.mxu0
        %v2070 = vadd.f32 %v1945, %v2069
        %2071 = vmatmul.f32.gmra.mxu0 %v1823
        %v2072 = vpop.f32.mrf.mxu0
        %v2073 = vadd.f32 %v1948, %v2072
        %2074 = vmatmul.f32.gmra.mxu0 %v1826
        %v2075 = vpop.f32.mrf.mxu0
        %v2076 = vadd.f32 %v1951, %v2075
        %2077 = vmatmul.f32.gmra.mxu0 %v1829
        %v2078 = vpop.f32.mrf.mxu0
        %v2079 = vadd.f32 %v1954, %v2078
        %2080 = vmatmul.f32.gmra.mxu0 %v1832
        %v2081 = vpop.f32.mrf.mxu0
        %v2082 = vadd.f32 %v1957, %v2081
        %2083 = vmatmul.f32.gmra.mxu0 %v1835
        %v2084 = vpop.f32.mrf.mxu0
        %v2085 = vadd.f32 %v1960, %v2084
        %2086 = vmatmul.f32.gmra.mxu0 %v1838
        %v2087 = vpop.f32.mrf.mxu0
        %v2088 = vadd.f32 %v1963, %v2087
        %2089 = vmatmul.f32.gmra.mxu0 %v1841
        %v2090 = vpop.f32.mrf.mxu0
        %v2091 = vadd.f32 %v1966, %v2090
        %2092 = vmatmul.f32.gmra.mxu0 %v1844
        %v2093 = vpop.f32.mrf.mxu0
        %v2094 = vadd.f32 %v1969, %v2093
        %2095 = vmatmul.f32.gmra.mxu0 %v1847
        %v2096 = vpop.f32.mrf.mxu0
        %v2097 = vadd.f32 %v1972, %v2096
        %2098 = vmatmul.f32.gmra.mxu0 %v1850
        %v2099 = vpop.f32.mrf.mxu0
        %v2100 = vadd.f32 %v1975, %v2099
        %2101 = vmatmul.f32.gmra.mxu0 %v1853
        %v2102 = vpop.f32.mrf.mxu0
        %v2103 = vadd.f32 %v1978, %v2102
        %2104 = vmatmul.f32.gmra.mxu0 %v1856
        %v2105 = vpop.f32.mrf.mxu0
        %v2106 = vadd.f32 %v1981, %v2105
        %2107 = vmatmul.f32.gmra.mxu0 %v1859
        %v2108 = vpop.f32.mrf.mxu0
        %v2109 = vadd.f32 %v1984, %v2108
        %2110 = vmatmul.f32.gmra.mxu0 %v1862
        %v2111 = vpop.f32.mrf.mxu0
        %v2112 = vadd.f32 %v1987, %v2111
        %2113 = vmatmul.f32.gmra.mxu0 %v1865
        %v2114 = vpop.f32.mrf.mxu0
        %v2115 = vadd.f32 %v1990, %v2114
        %2116 = vmatmul.f32.gmra.mxu0 %v1868
        %v2117 = vpop.f32.mrf.mxu0
        %v2118 = vadd.f32 %v1993, %v2117
        %2119 = vmatmul.f32.gmra.mxu0 %v1871
        %v2120 = vpop.f32.mrf.mxu0
        %v2121 = vadd.f32 %v1996, %v2120
        %2122 = vmatmul.f32.gmra.mxu0 %v1874
        %v2123 = vpop.f32.mrf.mxu0
        %v2124 = vadd.f32 %v1999, %v2123
        %2125 = vmatmul.f32.gmra.mxu0 %v1877
        %v2126 = vpop.f32.mrf.mxu0
        %v2127 = vadd.f32 %v2002, %v2126
        %2128 = vmatmul.f32.gmra.mxu0 %v1880
        %v2129 = vpop.f32.mrf.mxu0
        %v2130 = vadd.f32 %v2005, %v2129
        %2131 = vmatmul.f32.gmra.mxu0 %v1883
        %v2132 = vpop.f32.mrf.mxu0
        %v2133 = vadd.f32 %v2008, %v2132
        %2134 = vmatmul.f32.gmra.mxu0 %v1886
        %v2135 = vpop.f32.mrf.mxu0
        %v2136 = vadd.f32 %v2011, %v2135
        %2137 = vmatmul.f32.gmra.mxu0 %v1889
        %v2138 = vpop.f32.mrf.mxu0
        %v2139 = vadd.f32 %v2014, %v2138
        %2140 = vmatmul.f32.gmra.mxu0 %v1892
        %v2141 = vpop.f32.mrf.mxu0
        %v2142 = vadd.f32 %v2017, %v2141
        %2143 = vmatmul.f32.gmra.mxu0 %v1895
        %v2144 = vpop.f32.mrf.mxu0
        %v2145 = vadd.f32 %v2020, %v2144
        %2146 = vmatmul.f32.gmra.mxu0 %v1898
        %v2147 = vpop.f32.mrf.mxu0
        %v2148 = vadd.f32 %v2023, %v2147
        %2149 = vdwg.mxu0
        %v2150 = vmax.f32 %v1683, %v2043
        %v2151 = vmax.f32 %v1684, %v2046
        %v2152 = vmax.f32 %v1685, %v2049
        %v2153 = vmax.f32 %v1686, %v2052
        %v2154 = vmax.f32 %v1687, %v2055
        %v2155 = vmax.f32 %v1688, %v2058
        %v2156 = vmax.f32 %v1689, %v2061
        %v2157 = vmax.f32 %v1690, %v2064
        %v2158 = vmax.f32 %v1691, %v2067
        %v2159 = vmax.f32 %v1692, %v2070
        %v2160 = vmax.f32 %v1693, %v2073
        %v2161 = vmax.f32 %v1694, %v2076
        %v2162 = vmax.f32 %v1695, %v2079
        %v2163 = vmax.f32 %v1696, %v2082
        %v2164 = vmax.f32 %v1697, %v2085
        %v2165 = vmax.f32 %v1698, %v2088
        %v2166 = vmax.f32 %v1699, %v2091
        %v2167 = vmax.f32 %v1700, %v2094
        %v2168 = vmax.f32 %v1701, %v2097
        %v2169 = vmax.f32 %v1702, %v2100
        %v2170 = vmax.f32 %v1703, %v2103
        %v2171 = vmax.f32 %v1704, %v2106
        %v2172 = vmax.f32 %v1705, %v2109
        %v2173 = vmax.f32 %v1706, %v2112
        %v2174 = vmax.f32 %v1707, %v2115
        %v2175 = vmax.f32 %v1708, %v2118
        %v2176 = vmax.f32 %v1709, %v2121
        %v2177 = vmax.f32 %v1710, %v2124
        %v2178 = vmax.f32 %v1711, %v2127
        %v2179 = vmax.f32 %v1712, %v2130
        %v2180 = vmax.f32 %v1713, %v2133
        %v2181 = vmax.f32 %v1714, %v2136
        %v2182 = vmax.f32 %v1715, %v2139
        %v2183 = vmax.f32 %v1716, %v2142
        %v2184 = vmax.f32 %v1717, %v2145
        %v2185 = vmax.f32 %v1718, %v2148
        %v2186 = vld [vmem:[%s2] sm:$0x1]
        %v2188 = vperm.slane %v2186, 0
        %v2190 = vadd.f32 %v2150, %v2188
        %v2191 = vadd.f32 %v2151, %v2188
        %v2192 = vadd.f32 %v2152, %v2188
        %v2193 = vadd.f32 %v2153, %v2188
        %v2194 = vadd.f32 %v2154, %v2188
        %v2195 = vadd.f32 %v2155, %v2188
        %v2196 = vadd.f32 %v2156, %v2188
        %v2197 = vadd.f32 %v2157, %v2188
        %v2198 = vadd.f32 %v2158, %v2188
        %v2199 = vadd.f32 %v2159, %v2188
        %v2200 = vadd.f32 %v2160, %v2188
        %v2201 = vadd.f32 %v2161, %v2188
        %v2202 = vadd.f32 %v2162, %v2188
        %v2203 = vadd.f32 %v2163, %v2188
        %v2204 = vadd.f32 %v2164, %v2188
        %v2205 = vadd.f32 %v2165, %v2188
        %v2206 = vadd.f32 %v2166, %v2188
        %v2207 = vadd.f32 %v2167, %v2188
        %v2208 = vadd.f32 %v2168, %v2188
        %v2209 = vadd.f32 %v2169, %v2188
        %v2210 = vadd.f32 %v2170, %v2188
        %v2211 = vadd.f32 %v2171, %v2188
        %v2212 = vadd.f32 %v2172, %v2188
        %v2213 = vadd.f32 %v2173, %v2188
        %v2214 = vadd.f32 %v2174, %v2188
        %v2215 = vadd.f32 %v2175, %v2188
        %v2216 = vadd.f32 %v2176, %v2188
        %v2217 = vadd.f32 %v2177, %v2188
        %v2218 = vadd.f32 %v2178, %v2188
        %v2219 = vadd.f32 %v2179, %v2188
        %v2220 = vadd.f32 %v2180, %v2188
        %v2221 = vadd.f32 %v2181, %v2188
        %v2222 = vadd.f32 %v2182, %v2188
        %v2223 = vadd.f32 %v2183, %v2188
        %v2224 = vadd.f32 %v2184, %v2188
        %v2225 = vadd.f32 %v2185, %v2188
        %v2226 = vmax.f32 %v2190, 0.0
        %v2227 = vmax.f32 %v2191, 0.0
        %v2228 = vmax.f32 %v2192, 0.0
        %v2229 = vmax.f32 %v2193, 0.0
        %v2230 = vmax.f32 %v2194, 0.0
        %v2231 = vmax.f32 %v2195, 0.0
        %v2232 = vmax.f32 %v2196, 0.0
        %v2233 = vmax.f32 %v2197, 0.0
        %v2234 = vmax.f32 %v2198, 0.0
        %v2235 = vmax.f32 %v2199, 0.0
        %v2236 = vmax.f32 %v2200, 0.0
        %v2237 = vmax.f32 %v2201, 0.0
        %v2238 = vmax.f32 %v2202, 0.0
        %v2239 = vmax.f32 %v2203, 0.0
        %v2240 = vmax.f32 %v2204, 0.0
        %v2241 = vmax.f32 %v2205, 0.0
        %v2242 = vmax.f32 %v2206, 0.0
        %v2243 = vmax.f32 %v2207, 0.0
        %v2244 = vmax.f32 %v2208, 0.0
        %v2245 = vmax.f32 %v2209, 0.0
        %v2246 = vmax.f32 %v2210, 0.0
        %v2247 = vmax.f32 %v2211, 0.0
        %v2248 = vmax.f32 %v2212, 0.0
        %v2249 = vmax.f32 %v2213, 0.0
        %v2250 = vmax.f32 %v2214, 0.0
        %v2251 = vmax.f32 %v2215, 0.0
        %v2252 = vmax.f32 %v2216, 0.0
        %v2253 = vmax.f32 %v2217, 0.0
        %v2254 = vmax.f32 %v2218, 0.0
        %v2255 = vmax.f32 %v2219, 0.0
        %v2256 = vmax.f32 %v2220, 0.0
        %v2257 = vmax.f32 %v2221, 0.0
        %v2258 = vmax.f32 %v2222, 0.0
        %v2259 = vmax.f32 %v2223, 0.0
        %v2260 = vmax.f32 %v2224, 0.0
        %v2261 = vmax.f32 %v2225, 0.0
        %vm2262 = vcmask 130048
        %2263 = vst.msk [vmem:[#allocation2] sm:$0xff] %vm2262, %v2226
        %2264 = vst.msk [vmem:[#allocation2 + $0x8] sm:$0xff] %vm2262, %v2227
        %2265 = vst.msk [vmem:[#allocation2 + $0x10] sm:$0xff] %vm2262, %v2228
        %2266 = vst.msk [vmem:[#allocation2 + $0x18] sm:$0xff] %vm2262, %v2229
        %2267 = vst.msk [vmem:[#allocation2 + $0x20] sm:$0xff] %vm2262, %v2230
        %2268 = vst.msk [vmem:[#allocation2 + $0x28] sm:$0xff] %vm2262, %v2231
        %2269 = vst.msk [vmem:[#allocation2 + $0x30] sm:$0xff] %vm2262, %v2232
        %2270 = vst.msk [vmem:[#allocation2 + $0x38] sm:$0xff] %vm2262, %v2233
        %2271 = vst.msk [vmem:[#allocation2 + $0x40] sm:$0xff] %vm2262, %v2234
        %2272 = vst.msk [vmem:[#allocation2 + $0x48] sm:$0xff] %vm2262, %v2235
        %2273 = vst.msk [vmem:[#allocation2 + $0x50] sm:$0xff] %vm2262, %v2236
        %2274 = vst.msk [vmem:[#allocation2 + $0x58] sm:$0xff] %vm2262, %v2237
        %2275 = vst.msk [vmem:[#allocation2 + $0x60] sm:$0xff] %vm2262, %v2238
        %2276 = vst.msk [vmem:[#allocation2 + $0x68] sm:$0xff] %vm2262, %v2239
        %2277 = vst.msk [vmem:[#allocation2 + $0x70] sm:$0xff] %vm2262, %v2240
        %2278 = vst.msk [vmem:[#allocation2 + $0x78] sm:$0xff] %vm2262, %v2241
        %2279 = vst.msk [vmem:[#allocation2 + $0x80] sm:$0xff] %vm2262, %v2242
        %2280 = vst.msk [vmem:[#allocation2 + $0x88] sm:$0xff] %vm2262, %v2243
        %2281 = vst.msk [vmem:[#allocation2 + $0x90] sm:$0xff] %vm2262, %v2244
        %2282 = vst.msk [vmem:[#allocation2 + $0x98] sm:$0xff] %vm2262, %v2245
        %2283 = vst.msk [vmem:[#allocation2 + $0xa0] sm:$0xff] %vm2262, %v2246
        %2284 = vst.msk [vmem:[#allocation2 + $0xa8] sm:$0xff] %vm2262, %v2247
        %2285 = vst.msk [vmem:[#allocation2 + $0xb0] sm:$0xff] %vm2262, %v2248
        %2286 = vst.msk [vmem:[#allocation2 + $0xb8] sm:$0xff] %vm2262, %v2249
        %2287 = vst.msk [vmem:[#allocation2 + $0xc0] sm:$0xff] %vm2262, %v2250
        %2288 = vst.msk [vmem:[#allocation2 + $0xc8] sm:$0xff] %vm2262, %v2251
        %2289 = vst.msk [vmem:[#allocation2 + $0xd0] sm:$0xff] %vm2262, %v2252
        %2290 = vst.msk [vmem:[#allocation2 + $0xd8] sm:$0xff] %vm2262, %v2253
        %2291 = vst.msk [vmem:[#allocation2 + $0xe0] sm:$0xff] %vm2262, %v2254
        %2292 = vst.msk [vmem:[#allocation2 + $0xe8] sm:$0xff] %vm2262, %v2255
        %2293 = vst.msk [vmem:[#allocation2 + $0xf0] sm:$0xff] %vm2262, %v2256
        %2294 = vst.msk [vmem:[#allocation2 + $0xf8] sm:$0xff] %vm2262, %v2257
        %2295 = vst.msk [vmem:[#allocation2 + $0x100] sm:$0xff] %vm2262, %v2258
        %2296 = vst.msk [vmem:[#allocation2 + $0x108] sm:$0xff] %vm2262, %v2259
        %2297 = vst.msk [vmem:[#allocation2 + $0x110] sm:$0xff] %vm2262, %v2260
        %2298 = vst.msk [vmem:[#allocation2 + $0x118] sm:$0xff] %vm2262, %v2261
        %v2299 = vld [vmem:[#allocation2] sm:$0xff]
        %v2300 = vld [vmem:[%s3] sm:$0xff]
        %v2301 = vld [vmem:[%s3 + $0x8] sm:$0xff]
        %v2302 = vld [vmem:[#allocation2 + $0x8] sm:$0xff]
        %s2303 = scalar_lea.vmem %s3, 16
        %v2304 = vld [vmem:[%s2303] sm:$0xff]
        %v2305 = vld [vmem:[%s2303 + $0x8] sm:$0xff]
        %v2307 = vsel %vm2262, %v2302, 0
        %2309 = vmatpush.msra.mxu0 0.0
        %2310 = vmatpush.msra.mxu0 0.0
        %2311 = vmatpush.msra.mxu0 0.0
        %2312 = vmatpush.msra.mxu0 0.0
        %2313 = vmatpush.msra.mxu0 0.0
        %2314 = vmatpush.msra.mxu0 0.0
        %2315 = vmatpush.msra.mxu0 0.0
        %2316 = vmatpush.msra.mxu0 0.0
        %2317 = vmatpush.msra.mxu0 0.0
        %2318 = vmatpush.msra.mxu0 0.0
        %2319 = vmatpush.msra.mxu0 0.0
        %2320 = vmatpush.msra.mxu0 0.0
        %2321 = vmatpush.msra.mxu0 0.0
        %2322 = vmatpush.msra.mxu0 0.0
        %2323 = vmatpush.msra.mxu0 %v2305
        %2324 = vmatpush.msra.mxu0 %v2304
        %2325 = vmatmul.f32.gmra.mxu0 %v2307
        %v2326 = vpop.f32.mrf.mxu0
        %v2327 = vadd.f32 0.0, %v2326
        %2328 = vdwg.mxu0
        %v2330 = vsel %vm2262, %v2299, 0
        %2332 = vmatpush.msra.mxu0 0.0
        %2333 = vmatpush.msra.mxu0 0.0
        %2334 = vmatpush.msra.mxu0 0.0
        %2335 = vmatpush.msra.mxu0 0.0
        %2336 = vmatpush.msra.mxu0 0.0
        %2337 = vmatpush.msra.mxu0 0.0
        %2338 = vmatpush.msra.mxu0 0.0
        %2339 = vmatpush.msra.mxu0 0.0
        %2340 = vmatpush.msra.mxu0 0.0
        %2341 = vmatpush.msra.mxu0 0.0
        %2342 = vmatpush.msra.mxu0 0.0
        %2343 = vmatpush.msra.mxu0 0.0
        %2344 = vmatpush.msra.mxu0 0.0
        %2345 = vmatpush.msra.mxu0 0.0
        %2346 = vmatpush.msra.mxu0 %v2301
        %2347 = vmatpush.msra.mxu0 %v2300
        %2348 = vmatmul.f32.gmra.mxu0 %v2330
        %v2349 = vpop.f32.mrf.mxu0
        %v2350 = vadd.f32 %v2327, %v2349
        %2351 = vdwg.mxu0
        %v2352 = vld [vmem:[#allocation2 + $0x10] sm:$0xff]
        %s2353 = scalar_lea.vmem %s3, 32
        %v2354 = vld [vmem:[%s2353] sm:$0xff]
        %v2355 = vld [vmem:[%s2353 + $0x8] sm:$0xff]
        %v2357 = vsel %vm2262, %v2352, 0
        %2359 = vmatpush.msra.mxu0 0.0
        %2360 = vmatpush.msra.mxu0 0.0
        %2361 = vmatpush.msra.mxu0 0.0
        %2362 = vmatpush.msra.mxu0 0.0
        %2363 = vmatpush.msra.mxu0 0.0
        %2364 = vmatpush.msra.mxu0 0.0
        %2365 = vmatpush.msra.mxu0 0.0
        %2366 = vmatpush.msra.mxu0 0.0
        %2367 = vmatpush.msra.mxu0 0.0
        %2368 = vmatpush.msra.mxu0 0.0
        %2369 = vmatpush.msra.mxu0 0.0
        %2370 = vmatpush.msra.mxu0 0.0
        %2371 = vmatpush.msra.mxu0 0.0
        %2372 = vmatpush.msra.mxu0 0.0
        %2373 = vmatpush.msra.mxu0 %v2355
        %2374 = vmatpush.msra.mxu0 %v2354
        %2375 = vmatmul.f32.gmra.mxu0 %v2357
        %v2376 = vpop.f32.mrf.mxu0
        %v2377 = vadd.f32 0.0, %v2376
        %2378 = vdwg.mxu0
        %v2379 = vadd.f32 %v2350, %v2377
        %v2380 = vld [vmem:[#allocation2 + $0x18] sm:$0xff]
        %s2381 = scalar_lea.vmem %s3, 48
        %v2382 = vld [vmem:[%s2381] sm:$0xff]
        %v2383 = vld [vmem:[%s2381 + $0x8] sm:$0xff]
        %v2385 = vsel %vm2262, %v2380, 0
        %2387 = vmatpush.msra.mxu0 0.0
        %2388 = vmatpush.msra.mxu0 0.0
        %2389 = vmatpush.msra.mxu0 0.0
        %2390 = vmatpush.msra.mxu0 0.0
        %2391 = vmatpush.msra.mxu0 0.0
        %2392 = vmatpush.msra.mxu0 0.0
        %2393 = vmatpush.msra.mxu0 0.0
        %2394 = vmatpush.msra.mxu0 0.0
        %2395 = vmatpush.msra.mxu0 0.0
        %2396 = vmatpush.msra.mxu0 0.0
        %2397 = vmatpush.msra.mxu0 0.0
        %2398 = vmatpush.msra.mxu0 0.0
        %2399 = vmatpush.msra.mxu0 0.0
        %2400 = vmatpush.msra.mxu0 0.0
        %2401 = vmatpush.msra.mxu0 %v2383
        %2402 = vmatpush.msra.mxu0 %v2382
        %2403 = vmatmul.f32.gmra.mxu0 %v2385
        %v2404 = vpop.f32.mrf.mxu0
        %v2405 = vadd.f32 0.0, %v2404
        %2406 = vdwg.mxu0
        %v2407 = vadd.f32 %v2379, %v2405
        %v2408 = vld [vmem:[#allocation2 + $0x20] sm:$0xff]
        %s2409 = scalar_lea.vmem %s3, 64
        %v2410 = vld [vmem:[%s2409] sm:$0xff]
        %v2411 = vld [vmem:[%s2409 + $0x8] sm:$0xff]
        %v2413 = vsel %vm2262, %v2408, 0
        %2415 = vmatpush.msra.mxu0 0.0
        %2416 = vmatpush.msra.mxu0 0.0
        %2417 = vmatpush.msra.mxu0 0.0
        %2418 = vmatpush.msra.mxu0 0.0
        %2419 = vmatpush.msra.mxu0 0.0
        %2420 = vmatpush.msra.mxu0 0.0
        %2421 = vmatpush.msra.mxu0 0.0
        %2422 = vmatpush.msra.mxu0 0.0
        %2423 = vmatpush.msra.mxu0 0.0
        %2424 = vmatpush.msra.mxu0 0.0
        %2425 = vmatpush.msra.mxu0 0.0
        %2426 = vmatpush.msra.mxu0 0.0
        %2427 = vmatpush.msra.mxu0 0.0
        %2428 = vmatpush.msra.mxu0 0.0
        %2429 = vmatpush.msra.mxu0 %v2411
        %2430 = vmatpush.msra.mxu0 %v2410
        %2431 = vmatmul.f32.gmra.mxu0 %v2413
        %v2432 = vpop.f32.mrf.mxu0
        %v2433 = vadd.f32 0.0, %v2432
        %2434 = vdwg.mxu0
        %v2435 = vadd.f32 %v2407, %v2433
        %v2436 = vld [vmem:[#allocation2 + $0x28] sm:$0xff]
        %s2437 = scalar_lea.vmem %s3, 80
        %v2438 = vld [vmem:[%s2437] sm:$0xff]
        %v2439 = vld [vmem:[%s2437 + $0x8] sm:$0xff]
        %v2441 = vsel %vm2262, %v2436, 0
        %2443 = vmatpush.msra.mxu0 0.0
        %2444 = vmatpush.msra.mxu0 0.0
        %2445 = vmatpush.msra.mxu0 0.0
        %2446 = vmatpush.msra.mxu0 0.0
        %2447 = vmatpush.msra.mxu0 0.0
        %2448 = vmatpush.msra.mxu0 0.0
        %2449 = vmatpush.msra.mxu0 0.0
        %2450 = vmatpush.msra.mxu0 0.0
        %2451 = vmatpush.msra.mxu0 0.0
        %2452 = vmatpush.msra.mxu0 0.0
        %2453 = vmatpush.msra.mxu0 0.0
        %2454 = vmatpush.msra.mxu0 0.0
        %2455 = vmatpush.msra.mxu0 0.0
        %2456 = vmatpush.msra.mxu0 0.0
        %2457 = vmatpush.msra.mxu0 %v2439
        %2458 = vmatpush.msra.mxu0 %v2438
        %2459 = vmatmul.f32.gmra.mxu0 %v2441
        %v2460 = vpop.f32.mrf.mxu0
        %v2461 = vadd.f32 0.0, %v2460
        %2462 = vdwg.mxu0
        %v2463 = vadd.f32 %v2435, %v2461
        %v2464 = vld [vmem:[#allocation2 + $0x30] sm:$0xff]
        %s2465 = scalar_lea.vmem %s3, 96
        %v2466 = vld [vmem:[%s2465] sm:$0xff]
        %v2467 = vld [vmem:[%s2465 + $0x8] sm:$0xff]
        %v2469 = vsel %vm2262, %v2464, 0
        %2471 = vmatpush.msra.mxu0 0.0
        %2472 = vmatpush.msra.mxu0 0.0
        %2473 = vmatpush.msra.mxu0 0.0
        %2474 = vmatpush.msra.mxu0 0.0
        %2475 = vmatpush.msra.mxu0 0.0
        %2476 = vmatpush.msra.mxu0 0.0
        %2477 = vmatpush.msra.mxu0 0.0
        %2478 = vmatpush.msra.mxu0 0.0
        %2479 = vmatpush.msra.mxu0 0.0
        %2480 = vmatpush.msra.mxu0 0.0
        %2481 = vmatpush.msra.mxu0 0.0
        %2482 = vmatpush.msra.mxu0 0.0
        %2483 = vmatpush.msra.mxu0 0.0
        %2484 = vmatpush.msra.mxu0 0.0
        %2485 = vmatpush.msra.mxu0 %v2467
        %2486 = vmatpush.msra.mxu0 %v2466
        %2487 = vmatmul.f32.gmra.mxu0 %v2469
        %v2488 = vpop.f32.mrf.mxu0
        %v2489 = vadd.f32 0.0, %v2488
        %2490 = vdwg.mxu0
        %v2491 = vadd.f32 %v2463, %v2489
        %v2492 = vld [vmem:[#allocation2 + $0x38] sm:$0xff]
        %s2493 = scalar_lea.vmem %s3, 112
        %v2494 = vld [vmem:[%s2493] sm:$0xff]
        %v2495 = vld [vmem:[%s2493 + $0x8] sm:$0xff]
        %v2497 = vsel %vm2262, %v2492, 0
        %2499 = vmatpush.msra.mxu0 0.0
        %2500 = vmatpush.msra.mxu0 0.0
        %2501 = vmatpush.msra.mxu0 0.0
        %2502 = vmatpush.msra.mxu0 0.0
        %2503 = vmatpush.msra.mxu0 0.0
        %2504 = vmatpush.msra.mxu0 0.0
        %2505 = vmatpush.msra.mxu0 0.0
        %2506 = vmatpush.msra.mxu0 0.0
        %2507 = vmatpush.msra.mxu0 0.0
        %2508 = vmatpush.msra.mxu0 0.0
        %2509 = vmatpush.msra.mxu0 0.0
        %2510 = vmatpush.msra.mxu0 0.0
        %2511 = vmatpush.msra.mxu0 0.0
        %2512 = vmatpush.msra.mxu0 0.0
        %2513 = vmatpush.msra.mxu0 %v2495
        %2514 = vmatpush.msra.mxu0 %v2494
        %2515 = vmatmul.f32.gmra.mxu0 %v2497
        %v2516 = vpop.f32.mrf.mxu0
        %v2517 = vadd.f32 0.0, %v2516
        %2518 = vdwg.mxu0
        %v2519 = vadd.f32 %v2491, %v2517
        %v2520 = vld [vmem:[#allocation2 + $0x40] sm:$0xff]
        %s2521 = scalar_lea.vmem %s3, 128
        %v2522 = vld [vmem:[%s2521] sm:$0xff]
        %v2523 = vld [vmem:[%s2521 + $0x8] sm:$0xff]
        %v2525 = vsel %vm2262, %v2520, 0
        %2527 = vmatpush.msra.mxu0 0.0
        %2528 = vmatpush.msra.mxu0 0.0
        %2529 = vmatpush.msra.mxu0 0.0
        %2530 = vmatpush.msra.mxu0 0.0
        %2531 = vmatpush.msra.mxu0 0.0
        %2532 = vmatpush.msra.mxu0 0.0
        %2533 = vmatpush.msra.mxu0 0.0
        %2534 = vmatpush.msra.mxu0 0.0
        %2535 = vmatpush.msra.mxu0 0.0
        %2536 = vmatpush.msra.mxu0 0.0
        %2537 = vmatpush.msra.mxu0 0.0
        %2538 = vmatpush.msra.mxu0 0.0
        %2539 = vmatpush.msra.mxu0 0.0
        %2540 = vmatpush.msra.mxu0 0.0
        %2541 = vmatpush.msra.mxu0 %v2523
        %2542 = vmatpush.msra.mxu0 %v2522
        %2543 = vmatmul.f32.gmra.mxu0 %v2525
        %v2544 = vpop.f32.mrf.mxu0
        %v2545 = vadd.f32 0.0, %v2544
        %2546 = vdwg.mxu0
        %v2547 = vadd.f32 %v2519, %v2545
        %v2548 = vld [vmem:[#allocation2 + $0x48] sm:$0xff]
        %s2549 = scalar_lea.vmem %s3, 144
        %v2550 = vld [vmem:[%s2549] sm:$0xff]
        %v2551 = vld [vmem:[%s2549 + $0x8] sm:$0xff]
        %v2553 = vsel %vm2262, %v2548, 0
        %2555 = vmatpush.msra.mxu0 0.0
        %2556 = vmatpush.msra.mxu0 0.0
        %2557 = vmatpush.msra.mxu0 0.0
        %2558 = vmatpush.msra.mxu0 0.0
        %2559 = vmatpush.msra.mxu0 0.0
        %2560 = vmatpush.msra.mxu0 0.0
        %2561 = vmatpush.msra.mxu0 0.0
        %2562 = vmatpush.msra.mxu0 0.0
        %2563 = vmatpush.msra.mxu0 0.0
        %2564 = vmatpush.msra.mxu0 0.0
        %2565 = vmatpush.msra.mxu0 0.0
        %2566 = vmatpush.msra.mxu0 0.0
        %2567 = vmatpush.msra.mxu0 0.0
        %2568 = vmatpush.msra.mxu0 0.0
        %2569 = vmatpush.msra.mxu0 %v2551
        %2570 = vmatpush.msra.mxu0 %v2550
        %2571 = vmatmul.f32.gmra.mxu0 %v2553
        %v2572 = vpop.f32.mrf.mxu0
        %v2573 = vadd.f32 0.0, %v2572
        %2574 = vdwg.mxu0
        %v2575 = vadd.f32 %v2547, %v2573
        %v2576 = vld [vmem:[#allocation2 + $0x50] sm:$0xff]
        %s2577 = scalar_lea.vmem %s3, 160
        %v2578 = vld [vmem:[%s2577] sm:$0xff]
        %v2579 = vld [vmem:[%s2577 + $0x8] sm:$0xff]
        %v2581 = vsel %vm2262, %v2576, 0
        %2583 = vmatpush.msra.mxu0 0.0
        %2584 = vmatpush.msra.mxu0 0.0
        %2585 = vmatpush.msra.mxu0 0.0
        %2586 = vmatpush.msra.mxu0 0.0
        %2587 = vmatpush.msra.mxu0 0.0
        %2588 = vmatpush.msra.mxu0 0.0
        %2589 = vmatpush.msra.mxu0 0.0
        %2590 = vmatpush.msra.mxu0 0.0
        %2591 = vmatpush.msra.mxu0 0.0
        %2592 = vmatpush.msra.mxu0 0.0
        %2593 = vmatpush.msra.mxu0 0.0
        %2594 = vmatpush.msra.mxu0 0.0
        %2595 = vmatpush.msra.mxu0 0.0
        %2596 = vmatpush.msra.mxu0 0.0
        %2597 = vmatpush.msra.mxu0 %v2579
        %2598 = vmatpush.msra.mxu0 %v2578
        %2599 = vmatmul.f32.gmra.mxu0 %v2581
        %v2600 = vpop.f32.mrf.mxu0
        %v2601 = vadd.f32 0.0, %v2600
        %2602 = vdwg.mxu0
        %v2603 = vadd.f32 %v2575, %v2601
        %v2604 = vld [vmem:[#allocation2 + $0x58] sm:$0xff]
        %s2605 = scalar_lea.vmem %s3, 176
        %v2606 = vld [vmem:[%s2605] sm:$0xff]
        %v2607 = vld [vmem:[%s2605 + $0x8] sm:$0xff]
        %v2609 = vsel %vm2262, %v2604, 0
        %2611 = vmatpush.msra.mxu0 0.0
        %2612 = vmatpush.msra.mxu0 0.0
        %2613 = vmatpush.msra.mxu0 0.0
        %2614 = vmatpush.msra.mxu0 0.0
        %2615 = vmatpush.msra.mxu0 0.0
        %2616 = vmatpush.msra.mxu0 0.0
        %2617 = vmatpush.msra.mxu0 0.0
        %2618 = vmatpush.msra.mxu0 0.0
        %2619 = vmatpush.msra.mxu0 0.0
        %2620 = vmatpush.msra.mxu0 0.0
        %2621 = vmatpush.msra.mxu0 0.0
        %2622 = vmatpush.msra.mxu0 0.0
        %2623 = vmatpush.msra.mxu0 0.0
        %2624 = vmatpush.msra.mxu0 0.0
        %2625 = vmatpush.msra.mxu0 %v2607
        %2626 = vmatpush.msra.mxu0 %v2606
        %2627 = vmatmul.f32.gmra.mxu0 %v2609
        %v2628 = vpop.f32.mrf.mxu0
        %v2629 = vadd.f32 0.0, %v2628
        %2630 = vdwg.mxu0
        %v2631 = vadd.f32 %v2603, %v2629
        %v2632 = vld [vmem:[#allocation2 + $0x60] sm:$0xff]
        %s2633 = scalar_lea.vmem %s3, 192
        %v2634 = vld [vmem:[%s2633] sm:$0xff]
        %v2635 = vld [vmem:[%s2633 + $0x8] sm:$0xff]
        %v2637 = vsel %vm2262, %v2632, 0
        %2639 = vmatpush.msra.mxu0 0.0
        %2640 = vmatpush.msra.mxu0 0.0
        %2641 = vmatpush.msra.mxu0 0.0
        %2642 = vmatpush.msra.mxu0 0.0
        %2643 = vmatpush.msra.mxu0 0.0
        %2644 = vmatpush.msra.mxu0 0.0
        %2645 = vmatpush.msra.mxu0 0.0
        %2646 = vmatpush.msra.mxu0 0.0
        %2647 = vmatpush.msra.mxu0 0.0
        %2648 = vmatpush.msra.mxu0 0.0
        %2649 = vmatpush.msra.mxu0 0.0
        %2650 = vmatpush.msra.mxu0 0.0
        %2651 = vmatpush.msra.mxu0 0.0
        %2652 = vmatpush.msra.mxu0 0.0
        %2653 = vmatpush.msra.mxu0 %v2635
        %2654 = vmatpush.msra.mxu0 %v2634
        %2655 = vmatmul.f32.gmra.mxu0 %v2637
        %v2656 = vpop.f32.mrf.mxu0
        %v2657 = vadd.f32 0.0, %v2656
        %2658 = vdwg.mxu0
        %v2659 = vadd.f32 %v2631, %v2657
        %v2660 = vld [vmem:[#allocation2 + $0x68] sm:$0xff]
        %s2661 = scalar_lea.vmem %s3, 208
        %v2662 = vld [vmem:[%s2661] sm:$0xff]
        %v2663 = vld [vmem:[%s2661 + $0x8] sm:$0xff]
        %v2665 = vsel %vm2262, %v2660, 0
        %2667 = vmatpush.msra.mxu0 0.0
        %2668 = vmatpush.msra.mxu0 0.0
        %2669 = vmatpush.msra.mxu0 0.0
        %2670 = vmatpush.msra.mxu0 0.0
        %2671 = vmatpush.msra.mxu0 0.0
        %2672 = vmatpush.msra.mxu0 0.0
        %2673 = vmatpush.msra.mxu0 0.0
        %2674 = vmatpush.msra.mxu0 0.0
        %2675 = vmatpush.msra.mxu0 0.0
        %2676 = vmatpush.msra.mxu0 0.0
        %2677 = vmatpush.msra.mxu0 0.0
        %2678 = vmatpush.msra.mxu0 0.0
        %2679 = vmatpush.msra.mxu0 0.0
        %2680 = vmatpush.msra.mxu0 0.0
        %2681 = vmatpush.msra.mxu0 %v2663
        %2682 = vmatpush.msra.mxu0 %v2662
        %2683 = vmatmul.f32.gmra.mxu0 %v2665
        %v2684 = vpop.f32.mrf.mxu0
        %v2685 = vadd.f32 0.0, %v2684
        %2686 = vdwg.mxu0
        %v2687 = vadd.f32 %v2659, %v2685
        %v2688 = vld [vmem:[#allocation2 + $0x70] sm:$0xff]
        %s2689 = scalar_lea.vmem %s3, 224
        %v2690 = vld [vmem:[%s2689] sm:$0xff]
        %v2691 = vld [vmem:[%s2689 + $0x8] sm:$0xff]
        %v2693 = vsel %vm2262, %v2688, 0
        %2695 = vmatpush.msra.mxu0 0.0
        %2696 = vmatpush.msra.mxu0 0.0
        %2697 = vmatpush.msra.mxu0 0.0
        %2698 = vmatpush.msra.mxu0 0.0
        %2699 = vmatpush.msra.mxu0 0.0
        %2700 = vmatpush.msra.mxu0 0.0
        %2701 = vmatpush.msra.mxu0 0.0
        %2702 = vmatpush.msra.mxu0 0.0
        %2703 = vmatpush.msra.mxu0 0.0
        %2704 = vmatpush.msra.mxu0 0.0
        %2705 = vmatpush.msra.mxu0 0.0
        %2706 = vmatpush.msra.mxu0 0.0
        %2707 = vmatpush.msra.mxu0 0.0
        %2708 = vmatpush.msra.mxu0 0.0
        %2709 = vmatpush.msra.mxu0 %v2691
        %2710 = vmatpush.msra.mxu0 %v2690
        %2711 = vmatmul.f32.gmra.mxu0 %v2693
        %v2712 = vpop.f32.mrf.mxu0
        %v2713 = vadd.f32 0.0, %v2712
        %2714 = vdwg.mxu0
        %v2715 = vadd.f32 %v2687, %v2713
        %v2716 = vld [vmem:[#allocation2 + $0x78] sm:$0xff]
        %s2717 = scalar_lea.vmem %s3, 240
        %v2718 = vld [vmem:[%s2717] sm:$0xff]
        %v2719 = vld [vmem:[%s2717 + $0x8] sm:$0xff]
        %v2721 = vsel %vm2262, %v2716, 0
        %2723 = vmatpush.msra.mxu0 0.0
        %2724 = vmatpush.msra.mxu0 0.0
        %2725 = vmatpush.msra.mxu0 0.0
        %2726 = vmatpush.msra.mxu0 0.0
        %2727 = vmatpush.msra.mxu0 0.0
        %2728 = vmatpush.msra.mxu0 0.0
        %2729 = vmatpush.msra.mxu0 0.0
        %2730 = vmatpush.msra.mxu0 0.0
        %2731 = vmatpush.msra.mxu0 0.0
        %2732 = vmatpush.msra.mxu0 0.0
        %2733 = vmatpush.msra.mxu0 0.0
        %2734 = vmatpush.msra.mxu0 0.0
        %2735 = vmatpush.msra.mxu0 0.0
        %2736 = vmatpush.msra.mxu0 0.0
        %2737 = vmatpush.msra.mxu0 %v2719
        %2738 = vmatpush.msra.mxu0 %v2718
        %2739 = vmatmul.f32.gmra.mxu0 %v2721
        %v2740 = vpop.f32.mrf.mxu0
        %v2741 = vadd.f32 0.0, %v2740
        %2742 = vdwg.mxu0
        %v2743 = vadd.f32 %v2715, %v2741
        %v2744 = vld [vmem:[#allocation2 + $0x80] sm:$0xff]
        %s2745 = scalar_lea.vmem %s3, 256
        %v2746 = vld [vmem:[%s2745] sm:$0xff]
        %v2747 = vld [vmem:[%s2745 + $0x8] sm:$0xff]
        %v2749 = vsel %vm2262, %v2744, 0
        %2751 = vmatpush.msra.mxu0 0.0
        %2752 = vmatpush.msra.mxu0 0.0
        %2753 = vmatpush.msra.mxu0 0.0
        %2754 = vmatpush.msra.mxu0 0.0
        %2755 = vmatpush.msra.mxu0 0.0
        %2756 = vmatpush.msra.mxu0 0.0
        %2757 = vmatpush.msra.mxu0 0.0
        %2758 = vmatpush.msra.mxu0 0.0
        %2759 = vmatpush.msra.mxu0 0.0
        %2760 = vmatpush.msra.mxu0 0.0
        %2761 = vmatpush.msra.mxu0 0.0
        %2762 = vmatpush.msra.mxu0 0.0
        %2763 = vmatpush.msra.mxu0 0.0
        %2764 = vmatpush.msra.mxu0 0.0
        %2765 = vmatpush.msra.mxu0 %v2747
        %2766 = vmatpush.msra.mxu0 %v2746
        %2767 = vmatmul.f32.gmra.mxu0 %v2749
        %v2768 = vpop.f32.mrf.mxu0
        %v2769 = vadd.f32 0.0, %v2768
        %2770 = vdwg.mxu0
        %v2771 = vadd.f32 %v2743, %v2769
        %v2772 = vld [vmem:[#allocation2 + $0x88] sm:$0xff]
        %s2773 = scalar_lea.vmem %s3, 272
        %v2774 = vld [vmem:[%s2773] sm:$0xff]
        %v2775 = vld [vmem:[%s2773 + $0x8] sm:$0xff]
        %v2777 = vsel %vm2262, %v2772, 0
        %2779 = vmatpush.msra.mxu0 0.0
        %2780 = vmatpush.msra.mxu0 0.0
        %2781 = vmatpush.msra.mxu0 0.0
        %2782 = vmatpush.msra.mxu0 0.0
        %2783 = vmatpush.msra.mxu0 0.0
        %2784 = vmatpush.msra.mxu0 0.0
        %2785 = vmatpush.msra.mxu0 0.0
        %2786 = vmatpush.msra.mxu0 0.0
        %2787 = vmatpush.msra.mxu0 0.0
        %2788 = vmatpush.msra.mxu0 0.0
        %2789 = vmatpush.msra.mxu0 0.0
        %2790 = vmatpush.msra.mxu0 0.0
        %2791 = vmatpush.msra.mxu0 0.0
        %2792 = vmatpush.msra.mxu0 0.0
        %2793 = vmatpush.msra.mxu0 %v2775
        %2794 = vmatpush.msra.mxu0 %v2774
        %2795 = vmatmul.f32.gmra.mxu0 %v2777
        %v2796 = vpop.f32.mrf.mxu0
        %v2797 = vadd.f32 0.0, %v2796
        %2798 = vdwg.mxu0
        %v2799 = vadd.f32 %v2771, %v2797
        %v2800 = vld [vmem:[#allocation2 + $0x90] sm:$0xff]
        %s2801 = scalar_lea.vmem %s3, 288
        %v2802 = vld [vmem:[%s2801] sm:$0xff]
        %v2803 = vld [vmem:[%s2801 + $0x8] sm:$0xff]
        %v2805 = vsel %vm2262, %v2800, 0
        %2807 = vmatpush.msra.mxu0 0.0
        %2808 = vmatpush.msra.mxu0 0.0
        %2809 = vmatpush.msra.mxu0 0.0
        %2810 = vmatpush.msra.mxu0 0.0
        %2811 = vmatpush.msra.mxu0 0.0
        %2812 = vmatpush.msra.mxu0 0.0
        %2813 = vmatpush.msra.mxu0 0.0
        %2814 = vmatpush.msra.mxu0 0.0
        %2815 = vmatpush.msra.mxu0 0.0
        %2816 = vmatpush.msra.mxu0 0.0
        %2817 = vmatpush.msra.mxu0 0.0
        %2818 = vmatpush.msra.mxu0 0.0
        %2819 = vmatpush.msra.mxu0 0.0
        %2820 = vmatpush.msra.mxu0 0.0
        %2821 = vmatpush.msra.mxu0 %v2803
        %2822 = vmatpush.msra.mxu0 %v2802
        %2823 = vmatmul.f32.gmra.mxu0 %v2805
        %v2824 = vpop.f32.mrf.mxu0
        %v2825 = vadd.f32 0.0, %v2824
        %2826 = vdwg.mxu0
        %v2827 = vadd.f32 %v2799, %v2825
        %v2828 = vld [vmem:[#allocation2 + $0x98] sm:$0xff]
        %s2829 = scalar_lea.vmem %s3, 304
        %v2830 = vld [vmem:[%s2829] sm:$0xff]
        %v2831 = vld [vmem:[%s2829 + $0x8] sm:$0xff]
        %v2833 = vsel %vm2262, %v2828, 0
        %2835 = vmatpush.msra.mxu0 0.0
        %2836 = vmatpush.msra.mxu0 0.0
        %2837 = vmatpush.msra.mxu0 0.0
        %2838 = vmatpush.msra.mxu0 0.0
        %2839 = vmatpush.msra.mxu0 0.0
        %2840 = vmatpush.msra.mxu0 0.0
        %2841 = vmatpush.msra.mxu0 0.0
        %2842 = vmatpush.msra.mxu0 0.0
        %2843 = vmatpush.msra.mxu0 0.0
        %2844 = vmatpush.msra.mxu0 0.0
        %2845 = vmatpush.msra.mxu0 0.0
        %2846 = vmatpush.msra.mxu0 0.0
        %2847 = vmatpush.msra.mxu0 0.0
        %2848 = vmatpush.msra.mxu0 0.0
        %2849 = vmatpush.msra.mxu0 %v2831
        %2850 = vmatpush.msra.mxu0 %v2830
        %2851 = vmatmul.f32.gmra.mxu0 %v2833
        %v2852 = vpop.f32.mrf.mxu0
        %v2853 = vadd.f32 0.0, %v2852
        %2854 = vdwg.mxu0
        %v2855 = vadd.f32 %v2827, %v2853
        %v2856 = vld [vmem:[#allocation2 + $0xa0] sm:$0xff]
        %s2857 = scalar_lea.vmem %s3, 320
        %v2858 = vld [vmem:[%s2857] sm:$0xff]
        %v2859 = vld [vmem:[%s2857 + $0x8] sm:$0xff]
        %v2861 = vsel %vm2262, %v2856, 0
        %2863 = vmatpush.msra.mxu0 0.0
        %2864 = vmatpush.msra.mxu0 0.0
        %2865 = vmatpush.msra.mxu0 0.0
        %2866 = vmatpush.msra.mxu0 0.0
        %2867 = vmatpush.msra.mxu0 0.0
        %2868 = vmatpush.msra.mxu0 0.0
        %2869 = vmatpush.msra.mxu0 0.0
        %2870 = vmatpush.msra.mxu0 0.0
        %2871 = vmatpush.msra.mxu0 0.0
        %2872 = vmatpush.msra.mxu0 0.0
        %2873 = vmatpush.msra.mxu0 0.0
        %2874 = vmatpush.msra.mxu0 0.0
        %2875 = vmatpush.msra.mxu0 0.0
        %2876 = vmatpush.msra.mxu0 0.0
        %2877 = vmatpush.msra.mxu0 %v2859
        %2878 = vmatpush.msra.mxu0 %v2858
        %2879 = vmatmul.f32.gmra.mxu0 %v2861
        %v2880 = vpop.f32.mrf.mxu0
        %v2881 = vadd.f32 0.0, %v2880
        %2882 = vdwg.mxu0
        %v2883 = vadd.f32 %v2855, %v2881
        %v2884 = vld [vmem:[#allocation2 + $0xa8] sm:$0xff]
        %s2885 = scalar_lea.vmem %s3, 336
        %v2886 = vld [vmem:[%s2885] sm:$0xff]
        %v2887 = vld [vmem:[%s2885 + $0x8] sm:$0xff]
        %v2889 = vsel %vm2262, %v2884, 0
        %2891 = vmatpush.msra.mxu0 0.0
        %2892 = vmatpush.msra.mxu0 0.0
        %2893 = vmatpush.msra.mxu0 0.0
        %2894 = vmatpush.msra.mxu0 0.0
        %2895 = vmatpush.msra.mxu0 0.0
        %2896 = vmatpush.msra.mxu0 0.0
        %2897 = vmatpush.msra.mxu0 0.0
        %2898 = vmatpush.msra.mxu0 0.0
        %2899 = vmatpush.msra.mxu0 0.0
        %2900 = vmatpush.msra.mxu0 0.0
        %2901 = vmatpush.msra.mxu0 0.0
        %2902 = vmatpush.msra.mxu0 0.0
        %2903 = vmatpush.msra.mxu0 0.0
        %2904 = vmatpush.msra.mxu0 0.0
        %2905 = vmatpush.msra.mxu0 %v2887
        %2906 = vmatpush.msra.mxu0 %v2886
        %2907 = vmatmul.f32.gmra.mxu0 %v2889
        %v2908 = vpop.f32.mrf.mxu0
        %v2909 = vadd.f32 0.0, %v2908
        %2910 = vdwg.mxu0
        %v2911 = vadd.f32 %v2883, %v2909
        %v2912 = vld [vmem:[#allocation2 + $0xb0] sm:$0xff]
        %s2913 = scalar_lea.vmem %s3, 352
        %v2914 = vld [vmem:[%s2913] sm:$0xff]
        %v2915 = vld [vmem:[%s2913 + $0x8] sm:$0xff]
        %v2917 = vsel %vm2262, %v2912, 0
        %2919 = vmatpush.msra.mxu0 0.0
        %2920 = vmatpush.msra.mxu0 0.0
        %2921 = vmatpush.msra.mxu0 0.0
        %2922 = vmatpush.msra.mxu0 0.0
        %2923 = vmatpush.msra.mxu0 0.0
        %2924 = vmatpush.msra.mxu0 0.0
        %2925 = vmatpush.msra.mxu0 0.0
        %2926 = vmatpush.msra.mxu0 0.0
        %2927 = vmatpush.msra.mxu0 0.0
        %2928 = vmatpush.msra.mxu0 0.0
        %2929 = vmatpush.msra.mxu0 0.0
        %2930 = vmatpush.msra.mxu0 0.0
        %2931 = vmatpush.msra.mxu0 0.0
        %2932 = vmatpush.msra.mxu0 0.0
        %2933 = vmatpush.msra.mxu0 %v2915
        %2934 = vmatpush.msra.mxu0 %v2914
        %2935 = vmatmul.f32.gmra.mxu0 %v2917
        %v2936 = vpop.f32.mrf.mxu0
        %v2937 = vadd.f32 0.0, %v2936
        %2938 = vdwg.mxu0
        %v2939 = vadd.f32 %v2911, %v2937
        %v2940 = vld [vmem:[#allocation2 + $0xb8] sm:$0xff]
        %s2941 = scalar_lea.vmem %s3, 368
        %v2942 = vld [vmem:[%s2941] sm:$0xff]
        %v2943 = vld [vmem:[%s2941 + $0x8] sm:$0xff]
        %v2945 = vsel %vm2262, %v2940, 0
        %2947 = vmatpush.msra.mxu0 0.0
        %2948 = vmatpush.msra.mxu0 0.0
        %2949 = vmatpush.msra.mxu0 0.0
        %2950 = vmatpush.msra.mxu0 0.0
        %2951 = vmatpush.msra.mxu0 0.0
        %2952 = vmatpush.msra.mxu0 0.0
        %2953 = vmatpush.msra.mxu0 0.0
        %2954 = vmatpush.msra.mxu0 0.0
        %2955 = vmatpush.msra.mxu0 0.0
        %2956 = vmatpush.msra.mxu0 0.0
        %2957 = vmatpush.msra.mxu0 0.0
        %2958 = vmatpush.msra.mxu0 0.0
        %2959 = vmatpush.msra.mxu0 0.0
        %2960 = vmatpush.msra.mxu0 0.0
        %2961 = vmatpush.msra.mxu0 %v2943
        %2962 = vmatpush.msra.mxu0 %v2942
        %2963 = vmatmul.f32.gmra.mxu0 %v2945
        %v2964 = vpop.f32.mrf.mxu0
        %v2965 = vadd.f32 0.0, %v2964
        %2966 = vdwg.mxu0
        %v2967 = vadd.f32 %v2939, %v2965
        %v2968 = vld [vmem:[#allocation2 + $0xc0] sm:$0xff]
        %s2969 = scalar_lea.vmem %s3, 384
        %v2970 = vld [vmem:[%s2969] sm:$0xff]
        %v2971 = vld [vmem:[%s2969 + $0x8] sm:$0xff]
        %v2973 = vsel %vm2262, %v2968, 0
        %2975 = vmatpush.msra.mxu0 0.0
        %2976 = vmatpush.msra.mxu0 0.0
        %2977 = vmatpush.msra.mxu0 0.0
        %2978 = vmatpush.msra.mxu0 0.0
        %2979 = vmatpush.msra.mxu0 0.0
        %2980 = vmatpush.msra.mxu0 0.0
        %2981 = vmatpush.msra.mxu0 0.0
        %2982 = vmatpush.msra.mxu0 0.0
        %2983 = vmatpush.msra.mxu0 0.0
        %2984 = vmatpush.msra.mxu0 0.0
        %2985 = vmatpush.msra.mxu0 0.0
        %2986 = vmatpush.msra.mxu0 0.0
        %2987 = vmatpush.msra.mxu0 0.0
        %2988 = vmatpush.msra.mxu0 0.0
        %2989 = vmatpush.msra.mxu0 %v2971
        %2990 = vmatpush.msra.mxu0 %v2970
        %2991 = vmatmul.f32.gmra.mxu0 %v2973
        %v2992 = vpop.f32.mrf.mxu0
        %v2993 = vadd.f32 0.0, %v2992
        %2994 = vdwg.mxu0
        %v2995 = vadd.f32 %v2967, %v2993
        %v2996 = vld [vmem:[#allocation2 + $0xc8] sm:$0xff]
        %s2997 = scalar_lea.vmem %s3, 400
        %v2998 = vld [vmem:[%s2997] sm:$0xff]
        %v2999 = vld [vmem:[%s2997 + $0x8] sm:$0xff]
        %v3001 = vsel %vm2262, %v2996, 0
        %3003 = vmatpush.msra.mxu0 0.0
        %3004 = vmatpush.msra.mxu0 0.0
        %3005 = vmatpush.msra.mxu0 0.0
        %3006 = vmatpush.msra.mxu0 0.0
        %3007 = vmatpush.msra.mxu0 0.0
        %3008 = vmatpush.msra.mxu0 0.0
        %3009 = vmatpush.msra.mxu0 0.0
        %3010 = vmatpush.msra.mxu0 0.0
        %3011 = vmatpush.msra.mxu0 0.0
        %3012 = vmatpush.msra.mxu0 0.0
        %3013 = vmatpush.msra.mxu0 0.0
        %3014 = vmatpush.msra.mxu0 0.0
        %3015 = vmatpush.msra.mxu0 0.0
        %3016 = vmatpush.msra.mxu0 0.0
        %3017 = vmatpush.msra.mxu0 %v2999
        %3018 = vmatpush.msra.mxu0 %v2998
        %3019 = vmatmul.f32.gmra.mxu0 %v3001
        %v3020 = vpop.f32.mrf.mxu0
        %v3021 = vadd.f32 0.0, %v3020
        %3022 = vdwg.mxu0
        %v3023 = vadd.f32 %v2995, %v3021
        %v3024 = vld [vmem:[#allocation2 + $0xd0] sm:$0xff]
        %s3025 = scalar_lea.vmem %s3, 416
        %v3026 = vld [vmem:[%s3025] sm:$0xff]
        %v3027 = vld [vmem:[%s3025 + $0x8] sm:$0xff]
        %v3029 = vsel %vm2262, %v3024, 0
        %3031 = vmatpush.msra.mxu0 0.0
        %3032 = vmatpush.msra.mxu0 0.0
        %3033 = vmatpush.msra.mxu0 0.0
        %3034 = vmatpush.msra.mxu0 0.0
        %3035 = vmatpush.msra.mxu0 0.0
        %3036 = vmatpush.msra.mxu0 0.0
        %3037 = vmatpush.msra.mxu0 0.0
        %3038 = vmatpush.msra.mxu0 0.0
        %3039 = vmatpush.msra.mxu0 0.0
        %3040 = vmatpush.msra.mxu0 0.0
        %3041 = vmatpush.msra.mxu0 0.0
        %3042 = vmatpush.msra.mxu0 0.0
        %3043 = vmatpush.msra.mxu0 0.0
        %3044 = vmatpush.msra.mxu0 0.0
        %3045 = vmatpush.msra.mxu0 %v3027
        %3046 = vmatpush.msra.mxu0 %v3026
        %3047 = vmatmul.f32.gmra.mxu0 %v3029
        %v3048 = vpop.f32.mrf.mxu0
        %v3049 = vadd.f32 0.0, %v3048
        %3050 = vdwg.mxu0
        %v3051 = vadd.f32 %v3023, %v3049
        %v3052 = vld [vmem:[#allocation2 + $0xd8] sm:$0xff]
        %s3053 = scalar_lea.vmem %s3, 432
        %v3054 = vld [vmem:[%s3053] sm:$0xff]
        %v3055 = vld [vmem:[%s3053 + $0x8] sm:$0xff]
        %v3057 = vsel %vm2262, %v3052, 0
        %3059 = vmatpush.msra.mxu0 0.0
        %3060 = vmatpush.msra.mxu0 0.0
        %3061 = vmatpush.msra.mxu0 0.0
        %3062 = vmatpush.msra.mxu0 0.0
        %3063 = vmatpush.msra.mxu0 0.0
        %3064 = vmatpush.msra.mxu0 0.0
        %3065 = vmatpush.msra.mxu0 0.0
        %3066 = vmatpush.msra.mxu0 0.0
        %3067 = vmatpush.msra.mxu0 0.0
        %3068 = vmatpush.msra.mxu0 0.0
        %3069 = vmatpush.msra.mxu0 0.0
        %3070 = vmatpush.msra.mxu0 0.0
        %3071 = vmatpush.msra.mxu0 0.0
        %3072 = vmatpush.msra.mxu0 0.0
        %3073 = vmatpush.msra.mxu0 %v3055
        %3074 = vmatpush.msra.mxu0 %v3054
        %3075 = vmatmul.f32.gmra.mxu0 %v3057
        %v3076 = vpop.f32.mrf.mxu0
        %v3077 = vadd.f32 0.0, %v3076
        %3078 = vdwg.mxu0
        %v3079 = vadd.f32 %v3051, %v3077
        %v3080 = vld [vmem:[#allocation2 + $0xe0] sm:$0xff]
        %s3081 = scalar_lea.vmem %s3, 448
        %v3082 = vld [vmem:[%s3081] sm:$0xff]
        %v3083 = vld [vmem:[%s3081 + $0x8] sm:$0xff]
        %v3085 = vsel %vm2262, %v3080, 0
        %3087 = vmatpush.msra.mxu0 0.0
        %3088 = vmatpush.msra.mxu0 0.0
        %3089 = vmatpush.msra.mxu0 0.0
        %3090 = vmatpush.msra.mxu0 0.0
        %3091 = vmatpush.msra.mxu0 0.0
        %3092 = vmatpush.msra.mxu0 0.0
        %3093 = vmatpush.msra.mxu0 0.0
        %3094 = vmatpush.msra.mxu0 0.0
        %3095 = vmatpush.msra.mxu0 0.0
        %3096 = vmatpush.msra.mxu0 0.0
        %3097 = vmatpush.msra.mxu0 0.0
        %3098 = vmatpush.msra.mxu0 0.0
        %3099 = vmatpush.msra.mxu0 0.0
        %3100 = vmatpush.msra.mxu0 0.0
        %3101 = vmatpush.msra.mxu0 %v3083
        %3102 = vmatpush.msra.mxu0 %v3082
        %3103 = vmatmul.f32.gmra.mxu0 %v3085
        %v3104 = vpop.f32.mrf.mxu0
        %v3105 = vadd.f32 0.0, %v3104
        %3106 = vdwg.mxu0
        %v3107 = vadd.f32 %v3079, %v3105
        %v3108 = vld [vmem:[#allocation2 + $0xe8] sm:$0xff]
        %s3109 = scalar_lea.vmem %s3, 464
        %v3110 = vld [vmem:[%s3109] sm:$0xff]
        %v3111 = vld [vmem:[%s3109 + $0x8] sm:$0xff]
        %v3113 = vsel %vm2262, %v3108, 0
        %3115 = vmatpush.msra.mxu0 0.0
        %3116 = vmatpush.msra.mxu0 0.0
        %3117 = vmatpush.msra.mxu0 0.0
        %3118 = vmatpush.msra.mxu0 0.0
        %3119 = vmatpush.msra.mxu0 0.0
        %3120 = vmatpush.msra.mxu0 0.0
        %3121 = vmatpush.msra.mxu0 0.0
        %3122 = vmatpush.msra.mxu0 0.0
        %3123 = vmatpush.msra.mxu0 0.0
        %3124 = vmatpush.msra.mxu0 0.0
        %3125 = vmatpush.msra.mxu0 0.0
        %3126 = vmatpush.msra.mxu0 0.0
        %3127 = vmatpush.msra.mxu0 0.0
        %3128 = vmatpush.msra.mxu0 0.0
        %3129 = vmatpush.msra.mxu0 %v3111
        %3130 = vmatpush.msra.mxu0 %v3110
        %3131 = vmatmul.f32.gmra.mxu0 %v3113
        %v3132 = vpop.f32.mrf.mxu0
        %v3133 = vadd.f32 0.0, %v3132
        %3134 = vdwg.mxu0
        %v3135 = vadd.f32 %v3107, %v3133
        %v3136 = vld [vmem:[#allocation2 + $0xf0] sm:$0xff]
        %s3137 = scalar_lea.vmem %s3, 480
        %v3138 = vld [vmem:[%s3137] sm:$0xff]
        %v3139 = vld [vmem:[%s3137 + $0x8] sm:$0xff]
        %v3141 = vsel %vm2262, %v3136, 0
        %3143 = vmatpush.msra.mxu0 0.0
        %3144 = vmatpush.msra.mxu0 0.0
        %3145 = vmatpush.msra.mxu0 0.0
        %3146 = vmatpush.msra.mxu0 0.0
        %3147 = vmatpush.msra.mxu0 0.0
        %3148 = vmatpush.msra.mxu0 0.0
        %3149 = vmatpush.msra.mxu0 0.0
        %3150 = vmatpush.msra.mxu0 0.0
        %3151 = vmatpush.msra.mxu0 0.0
        %3152 = vmatpush.msra.mxu0 0.0
        %3153 = vmatpush.msra.mxu0 0.0
        %3154 = vmatpush.msra.mxu0 0.0
        %3155 = vmatpush.msra.mxu0 0.0
        %3156 = vmatpush.msra.mxu0 0.0
        %3157 = vmatpush.msra.mxu0 %v3139
        %3158 = vmatpush.msra.mxu0 %v3138
        %3159 = vmatmul.f32.gmra.mxu0 %v3141
        %v3160 = vpop.f32.mrf.mxu0
        %v3161 = vadd.f32 0.0, %v3160
        %3162 = vdwg.mxu0
        %v3163 = vadd.f32 %v3135, %v3161
        %v3164 = vld [vmem:[#allocation2 + $0xf8] sm:$0xff]
        %s3165 = scalar_lea.vmem %s3, 496
        %v3166 = vld [vmem:[%s3165] sm:$0xff]
        %v3167 = vld [vmem:[%s3165 + $0x8] sm:$0xff]
        %v3169 = vsel %vm2262, %v3164, 0
        %3171 = vmatpush.msra.mxu0 0.0
        %3172 = vmatpush.msra.mxu0 0.0
        %3173 = vmatpush.msra.mxu0 0.0
        %3174 = vmatpush.msra.mxu0 0.0
        %3175 = vmatpush.msra.mxu0 0.0
        %3176 = vmatpush.msra.mxu0 0.0
        %3177 = vmatpush.msra.mxu0 0.0
        %3178 = vmatpush.msra.mxu0 0.0
        %3179 = vmatpush.msra.mxu0 0.0
        %3180 = vmatpush.msra.mxu0 0.0
        %3181 = vmatpush.msra.mxu0 0.0
        %3182 = vmatpush.msra.mxu0 0.0
        %3183 = vmatpush.msra.mxu0 0.0
        %3184 = vmatpush.msra.mxu0 0.0
        %3185 = vmatpush.msra.mxu0 %v3167
        %3186 = vmatpush.msra.mxu0 %v3166
        %3187 = vmatmul.f32.gmra.mxu0 %v3169
        %v3188 = vpop.f32.mrf.mxu0
        %v3189 = vadd.f32 0.0, %v3188
        %3190 = vdwg.mxu0
        %v3191 = vadd.f32 %v3163, %v3189
        %v3192 = vld [vmem:[#allocation2 + $0x100] sm:$0xff]
        %s3193 = scalar_lea.vmem %s3, 512
        %v3194 = vld [vmem:[%s3193] sm:$0xff]
        %v3195 = vld [vmem:[%s3193 + $0x8] sm:$0xff]
        %v3197 = vsel %vm2262, %v3192, 0
        %3199 = vmatpush.msra.mxu0 0.0
        %3200 = vmatpush.msra.mxu0 0.0
        %3201 = vmatpush.msra.mxu0 0.0
        %3202 = vmatpush.msra.mxu0 0.0
        %3203 = vmatpush.msra.mxu0 0.0
        %3204 = vmatpush.msra.mxu0 0.0
        %3205 = vmatpush.msra.mxu0 0.0
        %3206 = vmatpush.msra.mxu0 0.0
        %3207 = vmatpush.msra.mxu0 0.0
        %3208 = vmatpush.msra.mxu0 0.0
        %3209 = vmatpush.msra.mxu0 0.0
        %3210 = vmatpush.msra.mxu0 0.0
        %3211 = vmatpush.msra.mxu0 0.0
        %3212 = vmatpush.msra.mxu0 0.0
        %3213 = vmatpush.msra.mxu0 %v3195
        %3214 = vmatpush.msra.mxu0 %v3194
        %3215 = vmatmul.f32.gmra.mxu0 %v3197
        %v3216 = vpop.f32.mrf.mxu0
        %v3217 = vadd.f32 0.0, %v3216
        %3218 = vdwg.mxu0
        %v3219 = vadd.f32 %v3191, %v3217
        %v3220 = vld [vmem:[#allocation2 + $0x108] sm:$0xff]
        %s3221 = scalar_lea.vmem %s3, 528
        %v3222 = vld [vmem:[%s3221] sm:$0xff]
        %v3223 = vld [vmem:[%s3221 + $0x8] sm:$0xff]
        %v3225 = vsel %vm2262, %v3220, 0
        %3227 = vmatpush.msra.mxu0 0.0
        %3228 = vmatpush.msra.mxu0 0.0
        %3229 = vmatpush.msra.mxu0 0.0
        %3230 = vmatpush.msra.mxu0 0.0
        %3231 = vmatpush.msra.mxu0 0.0
        %3232 = vmatpush.msra.mxu0 0.0
        %3233 = vmatpush.msra.mxu0 0.0
        %3234 = vmatpush.msra.mxu0 0.0
        %3235 = vmatpush.msra.mxu0 0.0
        %3236 = vmatpush.msra.mxu0 0.0
        %3237 = vmatpush.msra.mxu0 0.0
        %3238 = vmatpush.msra.mxu0 0.0
        %3239 = vmatpush.msra.mxu0 0.0
        %3240 = vmatpush.msra.mxu0 0.0
        %3241 = vmatpush.msra.mxu0 %v3223
        %3242 = vmatpush.msra.mxu0 %v3222
        %3243 = vmatmul.f32.gmra.mxu0 %v3225
        %v3244 = vpop.f32.mrf.mxu0
        %v3245 = vadd.f32 0.0, %v3244
        %3246 = vdwg.mxu0
        %v3247 = vadd.f32 %v3219, %v3245
        %v3248 = vld [vmem:[#allocation2 + $0x110] sm:$0xff]
        %s3249 = scalar_lea.vmem %s3, 544
        %v3250 = vld [vmem:[%s3249] sm:$0xff]
        %v3251 = vld [vmem:[%s3249 + $0x8] sm:$0xff]
        %v3253 = vsel %vm2262, %v3248, 0
        %3255 = vmatpush.msra.mxu0 0.0
        %3256 = vmatpush.msra.mxu0 0.0
        %3257 = vmatpush.msra.mxu0 0.0
        %3258 = vmatpush.msra.mxu0 0.0
        %3259 = vmatpush.msra.mxu0 0.0
        %3260 = vmatpush.msra.mxu0 0.0
        %3261 = vmatpush.msra.mxu0 0.0
        %3262 = vmatpush.msra.mxu0 0.0
        %3263 = vmatpush.msra.mxu0 0.0
        %3264 = vmatpush.msra.mxu0 0.0
        %3265 = vmatpush.msra.mxu0 0.0
        %3266 = vmatpush.msra.mxu0 0.0
        %3267 = vmatpush.msra.mxu0 0.0
        %3268 = vmatpush.msra.mxu0 0.0
        %3269 = vmatpush.msra.mxu0 %v3251
        %3270 = vmatpush.msra.mxu0 %v3250
        %3271 = vmatmul.f32.gmra.mxu0 %v3253
        %v3272 = vpop.f32.mrf.mxu0
        %v3273 = vadd.f32 0.0, %v3272
        %3274 = vdwg.mxu0
        %v3275 = vadd.f32 %v3247, %v3273
        %v3276 = vld [vmem:[#allocation2 + $0x118] sm:$0xff]
        %s3277 = scalar_lea.vmem %s3, 560
        %v3278 = vld [vmem:[%s3277] sm:$0xff]
        %v3279 = vld [vmem:[%s3277 + $0x8] sm:$0xff]
        %v3281 = vsel %vm2262, %v3276, 0
        %3283 = vmatpush.msra.mxu0 0.0
        %3284 = vmatpush.msra.mxu0 0.0
        %3285 = vmatpush.msra.mxu0 0.0
        %3286 = vmatpush.msra.mxu0 0.0
        %3287 = vmatpush.msra.mxu0 0.0
        %3288 = vmatpush.msra.mxu0 0.0
        %3289 = vmatpush.msra.mxu0 0.0
        %3290 = vmatpush.msra.mxu0 0.0
        %3291 = vmatpush.msra.mxu0 0.0
        %3292 = vmatpush.msra.mxu0 0.0
        %3293 = vmatpush.msra.mxu0 0.0
        %3294 = vmatpush.msra.mxu0 0.0
        %3295 = vmatpush.msra.mxu0 0.0
        %3296 = vmatpush.msra.mxu0 0.0
        %3297 = vmatpush.msra.mxu0 %v3279
        %3298 = vmatpush.msra.mxu0 %v3278
        %3299 = vmatmul.f32.gmra.mxu0 %v3281
        %v3300 = vpop.f32.mrf.mxu0
        %v3301 = vadd.f32 0.0, %v3300
        %3302 = vdwg.mxu0
        %v3303 = vadd.f32 %v3275, %v3301
        %v3304 = vld [vmem:[%s4] sm:$0x1]
        %v3306 = vperm.slane %v3304, 0
        %v3308 = vadd.f32 %v3303, %v3306
        %v3309 = vmax.f32 %v3308, 0.0
        %v3310 = vld [vmem:[%s5] sm:$0xff]
        %v3311 = vld [vmem:[%s5 + $0x8] sm:$0xff]
        %v3312 = vld [vmem:[%s5 + $0x10] sm:$0xff]
        %v3313 = vld [vmem:[%s5 + $0x18] sm:$0xff]
        %v3314 = vld [vmem:[%s5 + $0x20] sm:$0xff]
        %v3315 = vld [vmem:[%s5 + $0x28] sm:$0xff]
        %v3316 = vld [vmem:[%s5 + $0x30] sm:$0xff]
        %v3317 = vld [vmem:[%s5 + $0x38] sm:$0xff]
        %v3318 = vld [vmem:[%s5 + $0x40] sm:$0xff]
        %v3319 = vld [vmem:[%s5 + $0x48] sm:$0xff]
        %v3320 = vld [vmem:[%s5 + $0x50] sm:$0xff]
        %v3321 = vld [vmem:[%s5 + $0x58] sm:$0xff]
        %v3322 = vld [vmem:[%s5 + $0x60] sm:$0xff]
        %v3323 = vld [vmem:[%s5 + $0x68] sm:$0xff]
        %v3324 = vld [vmem:[%s5 + $0x70] sm:$0xff]
        %v3325 = vld [vmem:[%s5 + $0x78] sm:$0xff]
        %v3326 = vld [vmem:[%s6] sm:$0x1]
        %v3328 = vperm.slane %v3326, 0
        %3330 = vmatpush.msra.mxu0 %v3325
        %3331 = vmatpush.msra.mxu0 %v3324
        %3332 = vmatpush.msra.mxu0 %v3323
        %3333 = vmatpush.msra.mxu0 %v3322
        %3334 = vmatpush.msra.mxu0 %v3321
        %3335 = vmatpush.msra.mxu0 %v3320
        %3336 = vmatpush.msra.mxu0 %v3319
        %3337 = vmatpush.msra.mxu0 %v3318
        %3338 = vmatpush.msra.mxu0 %v3317
        %3339 = vmatpush.msra.mxu0 %v3316
        %3340 = vmatpush.msra.mxu0 %v3315
        %3341 = vmatpush.msra.mxu0 %v3314
        %3342 = vmatpush.msra.mxu0 %v3313
        %3343 = vmatpush.msra.mxu0 %v3312
        %3344 = vmatpush.msra.mxu0 %v3311
        %3345 = vmatpush.msra.mxu0 %v3310
        %3346 = vmatmul.f32.gmra.mxu0 %v3309
        %v3347 = vpop.f32.mrf.mxu0
        %v3348 = vadd.f32 %v3328, %v3347
        %3349 = vdwg.mxu0
        %v3350 = vmax.f32 %v3348, 0.0
        %v3351 = vld [vmem:[%s7] sm:$0xff]
        %v3352 = vld [vmem:[%s7 + $0x8] sm:$0xff]
        %v3353 = vld [vmem:[%s7 + $0x10] sm:$0xff]
        %v3354 = vld [vmem:[%s7 + $0x18] sm:$0xff]
        %v3355 = vld [vmem:[%s7 + $0x20] sm:$0xff]
        %v3356 = vld [vmem:[%s7 + $0x28] sm:$0xff]
        %v3357 = vld [vmem:[%s7 + $0x30] sm:$0xff]
        %v3358 = vld [vmem:[%s7 + $0x38] sm:$0xff]
        %v3359 = vld [vmem:[%s8] sm:$0x1]
        %v3361 = vperm.slane %v3359, 0
        %vm3363 = vcmask 523264
        %v3365 = vsel %vm3363, %v3350, 0
        %3367 = vmatpush.msra.mxu0 0.0
        %3368 = vmatpush.msra.mxu0 0.0
        %3369 = vmatpush.msra.mxu0 0.0
        %3370 = vmatpush.msra.mxu0 0.0
        %3371 = vmatpush.msra.mxu0 0.0
        %3372 = vmatpush.msra.mxu0 0.0
        %3373 = vmatpush.msra.mxu0 0.0
        %3374 = vmatpush.msra.mxu0 0.0
        %3375 = vmatpush.msra.mxu0 %v3358
        %3376 = vmatpush.msra.mxu0 %v3357
        %3377 = vmatpush.msra.mxu0 %v3356
        %3378 = vmatpush.msra.mxu0 %v3355
        %3379 = vmatpush.msra.mxu0 %v3354
        %3380 = vmatpush.msra.mxu0 %v3353
        %3381 = vmatpush.msra.mxu0 %v3352
        %3382 = vmatpush.msra.mxu0 %v3351
        %3383 = vmatmul.f32.gmra.mxu0 %v3365
        %v3384 = vpop.f32.mrf.mxu0
        %v3385 = vadd.f32 %v3361, %v3384
        %3386 = vdwg.mxu0
        %vm3387 = vcmask 80896
        %3388 = vst.msk [vmem:[%s325] sm:$0xff] %vm3387, %v3385
        %s3389 = sand.u32 %s225, 1
        %s3390 = scalar_lea.sflag [#allocation4], %s3389
        %s3391 = sand.u32 %s225, 1
        %s3392 = smul.addr %s3391, 8
        %s3393 = scalar_lea.vmem [#allocation3], %s3392
        // Predicated region
        $region57: #{cifar_convo_forward.3} parent=55 // pred_check
          %p3394 = pneg %p235
        $region58: #{cifar_convo_forward.3} parent=55 // pred_check_branch
          %3396 = sbr.rel (%p3394) target = $region60
        $region59: #{cifar_convo_forward.3} parent=55 // pred_region
          %3398 = vsyncadd %s3390, 0
          %s3399 = smul.addr %s23, 8
          %s3400 = scalar_lea.hbm %s9, %s3399
          %s3402 = sshll.u32 %s3393, 4
          %s3403 = int_to_ptr.vmem [resolvable:$true] %s3402
          %s3404 = sshll.u32 %s3400, 4
          %s3405 = int_to_ptr.hbm [resolvable:$true] %s3404
          %3407 = dma.vmem_to_hbm [thread:$0]  %s3403, 128, %s3405, %s3390
        $region60: #{cifar_convo_forward.3} parent=55 // pred_fallthru
          _
      $region56: #{cifar_convo_forward.3} parent=5 // pred_fallthru
        _
      %p3408 = scmp.le.s32.totalorder 2, %s18
      // Predicated region
      $region61: #{cifar_convo_forward.3} parent=5 // pred_check
        %p3409 = pneg %p3408
      $region62: #{cifar_convo_forward.3} parent=5 // pred_check_branch
        %3411 = sbr.rel (%p3409) target = $region64
      $region63: #{cifar_convo_forward.3} parent=5 // pred_region
        %s3412 = ssub.s32 %s18, 2
        // Predicated region
        $region65: #{cifar_convo_forward.3} parent=63 // pred_check
          %p3413 = pneg %p241
        $region66: #{cifar_convo_forward.3} parent=63 // pred_check_branch
          %3415 = sbr.rel (%p3413) target = $region68
        $region67: #{cifar_convo_forward.3} parent=63 // pred_region
          %s3416 = sand.u32 %s226, 1
          %s3417 = scalar_lea.sflag [#allocation4], %s3416
          %s3418 = sand.u32 %s226, 1
          %s3419 = smul.addr %s3418, 8
          %s3420 = scalar_lea.vmem [#allocation3], %s3419
          %3422 = dma.done %s3417, 128
        $region68: #{cifar_convo_forward.3} parent=63 // pred_fallthru
          _
      $region64: #{cifar_convo_forward.3} parent=5 // pred_fallthru
        _
    $region6: #{cifar_convo_forward.3} parent=1 // loop_footer
      %s22 = sadd.s32 1, %s18
    $region7: #{cifar_convo_forward.3} parent=1 // loop_footer_branch
      %17 = sbr.rel target = $region3
    $region8: #{cifar_convo_forward.3} parent=1 // loop_exit
      _
    %3423 = vsyncpa [#allocation4], 1
    %s3424 = scalar_lea.sflag [#allocation4], 1
    %3425 = vsyncpa %s3424, 1

</llo_original>
